<compile_context>
chip_gen: v7x
topology: tpu7x:2x2x1
jax: 0.10.0
libtpu: 0.0.40
codegen_flags: <defaults>
</compile_context>

<pallas_src>
import jax
import jax.numpy as jnp
from jax.experimental import pallas as pl
from jax.experimental.pallas import tpu as pltpu

D_BERT = 768
D_IN = D_BERT * 3                        # concat of del / add / message CLS features
MLP_DIMS = [D_IN, 1024, 256, 64, 8, 2]   # nn.Sequential Linear sizes (true, unpadded)


# ----------------------------- Pallas kernel --------------------------------
def mlp_head_kernel(xd_ref, xa_ref, xm_ref,
                    w1a, w1b, w1c, w2, w3, w4, w5,
                    bias_ref, o_ref):
    """5-layer MLP head, ReLU after every Linear (dropout = identity in eval).

    Activations arrive as f32 and are cast to bf16 in-kernel; matmuls use bf16
    MXU inputs with f32 accumulation.  Weights are bf16, resident in VMEM
    (single-buffered) across the batch grid.  bias_ref: (8, 1024) f32; row i
    holds the zero-padded bias of layer i+1.  Tail layers are zero-padded to
    128 output lanes; padding is exact (zero cols + zero bias + ReLU).
    """
    xd = xd_ref[...].astype(jnp.bfloat16)
    xa = xa_ref[...].astype(jnp.bfloat16)
    xm = xm_ref[...].astype(jnp.bfloat16)

    # ---- layer 1: 2304 -> 1024, sum of three 768-K dots (exact equivalent
    #      of dot(concat(xd, xa, xm), W1)) ----------------------------------
    h = jnp.dot(xd, w1a[...], preferred_element_type=jnp.float32)
    h = h + jnp.dot(xa, w1b[...], preferred_element_type=jnp.float32)
    h = h + jnp.dot(xm, w1c[...], preferred_element_type=jnp.float32)
    h = jnp.maximum(h + bias_ref[0:1, :], 0.0)                      # (B, 1024)

    # ---- layer 2: 1024 -> 256 ---------------------------------------------
    h = jnp.dot(h.astype(jnp.bfloat16), w2[...],
                preferred_element_type=jnp.float32)
    h = jnp.maximum(h + bias_ref[1:2, :256], 0.0)                   # (B, 256)

    # ---- layer 3: 256 -> 64 (padded to 128 lanes) --------------------------
    h = jnp.dot(h.astype(jnp.bfloat16), w3[...],
                preferred_element_type=jnp.float32)
    h = jnp.maximum(h + bias_ref[2:3, :128], 0.0)                   # (B, 128)

    # ---- layer 4: 64 -> 8 (padded to 128 x 128) ----------------------------
    h = jnp.dot(h.astype(jnp.bfloat16), w4[...],
                preferred_element_type=jnp.float32)
    h = jnp.maximum(h + bias_ref[3:4, :128], 0.0)                   # (B, 128)

    # ---- layer 5: 8 -> 2 (padded to 128 x 128, lane-dense output) ----------
    h = jnp.dot(h.astype(jnp.bfloat16), w5[...],
                preferred_element_type=jnp.float32)
    h = jnp.maximum(h + bias_ref[4:5, :128], 0.0)                   # (B, 128)

    o_ref[...] = h.astype(o_ref.dtype)


# ----------------------------- host wrapper ----------------------------------
def _pad_to(a, shape):
    return jnp.pad(a, [(0, t - s) for s, t in zip(a.shape, shape)])


def _round_up(x, m):
    return ((x + m - 1) // m) * m


def mlp_head(x_del, x_add, x_msg, params, *, tile_b=256):
    """x_*: (B, 768) f32 features; params: list of (w:(din,dout), b:(dout,)) f32.

    Note: weights are consumed as (din, dout) with h @ W.  A real PyTorch
    nn.Linear checkpoint stores (dout, din) and must be transposed on load.
    """
    B = x_del.shape[0]
    (w1, b1), (w2, b2), (w3, b3), (w4, b4), (w5, b5) = params

    # --- bf16 weights; split W1 rows to match the three un-concatenated inputs
    w1a = w1[:D_BERT].astype(jnp.bfloat16)                    # (768, 1024)
    w1b = w1[D_BERT:2 * D_BERT].astype(jnp.bfloat16)          # (768, 1024)
    w1c = w1[2 * D_BERT:].astype(jnp.bfloat16)                # (768, 1024)
    w2p = w2.astype(jnp.bfloat16)                             # (1024, 256)
    w3p = _pad_to(w3, (256, 128)).astype(jnp.bfloat16)        # 64  -> 128 cols
    w4p = _pad_to(w4, (128, 128)).astype(jnp.bfloat16)        # (64, 8)  -> (128, 128)
    w5p = _pad_to(w5, (128, 128)).astype(jnp.bfloat16)        # (8, 2)   -> (128, 128)

    # --- coalesce the 5 biases into one (8, 1024) f32 buffer (zero-padded)
    bias = jnp.zeros((8, 1024), jnp.float32)
    bias = bias.at[0, :1024].set(b1)
    bias = bias.at[1, :256].set(b2)
    bias = bias.at[2, :64].set(b3)
    bias = bias.at[3, :8].set(b4)
    bias = bias.at[4, :2].set(b5)

    # --- megacore-aware batch tiling -----------------------------------------
    B8 = _round_up(max(B, 1), 8)
    if B8 <= 8:
        TILE_B = 8                                   # can't split further
    elif B8 <= 2 * tile_b:
        # moderate batch: aim for >= 2 grid steps so the "parallel" batch axis
        # actually shards across both TensorCores on v7x megacore
        TILE_B = max(8, _round_up(pl.cdiv(B8, 2), 8))
    else:
        TILE_B = tile_b                              # large batch: big MXU tiles
    B_pad = _round_up(B, TILE_B)

    def prep_x(x):
        x = x.astype(jnp.float32)                    # no host-side bf16 pass
        if B_pad != B:
            x = jnp.pad(x, ((0, B_pad - B), (0, 0)))
        return x

    xd, xa, xm = prep_x(x_del), prep_x(x_add), prep_x(x_msg)

    act_spec = pl.BlockSpec((TILE_B, D_BERT), lambda i: (i, 0))

    def resident(shape):
        # full-array block, constant index map -> never re-DMA'd; single-buffer
        # it so the pipeline does not allocate a useless second VMEM copy.
        return pl.BlockSpec(shape, lambda i: (0, 0),
                            pipeline_mode=pl.Buffered(1))

    # --- advisory cost estimate (helps XLA schedule around the custom call)
    flops = 2 * B_pad * (D_IN * 1024 + 1024 * 256 + 256 * 128
                         + 128 * 128 + 128 * 128)
    weight_bytes = (3 * D_BERT * 1024 + 1024 * 256 + 256 * 128
                    + 2 * 128 * 128) * 2 + 8 * 1024 * 4
    bytes_accessed = weight_bytes + 3 * B_pad * D_BERT * 4 + B_pad * 128 * 2

    out = pl.pallas_call(
        mlp_head_kernel,
        out_shape=jax.ShapeDtypeStruct((B_pad, 128), jnp.bfloat16),
        grid_spec=pltpu.PrefetchScalarGridSpec(
            num_scalar_prefetch=0,
            grid=(B_pad // TILE_B,),
            in_specs=[act_spec, act_spec, act_spec,
                      resident((D_BERT, 1024)),
                      resident((D_BERT, 1024)),
                      resident((D_BERT, 1024)),
                      resident((1024, 256)),
                      resident((256, 128)),
                      resident((128, 128)),
                      resident((128, 128)),
                      resident((8, 1024))],
            out_specs=pl.BlockSpec((TILE_B, 128), lambda i: (i, 0)),
        ),
        compiler_params=pltpu.CompilerParams(
            dimension_semantics=("parallel",),
            vmem_limit_bytes=32 << 20),
        cost_estimate=pl.CostEstimate(flops=flops, transcendentals=0,
                                      bytes_accessed=bytes_accessed),
    )(xd, xa, xm, w1a, w1b, w1c, w2p, w3p, w4p, w5p, bias)

    # Lane-dense bf16 kernel output -> tiny (B, 2) f32 logits.
    return out[:B, :MLP_DIMS[-1]].astype(jnp.float32)


# ------------------------------ JAX glue -------------------------------------
def bert_cls_stub(ids, mask, emb_table):
    """Deterministic stand-in for a BERT encoder's [CLS] (position-0) output.

    # TODO(synk): the full pretrained transformer encoders (bert1.roberta /
    # bert2) have no clean Pallas equivalent here; masked mean of token
    # embeddings is used as the 768-d sequence feature instead.
    """
    e = emb_table[ids]                                    # (B, S, 768)
    m = mask[..., None].astype(jnp.float32)               # (B, S, 1)
    return (e * m).sum(axis=1) / jnp.maximum(m.sum(axis=1), 1.0)  # (B, 768)


def vul_classifier_forward(del_id, add_id, message_id,
                           del_mask, add_mask, message_mask,
                           emb_code, emb_msg, mlp_params):
    output_del = bert_cls_stub(del_id, del_mask, emb_code)             # bert1
    output_add = bert_cls_stub(add_id, add_mask, emb_code)             # bert1 (shared)
    output_message = bert_cls_stub(message_id, message_mask, emb_msg)  # bert2
    # no HBM concat: the three features feed the kernel directly; layer 1 is
    # the exact sum-of-slices equivalent of dot(concat(...), W1).
    return mlp_head(output_del, output_add, output_message, mlp_params)  # (B, 2)


# --------------------------------- main ---------------------------------------
if __name__ == "__main__":
    B, S, V = 2, 8, 1000
    key = jax.random.PRNGKey(0)
    keys = jax.random.split(key, 32)

    # Deterministic stand-in embedding tables for the two encoders.
    emb_code = 0.02 * jax.random.normal(keys[0], (V, D_BERT), jnp.float32)
    emb_msg = 0.02 * jax.random.normal(keys[1], (V, D_BERT), jnp.float32)

    # MLP head parameters (PyTorch-style uniform(-1/sqrt(fan_in), 1/sqrt(fan_in))).
    mlp_params = []
    ki = 2
    for din, dout in zip(MLP_DIMS[:-1], MLP_DIMS[1:]):
        bound = 1.0 / (din ** 0.5)
        w = jax.random.uniform(keys[ki], (din, dout), jnp.float32, -bound, bound)
        ki += 1
        b = jax.random.uniform(keys[ki], (dout,), jnp.float32, -bound, bound)
        ki += 1
        mlp_params.append((w, b))

    # Token ids + attention masks (the module's forward signature).
    del_id = jax.random.randint(keys[ki], (B, S), 0, V); ki += 1
    add_id = jax.random.randint(keys[ki], (B, S), 0, V); ki += 1
    message_id = jax.random.randint(keys[ki], (B, S), 0, V); ki += 1
    del_mask = jnp.ones((B, S), jnp.int32)
    add_mask = jnp.ones((B, S), jnp.int32)
    message_mask = jnp.ones((B, S), jnp.int32)

    out = vul_classifier_forward(del_id, add_id, message_id,
                                 del_mask, add_mask, message_mask,
                                 emb_code, emb_msg, mlp_params)
    out = jax.block_until_ready(out)
    assert out.shape == (B, 2) and out.dtype == jnp.float32
    assert bool(jnp.all(out >= 0.0))      # final ReLU => non-negative logits
    print("KERNEL_OK")
</pallas_src>

<mosaic_0001>
module attributes {stable_mosaic.version = 11 : i64} {
  func.func @mlp_head_kernel(%arg0: i32, %arg1: memref<8x768xf32, #tpu.memory_space<vmem>>, %arg2: memref<8x768xf32, #tpu.memory_space<vmem>>, %arg3: memref<8x768xf32, #tpu.memory_space<vmem>>, %arg4: memref<768x1024xbf16, #tpu.memory_space<vmem>>, %arg5: memref<768x1024xbf16, #tpu.memory_space<vmem>>, %arg6: memref<768x1024xbf16, #tpu.memory_space<vmem>>, %arg7: memref<1024x256xbf16, #tpu.memory_space<vmem>>, %arg8: memref<256x128xbf16, #tpu.memory_space<vmem>>, %arg9: memref<128x128xbf16, #tpu.memory_space<vmem>>, %arg10: memref<128x128xbf16, #tpu.memory_space<vmem>>, %arg11: memref<8x1024xf32, #tpu.memory_space<vmem>>, %arg12: memref<8x128xbf16, #tpu.memory_space<vmem>>) attributes {dimension_semantics = [#tpu.dimension_semantics<parallel>], iteration_bounds = array<i64: 1>, scalar_prefetch = 0 : i64, scratch_operands = 0 : i64, tpu.core_type = #tpu.core_type<tc>, window_params = [{transform_indices = @transform_0, window_bounds = array<i64: 8, 768>}, {transform_indices = @transform_1, window_bounds = array<i64: 8, 768>}, {transform_indices = @transform_2, window_bounds = array<i64: 8, 768>}, {pipeline_mode = #tpu.pipeline_mode<synchronous>, transform_indices = @transform_3, window_bounds = array<i64: 768, 1024>}, {pipeline_mode = #tpu.pipeline_mode<synchronous>, transform_indices = @transform_4, window_bounds = array<i64: 768, 1024>}, {pipeline_mode = #tpu.pipeline_mode<synchronous>, transform_indices = @transform_5, window_bounds = array<i64: 768, 1024>}, {pipeline_mode = #tpu.pipeline_mode<synchronous>, transform_indices = @transform_6, window_bounds = array<i64: 1024, 256>}, {pipeline_mode = #tpu.pipeline_mode<synchronous>, transform_indices = @transform_7, window_bounds = array<i64: 256, 128>}, {pipeline_mode = #tpu.pipeline_mode<synchronous>, transform_indices = @transform_8, window_bounds = array<i64: 128, 128>}, {pipeline_mode = #tpu.pipeline_mode<synchronous>, transform_indices = @transform_9, window_bounds = array<i64: 128, 128>}, {pipeline_mode = #tpu.pipeline_mode<synchronous>, transform_indices = @transform_10, window_bounds = array<i64: 8, 1024>}, {transform_indices = @transform_11, window_bounds = array<i64: 8, 128>}]} {
    %c0 = arith.constant 0 : index
    %c0_0 = arith.constant 0 : index
    %0 = vector.load %arg1[%c0, %c0_0] : memref<8x768xf32, #tpu.memory_space<vmem>>, vector<8x768xf32>
    %1 = arith.truncf %0 : vector<8x768xf32> to vector<8x768xbf16>
    %c0_1 = arith.constant 0 : index
    %c0_2 = arith.constant 0 : index
    %2 = vector.load %arg2[%c0_1, %c0_2] : memref<8x768xf32, #tpu.memory_space<vmem>>, vector<8x768xf32>
    %3 = arith.truncf %2 : vector<8x768xf32> to vector<8x768xbf16>
    %c0_3 = arith.constant 0 : index
    %c0_4 = arith.constant 0 : index
    %4 = vector.load %arg3[%c0_3, %c0_4] : memref<8x768xf32, #tpu.memory_space<vmem>>, vector<8x768xf32>
    %5 = arith.truncf %4 : vector<8x768xf32> to vector<8x768xbf16>
    %c0_5 = arith.constant 0 : index
    %c0_6 = arith.constant 0 : index
    %6 = vector.load %arg4[%c0_5, %c0_6] : memref<768x1024xbf16, #tpu.memory_space<vmem>>, vector<768x1024xbf16>
    %cst = arith.constant dense<0.000000e+00> : vector<8x1024xf32>
    %7 = tpu.matmul %1, %6, %cst {dimension_numbers = #tpu.dot_dimension_numbers<[1], [0], [0], [1], [0, 0, 1, 1], [], []>} : vector<8x768xbf16>, vector<768x1024xbf16>, vector<8x1024xf32> -> vector<8x1024xf32>
    %c0_7 = arith.constant 0 : index
    %c0_8 = arith.constant 0 : index
    %8 = vector.load %arg5[%c0_7, %c0_8] : memref<768x1024xbf16, #tpu.memory_space<vmem>>, vector<768x1024xbf16>
    %cst_9 = arith.constant dense<0.000000e+00> : vector<8x1024xf32>
    %9 = tpu.matmul %3, %8, %cst_9 {dimension_numbers = #tpu.dot_dimension_numbers<[1], [0], [0], [1], [0, 0, 1, 1], [], []>} : vector<8x768xbf16>, vector<768x1024xbf16>, vector<8x1024xf32> -> vector<8x1024xf32>
    %10 = arith.addf %7, %9 : vector<8x1024xf32>
    %c0_10 = arith.constant 0 : index
    %c0_11 = arith.constant 0 : index
    %11 = vector.load %arg6[%c0_10, %c0_11] : memref<768x1024xbf16, #tpu.memory_space<vmem>>, vector<768x1024xbf16>
    %cst_12 = arith.constant dense<0.000000e+00> : vector<8x1024xf32>
    %12 = tpu.matmul %5, %11, %cst_12 {dimension_numbers = #tpu.dot_dimension_numbers<[1], [0], [0], [1], [0, 0, 1, 1], [], []>} : vector<8x768xbf16>, vector<768x1024xbf16>, vector<8x1024xf32> -> vector<8x1024xf32>
    %13 = arith.addf %10, %12 : vector<8x1024xf32>
    %c0_13 = arith.constant 0 : index
    %c0_14 = arith.constant 0 : index
    %14 = vector.load %arg11[%c0_13, %c0_14] : memref<8x1024xf32, #tpu.memory_space<vmem>>, vector<1x1024xf32>
    %15 = vector.broadcast %14 : vector<1x1024xf32> to vector<8x1024xf32>
    %16 = arith.addf %13, %15 : vector<8x1024xf32>
    %cst_15 = arith.constant 0.000000e+00 : f32
    %17 = vector.broadcast %cst_15 : f32 to vector<8x1024xf32>
    %18 = arith.maximumf %16, %17 : vector<8x1024xf32>
    %19 = arith.truncf %18 : vector<8x1024xf32> to vector<8x1024xbf16>
    %c0_16 = arith.constant 0 : index
    %c0_17 = arith.constant 0 : index
    %20 = vector.load %arg7[%c0_16, %c0_17] : memref<1024x256xbf16, #tpu.memory_space<vmem>>, vector<1024x256xbf16>
    %cst_18 = arith.constant dense<0.000000e+00> : vector<8x256xf32>
    %21 = tpu.matmul %19, %20, %cst_18 {dimension_numbers = #tpu.dot_dimension_numbers<[1], [0], [0], [1], [0, 0, 1, 1], [], []>} : vector<8x1024xbf16>, vector<1024x256xbf16>, vector<8x256xf32> -> vector<8x256xf32>
    %c1 = arith.constant 1 : index
    %c0_19 = arith.constant 0 : index
    %22 = vector.load %arg11[%c1, %c0_19] : memref<8x1024xf32, #tpu.memory_space<vmem>>, vector<1x256xf32>
    %23 = vector.broadcast %22 : vector<1x256xf32> to vector<8x256xf32>
    %24 = arith.addf %21, %23 : vector<8x256xf32>
    %cst_20 = arith.constant 0.000000e+00 : f32
    %25 = vector.broadcast %cst_20 : f32 to vector<8x256xf32>
    %26 = arith.maximumf %24, %25 : vector<8x256xf32>
    %27 = arith.truncf %26 : vector<8x256xf32> to vector<8x256xbf16>
    %c0_21 = arith.constant 0 : index
    %c0_22 = arith.constant 0 : index
    %28 = vector.load %arg8[%c0_21, %c0_22] : memref<256x128xbf16, #tpu.memory_space<vmem>>, vector<256x128xbf16>
    %cst_23 = arith.constant dense<0.000000e+00> : vector<8x128xf32>
    %29 = tpu.matmul %27, %28, %cst_23 {dimension_numbers = #tpu.dot_dimension_numbers<[1], [0], [0], [1], [0, 0, 1, 1], [], []>} : vector<8x256xbf16>, vector<256x128xbf16>, vector<8x128xf32> -> vector<8x128xf32>
    %c2 = arith.constant 2 : index
    %c0_24 = arith.constant 0 : index
    %30 = vector.load %arg11[%c2, %c0_24] : memref<8x1024xf32, #tpu.memory_space<vmem>>, vector<1x128xf32>
    %31 = vector.broadcast %30 : vector<1x128xf32> to vector<8x128xf32>
    %32 = arith.addf %29, %31 : vector<8x128xf32>
    %cst_25 = arith.constant 0.000000e+00 : f32
    %33 = vector.broadcast %cst_25 : f32 to vector<8x128xf32>
    %34 = arith.maximumf %32, %33 : vector<8x128xf32>
    %35 = arith.truncf %34 : vector<8x128xf32> to vector<8x128xbf16>
    %c0_26 = arith.constant 0 : index
    %c0_27 = arith.constant 0 : index
    %36 = vector.load %arg9[%c0_26, %c0_27] : memref<128x128xbf16, #tpu.memory_space<vmem>>, vector<128x128xbf16>
    %cst_28 = arith.constant dense<0.000000e+00> : vector<8x128xf32>
    %37 = tpu.matmul %35, %36, %cst_28 {dimension_numbers = #tpu.dot_dimension_numbers<[1], [0], [0], [1], [0, 0, 1, 1], [], []>} : vector<8x128xbf16>, vector<128x128xbf16>, vector<8x128xf32> -> vector<8x128xf32>
    %c3 = arith.constant 3 : index
    %c0_29 = arith.constant 0 : index
    %38 = vector.load %arg11[%c3, %c0_29] : memref<8x1024xf32, #tpu.memory_space<vmem>>, vector<1x128xf32>
    %39 = vector.broadcast %38 : vector<1x128xf32> to vector<8x128xf32>
    %40 = arith.addf %37, %39 : vector<8x128xf32>
    %cst_30 = arith.constant 0.000000e+00 : f32
    %41 = vector.broadcast %cst_30 : f32 to vector<8x128xf32>
    %42 = arith.maximumf %40, %41 : vector<8x128xf32>
    %43 = arith.truncf %42 : vector<8x128xf32> to vector<8x128xbf16>
    %c0_31 = arith.constant 0 : index
    %c0_32 = arith.constant 0 : index
    %44 = vector.load %arg10[%c0_31, %c0_32] : memref<128x128xbf16, #tpu.memory_space<vmem>>, vector<128x128xbf16>
    %cst_33 = arith.constant dense<0.000000e+00> : vector<8x128xf32>
    %45 = tpu.matmul %43, %44, %cst_33 {dimension_numbers = #tpu.dot_dimension_numbers<[1], [0], [0], [1], [0, 0, 1, 1], [], []>} : vector<8x128xbf16>, vector<128x128xbf16>, vector<8x128xf32> -> vector<8x128xf32>
    %c4 = arith.constant 4 : index
    %c0_34 = arith.constant 0 : index
    %46 = vector.load %arg11[%c4, %c0_34] : memref<8x1024xf32, #tpu.memory_space<vmem>>, vector<1x128xf32>
    %47 = vector.broadcast %46 : vector<1x128xf32> to vector<8x128xf32>
    %48 = arith.addf %45, %47 : vector<8x128xf32>
    %cst_35 = arith.constant 0.000000e+00 : f32
    %49 = vector.broadcast %cst_35 : f32 to vector<8x128xf32>
    %50 = arith.maximumf %48, %49 : vector<8x128xf32>
    %51 = arith.truncf %50 : vector<8x128xf32> to vector<8x128xbf16>
    %c0_36 = arith.constant 0 : index
    %c0_37 = arith.constant 0 : index
    %52 = vector.load %arg12[%c0_36, %c0_37] : memref<8x128xbf16, #tpu.memory_space<vmem>>, vector<8x128xbf16>
    tpu.vector_store %arg12[%c0_36, %c0_37], %51 {strides = array<i32>} : memref<8x128xbf16, #tpu.memory_space<vmem>>, vector<8x128xbf16>,
    return
  }
  func.func @transform_0(%arg0: i32) -> (i32, i32) {
    %c0_i32 = arith.constant 0 : i32
    %c0_i32_0 = arith.constant 0 : i32
    return %arg0, %c0_i32 : i32, i32
  }
  func.func @transform_1(%arg0: i32) -> (i32, i32) {
    %c0_i32 = arith.constant 0 : i32
    %c0_i32_0 = arith.constant 0 : i32
    return %arg0, %c0_i32 : i32, i32
  }
  func.func @transform_2(%arg0: i32) -> (i32, i32) {
    %c0_i32 = arith.constant 0 : i32
    %c0_i32_0 = arith.constant 0 : i32
    return %arg0, %c0_i32 : i32, i32
  }
  func.func @transform_3(%arg0: i32) -> (i32, i32) {
    %c0_i32 = arith.constant 0 : i32
    %c0_i32_0 = arith.constant 0 : i32
    %c0_i32_1 = arith.constant 0 : i32
    return %c0_i32, %c0_i32_0 : i32, i32
  }
  func.func @transform_4(%arg0: i32) -> (i32, i32) {
    %c0_i32 = arith.constant 0 : i32
    %c0_i32_0 = arith.constant 0 : i32
    %c0_i32_1 = arith.constant 0 : i32
    return %c0_i32, %c0_i32_0 : i32, i32
  }
  func.func @transform_5(%arg0: i32) -> (i32, i32) {
    %c0_i32 = arith.constant 0 : i32
    %c0_i32_0 = arith.constant 0 : i32
    %c0_i32_1 = arith.constant 0 : i32
    return %c0_i32, %c0_i32_0 : i32, i32
  }
  func.func @transform_6(%arg0: i32) -> (i32, i32) {
    %c0_i32 = arith.constant 0 : i32
    %c0_i32_0 = arith.constant 0 : i32
    %c0_i32_1 = arith.constant 0 : i32
    return %c0_i32, %c0_i32_0 : i32, i32
  }
  func.func @transform_7(%arg0: i32) -> (i32, i32) {
    %c0_i32 = arith.constant 0 : i32
    %c0_i32_0 = arith.constant 0 : i32
    %c0_i32_1 = arith.constant 0 : i32
    return %c0_i32, %c0_i32_0 : i32, i32
  }
  func.func @transform_8(%arg0: i32) -> (i32, i32) {
    %c0_i32 = arith.constant 0 : i32
    %c0_i32_0 = arith.constant 0 : i32
    %c0_i32_1 = arith.constant 0 : i32
    return %c0_i32, %c0_i32_0 : i32, i32
  }
  func.func @transform_9(%arg0: i32) -> (i32, i32) {
    %c0_i32 = arith.constant 0 : i32
    %c0_i32_0 = arith.constant 0 : i32
    %c0_i32_1 = arith.constant 0 : i32
    return %c0_i32, %c0_i32_0 : i32, i32
  }
  func.func @transform_10(%arg0: i32) -> (i32, i32) {
    %c0_i32 = arith.constant 0 : i32
    %c0_i32_0 = arith.constant 0 : i32
    %c0_i32_1 = arith.constant 0 : i32
    return %c0_i32, %c0_i32_0 : i32, i32
  }
  func.func @transform_11(%arg0: i32) -> (i32, i32) {
    %c0_i32 = arith.constant 0 : i32
    %c0_i32_0 = arith.constant 0 : i32
    return %arg0, %c0_i32 : i32, i32
  }
}

</mosaic_0001>

<llo_original>
// kernel: tpu_custom_call.1
$region0: #{tpu_custom_call.1}
  #allocation0 [shape = 'u32[]', space=smem, size = 0x4, offset = 0x4, fixed_abs, tag = 'smem constant byte address 0x4 - core index']
  #allocation1 [shape = 'u32[144,128]{1,0:T(1,128)}', space=vmem, size = 0x12000, scoped, tag = 'internal scratch']
  %s0 = inlined_call_operand.hbm [shape: f32[8,768], index: 0, kind: input, shape index: {}]
  %s1 = inlined_call_operand.hbm [shape: f32[8,768], index: 1, kind: input, shape index: {}]
  %s2 = inlined_call_operand.hbm [shape: f32[8,768], index: 2, kind: input, shape index: {}]
  %s3 = inlined_call_operand.hbm [shape: bf16[768,1024], index: 3, kind: input, shape index: {}]
  %s4 = inlined_call_operand.hbm [shape: bf16[768,1024], index: 4, kind: input, shape index: {}]
  %s5 = inlined_call_operand.hbm [shape: bf16[768,1024], index: 5, kind: input, shape index: {}]
  %s6 = inlined_call_operand.hbm [shape: bf16[1024,256], index: 6, kind: input, shape index: {}]
  %s7 = inlined_call_operand.hbm [shape: bf16[256,128], index: 7, kind: input, shape index: {}]
  %s8 = inlined_call_operand.hbm [shape: bf16[128,128], index: 8, kind: input, shape index: {}]
  %s9 = inlined_call_operand.hbm [shape: bf16[128,128], index: 9, kind: input, shape index: {}]
  %s10 = inlined_call_operand.hbm [shape: f32[8,1024], index: 10, kind: input, shape index: {}]
  %s11 = inlined_call_operand.hbm [shape: bf16[8,128], index: 11, kind: output, shape index: {}]
  %s12 = sld [smem:[#allocation0]]
  $region98: #{tpu_custom_call.1} parent=0
    _
  %s14 = ssub.s32 1, %s12
  %s15 = scalar_select 0, %s14, %s12
  $region1: #{tpu_custom_call.1} parent=0
    #allocation2 [shape = 'u8[24576]{0}', space=vmem, size = 0x6000, scoped, tag = 'input window, operand 0, single buffered']
    #allocation3 [shape = 's32[1]{0}', space=sflag, size = 0x4, scoped, tag = 'scoped memory for tpu_custom_call.1']
    #allocation4 [shape = 's32[1]{0}', space=sflag, size = 0x4, scoped, tag = 'scoped memory for tpu_custom_call.1']
    #allocation5 [shape = 'u8[24576]{0}', space=vmem, size = 0x6000, scoped, tag = 'input window, operand 1, single buffered']
    #allocation6 [shape = 's32[1]{0}', space=sflag, size = 0x4, scoped, tag = 'scoped memory for tpu_custom_call.1']
    #allocation7 [shape = 'u8[24576]{0}', space=vmem, size = 0x6000, scoped, tag = 'input window, operand 2, single buffered']
    #allocation8 [shape = 'u8[1572864]{0}', space=vmem, size = 0x180000, scoped, tag = 'input window, operand 3, single buffered']
    #allocation9 [shape = 's32[1]{0}', space=sflag, size = 0x4, scoped, tag = 'scoped memory for tpu_custom_call.1']
    #allocation10 [shape = 'u8[1572864]{0}', space=vmem, size = 0x180000, scoped, tag = 'input window, operand 4, single buffered']
    #allocation11 [shape = 'u8[1572864]{0}', space=vmem, size = 0x180000, scoped, tag = 'input window, operand 5, single buffered']
    #allocation12 [shape = 's32[1]{0}', space=sflag, size = 0x4, scoped, tag = 'scoped memory for tpu_custom_call.1']
    #allocation13 [shape = 'u8[524288]{0}', space=vmem, size = 0x80000, scoped, tag = 'input window, operand 6, single buffered']
    #allocation14 [shape = 'u8[65536]{0}', space=vmem, size = 0x10000, scoped, tag = 'input window, operand 7, single buffered']
    #allocation15 [shape = 's32[1]{0}', space=sflag, size = 0x4, scoped, tag = 'scoped memory for tpu_custom_call.1']
    #allocation16 [shape = 'u8[32768]{0}', space=vmem, size = 0x8000, scoped, tag = 'input window, operand 8, single buffered']
    #allocation17 [shape = 'u8[32768]{0}', space=vmem, size = 0x8000, scoped, tag = 'input window, operand 9, single buffered']
    #allocation18 [shape = 's32[1]{0}', space=sflag, size = 0x4, scoped, tag = 'scoped memory for tpu_custom_call.1']
    #allocation19 [shape = 'u8[32768]{0}', space=vmem, size = 0x8000, scoped, tag = 'input window, operand 10, single buffered']
    #allocation20 [shape = 'u8[2048]{0}', space=vmem, size = 0x800, scoped, tag = 'output window, operand 0, single buffered']
    %16 = vsyncpa [#allocation3], 0
    %17 = vsyncpa [#allocation6], 0
    %18 = vsyncpa [#allocation9], 0
    %19 = vsyncpa [#allocation12], 0
    %20 = vsyncpa [#allocation15], 0
    %21 = vsyncpa [#allocation18], 0
    %22 = vsyncpa [#allocation4], 0
    // Predicated region
    $region2: #{tpu_custom_call.1} parent=1 // pred_check
      _
    $region3: #{tpu_custom_call.1} parent=1 // pred_check_branch
      %24 = sbr.rel (0) target = $region5
    $region4: #{tpu_custom_call.1} parent=1 // pred_region
      %s26 = ssub.s32 768, 768
      %27 = vsyncadd [#allocation3], %s26
      %s29 = sshll.u32 [#allocation2], 4
      %s30 = int_to_ptr.vmem [resolvable:$true] %s29
      %32 = dma.hbm_to_vmem [thread:$0]  %s0, 768, %s30, [#allocation3]
    $region5: #{tpu_custom_call.1} parent=1 // pred_fallthru
      _
    // Predicated region
    $region6: #{tpu_custom_call.1} parent=1 // pred_check
      _
    $region7: #{tpu_custom_call.1} parent=1 // pred_check_branch
      %34 = sbr.rel (0) target = $region9
    $region8: #{tpu_custom_call.1} parent=1 // pred_region
      %s36 = ssub.s32 768, 768
      %37 = vsyncadd [#allocation6], %s36
      %s39 = sshll.u32 [#allocation5], 4
      %s40 = int_to_ptr.vmem [resolvable:$true] %s39
      %42 = dma.hbm_to_vmem [thread:$0]  %s1, 768, %s40, [#allocation6]
    $region9: #{tpu_custom_call.1} parent=1 // pred_fallthru
      _
    // Predicated region
    $region10: #{tpu_custom_call.1} parent=1 // pred_check
      _
    $region11: #{tpu_custom_call.1} parent=1 // pred_check_branch
      %44 = sbr.rel (0) target = $region13
    $region12: #{tpu_custom_call.1} parent=1 // pred_region
      %s46 = ssub.s32 768, 768
      %47 = vsyncadd [#allocation6], %s46
      %s49 = sshll.u32 [#allocation7], 4
      %s50 = int_to_ptr.vmem [resolvable:$true] %s49
      %52 = dma.hbm_to_vmem [thread:$0]  %s2, 768, %s50, [#allocation6]
    $region13: #{tpu_custom_call.1} parent=1 // pred_fallthru
      _
    // Predicated region
    $region14: #{tpu_custom_call.1} parent=1 // pred_check
      _
    $region15: #{tpu_custom_call.1} parent=1 // pred_check_branch
      %54 = sbr.rel (0) target = $region17
    $region16: #{tpu_custom_call.1} parent=1 // pred_region
      %s56 = ssub.s32 49152, 49152
      %57 = vsyncadd [#allocation9], %s56
      %s58 = sshll.u32 [#allocation8], 4
      %s59 = int_to_ptr.vmem [resolvable:$true] %s58
      %64 = dma.hbm_to_vmem [thread:$0]  %s3, 49152, %s59, [#allocation9], 512, 512, 32
    $region17: #{tpu_custom_call.1} parent=1 // pred_fallthru
      _
    // Predicated region
    $region18: #{tpu_custom_call.1} parent=1 // pred_check
      _
    $region19: #{tpu_custom_call.1} parent=1 // pred_check_branch
      %66 = sbr.rel (0) target = $region21
    $region20: #{tpu_custom_call.1} parent=1 // pred_region
      %s68 = ssub.s32 49152, 49152
      %69 = vsyncadd [#allocation9], %s68
      %s70 = sshll.u32 [#allocation10], 4
      %s71 = int_to_ptr.vmem [resolvable:$true] %s70
      %76 = dma.hbm_to_vmem [thread:$0]  %s4, 49152, %s71, [#allocation9], 512, 512, 32
    $region21: #{tpu_custom_call.1} parent=1 // pred_fallthru
      _
    // Predicated region
    $region22: #{tpu_custom_call.1} parent=1 // pred_check
      _
    $region23: #{tpu_custom_call.1} parent=1 // pred_check_branch
      %78 = sbr.rel (0) target = $region25
    $region24: #{tpu_custom_call.1} parent=1 // pred_region
      %s80 = ssub.s32 49152, 49152
      %81 = vsyncadd [#allocation12], %s80
      %s82 = sshll.u32 [#allocation11], 4
      %s83 = int_to_ptr.vmem [resolvable:$true] %s82
      %88 = dma.hbm_to_vmem [thread:$0]  %s5, 49152, %s83, [#allocation12], 512, 512, 32
    $region25: #{tpu_custom_call.1} parent=1 // pred_fallthru
      _
    // Predicated region
    $region26: #{tpu_custom_call.1} parent=1 // pred_check
      _
    $region27: #{tpu_custom_call.1} parent=1 // pred_check_branch
      %90 = sbr.rel (0) target = $region29
    $region28: #{tpu_custom_call.1} parent=1 // pred_region
      %s92 = ssub.s32 16384, 16384
      %93 = vsyncadd [#allocation12], %s92
      %s94 = sshll.u32 [#allocation13], 4
      %s95 = int_to_ptr.vmem [resolvable:$true] %s94
      %100 = dma.hbm_to_vmem [thread:$0]  %s6, 16384, %s95, [#allocation12], 128, 128, 8
    $region29: #{tpu_custom_call.1} parent=1 // pred_fallthru
      _
    // Predicated region
    $region30: #{tpu_custom_call.1} parent=1 // pred_check
      _
    $region31: #{tpu_custom_call.1} parent=1 // pred_check_branch
      %102 = sbr.rel (0) target = $region33
    $region32: #{tpu_custom_call.1} parent=1 // pred_region
      %s104 = ssub.s32 2048, 2048
      %105 = vsyncadd [#allocation15], %s104
      %s106 = sshll.u32 [#allocation14], 4
      %s107 = int_to_ptr.vmem [resolvable:$true] %s106
      %112 = dma.hbm_to_vmem [thread:$0]  %s7, 2048, %s107, [#allocation15], 64, 64, 4
    $region33: #{tpu_custom_call.1} parent=1 // pred_fallthru
      _
    // Predicated region
    $region34: #{tpu_custom_call.1} parent=1 // pred_check
      _
    $region35: #{tpu_custom_call.1} parent=1 // pred_check_branch
      %114 = sbr.rel (0) target = $region37
    $region36: #{tpu_custom_call.1} parent=1 // pred_region
      %s116 = ssub.s32 1024, 1024
      %117 = vsyncadd [#allocation15], %s116
      %s118 = sshll.u32 [#allocation16], 4
      %s119 = int_to_ptr.vmem [resolvable:$true] %s118
      %124 = dma.hbm_to_vmem [thread:$0]  %s8, 1024, %s119, [#allocation15], 64, 64, 4
    $region37: #{tpu_custom_call.1} parent=1 // pred_fallthru
      _
    // Predicated region
    $region38: #{tpu_custom_call.1} parent=1 // pred_check
      _
    $region39: #{tpu_custom_call.1} parent=1 // pred_check_branch
      %126 = sbr.rel (0) target = $region41
    $region40: #{tpu_custom_call.1} parent=1 // pred_region
      %s128 = ssub.s32 1024, 1024
      %129 = vsyncadd [#allocation18], %s128
      %s130 = sshll.u32 [#allocation17], 4
      %s131 = int_to_ptr.vmem [resolvable:$true] %s130
      %136 = dma.hbm_to_vmem [thread:$0]  %s9, 1024, %s131, [#allocation18], 64, 64, 4
    $region41: #{tpu_custom_call.1} parent=1 // pred_fallthru
      _
    // Predicated region
    $region42: #{tpu_custom_call.1} parent=1 // pred_check
      _
    $region43: #{tpu_custom_call.1} parent=1 // pred_check_branch
      %138 = sbr.rel (0) target = $region45
    $region44: #{tpu_custom_call.1} parent=1 // pred_region
      %s140 = ssub.s32 1024, 1024
      %141 = vsyncadd [#allocation18], %s140
      %s143 = sshll.u32 [#allocation19], 4
      %s144 = int_to_ptr.vmem [resolvable:$true] %s143
      %146 = dma.hbm_to_vmem [thread:$0]  %s10, 1024, %s144, [#allocation18]
    $region45: #{tpu_custom_call.1} parent=1 // pred_fallthru
      _
    // Predicated region
    $region46: #{tpu_custom_call.1} parent=1 // pred_check
      _
    $region47: #{tpu_custom_call.1} parent=1 // pred_check_branch
      %148 = sbr.rel (0) target = $region49
    $region48: #{tpu_custom_call.1} parent=1 // pred_region
      %149 = dma.done [#allocation3], 768
    $region49: #{tpu_custom_call.1} parent=1 // pred_fallthru
      _
    // Predicated region
    $region50: #{tpu_custom_call.1} parent=1 // pred_check
      _
    $region51: #{tpu_custom_call.1} parent=1 // pred_check_branch
      %151 = sbr.rel (0) target = $region53
    $region52: #{tpu_custom_call.1} parent=1 // pred_region
      %152 = dma.done [#allocation6], 768
    $region53: #{tpu_custom_call.1} parent=1 // pred_fallthru
      _
    // Predicated region
    $region54: #{tpu_custom_call.1} parent=1 // pred_check
      _
    $region55: #{tpu_custom_call.1} parent=1 // pred_check_branch
      %154 = sbr.rel (0) target = $region57
    $region56: #{tpu_custom_call.1} parent=1 // pred_region
      %155 = dma.done [#allocation6], 768
    $region57: #{tpu_custom_call.1} parent=1 // pred_fallthru
      _
    // Predicated region
    $region58: #{tpu_custom_call.1} parent=1 // pred_check
      _
    $region59: #{tpu_custom_call.1} parent=1 // pred_check_branch
      %157 = sbr.rel (0) target = $region61
    $region60: #{tpu_custom_call.1} parent=1 // pred_region
      %158 = dma.done [#allocation9], 49152
    $region61: #{tpu_custom_call.1} parent=1 // pred_fallthru
      _
    // Predicated region
    $region62: #{tpu_custom_call.1} parent=1 // pred_check
      _
    $region63: #{tpu_custom_call.1} parent=1 // pred_check_branch
      %160 = sbr.rel (0) target = $region65
    $region64: #{tpu_custom_call.1} parent=1 // pred_region
      %161 = dma.done [#allocation9], 49152
    $region65: #{tpu_custom_call.1} parent=1 // pred_fallthru
      _
    // Predicated region
    $region66: #{tpu_custom_call.1} parent=1 // pred_check
      _
    $region67: #{tpu_custom_call.1} parent=1 // pred_check_branch
      %163 = sbr.rel (0) target = $region69
    $region68: #{tpu_custom_call.1} parent=1 // pred_region
      %164 = dma.done [#allocation12], 49152
    $region69: #{tpu_custom_call.1} parent=1 // pred_fallthru
      _
    // Predicated region
    $region70: #{tpu_custom_call.1} parent=1 // pred_check
      _
    $region71: #{tpu_custom_call.1} parent=1 // pred_check_branch
      %166 = sbr.rel (0) target = $region73
    $region72: #{tpu_custom_call.1} parent=1 // pred_region
      %167 = dma.done [#allocation12], 16384
    $region73: #{tpu_custom_call.1} parent=1 // pred_fallthru
      _
    // Predicated region
    $region74: #{tpu_custom_call.1} parent=1 // pred_check
      _
    $region75: #{tpu_custom_call.1} parent=1 // pred_check_branch
      %169 = sbr.rel (0) target = $region77
    $region76: #{tpu_custom_call.1} parent=1 // pred_region
      %170 = dma.done [#allocation15], 2048
    $region77: #{tpu_custom_call.1} parent=1 // pred_fallthru
      _
    // Predicated region
    $region78: #{tpu_custom_call.1} parent=1 // pred_check
      _
    $region79: #{tpu_custom_call.1} parent=1 // pred_check_branch
      %172 = sbr.rel (0) target = $region81
    $region80: #{tpu_custom_call.1} parent=1 // pred_region
      %173 = dma.done [#allocation15], 1024
    $region81: #{tpu_custom_call.1} parent=1 // pred_fallthru
      _
    // Predicated region
    $region82: #{tpu_custom_call.1} parent=1 // pred_check
      _
    $region83: #{tpu_custom_call.1} parent=1 // pred_check_branch
      %175 = sbr.rel (0) target = $region85
    $region84: #{tpu_custom_call.1} parent=1 // pred_region
      %176 = dma.done [#allocation18], 1024
    $region85: #{tpu_custom_call.1} parent=1 // pred_fallthru
      _
    // Predicated region
    $region86: #{tpu_custom_call.1} parent=1 // pred_check
      _
    $region87: #{tpu_custom_call.1} parent=1 // pred_check_branch
      %178 = sbr.rel (0) target = $region89
    $region88: #{tpu_custom_call.1} parent=1 // pred_region
      %179 = dma.done [#allocation18], 1024
    $region89: #{tpu_custom_call.1} parent=1 // pred_fallthru
      _
    %v181 = vld [vmem:[#allocation2] sm:$0xff]
    %v182 = vld [vmem:[#allocation2 + $0x8] sm:$0xff]
    %v183 = vld [vmem:[#allocation2 + $0x10] sm:$0xff]
    %v184 = vld [vmem:[#allocation2 + $0x18] sm:$0xff]
    %v185 = vld [vmem:[#allocation2 + $0x20] sm:$0xff]
    %v186 = vld [vmem:[#allocation2 + $0x28] sm:$0xff]
    %v187 = vpack.c.bf16 %v181, %v181
    %v188 = vpack.c.bf16 %v182, %v182
    %v189 = vpack.c.bf16 %v183, %v183
    %v190 = vpack.c.bf16 %v184, %v184
    %v191 = vpack.c.bf16 %v185, %v185
    %v192 = vpack.c.bf16 %v186, %v186
    %v193 = vld [vmem:[#allocation5] sm:$0xff]
    %v194 = vld [vmem:[#allocation5 + $0x8] sm:$0xff]
    %v195 = vld [vmem:[#allocation5 + $0x10] sm:$0xff]
    %v196 = vld [vmem:[#allocation5 + $0x18] sm:$0xff]
    %v197 = vld [vmem:[#allocation5 + $0x20] sm:$0xff]
    %v198 = vld [vmem:[#allocation5 + $0x28] sm:$0xff]
    %v199 = vpack.c.bf16 %v193, %v193
    %v200 = vpack.c.bf16 %v194, %v194
    %v201 = vpack.c.bf16 %v195, %v195
    %v202 = vpack.c.bf16 %v196, %v196
    %v203 = vpack.c.bf16 %v197, %v197
    %v204 = vpack.c.bf16 %v198, %v198
    %v205 = vld [vmem:[#allocation7] sm:$0xff]
    %v206 = vld [vmem:[#allocation7 + $0x8] sm:$0xff]
    %v207 = vld [vmem:[#allocation7 + $0x10] sm:$0xff]
    %v208 = vld [vmem:[#allocation7 + $0x18] sm:$0xff]
    %v209 = vld [vmem:[#allocation7 + $0x20] sm:$0xff]
    %v210 = vld [vmem:[#allocation7 + $0x28] sm:$0xff]
    %v211 = vpack.c.bf16 %v205, %v205
    %v212 = vpack.c.bf16 %v206, %v206
    %v213 = vpack.c.bf16 %v207, %v207
    %v214 = vpack.c.bf16 %v208, %v208
    %v215 = vpack.c.bf16 %v209, %v209
    %v216 = vpack.c.bf16 %v210, %v210
    %v217 = vld [vmem:[#allocation8] sm:$0xff]
    %v218 = vld [vmem:[#allocation8 + $0x8] sm:$0xff]
    %v219 = vld [vmem:[#allocation8 + $0x10] sm:$0xff]
    %v220 = vld [vmem:[#allocation8 + $0x18] sm:$0xff]
    %v221 = vld [vmem:[#allocation8 + $0x20] sm:$0xff]
    %v222 = vld [vmem:[#allocation8 + $0x28] sm:$0xff]
    %v223 = vld [vmem:[#allocation8 + $0x30] sm:$0xff]
    %v224 = vld [vmem:[#allocation8 + $0x38] sm:$0xff]
    %v225 = vld [vmem:[#allocation8 + $0x40] sm:$0xff]
    %v226 = vld [vmem:[#allocation8 + $0x48] sm:$0xff]
    %v227 = vld [vmem:[#allocation8 + $0x50] sm:$0xff]
    %v228 = vld [vmem:[#allocation8 + $0x58] sm:$0xff]
    %v229 = vld [vmem:[#allocation8 + $0x60] sm:$0xff]
    %v230 = vld [vmem:[#allocation8 + $0x68] sm:$0xff]
    %v231 = vld [vmem:[#allocation8 + $0x70] sm:$0xff]
    %v232 = vld [vmem:[#allocation8 + $0x78] sm:$0xff]
    %v233 = vld [vmem:[#allocation8 + $0x80] sm:$0xff]
    %v234 = vld [vmem:[#allocation8 + $0x88] sm:$0xff]
    %v235 = vld [vmem:[#allocation8 + $0x90] sm:$0xff]
    %v236 = vld [vmem:[#allocation8 + $0x98] sm:$0xff]
    %v237 = vld [vmem:[#allocation8 + $0xa0] sm:$0xff]
    %v238 = vld [vmem:[#allocation8 + $0xa8] sm:$0xff]
    %v239 = vld [vmem:[#allocation8 + $0xb0] sm:$0xff]
    %v240 = vld [vmem:[#allocation8 + $0xb8] sm:$0xff]
    %v241 = vld [vmem:[#allocation8 + $0xc0] sm:$0xff]
    %v242 = vld [vmem:[#allocation8 + $0xc8] sm:$0xff]
    %v243 = vld [vmem:[#allocation8 + $0xd0] sm:$0xff]
    %v244 = vld [vmem:[#allocation8 + $0xd8] sm:$0xff]
    %v245 = vld [vmem:[#allocation8 + $0xe0] sm:$0xff]
    %v246 = vld [vmem:[#allocation8 + $0xe8] sm:$0xff]
    %v247 = vld [vmem:[#allocation8 + $0xf0] sm:$0xff]
    %v248 = vld [vmem:[#allocation8 + $0xf8] sm:$0xff]
    %v249 = vld [vmem:[#allocation8 + $0x100] sm:$0xff]
    %v250 = vld [vmem:[#allocation8 + $0x108] sm:$0xff]
    %v251 = vld [vmem:[#allocation8 + $0x110] sm:$0xff]
    %v252 = vld [vmem:[#allocation8 + $0x118] sm:$0xff]
    %v253 = vld [vmem:[#allocation8 + $0x120] sm:$0xff]
    %v254 = vld [vmem:[#allocation8 + $0x128] sm:$0xff]
    %v255 = vld [vmem:[#allocation8 + $0x130] sm:$0xff]
    %v256 = vld [vmem:[#allocation8 + $0x138] sm:$0xff]
    %v257 = vld [vmem:[#allocation8 + $0x140] sm:$0xff]
    %v258 = vld [vmem:[#allocation8 + $0x148] sm:$0xff]
    %v259 = vld [vmem:[#allocation8 + $0x150] sm:$0xff]
    %v260 = vld [vmem:[#allocation8 + $0x158] sm:$0xff]
    %v261 = vld [vmem:[#allocation8 + $0x160] sm:$0xff]
    %v262 = vld [vmem:[#allocation8 + $0x168] sm:$0xff]
    %v263 = vld [vmem:[#allocation8 + $0x170] sm:$0xff]
    %v264 = vld [vmem:[#allocation8 + $0x178] sm:$0xff]
    %v265 = vld [vmem:[#allocation8 + $0x180] sm:$0xff]
    %v266 = vld [vmem:[#allocation8 + $0x188] sm:$0xff]
    %v267 = vld [vmem:[#allocation8 + $0x190] sm:$0xff]
    %v268 = vld [vmem:[#allocation8 + $0x198] sm:$0xff]
    %v269 = vld [vmem:[#allocation8 + $0x1a0] sm:$0xff]
    %v270 = vld [vmem:[#allocation8 + $0x1a8] sm:$0xff]
    %v271 = vld [vmem:[#allocation8 + $0x1b0] sm:$0xff]
    %v272 = vld [vmem:[#allocation8 + $0x1b8] sm:$0xff]
    %v273 = vld [vmem:[#allocation8 + $0x1c0] sm:$0xff]
    %v274 = vld [vmem:[#allocation8 + $0x1c8] sm:$0xff]
    %v275 = vld [vmem:[#allocation8 + $0x1d0] sm:$0xff]
    %v276 = vld [vmem:[#allocation8 + $0x1d8] sm:$0xff]
    %v277 = vld [vmem:[#allocation8 + $0x1e0] sm:$0xff]
    %v278 = vld [vmem:[#allocation8 + $0x1e8] sm:$0xff]
    %v279 = vld [vmem:[#allocation8 + $0x1f0] sm:$0xff]
    %v280 = vld [vmem:[#allocation8 + $0x1f8] sm:$0xff]
    %v281 = vld [vmem:[#allocation8 + $0x200] sm:$0xff]
    %v282 = vld [vmem:[#allocation8 + $0x208] sm:$0xff]
    %v283 = vld [vmem:[#allocation8 + $0x210] sm:$0xff]
    %v284 = vld [vmem:[#allocation8 + $0x218] sm:$0xff]
    %v285 = vld [vmem:[#allocation8 + $0x220] sm:$0xff]
    %v286 = vld [vmem:[#allocation8 + $0x228] sm:$0xff]
    %v287 = vld [vmem:[#allocation8 + $0x230] sm:$0xff]
    %v288 = vld [vmem:[#allocation8 + $0x238] sm:$0xff]
    %v289 = vld [vmem:[#allocation8 + $0x240] sm:$0xff]
    %v290 = vld [vmem:[#allocation8 + $0x248] sm:$0xff]
    %v291 = vld [vmem:[#allocation8 + $0x250] sm:$0xff]
    %v292 = vld [vmem:[#allocation8 + $0x258] sm:$0xff]
    %v293 = vld [vmem:[#allocation8 + $0x260] sm:$0xff]
    %v294 = vld [vmem:[#allocation8 + $0x268] sm:$0xff]
    %v295 = vld [vmem:[#allocation8 + $0x270] sm:$0xff]
    %v296 = vld [vmem:[#allocation8 + $0x278] sm:$0xff]
    %v297 = vld [vmem:[#allocation8 + $0x280] sm:$0xff]
    %v298 = vld [vmem:[#allocation8 + $0x288] sm:$0xff]
    %v299 = vld [vmem:[#allocation8 + $0x290] sm:$0xff]
    %v300 = vld [vmem:[#allocation8 + $0x298] sm:$0xff]
    %v301 = vld [vmem:[#allocation8 + $0x2a0] sm:$0xff]
    %v302 = vld [vmem:[#allocation8 + $0x2a8] sm:$0xff]
    %v303 = vld [vmem:[#allocation8 + $0x2b0] sm:$0xff]
    %v304 = vld [vmem:[#allocation8 + $0x2b8] sm:$0xff]
    %v305 = vld [vmem:[#allocation8 + $0x2c0] sm:$0xff]
    %v306 = vld [vmem:[#allocation8 + $0x2c8] sm:$0xff]
    %v307 = vld [vmem:[#allocation8 + $0x2d0] sm:$0xff]
    %v308 = vld [vmem:[#allocation8 + $0x2d8] sm:$0xff]
    %v309 = vld [vmem:[#allocation8 + $0x2e0] sm:$0xff]
    %v310 = vld [vmem:[#allocation8 + $0x2e8] sm:$0xff]
    %v311 = vld [vmem:[#allocation8 + $0x2f0] sm:$0xff]
    %v312 = vld [vmem:[#allocation8 + $0x2f8] sm:$0xff]
    %v313 = vld [vmem:[#allocation8 + $0x300] sm:$0xff]
    %v314 = vld [vmem:[#allocation8 + $0x308] sm:$0xff]
    %v315 = vld [vmem:[#allocation8 + $0x310] sm:$0xff]
    %v316 = vld [vmem:[#allocation8 + $0x318] sm:$0xff]
    %v317 = vld [vmem:[#allocation8 + $0x320] sm:$0xff]
    %v318 = vld [vmem:[#allocation8 + $0x328] sm:$0xff]
    %v319 = vld [vmem:[#allocation8 + $0x330] sm:$0xff]
    %v320 = vld [vmem:[#allocation8 + $0x338] sm:$0xff]
    %v321 = vld [vmem:[#allocation8 + $0x340] sm:$0xff]
    %v322 = vld [vmem:[#allocation8 + $0x348] sm:$0xff]
    %v323 = vld [vmem:[#allocation8 + $0x350] sm:$0xff]
    %v324 = vld [vmem:[#allocation8 + $0x358] sm:$0xff]
    %v325 = vld [vmem:[#allocation8 + $0x360] sm:$0xff]
    %v326 = vld [vmem:[#allocation8 + $0x368] sm:$0xff]
    %v327 = vld [vmem:[#allocation8 + $0x370] sm:$0xff]
    %v328 = vld [vmem:[#allocation8 + $0x378] sm:$0xff]
    %v329 = vld [vmem:[#allocation8 + $0x380] sm:$0xff]
    %v330 = vld [vmem:[#allocation8 + $0x388] sm:$0xff]
    %v331 = vld [vmem:[#allocation8 + $0x390] sm:$0xff]
    %v332 = vld [vmem:[#allocation8 + $0x398] sm:$0xff]
    %v333 = vld [vmem:[#allocation8 + $0x3a0] sm:$0xff]
    %v334 = vld [vmem:[#allocation8 + $0x3a8] sm:$0xff]
    %v335 = vld [vmem:[#allocation8 + $0x3b0] sm:$0xff]
    %v336 = vld [vmem:[#allocation8 + $0x3b8] sm:$0xff]
    %v337 = vld [vmem:[#allocation8 + $0x3c0] sm:$0xff]
    %v338 = vld [vmem:[#allocation8 + $0x3c8] sm:$0xff]
    %v339 = vld [vmem:[#allocation8 + $0x3d0] sm:$0xff]
    %v340 = vld [vmem:[#allocation8 + $0x3d8] sm:$0xff]
    %v341 = vld [vmem:[#allocation8 + $0x3e0] sm:$0xff]
    %v342 = vld [vmem:[#allocation8 + $0x3e8] sm:$0xff]
    %v343 = vld [vmem:[#allocation8 + $0x3f0] sm:$0xff]
    %v344 = vld [vmem:[#allocation8 + $0x3f8] sm:$0xff]
    %v345 = vld [vmem:[#allocation8 + $0x400] sm:$0xff]
    %v346 = vld [vmem:[#allocation8 + $0x408] sm:$0xff]
    %v347 = vld [vmem:[#allocation8 + $0x410] sm:$0xff]
    %v348 = vld [vmem:[#allocation8 + $0x418] sm:$0xff]
    %v349 = vld [vmem:[#allocation8 + $0x420] sm:$0xff]
    %v350 = vld [vmem:[#allocation8 + $0x428] sm:$0xff]
    %v351 = vld [vmem:[#allocation8 + $0x430] sm:$0xff]
    %v352 = vld [vmem:[#allocation8 + $0x438] sm:$0xff]
    %v353 = vld [vmem:[#allocation8 + $0x440] sm:$0xff]
    %v354 = vld [vmem:[#allocation8 + $0x448] sm:$0xff]
    %v355 = vld [vmem:[#allocation8 + $0x450] sm:$0xff]
    %v356 = vld [vmem:[#allocation8 + $0x458] sm:$0xff]
    %v357 = vld [vmem:[#allocation8 + $0x460] sm:$0xff]
    %v358 = vld [vmem:[#allocation8 + $0x468] sm:$0xff]
    %v359 = vld [vmem:[#allocation8 + $0x470] sm:$0xff]
    %v360 = vld [vmem:[#allocation8 + $0x478] sm:$0xff]
    %v361 = vld [vmem:[#allocation8 + $0x480] sm:$0xff]
    %v362 = vld [vmem:[#allocation8 + $0x488] sm:$0xff]
    %v363 = vld [vmem:[#allocation8 + $0x490] sm:$0xff]
    %v364 = vld [vmem:[#allocation8 + $0x498] sm:$0xff]
    %v365 = vld [vmem:[#allocation8 + $0x4a0] sm:$0xff]
    %v366 = vld [vmem:[#allocation8 + $0x4a8] sm:$0xff]
    %v367 = vld [vmem:[#allocation8 + $0x4b0] sm:$0xff]
    %v368 = vld [vmem:[#allocation8 + $0x4b8] sm:$0xff]
    %v369 = vld [vmem:[#allocation8 + $0x4c0] sm:$0xff]
    %v370 = vld [vmem:[#allocation8 + $0x4c8] sm:$0xff]
    %v371 = vld [vmem:[#allocation8 + $0x4d0] sm:$0xff]
    %v372 = vld [vmem:[#allocation8 + $0x4d8] sm:$0xff]
    %v373 = vld [vmem:[#allocation8 + $0x4e0] sm:$0xff]
    %v374 = vld [vmem:[#allocation8 + $0x4e8] sm:$0xff]
    %v375 = vld [vmem:[#allocation8 + $0x4f0] sm:$0xff]
    %v376 = vld [vmem:[#allocation8 + $0x4f8] sm:$0xff]
    %v377 = vld [vmem:[#allocation8 + $0x500] sm:$0xff]
    %v378 = vld [vmem:[#allocation8 + $0x508] sm:$0xff]
    %v379 = vld [vmem:[#allocation8 + $0x510] sm:$0xff]
    %v380 = vld [vmem:[#allocation8 + $0x518] sm:$0xff]
    %v381 = vld [vmem:[#allocation8 + $0x520] sm:$0xff]
    %v382 = vld [vmem:[#allocation8 + $0x528] sm:$0xff]
    %v383 = vld [vmem:[#allocation8 + $0x530] sm:$0xff]
    %v384 = vld [vmem:[#allocation8 + $0x538] sm:$0xff]
    %v385 = vld [vmem:[#allocation8 + $0x540] sm:$0xff]
    %v386 = vld [vmem:[#allocation8 + $0x548] sm:$0xff]
    %v387 = vld [vmem:[#allocation8 + $0x550] sm:$0xff]
    %v388 = vld [vmem:[#allocation8 + $0x558] sm:$0xff]
    %v389 = vld [vmem:[#allocation8 + $0x560] sm:$0xff]
    %v390 = vld [vmem:[#allocation8 + $0x568] sm:$0xff]
    %v391 = vld [vmem:[#allocation8 + $0x570] sm:$0xff]
    %v392 = vld [vmem:[#allocation8 + $0x578] sm:$0xff]
    %v393 = vld [vmem:[#allocation8 + $0x580] sm:$0xff]
    %v394 = vld [vmem:[#allocation8 + $0x588] sm:$0xff]
    %v395 = vld [vmem:[#allocation8 + $0x590] sm:$0xff]
    %v396 = vld [vmem:[#allocation8 + $0x598] sm:$0xff]
    %v397 = vld [vmem:[#allocation8 + $0x5a0] sm:$0xff]
    %v398 = vld [vmem:[#allocation8 + $0x5a8] sm:$0xff]
    %v399 = vld [vmem:[#allocation8 + $0x5b0] sm:$0xff]
    %v400 = vld [vmem:[#allocation8 + $0x5b8] sm:$0xff]
    %v401 = vld [vmem:[#allocation8 + $0x5c0] sm:$0xff]
    %v402 = vld [vmem:[#allocation8 + $0x5c8] sm:$0xff]
    %v403 = vld [vmem:[#allocation8 + $0x5d0] sm:$0xff]
    %v404 = vld [vmem:[#allocation8 + $0x5d8] sm:$0xff]
    %v405 = vld [vmem:[#allocation8 + $0x5e0] sm:$0xff]
    %v406 = vld [vmem:[#allocation8 + $0x5e8] sm:$0xff]
    %v407 = vld [vmem:[#allocation8 + $0x5f0] sm:$0xff]
    %v408 = vld [vmem:[#allocation8 + $0x5f8] sm:$0xff]
    %v409 = vld [vmem:[#allocation8 + $0x600] sm:$0xff]
    %v410 = vld [vmem:[#allocation8 + $0x608] sm:$0xff]
    %v411 = vld [vmem:[#allocation8 + $0x610] sm:$0xff]
    %v412 = vld [vmem:[#allocation8 + $0x618] sm:$0xff]
    %v413 = vld [vmem:[#allocation8 + $0x620] sm:$0xff]
    %v414 = vld [vmem:[#allocation8 + $0x628] sm:$0xff]
    %v415 = vld [vmem:[#allocation8 + $0x630] sm:$0xff]
    %v416 = vld [vmem:[#allocation8 + $0x638] sm:$0xff]
    %v417 = vld [vmem:[#allocation8 + $0x640] sm:$0xff]
    %v418 = vld [vmem:[#allocation8 + $0x648] sm:$0xff]
    %v419 = vld [vmem:[#allocation8 + $0x650] sm:$0xff]
    %v420 = vld [vmem:[#allocation8 + $0x658] sm:$0xff]
    %v421 = vld [vmem:[#allocation8 + $0x660] sm:$0xff]
    %v422 = vld [vmem:[#allocation8 + $0x668] sm:$0xff]
    %v423 = vld [vmem:[#allocation8 + $0x670] sm:$0xff]
    %v424 = vld [vmem:[#allocation8 + $0x678] sm:$0xff]
    %v425 = vld [vmem:[#allocation8 + $0x680] sm:$0xff]
    %v426 = vld [vmem:[#allocation8 + $0x688] sm:$0xff]
    %v427 = vld [vmem:[#allocation8 + $0x690] sm:$0xff]
    %v428 = vld [vmem:[#allocation8 + $0x698] sm:$0xff]
    %v429 = vld [vmem:[#allocation8 + $0x6a0] sm:$0xff]
    %v430 = vld [vmem:[#allocation8 + $0x6a8] sm:$0xff]
    %v431 = vld [vmem:[#allocation8 + $0x6b0] sm:$0xff]
    %v432 = vld [vmem:[#allocation8 + $0x6b8] sm:$0xff]
    %v433 = vld [vmem:[#allocation8 + $0x6c0] sm:$0xff]
    %v434 = vld [vmem:[#allocation8 + $0x6c8] sm:$0xff]
    %v435 = vld [vmem:[#allocation8 + $0x6d0] sm:$0xff]
    %v436 = vld [vmem:[#allocation8 + $0x6d8] sm:$0xff]
    %v437 = vld [vmem:[#allocation8 + $0x6e0] sm:$0xff]
    %v438 = vld [vmem:[#allocation8 + $0x6e8] sm:$0xff]
    %v439 = vld [vmem:[#allocation8 + $0x6f0] sm:$0xff]
    %v440 = vld [vmem:[#allocation8 + $0x6f8] sm:$0xff]
    %v441 = vld [vmem:[#allocation8 + $0x700] sm:$0xff]
    %v442 = vld [vmem:[#allocation8 + $0x708] sm:$0xff]
    %v443 = vld [vmem:[#allocation8 + $0x710] sm:$0xff]
    %v444 = vld [vmem:[#allocation8 + $0x718] sm:$0xff]
    %v445 = vld [vmem:[#allocation8 + $0x720] sm:$0xff]
    %v446 = vld [vmem:[#allocation8 + $0x728] sm:$0xff]
    %v447 = vld [vmem:[#allocation8 + $0x730] sm:$0xff]
    %v448 = vld [vmem:[#allocation8 + $0x738] sm:$0xff]
    %v449 = vld [vmem:[#allocation8 + $0x740] sm:$0xff]
    %v450 = vld [vmem:[#allocation8 + $0x748] sm:$0xff]
    %v451 = vld [vmem:[#allocation8 + $0x750] sm:$0xff]
    %v452 = vld [vmem:[#allocation8 + $0x758] sm:$0xff]
    %v453 = vld [vmem:[#allocation8 + $0x760] sm:$0xff]
    %v454 = vld [vmem:[#allocation8 + $0x768] sm:$0xff]
    %v455 = vld [vmem:[#allocation8 + $0x770] sm:$0xff]
    %v456 = vld [vmem:[#allocation8 + $0x778] sm:$0xff]
    %v457 = vld [vmem:[#allocation8 + $0x780] sm:$0xff]
    %v458 = vld [vmem:[#allocation8 + $0x788] sm:$0xff]
    %v459 = vld [vmem:[#allocation8 + $0x790] sm:$0xff]
    %v460 = vld [vmem:[#allocation8 + $0x798] sm:$0xff]
    %v461 = vld [vmem:[#allocation8 + $0x7a0] sm:$0xff]
    %v462 = vld [vmem:[#allocation8 + $0x7a8] sm:$0xff]
    %v463 = vld [vmem:[#allocation8 + $0x7b0] sm:$0xff]
    %v464 = vld [vmem:[#allocation8 + $0x7b8] sm:$0xff]
    %v465 = vld [vmem:[#allocation8 + $0x7c0] sm:$0xff]
    %v466 = vld [vmem:[#allocation8 + $0x7c8] sm:$0xff]
    %v467 = vld [vmem:[#allocation8 + $0x7d0] sm:$0xff]
    %v468 = vld [vmem:[#allocation8 + $0x7d8] sm:$0xff]
    %v469 = vld [vmem:[#allocation8 + $0x7e0] sm:$0xff]
    %v470 = vld [vmem:[#allocation8 + $0x7e8] sm:$0xff]
    %v471 = vld [vmem:[#allocation8 + $0x7f0] sm:$0xff]
    %v472 = vld [vmem:[#allocation8 + $0x7f8] sm:$0xff]
    %v473 = vld [vmem:[#allocation8 + $0x800] sm:$0xff]
    %v474 = vld [vmem:[#allocation8 + $0x808] sm:$0xff]
    %v475 = vld [vmem:[#allocation8 + $0x810] sm:$0xff]
    %v476 = vld [vmem:[#allocation8 + $0x818] sm:$0xff]
    %v477 = vld [vmem:[#allocation8 + $0x820] sm:$0xff]
    %v478 = vld [vmem:[#allocation8 + $0x828] sm:$0xff]
    %v479 = vld [vmem:[#allocation8 + $0x830] sm:$0xff]
    %v480 = vld [vmem:[#allocation8 + $0x838] sm:$0xff]
    %v481 = vld [vmem:[#allocation8 + $0x840] sm:$0xff]
    %v482 = vld [vmem:[#allocation8 + $0x848] sm:$0xff]
    %v483 = vld [vmem:[#allocation8 + $0x850] sm:$0xff]
    %v484 = vld [vmem:[#allocation8 + $0x858] sm:$0xff]
    %v485 = vld [vmem:[#allocation8 + $0x860] sm:$0xff]
    %v486 = vld [vmem:[#allocation8 + $0x868] sm:$0xff]
    %v487 = vld [vmem:[#allocation8 + $0x870] sm:$0xff]
    %v488 = vld [vmem:[#allocation8 + $0x878] sm:$0xff]
    %v489 = vld [vmem:[#allocation8 + $0x880] sm:$0xff]
    %v490 = vld [vmem:[#allocation8 + $0x888] sm:$0xff]
    %v491 = vld [vmem:[#allocation8 + $0x890] sm:$0xff]
    %v492 = vld [vmem:[#allocation8 + $0x898] sm:$0xff]
    %v493 = vld [vmem:[#allocation8 + $0x8a0] sm:$0xff]
    %v494 = vld [vmem:[#allocation8 + $0x8a8] sm:$0xff]
    %v495 = vld [vmem:[#allocation8 + $0x8b0] sm:$0xff]
    %v496 = vld [vmem:[#allocation8 + $0x8b8] sm:$0xff]
    %v497 = vld [vmem:[#allocation8 + $0x8c0] sm:$0xff]
    %v498 = vld [vmem:[#allocation8 + $0x8c8] sm:$0xff]
    %v499 = vld [vmem:[#allocation8 + $0x8d0] sm:$0xff]
    %v500 = vld [vmem:[#allocation8 + $0x8d8] sm:$0xff]
    %v501 = vld [vmem:[#allocation8 + $0x8e0] sm:$0xff]
    %v502 = vld [vmem:[#allocation8 + $0x8e8] sm:$0xff]
    %v503 = vld [vmem:[#allocation8 + $0x8f0] sm:$0xff]
    %v504 = vld [vmem:[#allocation8 + $0x8f8] sm:$0xff]
    %v505 = vld [vmem:[#allocation8 + $0x900] sm:$0xff]
    %v506 = vld [vmem:[#allocation8 + $0x908] sm:$0xff]
    %v507 = vld [vmem:[#allocation8 + $0x910] sm:$0xff]
    %v508 = vld [vmem:[#allocation8 + $0x918] sm:$0xff]
    %v509 = vld [vmem:[#allocation8 + $0x920] sm:$0xff]
    %v510 = vld [vmem:[#allocation8 + $0x928] sm:$0xff]
    %v511 = vld [vmem:[#allocation8 + $0x930] sm:$0xff]
    %v512 = vld [vmem:[#allocation8 + $0x938] sm:$0xff]
    %v513 = vld [vmem:[#allocation8 + $0x940] sm:$0xff]
    %v514 = vld [vmem:[#allocation8 + $0x948] sm:$0xff]
    %v515 = vld [vmem:[#allocation8 + $0x950] sm:$0xff]
    %v516 = vld [vmem:[#allocation8 + $0x958] sm:$0xff]
    %v517 = vld [vmem:[#allocation8 + $0x960] sm:$0xff]
    %v518 = vld [vmem:[#allocation8 + $0x968] sm:$0xff]
    %v519 = vld [vmem:[#allocation8 + $0x970] sm:$0xff]
    %v520 = vld [vmem:[#allocation8 + $0x978] sm:$0xff]
    %v521 = vld [vmem:[#allocation8 + $0x980] sm:$0xff]
    %v522 = vld [vmem:[#allocation8 + $0x988] sm:$0xff]
    %v523 = vld [vmem:[#allocation8 + $0x990] sm:$0xff]
    %v524 = vld [vmem:[#allocation8 + $0x998] sm:$0xff]
    %v525 = vld [vmem:[#allocation8 + $0x9a0] sm:$0xff]
    %v526 = vld [vmem:[#allocation8 + $0x9a8] sm:$0xff]
    %v527 = vld [vmem:[#allocation8 + $0x9b0] sm:$0xff]
    %v528 = vld [vmem:[#allocation8 + $0x9b8] sm:$0xff]
    %v529 = vld [vmem:[#allocation8 + $0x9c0] sm:$0xff]
    %v530 = vld [vmem:[#allocation8 + $0x9c8] sm:$0xff]
    %v531 = vld [vmem:[#allocation8 + $0x9d0] sm:$0xff]
    %v532 = vld [vmem:[#allocation8 + $0x9d8] sm:$0xff]
    %v533 = vld [vmem:[#allocation8 + $0x9e0] sm:$0xff]
    %v534 = vld [vmem:[#allocation8 + $0x9e8] sm:$0xff]
    %v535 = vld [vmem:[#allocation8 + $0x9f0] sm:$0xff]
    %v536 = vld [vmem:[#allocation8 + $0x9f8] sm:$0xff]
    %v537 = vld [vmem:[#allocation8 + $0xa00] sm:$0xff]
    %v538 = vld [vmem:[#allocation8 + $0xa08] sm:$0xff]
    %v539 = vld [vmem:[#allocation8 + $0xa10] sm:$0xff]
    %v540 = vld [vmem:[#allocation8 + $0xa18] sm:$0xff]
    %v541 = vld [vmem:[#allocation8 + $0xa20] sm:$0xff]
    %v542 = vld [vmem:[#allocation8 + $0xa28] sm:$0xff]
    %v543 = vld [vmem:[#allocation8 + $0xa30] sm:$0xff]
    %v544 = vld [vmem:[#allocation8 + $0xa38] sm:$0xff]
    %v545 = vld [vmem:[#allocation8 + $0xa40] sm:$0xff]
    %v546 = vld [vmem:[#allocation8 + $0xa48] sm:$0xff]
    %v547 = vld [vmem:[#allocation8 + $0xa50] sm:$0xff]
    %v548 = vld [vmem:[#allocation8 + $0xa58] sm:$0xff]
    %v549 = vld [vmem:[#allocation8 + $0xa60] sm:$0xff]
    %v550 = vld [vmem:[#allocation8 + $0xa68] sm:$0xff]
    %v551 = vld [vmem:[#allocation8 + $0xa70] sm:$0xff]
    %v552 = vld [vmem:[#allocation8 + $0xa78] sm:$0xff]
    %v553 = vld [vmem:[#allocation8 + $0xa80] sm:$0xff]
    %v554 = vld [vmem:[#allocation8 + $0xa88] sm:$0xff]
    %v555 = vld [vmem:[#allocation8 + $0xa90] sm:$0xff]
    %v556 = vld [vmem:[#allocation8 + $0xa98] sm:$0xff]
    %v557 = vld [vmem:[#allocation8 + $0xaa0] sm:$0xff]
    %v558 = vld [vmem:[#allocation8 + $0xaa8] sm:$0xff]
    %v559 = vld [vmem:[#allocation8 + $0xab0] sm:$0xff]
    %v560 = vld [vmem:[#allocation8 + $0xab8] sm:$0xff]
    %v561 = vld [vmem:[#allocation8 + $0xac0] sm:$0xff]
    %v562 = vld [vmem:[#allocation8 + $0xac8] sm:$0xff]
    %v563 = vld [vmem:[#allocation8 + $0xad0] sm:$0xff]
    %v564 = vld [vmem:[#allocation8 + $0xad8] sm:$0xff]
    %v565 = vld [vmem:[#allocation8 + $0xae0] sm:$0xff]
    %v566 = vld [vmem:[#allocation8 + $0xae8] sm:$0xff]
    %v567 = vld [vmem:[#allocation8 + $0xaf0] sm:$0xff]
    %v568 = vld [vmem:[#allocation8 + $0xaf8] sm:$0xff]
    %v569 = vld [vmem:[#allocation8 + $0xb00] sm:$0xff]
    %v570 = vld [vmem:[#allocation8 + $0xb08] sm:$0xff]
    %v571 = vld [vmem:[#allocation8 + $0xb10] sm:$0xff]
    %v572 = vld [vmem:[#allocation8 + $0xb18] sm:$0xff]
    %v573 = vld [vmem:[#allocation8 + $0xb20] sm:$0xff]
    %v574 = vld [vmem:[#allocation8 + $0xb28] sm:$0xff]
    %v575 = vld [vmem:[#allocation8 + $0xb30] sm:$0xff]
    %v576 = vld [vmem:[#allocation8 + $0xb38] sm:$0xff]
    %v577 = vld [vmem:[#allocation8 + $0xb40] sm:$0xff]
    %v578 = vld [vmem:[#allocation8 + $0xb48] sm:$0xff]
    %v579 = vld [vmem:[#allocation8 + $0xb50] sm:$0xff]
    %v580 = vld [vmem:[#allocation8 + $0xb58] sm:$0xff]
    %v581 = vld [vmem:[#allocation8 + $0xb60] sm:$0xff]
    %v582 = vld [vmem:[#allocation8 + $0xb68] sm:$0xff]
    %v583 = vld [vmem:[#allocation8 + $0xb70] sm:$0xff]
    %v584 = vld [vmem:[#allocation8 + $0xb78] sm:$0xff]
    %v585 = vld [vmem:[#allocation8 + $0xb80] sm:$0xff]
    %v586 = vld [vmem:[#allocation8 + $0xb88] sm:$0xff]
    %v587 = vld [vmem:[#allocation8 + $0xb90] sm:$0xff]
    %v588 = vld [vmem:[#allocation8 + $0xb98] sm:$0xff]
    %v589 = vld [vmem:[#allocation8 + $0xba0] sm:$0xff]
    %v590 = vld [vmem:[#allocation8 + $0xba8] sm:$0xff]
    %v591 = vld [vmem:[#allocation8 + $0xbb0] sm:$0xff]
    %v592 = vld [vmem:[#allocation8 + $0xbb8] sm:$0xff]
    %v593 = vld [vmem:[#allocation8 + $0xbc0] sm:$0xff]
    %v594 = vld [vmem:[#allocation8 + $0xbc8] sm:$0xff]
    %v595 = vld [vmem:[#allocation8 + $0xbd0] sm:$0xff]
    %v596 = vld [vmem:[#allocation8 + $0xbd8] sm:$0xff]
    %v597 = vld [vmem:[#allocation8 + $0xbe0] sm:$0xff]
    %v598 = vld [vmem:[#allocation8 + $0xbe8] sm:$0xff]
    %v599 = vld [vmem:[#allocation8 + $0xbf0] sm:$0xff]
    %v600 = vld [vmem:[#allocation8 + $0xbf8] sm:$0xff]
    %v601 = vld [vmem:[#allocation10] sm:$0xff]
    %v602 = vld [vmem:[#allocation10 + $0x8] sm:$0xff]
    %v603 = vld [vmem:[#allocation10 + $0x10] sm:$0xff]
    %v604 = vld [vmem:[#allocation10 + $0x18] sm:$0xff]
    %v605 = vld [vmem:[#allocation10 + $0x20] sm:$0xff]
    %v606 = vld [vmem:[#allocation10 + $0x28] sm:$0xff]
    %v607 = vld [vmem:[#allocation10 + $0x30] sm:$0xff]
    %v608 = vld [vmem:[#allocation10 + $0x38] sm:$0xff]
    %v609 = vld [vmem:[#allocation10 + $0x40] sm:$0xff]
    %v610 = vld [vmem:[#allocation10 + $0x48] sm:$0xff]
    %v611 = vld [vmem:[#allocation10 + $0x50] sm:$0xff]
    %v612 = vld [vmem:[#allocation10 + $0x58] sm:$0xff]
    %v613 = vld [vmem:[#allocation10 + $0x60] sm:$0xff]
    %v614 = vld [vmem:[#allocation10 + $0x68] sm:$0xff]
    %v615 = vld [vmem:[#allocation10 + $0x70] sm:$0xff]
    %v616 = vld [vmem:[#allocation10 + $0x78] sm:$0xff]
    %v617 = vld [vmem:[#allocation10 + $0x80] sm:$0xff]
    %v618 = vld [vmem:[#allocation10 + $0x88] sm:$0xff]
    %v619 = vld [vmem:[#allocation10 + $0x90] sm:$0xff]
    %v620 = vld [vmem:[#allocation10 + $0x98] sm:$0xff]
    %v621 = vld [vmem:[#allocation10 + $0xa0] sm:$0xff]
    %v622 = vld [vmem:[#allocation10 + $0xa8] sm:$0xff]
    %v623 = vld [vmem:[#allocation10 + $0xb0] sm:$0xff]
    %v624 = vld [vmem:[#allocation10 + $0xb8] sm:$0xff]
    %v625 = vld [vmem:[#allocation10 + $0xc0] sm:$0xff]
    %v626 = vld [vmem:[#allocation10 + $0xc8] sm:$0xff]
    %v627 = vld [vmem:[#allocation10 + $0xd0] sm:$0xff]
    %v628 = vld [vmem:[#allocation10 + $0xd8] sm:$0xff]
    %v629 = vld [vmem:[#allocation10 + $0xe0] sm:$0xff]
    %v630 = vld [vmem:[#allocation10 + $0xe8] sm:$0xff]
    %v631 = vld [vmem:[#allocation10 + $0xf0] sm:$0xff]
    %v632 = vld [vmem:[#allocation10 + $0xf8] sm:$0xff]
    %v633 = vld [vmem:[#allocation10 + $0x100] sm:$0xff]
    %v634 = vld [vmem:[#allocation10 + $0x108] sm:$0xff]
    %v635 = vld [vmem:[#allocation10 + $0x110] sm:$0xff]
    %v636 = vld [vmem:[#allocation10 + $0x118] sm:$0xff]
    %v637 = vld [vmem:[#allocation10 + $0x120] sm:$0xff]
    %v638 = vld [vmem:[#allocation10 + $0x128] sm:$0xff]
    %v639 = vld [vmem:[#allocation10 + $0x130] sm:$0xff]
    %v640 = vld [vmem:[#allocation10 + $0x138] sm:$0xff]
    %v641 = vld [vmem:[#allocation10 + $0x140] sm:$0xff]
    %v642 = vld [vmem:[#allocation10 + $0x148] sm:$0xff]
    %v643 = vld [vmem:[#allocation10 + $0x150] sm:$0xff]
    %v644 = vld [vmem:[#allocation10 + $0x158] sm:$0xff]
    %v645 = vld [vmem:[#allocation10 + $0x160] sm:$0xff]
    %v646 = vld [vmem:[#allocation10 + $0x168] sm:$0xff]
    %v647 = vld [vmem:[#allocation10 + $0x170] sm:$0xff]
    %v648 = vld [vmem:[#allocation10 + $0x178] sm:$0xff]
    %v649 = vld [vmem:[#allocation10 + $0x180] sm:$0xff]
    %v650 = vld [vmem:[#allocation10 + $0x188] sm:$0xff]
    %v651 = vld [vmem:[#allocation10 + $0x190] sm:$0xff]
    %v652 = vld [vmem:[#allocation10 + $0x198] sm:$0xff]
    %v653 = vld [vmem:[#allocation10 + $0x1a0] sm:$0xff]
    %v654 = vld [vmem:[#allocation10 + $0x1a8] sm:$0xff]
    %v655 = vld [vmem:[#allocation10 + $0x1b0] sm:$0xff]
    %v656 = vld [vmem:[#allocation10 + $0x1b8] sm:$0xff]
    %v657 = vld [vmem:[#allocation10 + $0x1c0] sm:$0xff]
    %v658 = vld [vmem:[#allocation10 + $0x1c8] sm:$0xff]
    %v659 = vld [vmem:[#allocation10 + $0x1d0] sm:$0xff]
    %v660 = vld [vmem:[#allocation10 + $0x1d8] sm:$0xff]
    %v661 = vld [vmem:[#allocation10 + $0x1e0] sm:$0xff]
    %v662 = vld [vmem:[#allocation10 + $0x1e8] sm:$0xff]
    %v663 = vld [vmem:[#allocation10 + $0x1f0] sm:$0xff]
    %v664 = vld [vmem:[#allocation10 + $0x1f8] sm:$0xff]
    %v665 = vld [vmem:[#allocation10 + $0x200] sm:$0xff]
    %v666 = vld [vmem:[#allocation10 + $0x208] sm:$0xff]
    %v667 = vld [vmem:[#allocation10 + $0x210] sm:$0xff]
    %v668 = vld [vmem:[#allocation10 + $0x218] sm:$0xff]
    %v669 = vld [vmem:[#allocation10 + $0x220] sm:$0xff]
    %v670 = vld [vmem:[#allocation10 + $0x228] sm:$0xff]
    %v671 = vld [vmem:[#allocation10 + $0x230] sm:$0xff]
    %v672 = vld [vmem:[#allocation10 + $0x238] sm:$0xff]
    %v673 = vld [vmem:[#allocation10 + $0x240] sm:$0xff]
    %v674 = vld [vmem:[#allocation10 + $0x248] sm:$0xff]
    %v675 = vld [vmem:[#allocation10 + $0x250] sm:$0xff]
    %v676 = vld [vmem:[#allocation10 + $0x258] sm:$0xff]
    %v677 = vld [vmem:[#allocation10 + $0x260] sm:$0xff]
    %v678 = vld [vmem:[#allocation10 + $0x268] sm:$0xff]
    %v679 = vld [vmem:[#allocation10 + $0x270] sm:$0xff]
    %v680 = vld [vmem:[#allocation10 + $0x278] sm:$0xff]
    %v681 = vld [vmem:[#allocation10 + $0x280] sm:$0xff]
    %v682 = vld [vmem:[#allocation10 + $0x288] sm:$0xff]
    %v683 = vld [vmem:[#allocation10 + $0x290] sm:$0xff]
    %v684 = vld [vmem:[#allocation10 + $0x298] sm:$0xff]
    %v685 = vld [vmem:[#allocation10 + $0x2a0] sm:$0xff]
    %v686 = vld [vmem:[#allocation10 + $0x2a8] sm:$0xff]
    %v687 = vld [vmem:[#allocation10 + $0x2b0] sm:$0xff]
    %v688 = vld [vmem:[#allocation10 + $0x2b8] sm:$0xff]
    %v689 = vld [vmem:[#allocation10 + $0x2c0] sm:$0xff]
    %v690 = vld [vmem:[#allocation10 + $0x2c8] sm:$0xff]
    %v691 = vld [vmem:[#allocation10 + $0x2d0] sm:$0xff]
    %v692 = vld [vmem:[#allocation10 + $0x2d8] sm:$0xff]
    %v693 = vld [vmem:[#allocation10 + $0x2e0] sm:$0xff]
    %v694 = vld [vmem:[#allocation10 + $0x2e8] sm:$0xff]
    %v695 = vld [vmem:[#allocation10 + $0x2f0] sm:$0xff]
    %v696 = vld [vmem:[#allocation10 + $0x2f8] sm:$0xff]
    %v697 = vld [vmem:[#allocation10 + $0x300] sm:$0xff]
    %v698 = vld [vmem:[#allocation10 + $0x308] sm:$0xff]
    %v699 = vld [vmem:[#allocation10 + $0x310] sm:$0xff]
    %v700 = vld [vmem:[#allocation10 + $0x318] sm:$0xff]
    %v701 = vld [vmem:[#allocation10 + $0x320] sm:$0xff]
    %v702 = vld [vmem:[#allocation10 + $0x328] sm:$0xff]
    %v703 = vld [vmem:[#allocation10 + $0x330] sm:$0xff]
    %v704 = vld [vmem:[#allocation10 + $0x338] sm:$0xff]
    %v705 = vld [vmem:[#allocation10 + $0x340] sm:$0xff]
    %v706 = vld [vmem:[#allocation10 + $0x348] sm:$0xff]
    %v707 = vld [vmem:[#allocation10 + $0x350] sm:$0xff]
    %v708 = vld [vmem:[#allocation10 + $0x358] sm:$0xff]
    %v709 = vld [vmem:[#allocation10 + $0x360] sm:$0xff]
    %v710 = vld [vmem:[#allocation10 + $0x368] sm:$0xff]
    %v711 = vld [vmem:[#allocation10 + $0x370] sm:$0xff]
    %v712 = vld [vmem:[#allocation10 + $0x378] sm:$0xff]
    %v713 = vld [vmem:[#allocation10 + $0x380] sm:$0xff]
    %v714 = vld [vmem:[#allocation10 + $0x388] sm:$0xff]
    %v715 = vld [vmem:[#allocation10 + $0x390] sm:$0xff]
    %v716 = vld [vmem:[#allocation10 + $0x398] sm:$0xff]
    %v717 = vld [vmem:[#allocation10 + $0x3a0] sm:$0xff]
    %v718 = vld [vmem:[#allocation10 + $0x3a8] sm:$0xff]
    %v719 = vld [vmem:[#allocation10 + $0x3b0] sm:$0xff]
    %v720 = vld [vmem:[#allocation10 + $0x3b8] sm:$0xff]
    %v721 = vld [vmem:[#allocation10 + $0x3c0] sm:$0xff]
    %v722 = vld [vmem:[#allocation10 + $0x3c8] sm:$0xff]
    %v723 = vld [vmem:[#allocation10 + $0x3d0] sm:$0xff]
    %v724 = vld [vmem:[#allocation10 + $0x3d8] sm:$0xff]
    %v725 = vld [vmem:[#allocation10 + $0x3e0] sm:$0xff]
    %v726 = vld [vmem:[#allocation10 + $0x3e8] sm:$0xff]
    %v727 = vld [vmem:[#allocation10 + $0x3f0] sm:$0xff]
    %v728 = vld [vmem:[#allocation10 + $0x3f8] sm:$0xff]
    %v729 = vld [vmem:[#allocation10 + $0x400] sm:$0xff]
    %v730 = vld [vmem:[#allocation10 + $0x408] sm:$0xff]
    %v731 = vld [vmem:[#allocation10 + $0x410] sm:$0xff]
    %v732 = vld [vmem:[#allocation10 + $0x418] sm:$0xff]
    %v733 = vld [vmem:[#allocation10 + $0x420] sm:$0xff]
    %v734 = vld [vmem:[#allocation10 + $0x428] sm:$0xff]
    %v735 = vld [vmem:[#allocation10 + $0x430] sm:$0xff]
    %v736 = vld [vmem:[#allocation10 + $0x438] sm:$0xff]
    %v737 = vld [vmem:[#allocation10 + $0x440] sm:$0xff]
    %v738 = vld [vmem:[#allocation10 + $0x448] sm:$0xff]
    %v739 = vld [vmem:[#allocation10 + $0x450] sm:$0xff]
    %v740 = vld [vmem:[#allocation10 + $0x458] sm:$0xff]
    %v741 = vld [vmem:[#allocation10 + $0x460] sm:$0xff]
    %v742 = vld [vmem:[#allocation10 + $0x468] sm:$0xff]
    %v743 = vld [vmem:[#allocation10 + $0x470] sm:$0xff]
    %v744 = vld [vmem:[#allocation10 + $0x478] sm:$0xff]
    %v745 = vld [vmem:[#allocation10 + $0x480] sm:$0xff]
    %v746 = vld [vmem:[#allocation10 + $0x488] sm:$0xff]
    %v747 = vld [vmem:[#allocation10 + $0x490] sm:$0xff]
    %v748 = vld [vmem:[#allocation10 + $0x498] sm:$0xff]
    %v749 = vld [vmem:[#allocation10 + $0x4a0] sm:$0xff]
    %v750 = vld [vmem:[#allocation10 + $0x4a8] sm:$0xff]
    %v751 = vld [vmem:[#allocation10 + $0x4b0] sm:$0xff]
    %v752 = vld [vmem:[#allocation10 + $0x4b8] sm:$0xff]
    %v753 = vld [vmem:[#allocation10 + $0x4c0] sm:$0xff]
    %v754 = vld [vmem:[#allocation10 + $0x4c8] sm:$0xff]
    %v755 = vld [vmem:[#allocation10 + $0x4d0] sm:$0xff]
    %v756 = vld [vmem:[#allocation10 + $0x4d8] sm:$0xff]
    %v757 = vld [vmem:[#allocation10 + $0x4e0] sm:$0xff]
    %v758 = vld [vmem:[#allocation10 + $0x4e8] sm:$0xff]
    %v759 = vld [vmem:[#allocation10 + $0x4f0] sm:$0xff]
    %v760 = vld [vmem:[#allocation10 + $0x4f8] sm:$0xff]
    %v761 = vld [vmem:[#allocation10 + $0x500] sm:$0xff]
    %v762 = vld [vmem:[#allocation10 + $0x508] sm:$0xff]
    %v763 = vld [vmem:[#allocation10 + $0x510] sm:$0xff]
    %v764 = vld [vmem:[#allocation10 + $0x518] sm:$0xff]
    %v765 = vld [vmem:[#allocation10 + $0x520] sm:$0xff]
    %v766 = vld [vmem:[#allocation10 + $0x528] sm:$0xff]
    %v767 = vld [vmem:[#allocation10 + $0x530] sm:$0xff]
    %v768 = vld [vmem:[#allocation10 + $0x538] sm:$0xff]
    %v769 = vld [vmem:[#allocation10 + $0x540] sm:$0xff]
    %v770 = vld [vmem:[#allocation10 + $0x548] sm:$0xff]
    %v771 = vld [vmem:[#allocation10 + $0x550] sm:$0xff]
    %v772 = vld [vmem:[#allocation10 + $0x558] sm:$0xff]
    %v773 = vld [vmem:[#allocation10 + $0x560] sm:$0xff]
    %v774 = vld [vmem:[#allocation10 + $0x568] sm:$0xff]
    %v775 = vld [vmem:[#allocation10 + $0x570] sm:$0xff]
    %v776 = vld [vmem:[#allocation10 + $0x578] sm:$0xff]
    %v777 = vld [vmem:[#allocation10 + $0x580] sm:$0xff]
    %v778 = vld [vmem:[#allocation10 + $0x588] sm:$0xff]
    %v779 = vld [vmem:[#allocation10 + $0x590] sm:$0xff]
    %v780 = vld [vmem:[#allocation10 + $0x598] sm:$0xff]
    %v781 = vld [vmem:[#allocation10 + $0x5a0] sm:$0xff]
    %v782 = vld [vmem:[#allocation10 + $0x5a8] sm:$0xff]
    %v783 = vld [vmem:[#allocation10 + $0x5b0] sm:$0xff]
    %v784 = vld [vmem:[#allocation10 + $0x5b8] sm:$0xff]
    %v785 = vld [vmem:[#allocation10 + $0x5c0] sm:$0xff]
    %v786 = vld [vmem:[#allocation10 + $0x5c8] sm:$0xff]
    %v787 = vld [vmem:[#allocation10 + $0x5d0] sm:$0xff]
    %v788 = vld [vmem:[#allocation10 + $0x5d8] sm:$0xff]
    %v789 = vld [vmem:[#allocation10 + $0x5e0] sm:$0xff]
    %v790 = vld [vmem:[#allocation10 + $0x5e8] sm:$0xff]
    %v791 = vld [vmem:[#allocation10 + $0x5f0] sm:$0xff]
    %v792 = vld [vmem:[#allocation10 + $0x5f8] sm:$0xff]
    %v793 = vld [vmem:[#allocation10 + $0x600] sm:$0xff]
    %v794 = vld [vmem:[#allocation10 + $0x608] sm:$0xff]
    %v795 = vld [vmem:[#allocation10 + $0x610] sm:$0xff]
    %v796 = vld [vmem:[#allocation10 + $0x618] sm:$0xff]
    %v797 = vld [vmem:[#allocation10 + $0x620] sm:$0xff]
    %v798 = vld [vmem:[#allocation10 + $0x628] sm:$0xff]
    %v799 = vld [vmem:[#allocation10 + $0x630] sm:$0xff]
    %v800 = vld [vmem:[#allocation10 + $0x638] sm:$0xff]
    %v801 = vld [vmem:[#allocation10 + $0x640] sm:$0xff]
    %v802 = vld [vmem:[#allocation10 + $0x648] sm:$0xff]
    %v803 = vld [vmem:[#allocation10 + $0x650] sm:$0xff]
    %v804 = vld [vmem:[#allocation10 + $0x658] sm:$0xff]
    %v805 = vld [vmem:[#allocation10 + $0x660] sm:$0xff]
    %v806 = vld [vmem:[#allocation10 + $0x668] sm:$0xff]
    %v807 = vld [vmem:[#allocation10 + $0x670] sm:$0xff]
    %v808 = vld [vmem:[#allocation10 + $0x678] sm:$0xff]
    %v809 = vld [vmem:[#allocation10 + $0x680] sm:$0xff]
    %v810 = vld [vmem:[#allocation10 + $0x688] sm:$0xff]
    %v811 = vld [vmem:[#allocation10 + $0x690] sm:$0xff]
    %v812 = vld [vmem:[#allocation10 + $0x698] sm:$0xff]
    %v813 = vld [vmem:[#allocation10 + $0x6a0] sm:$0xff]
    %v814 = vld [vmem:[#allocation10 + $0x6a8] sm:$0xff]
    %v815 = vld [vmem:[#allocation10 + $0x6b0] sm:$0xff]
    %v816 = vld [vmem:[#allocation10 + $0x6b8] sm:$0xff]
    %v817 = vld [vmem:[#allocation10 + $0x6c0] sm:$0xff]
    %v818 = vld [vmem:[#allocation10 + $0x6c8] sm:$0xff]
    %v819 = vld [vmem:[#allocation10 + $0x6d0] sm:$0xff]
    %v820 = vld [vmem:[#allocation10 + $0x6d8] sm:$0xff]
    %v821 = vld [vmem:[#allocation10 + $0x6e0] sm:$0xff]
    %v822 = vld [vmem:[#allocation10 + $0x6e8] sm:$0xff]
    %v823 = vld [vmem:[#allocation10 + $0x6f0] sm:$0xff]
    %v824 = vld [vmem:[#allocation10 + $0x6f8] sm:$0xff]
    %v825 = vld [vmem:[#allocation10 + $0x700] sm:$0xff]
    %v826 = vld [vmem:[#allocation10 + $0x708] sm:$0xff]
    %v827 = vld [vmem:[#allocation10 + $0x710] sm:$0xff]
    %v828 = vld [vmem:[#allocation10 + $0x718] sm:$0xff]
    %v829 = vld [vmem:[#allocation10 + $0x720] sm:$0xff]
    %v830 = vld [vmem:[#allocation10 + $0x728] sm:$0xff]
    %v831 = vld [vmem:[#allocation10 + $0x730] sm:$0xff]
    %v832 = vld [vmem:[#allocation10 + $0x738] sm:$0xff]
    %v833 = vld [vmem:[#allocation10 + $0x740] sm:$0xff]
    %v834 = vld [vmem:[#allocation10 + $0x748] sm:$0xff]
    %v835 = vld [vmem:[#allocation10 + $0x750] sm:$0xff]
    %v836 = vld [vmem:[#allocation10 + $0x758] sm:$0xff]
    %v837 = vld [vmem:[#allocation10 + $0x760] sm:$0xff]
    %v838 = vld [vmem:[#allocation10 + $0x768] sm:$0xff]
    %v839 = vld [vmem:[#allocation10 + $0x770] sm:$0xff]
    %v840 = vld [vmem:[#allocation10 + $0x778] sm:$0xff]
    %v841 = vld [vmem:[#allocation10 + $0x780] sm:$0xff]
    %v842 = vld [vmem:[#allocation10 + $0x788] sm:$0xff]
    %v843 = vld [vmem:[#allocation10 + $0x790] sm:$0xff]
    %v844 = vld [vmem:[#allocation10 + $0x798] sm:$0xff]
    %v845 = vld [vmem:[#allocation10 + $0x7a0] sm:$0xff]
    %v846 = vld [vmem:[#allocation10 + $0x7a8] sm:$0xff]
    %v847 = vld [vmem:[#allocation10 + $0x7b0] sm:$0xff]
    %v848 = vld [vmem:[#allocation10 + $0x7b8] sm:$0xff]
    %v849 = vld [vmem:[#allocation10 + $0x7c0] sm:$0xff]
    %v850 = vld [vmem:[#allocation10 + $0x7c8] sm:$0xff]
    %v851 = vld [vmem:[#allocation10 + $0x7d0] sm:$0xff]
    %v852 = vld [vmem:[#allocation10 + $0x7d8] sm:$0xff]
    %v853 = vld [vmem:[#allocation10 + $0x7e0] sm:$0xff]
    %v854 = vld [vmem:[#allocation10 + $0x7e8] sm:$0xff]
    %v855 = vld [vmem:[#allocation10 + $0x7f0] sm:$0xff]
    %v856 = vld [vmem:[#allocation10 + $0x7f8] sm:$0xff]
    %v857 = vld [vmem:[#allocation10 + $0x800] sm:$0xff]
    %v858 = vld [vmem:[#allocation10 + $0x808] sm:$0xff]
    %v859 = vld [vmem:[#allocation10 + $0x810] sm:$0xff]
    %v860 = vld [vmem:[#allocation10 + $0x818] sm:$0xff]
    %v861 = vld [vmem:[#allocation10 + $0x820] sm:$0xff]
    %v862 = vld [vmem:[#allocation10 + $0x828] sm:$0xff]
    %v863 = vld [vmem:[#allocation10 + $0x830] sm:$0xff]
    %v864 = vld [vmem:[#allocation10 + $0x838] sm:$0xff]
    %v865 = vld [vmem:[#allocation10 + $0x840] sm:$0xff]
    %v866 = vld [vmem:[#allocation10 + $0x848] sm:$0xff]
    %v867 = vld [vmem:[#allocation10 + $0x850] sm:$0xff]
    %v868 = vld [vmem:[#allocation10 + $0x858] sm:$0xff]
    %v869 = vld [vmem:[#allocation10 + $0x860] sm:$0xff]
    %v870 = vld [vmem:[#allocation10 + $0x868] sm:$0xff]
    %v871 = vld [vmem:[#allocation10 + $0x870] sm:$0xff]
    %v872 = vld [vmem:[#allocation10 + $0x878] sm:$0xff]
    %v873 = vld [vmem:[#allocation10 + $0x880] sm:$0xff]
    %v874 = vld [vmem:[#allocation10 + $0x888] sm:$0xff]
    %v875 = vld [vmem:[#allocation10 + $0x890] sm:$0xff]
    %v876 = vld [vmem:[#allocation10 + $0x898] sm:$0xff]
    %v877 = vld [vmem:[#allocation10 + $0x8a0] sm:$0xff]
    %v878 = vld [vmem:[#allocation10 + $0x8a8] sm:$0xff]
    %v879 = vld [vmem:[#allocation10 + $0x8b0] sm:$0xff]
    %v880 = vld [vmem:[#allocation10 + $0x8b8] sm:$0xff]
    %v881 = vld [vmem:[#allocation10 + $0x8c0] sm:$0xff]
    %v882 = vld [vmem:[#allocation10 + $0x8c8] sm:$0xff]
    %v883 = vld [vmem:[#allocation10 + $0x8d0] sm:$0xff]
    %v884 = vld [vmem:[#allocation10 + $0x8d8] sm:$0xff]
    %v885 = vld [vmem:[#allocation10 + $0x8e0] sm:$0xff]
    %v886 = vld [vmem:[#allocation10 + $0x8e8] sm:$0xff]
    %v887 = vld [vmem:[#allocation10 + $0x8f0] sm:$0xff]
    %v888 = vld [vmem:[#allocation10 + $0x8f8] sm:$0xff]
    %v889 = vld [vmem:[#allocation10 + $0x900] sm:$0xff]
    %v890 = vld [vmem:[#allocation10 + $0x908] sm:$0xff]
    %v891 = vld [vmem:[#allocation10 + $0x910] sm:$0xff]
    %v892 = vld [vmem:[#allocation10 + $0x918] sm:$0xff]
    %v893 = vld [vmem:[#allocation10 + $0x920] sm:$0xff]
    %v894 = vld [vmem:[#allocation10 + $0x928] sm:$0xff]
    %v895 = vld [vmem:[#allocation10 + $0x930] sm:$0xff]
    %v896 = vld [vmem:[#allocation10 + $0x938] sm:$0xff]
    %v897 = vld [vmem:[#allocation10 + $0x940] sm:$0xff]
    %v898 = vld [vmem:[#allocation10 + $0x948] sm:$0xff]
    %v899 = vld [vmem:[#allocation10 + $0x950] sm:$0xff]
    %v900 = vld [vmem:[#allocation10 + $0x958] sm:$0xff]
    %v901 = vld [vmem:[#allocation10 + $0x960] sm:$0xff]
    %v902 = vld [vmem:[#allocation10 + $0x968] sm:$0xff]
    %v903 = vld [vmem:[#allocation10 + $0x970] sm:$0xff]
    %v904 = vld [vmem:[#allocation10 + $0x978] sm:$0xff]
    %v905 = vld [vmem:[#allocation10 + $0x980] sm:$0xff]
    %v906 = vld [vmem:[#allocation10 + $0x988] sm:$0xff]
    %v907 = vld [vmem:[#allocation10 + $0x990] sm:$0xff]
    %v908 = vld [vmem:[#allocation10 + $0x998] sm:$0xff]
    %v909 = vld [vmem:[#allocation10 + $0x9a0] sm:$0xff]
    %v910 = vld [vmem:[#allocation10 + $0x9a8] sm:$0xff]
    %v911 = vld [vmem:[#allocation10 + $0x9b0] sm:$0xff]
    %v912 = vld [vmem:[#allocation10 + $0x9b8] sm:$0xff]
    %v913 = vld [vmem:[#allocation10 + $0x9c0] sm:$0xff]
    %v914 = vld [vmem:[#allocation10 + $0x9c8] sm:$0xff]
    %v915 = vld [vmem:[#allocation10 + $0x9d0] sm:$0xff]
    %v916 = vld [vmem:[#allocation10 + $0x9d8] sm:$0xff]
    %v917 = vld [vmem:[#allocation10 + $0x9e0] sm:$0xff]
    %v918 = vld [vmem:[#allocation10 + $0x9e8] sm:$0xff]
    %v919 = vld [vmem:[#allocation10 + $0x9f0] sm:$0xff]
    %v920 = vld [vmem:[#allocation10 + $0x9f8] sm:$0xff]
    %v921 = vld [vmem:[#allocation10 + $0xa00] sm:$0xff]
    %v922 = vld [vmem:[#allocation10 + $0xa08] sm:$0xff]
    %v923 = vld [vmem:[#allocation10 + $0xa10] sm:$0xff]
    %v924 = vld [vmem:[#allocation10 + $0xa18] sm:$0xff]
    %v925 = vld [vmem:[#allocation10 + $0xa20] sm:$0xff]
    %v926 = vld [vmem:[#allocation10 + $0xa28] sm:$0xff]
    %v927 = vld [vmem:[#allocation10 + $0xa30] sm:$0xff]
    %v928 = vld [vmem:[#allocation10 + $0xa38] sm:$0xff]
    %v929 = vld [vmem:[#allocation10 + $0xa40] sm:$0xff]
    %v930 = vld [vmem:[#allocation10 + $0xa48] sm:$0xff]
    %v931 = vld [vmem:[#allocation10 + $0xa50] sm:$0xff]
    %v932 = vld [vmem:[#allocation10 + $0xa58] sm:$0xff]
    %v933 = vld [vmem:[#allocation10 + $0xa60] sm:$0xff]
    %v934 = vld [vmem:[#allocation10 + $0xa68] sm:$0xff]
    %v935 = vld [vmem:[#allocation10 + $0xa70] sm:$0xff]
    %v936 = vld [vmem:[#allocation10 + $0xa78] sm:$0xff]
    %v937 = vld [vmem:[#allocation10 + $0xa80] sm:$0xff]
    %v938 = vld [vmem:[#allocation10 + $0xa88] sm:$0xff]
    %v939 = vld [vmem:[#allocation10 + $0xa90] sm:$0xff]
    %v940 = vld [vmem:[#allocation10 + $0xa98] sm:$0xff]
    %v941 = vld [vmem:[#allocation10 + $0xaa0] sm:$0xff]
    %v942 = vld [vmem:[#allocation10 + $0xaa8] sm:$0xff]
    %v943 = vld [vmem:[#allocation10 + $0xab0] sm:$0xff]
    %v944 = vld [vmem:[#allocation10 + $0xab8] sm:$0xff]
    %v945 = vld [vmem:[#allocation10 + $0xac0] sm:$0xff]
    %v946 = vld [vmem:[#allocation10 + $0xac8] sm:$0xff]
    %v947 = vld [vmem:[#allocation10 + $0xad0] sm:$0xff]
    %v948 = vld [vmem:[#allocation10 + $0xad8] sm:$0xff]
    %v949 = vld [vmem:[#allocation10 + $0xae0] sm:$0xff]
    %v950 = vld [vmem:[#allocation10 + $0xae8] sm:$0xff]
    %v951 = vld [vmem:[#allocation10 + $0xaf0] sm:$0xff]
    %v952 = vld [vmem:[#allocation10 + $0xaf8] sm:$0xff]
    %v953 = vld [vmem:[#allocation10 + $0xb00] sm:$0xff]
    %v954 = vld [vmem:[#allocation10 + $0xb08] sm:$0xff]
    %v955 = vld [vmem:[#allocation10 + $0xb10] sm:$0xff]
    %v956 = vld [vmem:[#allocation10 + $0xb18] sm:$0xff]
    %v957 = vld [vmem:[#allocation10 + $0xb20] sm:$0xff]
    %v958 = vld [vmem:[#allocation10 + $0xb28] sm:$0xff]
    %v959 = vld [vmem:[#allocation10 + $0xb30] sm:$0xff]
    %v960 = vld [vmem:[#allocation10 + $0xb38] sm:$0xff]
    %v961 = vld [vmem:[#allocation10 + $0xb40] sm:$0xff]
    %v962 = vld [vmem:[#allocation10 + $0xb48] sm:$0xff]
    %v963 = vld [vmem:[#allocation10 + $0xb50] sm:$0xff]
    %v964 = vld [vmem:[#allocation10 + $0xb58] sm:$0xff]
    %v965 = vld [vmem:[#allocation10 + $0xb60] sm:$0xff]
    %v966 = vld [vmem:[#allocation10 + $0xb68] sm:$0xff]
    %v967 = vld [vmem:[#allocation10 + $0xb70] sm:$0xff]
    %v968 = vld [vmem:[#allocation10 + $0xb78] sm:$0xff]
    %v969 = vld [vmem:[#allocation10 + $0xb80] sm:$0xff]
    %v970 = vld [vmem:[#allocation10 + $0xb88] sm:$0xff]
    %v971 = vld [vmem:[#allocation10 + $0xb90] sm:$0xff]
    %v972 = vld [vmem:[#allocation10 + $0xb98] sm:$0xff]
    %v973 = vld [vmem:[#allocation10 + $0xba0] sm:$0xff]
    %v974 = vld [vmem:[#allocation10 + $0xba8] sm:$0xff]
    %v975 = vld [vmem:[#allocation10 + $0xbb0] sm:$0xff]
    %v976 = vld [vmem:[#allocation10 + $0xbb8] sm:$0xff]
    %v977 = vld [vmem:[#allocation10 + $0xbc0] sm:$0xff]
    %v978 = vld [vmem:[#allocation10 + $0xbc8] sm:$0xff]
    %v979 = vld [vmem:[#allocation10 + $0xbd0] sm:$0xff]
    %v980 = vld [vmem:[#allocation10 + $0xbd8] sm:$0xff]
    %v981 = vld [vmem:[#allocation10 + $0xbe0] sm:$0xff]
    %v982 = vld [vmem:[#allocation10 + $0xbe8] sm:$0xff]
    %v983 = vld [vmem:[#allocation10 + $0xbf0] sm:$0xff]
    %v984 = vld [vmem:[#allocation10 + $0xbf8] sm:$0xff]
    %v1369 = vunpack.c.l.b16 %v601
    %v1370 = vunpack.c.h.b16 %v601
    %v1371 = vunpack.c.l.b16 %v602
    %v1372 = vunpack.c.h.b16 %v602
    %v1373 = vunpack.c.l.b16 %v603
    %v1374 = vunpack.c.h.b16 %v603
    %v1375 = vunpack.c.l.b16 %v604
    %v1376 = vunpack.c.h.b16 %v604
    %v1377 = vunpack.c.l.b16 %v605
    %v1378 = vunpack.c.h.b16 %v605
    %v1379 = vunpack.c.l.b16 %v606
    %v1380 = vunpack.c.h.b16 %v606
    %v1381 = vunpack.c.l.b16 %v607
    %v1382 = vunpack.c.h.b16 %v607
    %v1383 = vunpack.c.l.b16 %v608
    %v1384 = vunpack.c.h.b16 %v608
    %v1385 = vunpack.c.l.b16 %v609
    %v1386 = vunpack.c.h.b16 %v609
    %v1387 = vunpack.c.l.b16 %v610
    %v1388 = vunpack.c.h.b16 %v610
    %v1389 = vunpack.c.l.b16 %v611
    %v1390 = vunpack.c.h.b16 %v611
    %v1391 = vunpack.c.l.b16 %v612
    %v1392 = vunpack.c.h.b16 %v612
    %v1393 = vunpack.c.l.b16 %v613
    %v1394 = vunpack.c.h.b16 %v613
    %v1395 = vunpack.c.l.b16 %v614
    %v1396 = vunpack.c.h.b16 %v614
    %v1397 = vunpack.c.l.b16 %v615
    %v1398 = vunpack.c.h.b16 %v615
    %v1399 = vunpack.c.l.b16 %v616
    %v1400 = vunpack.c.h.b16 %v616
    %v1401 = vunpack.c.l.b16 %v617
    %v1402 = vunpack.c.h.b16 %v617
    %v1403 = vunpack.c.l.b16 %v618
    %v1404 = vunpack.c.h.b16 %v618
    %v1405 = vunpack.c.l.b16 %v619
    %v1406 = vunpack.c.h.b16 %v619
    %v1407 = vunpack.c.l.b16 %v620
    %v1408 = vunpack.c.h.b16 %v620
    %v1409 = vunpack.c.l.b16 %v621
    %v1410 = vunpack.c.h.b16 %v621
    %v1411 = vunpack.c.l.b16 %v622
    %v1412 = vunpack.c.h.b16 %v622
    %v1413 = vunpack.c.l.b16 %v623
    %v1414 = vunpack.c.h.b16 %v623
    %v1415 = vunpack.c.l.b16 %v624
    %v1416 = vunpack.c.h.b16 %v624
    %v1417 = vunpack.c.l.b16 %v625
    %v1418 = vunpack.c.h.b16 %v625
    %v1419 = vunpack.c.l.b16 %v626
    %v1420 = vunpack.c.h.b16 %v626
    %v1421 = vunpack.c.l.b16 %v627
    %v1422 = vunpack.c.h.b16 %v627
    %v1423 = vunpack.c.l.b16 %v628
    %v1424 = vunpack.c.h.b16 %v628
    %v1425 = vunpack.c.l.b16 %v629
    %v1426 = vunpack.c.h.b16 %v629
    %v1427 = vunpack.c.l.b16 %v630
    %v1428 = vunpack.c.h.b16 %v630
    %v1429 = vunpack.c.l.b16 %v631
    %v1430 = vunpack.c.h.b16 %v631
    %v1431 = vunpack.c.l.b16 %v632
    %v1432 = vunpack.c.h.b16 %v632
    %v1433 = vunpack.c.l.b16 %v633
    %v1434 = vunpack.c.h.b16 %v633
    %v1435 = vunpack.c.l.b16 %v634
    %v1436 = vunpack.c.h.b16 %v634
    %v1437 = vunpack.c.l.b16 %v635
    %v1438 = vunpack.c.h.b16 %v635
    %v1439 = vunpack.c.l.b16 %v636
    %v1440 = vunpack.c.h.b16 %v636
    %v1441 = vunpack.c.l.b16 %v637
    %v1442 = vunpack.c.h.b16 %v637
    %v1443 = vunpack.c.l.b16 %v638
    %v1444 = vunpack.c.h.b16 %v638
    %v1445 = vunpack.c.l.b16 %v639
    %v1446 = vunpack.c.h.b16 %v639
    %v1447 = vunpack.c.l.b16 %v640
    %v1448 = vunpack.c.h.b16 %v640
    %v1449 = vunpack.c.l.b16 %v641
    %v1450 = vunpack.c.h.b16 %v641
    %v1451 = vunpack.c.l.b16 %v642
    %v1452 = vunpack.c.h.b16 %v642
    %v1453 = vunpack.c.l.b16 %v643
    %v1454 = vunpack.c.h.b16 %v643
    %v1455 = vunpack.c.l.b16 %v644
    %v1456 = vunpack.c.h.b16 %v644
    %v1457 = vunpack.c.l.b16 %v645
    %v1458 = vunpack.c.h.b16 %v645
    %v1459 = vunpack.c.l.b16 %v646
    %v1460 = vunpack.c.h.b16 %v646
    %v1461 = vunpack.c.l.b16 %v647
    %v1462 = vunpack.c.h.b16 %v647
    %v1463 = vunpack.c.l.b16 %v648
    %v1464 = vunpack.c.h.b16 %v648
    %v1465 = vunpack.c.l.b16 %v649
    %v1466 = vunpack.c.h.b16 %v649
    %v1467 = vunpack.c.l.b16 %v650
    %v1468 = vunpack.c.h.b16 %v650
    %v1469 = vunpack.c.l.b16 %v651
    %v1470 = vunpack.c.h.b16 %v651
    %v1471 = vunpack.c.l.b16 %v652
    %v1472 = vunpack.c.h.b16 %v652
    %v1473 = vunpack.c.l.b16 %v653
    %v1474 = vunpack.c.h.b16 %v653
    %v1475 = vunpack.c.l.b16 %v654
    %v1476 = vunpack.c.h.b16 %v654
    %v1477 = vunpack.c.l.b16 %v655
    %v1478 = vunpack.c.h.b16 %v655
    %v1479 = vunpack.c.l.b16 %v656
    %v1480 = vunpack.c.h.b16 %v656
    %v1481 = vunpack.c.l.b16 %v657
    %v1482 = vunpack.c.h.b16 %v657
    %v1483 = vunpack.c.l.b16 %v658
    %v1484 = vunpack.c.h.b16 %v658
    %v1485 = vunpack.c.l.b16 %v659
    %v1486 = vunpack.c.h.b16 %v659
    %v1487 = vunpack.c.l.b16 %v660
    %v1488 = vunpack.c.h.b16 %v660
    %v1489 = vunpack.c.l.b16 %v661
    %v1490 = vunpack.c.h.b16 %v661
    %v1491 = vunpack.c.l.b16 %v662
    %v1492 = vunpack.c.h.b16 %v662
    %v1493 = vunpack.c.l.b16 %v663
    %v1494 = vunpack.c.h.b16 %v663
    %v1495 = vunpack.c.l.b16 %v664
    %v1496 = vunpack.c.h.b16 %v664
    %v1497 = vunpack.c.l.b16 %v665
    %v1498 = vunpack.c.h.b16 %v665
    %v1499 = vunpack.c.l.b16 %v666
    %v1500 = vunpack.c.h.b16 %v666
    %v1501 = vunpack.c.l.b16 %v667
    %v1502 = vunpack.c.h.b16 %v667
    %v1503 = vunpack.c.l.b16 %v668
    %v1504 = vunpack.c.h.b16 %v668
    %v1505 = vunpack.c.l.b16 %v669
    %v1506 = vunpack.c.h.b16 %v669
    %v1507 = vunpack.c.l.b16 %v670
    %v1508 = vunpack.c.h.b16 %v670
    %v1509 = vunpack.c.l.b16 %v671
    %v1510 = vunpack.c.h.b16 %v671
    %v1511 = vunpack.c.l.b16 %v672
    %v1512 = vunpack.c.h.b16 %v672
    %v1513 = vunpack.c.l.b16 %v673
    %v1514 = vunpack.c.h.b16 %v673
    %v1515 = vunpack.c.l.b16 %v674
    %v1516 = vunpack.c.h.b16 %v674
    %v1517 = vunpack.c.l.b16 %v675
    %v1518 = vunpack.c.h.b16 %v675
    %v1519 = vunpack.c.l.b16 %v676
    %v1520 = vunpack.c.h.b16 %v676
    %v1521 = vunpack.c.l.b16 %v677
    %v1522 = vunpack.c.h.b16 %v677
    %v1523 = vunpack.c.l.b16 %v678
    %v1524 = vunpack.c.h.b16 %v678
    %v1525 = vunpack.c.l.b16 %v679
    %v1526 = vunpack.c.h.b16 %v679
    %v1527 = vunpack.c.l.b16 %v680
    %v1528 = vunpack.c.h.b16 %v680
    %v1529 = vunpack.c.l.b16 %v681
    %v1530 = vunpack.c.h.b16 %v681
    %v1531 = vunpack.c.l.b16 %v682
    %v1532 = vunpack.c.h.b16 %v682
    %v1533 = vunpack.c.l.b16 %v683
    %v1534 = vunpack.c.h.b16 %v683
    %v1535 = vunpack.c.l.b16 %v684
    %v1536 = vunpack.c.h.b16 %v684
    %v1537 = vunpack.c.l.b16 %v685
    %v1538 = vunpack.c.h.b16 %v685
    %v1539 = vunpack.c.l.b16 %v686
    %v1540 = vunpack.c.h.b16 %v686
    %v1541 = vunpack.c.l.b16 %v687
    %v1542 = vunpack.c.h.b16 %v687
    %v1543 = vunpack.c.l.b16 %v688
    %v1544 = vunpack.c.h.b16 %v688
    %v1545 = vunpack.c.l.b16 %v689
    %v1546 = vunpack.c.h.b16 %v689
    %v1547 = vunpack.c.l.b16 %v690
    %v1548 = vunpack.c.h.b16 %v690
    %v1549 = vunpack.c.l.b16 %v691
    %v1550 = vunpack.c.h.b16 %v691
    %v1551 = vunpack.c.l.b16 %v692
    %v1552 = vunpack.c.h.b16 %v692
    %v1553 = vunpack.c.l.b16 %v693
    %v1554 = vunpack.c.h.b16 %v693
    %v1555 = vunpack.c.l.b16 %v694
    %v1556 = vunpack.c.h.b16 %v694
    %v1557 = vunpack.c.l.b16 %v695
    %v1558 = vunpack.c.h.b16 %v695
    %v1559 = vunpack.c.l.b16 %v696
    %v1560 = vunpack.c.h.b16 %v696
    %v1561 = vunpack.c.l.b16 %v697
    %v1562 = vunpack.c.h.b16 %v697
    %v1563 = vunpack.c.l.b16 %v698
    %v1564 = vunpack.c.h.b16 %v698
    %v1565 = vunpack.c.l.b16 %v699
    %v1566 = vunpack.c.h.b16 %v699
    %v1567 = vunpack.c.l.b16 %v700
    %v1568 = vunpack.c.h.b16 %v700
    %v1569 = vunpack.c.l.b16 %v701
    %v1570 = vunpack.c.h.b16 %v701
    %v1571 = vunpack.c.l.b16 %v702
    %v1572 = vunpack.c.h.b16 %v702
    %v1573 = vunpack.c.l.b16 %v703
    %v1574 = vunpack.c.h.b16 %v703
    %v1575 = vunpack.c.l.b16 %v704
    %v1576 = vunpack.c.h.b16 %v704
    %v1577 = vunpack.c.l.b16 %v705
    %v1578 = vunpack.c.h.b16 %v705
    %v1579 = vunpack.c.l.b16 %v706
    %v1580 = vunpack.c.h.b16 %v706
    %v1581 = vunpack.c.l.b16 %v707
    %v1582 = vunpack.c.h.b16 %v707
    %v1583 = vunpack.c.l.b16 %v708
    %v1584 = vunpack.c.h.b16 %v708
    %v1585 = vunpack.c.l.b16 %v709
    %v1586 = vunpack.c.h.b16 %v709
    %v1587 = vunpack.c.l.b16 %v710
    %v1588 = vunpack.c.h.b16 %v710
    %v1589 = vunpack.c.l.b16 %v711
    %v1590 = vunpack.c.h.b16 %v711
    %v1591 = vunpack.c.l.b16 %v712
    %v1592 = vunpack.c.h.b16 %v712
    %v1593 = vunpack.c.l.b16 %v713
    %v1594 = vunpack.c.h.b16 %v713
    %v1595 = vunpack.c.l.b16 %v714
    %v1596 = vunpack.c.h.b16 %v714
    %v1597 = vunpack.c.l.b16 %v715
    %v1598 = vunpack.c.h.b16 %v715
    %v1599 = vunpack.c.l.b16 %v716
    %v1600 = vunpack.c.h.b16 %v716
    %v1601 = vunpack.c.l.b16 %v717
    %v1602 = vunpack.c.h.b16 %v717
    %v1603 = vunpack.c.l.b16 %v718
    %v1604 = vunpack.c.h.b16 %v718
    %v1605 = vunpack.c.l.b16 %v719
    %v1606 = vunpack.c.h.b16 %v719
    %v1607 = vunpack.c.l.b16 %v720
    %v1608 = vunpack.c.h.b16 %v720
    %v1609 = vunpack.c.l.b16 %v721
    %v1610 = vunpack.c.h.b16 %v721
    %v1611 = vunpack.c.l.b16 %v722
    %v1612 = vunpack.c.h.b16 %v722
    %v1613 = vunpack.c.l.b16 %v723
    %v1614 = vunpack.c.h.b16 %v723
    %v1615 = vunpack.c.l.b16 %v724
    %v1616 = vunpack.c.h.b16 %v724
    %v1617 = vunpack.c.l.b16 %v725
    %v1618 = vunpack.c.h.b16 %v725
    %v1619 = vunpack.c.l.b16 %v726
    %v1620 = vunpack.c.h.b16 %v726
    %v1621 = vunpack.c.l.b16 %v727
    %v1622 = vunpack.c.h.b16 %v727
    %v1623 = vunpack.c.l.b16 %v728
    %v1624 = vunpack.c.h.b16 %v728
    %v1625 = vunpack.c.l.b16 %v729
    %v1626 = vunpack.c.h.b16 %v729
    %v1627 = vunpack.c.l.b16 %v730
    %v1628 = vunpack.c.h.b16 %v730
    %v1629 = vunpack.c.l.b16 %v731
    %v1630 = vunpack.c.h.b16 %v731
    %v1631 = vunpack.c.l.b16 %v732
    %v1632 = vunpack.c.h.b16 %v732
    %v1633 = vunpack.c.l.b16 %v733
    %v1634 = vunpack.c.h.b16 %v733
    %v1635 = vunpack.c.l.b16 %v734
    %v1636 = vunpack.c.h.b16 %v734
    %v1637 = vunpack.c.l.b16 %v735
    %v1638 = vunpack.c.h.b16 %v735
    %v1639 = vunpack.c.l.b16 %v736
    %v1640 = vunpack.c.h.b16 %v736
    %v1641 = vunpack.c.l.b16 %v737
    %v1642 = vunpack.c.h.b16 %v737
    %v1643 = vunpack.c.l.b16 %v738
    %v1644 = vunpack.c.h.b16 %v738
    %v1645 = vunpack.c.l.b16 %v739
    %v1646 = vunpack.c.h.b16 %v739
    %v1647 = vunpack.c.l.b16 %v740
    %v1648 = vunpack.c.h.b16 %v740
    %v1649 = vunpack.c.l.b16 %v741
    %v1650 = vunpack.c.h.b16 %v741
    %v1651 = vunpack.c.l.b16 %v742
    %v1652 = vunpack.c.h.b16 %v742
    %v1653 = vunpack.c.l.b16 %v743
    %v1654 = vunpack.c.h.b16 %v743
    %v1655 = vunpack.c.l.b16 %v744
    %v1656 = vunpack.c.h.b16 %v744
    %v1657 = vunpack.c.l.b16 %v745
    %v1658 = vunpack.c.h.b16 %v745
    %v1659 = vunpack.c.l.b16 %v746
    %v1660 = vunpack.c.h.b16 %v746
    %v1661 = vunpack.c.l.b16 %v747
    %v1662 = vunpack.c.h.b16 %v747
    %v1663 = vunpack.c.l.b16 %v748
    %v1664 = vunpack.c.h.b16 %v748
    %v1665 = vunpack.c.l.b16 %v749
    %v1666 = vunpack.c.h.b16 %v749
    %v1667 = vunpack.c.l.b16 %v750
    %v1668 = vunpack.c.h.b16 %v750
    %v1669 = vunpack.c.l.b16 %v751
    %v1670 = vunpack.c.h.b16 %v751
    %v1671 = vunpack.c.l.b16 %v752
    %v1672 = vunpack.c.h.b16 %v752
    %v1673 = vunpack.c.l.b16 %v753
    %v1674 = vunpack.c.h.b16 %v753
    %v1675 = vunpack.c.l.b16 %v754
    %v1676 = vunpack.c.h.b16 %v754
    %v1677 = vunpack.c.l.b16 %v755
    %v1678 = vunpack.c.h.b16 %v755
    %v1679 = vunpack.c.l.b16 %v756
    %v1680 = vunpack.c.h.b16 %v756
    %v1681 = vunpack.c.l.b16 %v757
    %v1682 = vunpack.c.h.b16 %v757
    %v1683 = vunpack.c.l.b16 %v758
    %v1684 = vunpack.c.h.b16 %v758
    %v1685 = vunpack.c.l.b16 %v759
    %v1686 = vunpack.c.h.b16 %v759
    %v1687 = vunpack.c.l.b16 %v760
    %v1688 = vunpack.c.h.b16 %v760
    %v1689 = vunpack.c.l.b16 %v761
    %v1690 = vunpack.c.h.b16 %v761
    %v1691 = vunpack.c.l.b16 %v762
    %v1692 = vunpack.c.h.b16 %v762
    %v1693 = vunpack.c.l.b16 %v763
    %v1694 = vunpack.c.h.b16 %v763
    %v1695 = vunpack.c.l.b16 %v764
    %v1696 = vunpack.c.h.b16 %v764
    %v1697 = vunpack.c.l.b16 %v765
    %v1698 = vunpack.c.h.b16 %v765
    %v1699 = vunpack.c.l.b16 %v766
    %v1700 = vunpack.c.h.b16 %v766
    %v1701 = vunpack.c.l.b16 %v767
    %v1702 = vunpack.c.h.b16 %v767
    %v1703 = vunpack.c.l.b16 %v768
    %v1704 = vunpack.c.h.b16 %v768
    %v1705 = vunpack.c.l.b16 %v769
    %v1706 = vunpack.c.h.b16 %v769
    %v1707 = vunpack.c.l.b16 %v770
    %v1708 = vunpack.c.h.b16 %v770
    %v1709 = vunpack.c.l.b16 %v771
    %v1710 = vunpack.c.h.b16 %v771
    %v1711 = vunpack.c.l.b16 %v772
    %v1712 = vunpack.c.h.b16 %v772
    %v1713 = vunpack.c.l.b16 %v773
    %v1714 = vunpack.c.h.b16 %v773
    %v1715 = vunpack.c.l.b16 %v774
    %v1716 = vunpack.c.h.b16 %v774
    %v1717 = vunpack.c.l.b16 %v775
    %v1718 = vunpack.c.h.b16 %v775
    %v1719 = vunpack.c.l.b16 %v776
    %v1720 = vunpack.c.h.b16 %v776
    %v1721 = vunpack.c.l.b16 %v777
    %v1722 = vunpack.c.h.b16 %v777
    %v1723 = vunpack.c.l.b16 %v778
    %v1724 = vunpack.c.h.b16 %v778
    %v1725 = vunpack.c.l.b16 %v779
    %v1726 = vunpack.c.h.b16 %v779
    %v1727 = vunpack.c.l.b16 %v780
    %v1728 = vunpack.c.h.b16 %v780
    %v1729 = vunpack.c.l.b16 %v781
    %v1730 = vunpack.c.h.b16 %v781
    %v1731 = vunpack.c.l.b16 %v782
    %v1732 = vunpack.c.h.b16 %v782
    %v1733 = vunpack.c.l.b16 %v783
    %v1734 = vunpack.c.h.b16 %v783
    %v1735 = vunpack.c.l.b16 %v784
    %v1736 = vunpack.c.h.b16 %v784
    %v1737 = vunpack.c.l.b16 %v785
    %v1738 = vunpack.c.h.b16 %v785
    %v1739 = vunpack.c.l.b16 %v786
    %v1740 = vunpack.c.h.b16 %v786
    %v1741 = vunpack.c.l.b16 %v787
    %v1742 = vunpack.c.h.b16 %v787
    %v1743 = vunpack.c.l.b16 %v788
    %v1744 = vunpack.c.h.b16 %v788
    %v1745 = vunpack.c.l.b16 %v789
    %v1746 = vunpack.c.h.b16 %v789
    %v1747 = vunpack.c.l.b16 %v790
    %v1748 = vunpack.c.h.b16 %v790
    %v1749 = vunpack.c.l.b16 %v791
    %v1750 = vunpack.c.h.b16 %v791
    %v1751 = vunpack.c.l.b16 %v792
    %v1752 = vunpack.c.h.b16 %v792
    %v1753 = vunpack.c.l.b16 %v793
    %v1754 = vunpack.c.h.b16 %v793
    %v1755 = vunpack.c.l.b16 %v794
    %v1756 = vunpack.c.h.b16 %v794
    %v1757 = vunpack.c.l.b16 %v795
    %v1758 = vunpack.c.h.b16 %v795
    %v1759 = vunpack.c.l.b16 %v796
    %v1760 = vunpack.c.h.b16 %v796
    %v1761 = vunpack.c.l.b16 %v797
    %v1762 = vunpack.c.h.b16 %v797
    %v1763 = vunpack.c.l.b16 %v798
    %v1764 = vunpack.c.h.b16 %v798
    %v1765 = vunpack.c.l.b16 %v799
    %v1766 = vunpack.c.h.b16 %v799
    %v1767 = vunpack.c.l.b16 %v800
    %v1768 = vunpack.c.h.b16 %v800
    %v1769 = vunpack.c.l.b16 %v801
    %v1770 = vunpack.c.h.b16 %v801
    %v1771 = vunpack.c.l.b16 %v802
    %v1772 = vunpack.c.h.b16 %v802
    %v1773 = vunpack.c.l.b16 %v803
    %v1774 = vunpack.c.h.b16 %v803
    %v1775 = vunpack.c.l.b16 %v804
    %v1776 = vunpack.c.h.b16 %v804
    %v1777 = vunpack.c.l.b16 %v805
    %v1778 = vunpack.c.h.b16 %v805
    %v1779 = vunpack.c.l.b16 %v806
    %v1780 = vunpack.c.h.b16 %v806
    %v1781 = vunpack.c.l.b16 %v807
    %v1782 = vunpack.c.h.b16 %v807
    %v1783 = vunpack.c.l.b16 %v808
    %v1784 = vunpack.c.h.b16 %v808
    %v1785 = vunpack.c.l.b16 %v809
    %v1786 = vunpack.c.h.b16 %v809
    %v1787 = vunpack.c.l.b16 %v810
    %v1788 = vunpack.c.h.b16 %v810
    %v1789 = vunpack.c.l.b16 %v811
    %v1790 = vunpack.c.h.b16 %v811
    %v1791 = vunpack.c.l.b16 %v812
    %v1792 = vunpack.c.h.b16 %v812
    %v1793 = vunpack.c.l.b16 %v813
    %v1794 = vunpack.c.h.b16 %v813
    %v1795 = vunpack.c.l.b16 %v814
    %v1796 = vunpack.c.h.b16 %v814
    %v1797 = vunpack.c.l.b16 %v815
    %v1798 = vunpack.c.h.b16 %v815
    %v1799 = vunpack.c.l.b16 %v816
    %v1800 = vunpack.c.h.b16 %v816
    %v1801 = vunpack.c.l.b16 %v817
    %v1802 = vunpack.c.h.b16 %v817
    %v1803 = vunpack.c.l.b16 %v818
    %v1804 = vunpack.c.h.b16 %v818
    %v1805 = vunpack.c.l.b16 %v819
    %v1806 = vunpack.c.h.b16 %v819
    %v1807 = vunpack.c.l.b16 %v820
    %v1808 = vunpack.c.h.b16 %v820
    %v1809 = vunpack.c.l.b16 %v821
    %v1810 = vunpack.c.h.b16 %v821
    %v1811 = vunpack.c.l.b16 %v822
    %v1812 = vunpack.c.h.b16 %v822
    %v1813 = vunpack.c.l.b16 %v823
    %v1814 = vunpack.c.h.b16 %v823
    %v1815 = vunpack.c.l.b16 %v824
    %v1816 = vunpack.c.h.b16 %v824
    %v1817 = vunpack.c.l.b16 %v825
    %v1818 = vunpack.c.h.b16 %v825
    %v1819 = vunpack.c.l.b16 %v826
    %v1820 = vunpack.c.h.b16 %v826
    %v1821 = vunpack.c.l.b16 %v827
    %v1822 = vunpack.c.h.b16 %v827
    %v1823 = vunpack.c.l.b16 %v828
    %v1824 = vunpack.c.h.b16 %v828
    %v1825 = vunpack.c.l.b16 %v829
    %v1826 = vunpack.c.h.b16 %v829
    %v1827 = vunpack.c.l.b16 %v830
    %v1828 = vunpack.c.h.b16 %v830
    %v1829 = vunpack.c.l.b16 %v831
    %v1830 = vunpack.c.h.b16 %v831
    %v1831 = vunpack.c.l.b16 %v832
    %v1832 = vunpack.c.h.b16 %v832
    %v1833 = vunpack.c.l.b16 %v833
    %v1834 = vunpack.c.h.b16 %v833
    %v1835 = vunpack.c.l.b16 %v834
    %v1836 = vunpack.c.h.b16 %v834
    %v1837 = vunpack.c.l.b16 %v835
    %v1838 = vunpack.c.h.b16 %v835
    %v1839 = vunpack.c.l.b16 %v836
    %v1840 = vunpack.c.h.b16 %v836
    %v1841 = vunpack.c.l.b16 %v837
    %v1842 = vunpack.c.h.b16 %v837
    %v1843 = vunpack.c.l.b16 %v838
    %v1844 = vunpack.c.h.b16 %v838
    %v1845 = vunpack.c.l.b16 %v839
    %v1846 = vunpack.c.h.b16 %v839
    %v1847 = vunpack.c.l.b16 %v840
    %v1848 = vunpack.c.h.b16 %v840
    %v1849 = vunpack.c.l.b16 %v841
    %v1850 = vunpack.c.h.b16 %v841
    %v1851 = vunpack.c.l.b16 %v842
    %v1852 = vunpack.c.h.b16 %v842
    %v1853 = vunpack.c.l.b16 %v843
    %v1854 = vunpack.c.h.b16 %v843
    %v1855 = vunpack.c.l.b16 %v844
    %v1856 = vunpack.c.h.b16 %v844
    %v1857 = vunpack.c.l.b16 %v845
    %v1858 = vunpack.c.h.b16 %v845
    %v1859 = vunpack.c.l.b16 %v846
    %v1860 = vunpack.c.h.b16 %v846
    %v1861 = vunpack.c.l.b16 %v847
    %v1862 = vunpack.c.h.b16 %v847
    %v1863 = vunpack.c.l.b16 %v848
    %v1864 = vunpack.c.h.b16 %v848
    %v1865 = vunpack.c.l.b16 %v849
    %v1866 = vunpack.c.h.b16 %v849
    %v1867 = vunpack.c.l.b16 %v850
    %v1868 = vunpack.c.h.b16 %v850
    %v1869 = vunpack.c.l.b16 %v851
    %v1870 = vunpack.c.h.b16 %v851
    %v1871 = vunpack.c.l.b16 %v852
    %v1872 = vunpack.c.h.b16 %v852
    %v1873 = vunpack.c.l.b16 %v853
    %v1874 = vunpack.c.h.b16 %v853
    %v1875 = vunpack.c.l.b16 %v854
    %v1876 = vunpack.c.h.b16 %v854
    %v1877 = vunpack.c.l.b16 %v855
    %v1878 = vunpack.c.h.b16 %v855
    %v1879 = vunpack.c.l.b16 %v856
    %v1880 = vunpack.c.h.b16 %v856
    %v1881 = vunpack.c.l.b16 %v857
    %v1882 = vunpack.c.h.b16 %v857
    %v1883 = vunpack.c.l.b16 %v858
    %v1884 = vunpack.c.h.b16 %v858
    %v1885 = vunpack.c.l.b16 %v859
    %v1886 = vunpack.c.h.b16 %v859
    %v1887 = vunpack.c.l.b16 %v860
    %v1888 = vunpack.c.h.b16 %v860
    %v1889 = vunpack.c.l.b16 %v861
    %v1890 = vunpack.c.h.b16 %v861
    %v1891 = vunpack.c.l.b16 %v862
    %v1892 = vunpack.c.h.b16 %v862
    %v1893 = vunpack.c.l.b16 %v863
    %v1894 = vunpack.c.h.b16 %v863
    %v1895 = vunpack.c.l.b16 %v864
    %v1896 = vunpack.c.h.b16 %v864
    %v1897 = vunpack.c.l.b16 %v865
    %v1898 = vunpack.c.h.b16 %v865
    %v1899 = vunpack.c.l.b16 %v866
    %v1900 = vunpack.c.h.b16 %v866
    %v1901 = vunpack.c.l.b16 %v867
    %v1902 = vunpack.c.h.b16 %v867
    %v1903 = vunpack.c.l.b16 %v868
    %v1904 = vunpack.c.h.b16 %v868
    %v1905 = vunpack.c.l.b16 %v869
    %v1906 = vunpack.c.h.b16 %v869
    %v1907 = vunpack.c.l.b16 %v870
    %v1908 = vunpack.c.h.b16 %v870
    %v1909 = vunpack.c.l.b16 %v871
    %v1910 = vunpack.c.h.b16 %v871
    %v1911 = vunpack.c.l.b16 %v872
    %v1912 = vunpack.c.h.b16 %v872
    %v1913 = vunpack.c.l.b16 %v873
    %v1914 = vunpack.c.h.b16 %v873
    %v1915 = vunpack.c.l.b16 %v874
    %v1916 = vunpack.c.h.b16 %v874
    %v1917 = vunpack.c.l.b16 %v875
    %v1918 = vunpack.c.h.b16 %v875
    %v1919 = vunpack.c.l.b16 %v876
    %v1920 = vunpack.c.h.b16 %v876
    %v1921 = vunpack.c.l.b16 %v877
    %v1922 = vunpack.c.h.b16 %v877
    %v1923 = vunpack.c.l.b16 %v878
    %v1924 = vunpack.c.h.b16 %v878
    %v1925 = vunpack.c.l.b16 %v879
    %v1926 = vunpack.c.h.b16 %v879
    %v1927 = vunpack.c.l.b16 %v880
    %v1928 = vunpack.c.h.b16 %v880
    %v1929 = vunpack.c.l.b16 %v881
    %v1930 = vunpack.c.h.b16 %v881
    %v1931 = vunpack.c.l.b16 %v882
    %v1932 = vunpack.c.h.b16 %v882
    %v1933 = vunpack.c.l.b16 %v883
    %v1934 = vunpack.c.h.b16 %v883
    %v1935 = vunpack.c.l.b16 %v884
    %v1936 = vunpack.c.h.b16 %v884
    %v1937 = vunpack.c.l.b16 %v885
    %v1938 = vunpack.c.h.b16 %v885
    %v1939 = vunpack.c.l.b16 %v886
    %v1940 = vunpack.c.h.b16 %v886
    %v1941 = vunpack.c.l.b16 %v887
    %v1942 = vunpack.c.h.b16 %v887
    %v1943 = vunpack.c.l.b16 %v888
    %v1944 = vunpack.c.h.b16 %v888
    %v1945 = vunpack.c.l.b16 %v889
    %v1946 = vunpack.c.h.b16 %v889
    %v1947 = vunpack.c.l.b16 %v890
    %v1948 = vunpack.c.h.b16 %v890
    %v1949 = vunpack.c.l.b16 %v891
    %v1950 = vunpack.c.h.b16 %v891
    %v1951 = vunpack.c.l.b16 %v892
    %v1952 = vunpack.c.h.b16 %v892
    %v1953 = vunpack.c.l.b16 %v893
    %v1954 = vunpack.c.h.b16 %v893
    %v1955 = vunpack.c.l.b16 %v894
    %v1956 = vunpack.c.h.b16 %v894
    %v1957 = vunpack.c.l.b16 %v895
    %v1958 = vunpack.c.h.b16 %v895
    %v1959 = vunpack.c.l.b16 %v896
    %v1960 = vunpack.c.h.b16 %v896
    %v1961 = vunpack.c.l.b16 %v897
    %v1962 = vunpack.c.h.b16 %v897
    %v1963 = vunpack.c.l.b16 %v898
    %v1964 = vunpack.c.h.b16 %v898
    %v1965 = vunpack.c.l.b16 %v899
    %v1966 = vunpack.c.h.b16 %v899
    %v1967 = vunpack.c.l.b16 %v900
    %v1968 = vunpack.c.h.b16 %v900
    %v1969 = vunpack.c.l.b16 %v901
    %v1970 = vunpack.c.h.b16 %v901
    %v1971 = vunpack.c.l.b16 %v902
    %v1972 = vunpack.c.h.b16 %v902
    %v1973 = vunpack.c.l.b16 %v903
    %v1974 = vunpack.c.h.b16 %v903
    %v1975 = vunpack.c.l.b16 %v904
    %v1976 = vunpack.c.h.b16 %v904
    %v1977 = vunpack.c.l.b16 %v905
    %v1978 = vunpack.c.h.b16 %v905
    %v1979 = vunpack.c.l.b16 %v906
    %v1980 = vunpack.c.h.b16 %v906
    %v1981 = vunpack.c.l.b16 %v907
    %v1982 = vunpack.c.h.b16 %v907
    %v1983 = vunpack.c.l.b16 %v908
    %v1984 = vunpack.c.h.b16 %v908
    %v1985 = vunpack.c.l.b16 %v909
    %v1986 = vunpack.c.h.b16 %v909
    %v1987 = vunpack.c.l.b16 %v910
    %v1988 = vunpack.c.h.b16 %v910
    %v1989 = vunpack.c.l.b16 %v911
    %v1990 = vunpack.c.h.b16 %v911
    %v1991 = vunpack.c.l.b16 %v912
    %v1992 = vunpack.c.h.b16 %v912
    %v1993 = vunpack.c.l.b16 %v913
    %v1994 = vunpack.c.h.b16 %v913
    %v1995 = vunpack.c.l.b16 %v914
    %v1996 = vunpack.c.h.b16 %v914
    %v1997 = vunpack.c.l.b16 %v915
    %v1998 = vunpack.c.h.b16 %v915
    %v1999 = vunpack.c.l.b16 %v916
    %v2000 = vunpack.c.h.b16 %v916
    %v2001 = vunpack.c.l.b16 %v917
    %v2002 = vunpack.c.h.b16 %v917
    %v2003 = vunpack.c.l.b16 %v918
    %v2004 = vunpack.c.h.b16 %v918
    %v2005 = vunpack.c.l.b16 %v919
    %v2006 = vunpack.c.h.b16 %v919
    %v2007 = vunpack.c.l.b16 %v920
    %v2008 = vunpack.c.h.b16 %v920
    %v2009 = vunpack.c.l.b16 %v921
    %v2010 = vunpack.c.h.b16 %v921
    %v2011 = vunpack.c.l.b16 %v922
    %v2012 = vunpack.c.h.b16 %v922
    %v2013 = vunpack.c.l.b16 %v923
    %v2014 = vunpack.c.h.b16 %v923
    %v2015 = vunpack.c.l.b16 %v924
    %v2016 = vunpack.c.h.b16 %v924
    %v2017 = vunpack.c.l.b16 %v925
    %v2018 = vunpack.c.h.b16 %v925
    %v2019 = vunpack.c.l.b16 %v926
    %v2020 = vunpack.c.h.b16 %v926
    %v2021 = vunpack.c.l.b16 %v927
    %v2022 = vunpack.c.h.b16 %v927
    %v2023 = vunpack.c.l.b16 %v928
    %v2024 = vunpack.c.h.b16 %v928
    %v2025 = vunpack.c.l.b16 %v929
    %v2026 = vunpack.c.h.b16 %v929
    %v2027 = vunpack.c.l.b16 %v930
    %v2028 = vunpack.c.h.b16 %v930
    %v2029 = vunpack.c.l.b16 %v931
    %v2030 = vunpack.c.h.b16 %v931
    %v2031 = vunpack.c.l.b16 %v932
    %v2032 = vunpack.c.h.b16 %v932
    %v2033 = vunpack.c.l.b16 %v933
    %v2034 = vunpack.c.h.b16 %v933
    %v2035 = vunpack.c.l.b16 %v934
    %v2036 = vunpack.c.h.b16 %v934
    %v2037 = vunpack.c.l.b16 %v935
    %v2038 = vunpack.c.h.b16 %v935
    %v2039 = vunpack.c.l.b16 %v936
    %v2040 = vunpack.c.h.b16 %v936
    %v2041 = vunpack.c.l.b16 %v937
    %v2042 = vunpack.c.h.b16 %v937
    %v2043 = vunpack.c.l.b16 %v938
    %v2044 = vunpack.c.h.b16 %v938
    %v2045 = vunpack.c.l.b16 %v939
    %v2046 = vunpack.c.h.b16 %v939
    %v2047 = vunpack.c.l.b16 %v940
    %v2048 = vunpack.c.h.b16 %v940
    %v2049 = vunpack.c.l.b16 %v941
    %v2050 = vunpack.c.h.b16 %v941
    %v2051 = vunpack.c.l.b16 %v942
    %v2052 = vunpack.c.h.b16 %v942
    %v2053 = vunpack.c.l.b16 %v943
    %v2054 = vunpack.c.h.b16 %v943
    %v2055 = vunpack.c.l.b16 %v944
    %v2056 = vunpack.c.h.b16 %v944
    %v2057 = vunpack.c.l.b16 %v945
    %v2058 = vunpack.c.h.b16 %v945
    %v2059 = vunpack.c.l.b16 %v946
    %v2060 = vunpack.c.h.b16 %v946
    %v2061 = vunpack.c.l.b16 %v947
    %v2062 = vunpack.c.h.b16 %v947
    %v2063 = vunpack.c.l.b16 %v948
    %v2064 = vunpack.c.h.b16 %v948
    %v2065 = vunpack.c.l.b16 %v949
    %v2066 = vunpack.c.h.b16 %v949
    %v2067 = vunpack.c.l.b16 %v950
    %v2068 = vunpack.c.h.b16 %v950
    %v2069 = vunpack.c.l.b16 %v951
    %v2070 = vunpack.c.h.b16 %v951
    %v2071 = vunpack.c.l.b16 %v952
    %v2072 = vunpack.c.h.b16 %v952
    %v2073 = vunpack.c.l.b16 %v953
    %v2074 = vunpack.c.h.b16 %v953
    %v2075 = vunpack.c.l.b16 %v954
    %v2076 = vunpack.c.h.b16 %v954
    %v2077 = vunpack.c.l.b16 %v955
    %v2078 = vunpack.c.h.b16 %v955
    %v2079 = vunpack.c.l.b16 %v956
    %v2080 = vunpack.c.h.b16 %v956
    %v2081 = vunpack.c.l.b16 %v957
    %v2082 = vunpack.c.h.b16 %v957
    %v2083 = vunpack.c.l.b16 %v958
    %v2084 = vunpack.c.h.b16 %v958
    %v2085 = vunpack.c.l.b16 %v959
    %v2086 = vunpack.c.h.b16 %v959
    %v2087 = vunpack.c.l.b16 %v960
    %v2088 = vunpack.c.h.b16 %v960
    %v2089 = vunpack.c.l.b16 %v961
    %v2090 = vunpack.c.h.b16 %v961
    %v2091 = vunpack.c.l.b16 %v962
    %v2092 = vunpack.c.h.b16 %v962
    %v2093 = vunpack.c.l.b16 %v963
    %v2094 = vunpack.c.h.b16 %v963
    %v2095 = vunpack.c.l.b16 %v964
    %v2096 = vunpack.c.h.b16 %v964
    %v2097 = vunpack.c.l.b16 %v965
    %v2098 = vunpack.c.h.b16 %v965
    %v2099 = vunpack.c.l.b16 %v966
    %v2100 = vunpack.c.h.b16 %v966
    %v2101 = vunpack.c.l.b16 %v967
    %v2102 = vunpack.c.h.b16 %v967
    %v2103 = vunpack.c.l.b16 %v968
    %v2104 = vunpack.c.h.b16 %v968
    %v2105 = vunpack.c.l.b16 %v969
    %v2106 = vunpack.c.h.b16 %v969
    %v2107 = vunpack.c.l.b16 %v970
    %v2108 = vunpack.c.h.b16 %v970
    %v2109 = vunpack.c.l.b16 %v971
    %v2110 = vunpack.c.h.b16 %v971
    %v2111 = vunpack.c.l.b16 %v972
    %v2112 = vunpack.c.h.b16 %v972
    %v2113 = vunpack.c.l.b16 %v973
    %v2114 = vunpack.c.h.b16 %v973
    %v2115 = vunpack.c.l.b16 %v974
    %v2116 = vunpack.c.h.b16 %v974
    %v2117 = vunpack.c.l.b16 %v975
    %v2118 = vunpack.c.h.b16 %v975
    %v2119 = vunpack.c.l.b16 %v976
    %v2120 = vunpack.c.h.b16 %v976
    %v2121 = vunpack.c.l.b16 %v977
    %v2122 = vunpack.c.h.b16 %v977
    %v2123 = vunpack.c.l.b16 %v978
    %v2124 = vunpack.c.h.b16 %v978
    %v2125 = vunpack.c.l.b16 %v979
    %v2126 = vunpack.c.h.b16 %v979
    %v2127 = vunpack.c.l.b16 %v980
    %v2128 = vunpack.c.h.b16 %v980
    %v2129 = vunpack.c.l.b16 %v981
    %v2130 = vunpack.c.h.b16 %v981
    %v2131 = vunpack.c.l.b16 %v982
    %v2132 = vunpack.c.h.b16 %v982
    %v2133 = vunpack.c.l.b16 %v983
    %v2134 = vunpack.c.h.b16 %v983
    %v2135 = vunpack.c.l.b16 %v984
    %v2136 = vunpack.c.h.b16 %v984
    %v2137 = vpack.c.b16 %v1377, %v1369
    %v2138 = vpack.c.b16 %v1378, %v1370
    %v2139 = vpack.c.b16 %v1379, %v1371
    %v2140 = vpack.c.b16 %v1380, %v1372
    %v2141 = vpack.c.b16 %v1381, %v1373
    %v2142 = vpack.c.b16 %v1382, %v1374
    %v2143 = vpack.c.b16 %v1383, %v1375
    %v2144 = vpack.c.b16 %v1384, %v1376
    %v2145 = vpack.c.b16 %v1393, %v1385
    %v2146 = vpack.c.b16 %v1394, %v1386
    %v2147 = vpack.c.b16 %v1395, %v1387
    %v2148 = vpack.c.b16 %v1396, %v1388
    %v2149 = vpack.c.b16 %v1397, %v1389
    %v2150 = vpack.c.b16 %v1398, %v1390
    %v2151 = vpack.c.b16 %v1399, %v1391
    %v2152 = vpack.c.b16 %v1400, %v1392
    %v2153 = vpack.c.b16 %v1409, %v1401
    %v2154 = vpack.c.b16 %v1410, %v1402
    %v2155 = vpack.c.b16 %v1411, %v1403
    %v2156 = vpack.c.b16 %v1412, %v1404
    %v2157 = vpack.c.b16 %v1413, %v1405
    %v2158 = vpack.c.b16 %v1414, %v1406
    %v2159 = vpack.c.b16 %v1415, %v1407
    %v2160 = vpack.c.b16 %v1416, %v1408
    %v2161 = vpack.c.b16 %v1425, %v1417
    %v2162 = vpack.c.b16 %v1426, %v1418
    %v2163 = vpack.c.b16 %v1427, %v1419
    %v2164 = vpack.c.b16 %v1428, %v1420
    %v2165 = vpack.c.b16 %v1429, %v1421
    %v2166 = vpack.c.b16 %v1430, %v1422
    %v2167 = vpack.c.b16 %v1431, %v1423
    %v2168 = vpack.c.b16 %v1432, %v1424
    %v2169 = vpack.c.b16 %v1441, %v1433
    %v2170 = vpack.c.b16 %v1442, %v1434
    %v2171 = vpack.c.b16 %v1443, %v1435
    %v2172 = vpack.c.b16 %v1444, %v1436
    %v2173 = vpack.c.b16 %v1445, %v1437
    %v2174 = vpack.c.b16 %v1446, %v1438
    %v2175 = vpack.c.b16 %v1447, %v1439
    %v2176 = vpack.c.b16 %v1448, %v1440
    %v2177 = vpack.c.b16 %v1457, %v1449
    %v2178 = vpack.c.b16 %v1458, %v1450
    %v2179 = vpack.c.b16 %v1459, %v1451
    %v2180 = vpack.c.b16 %v1460, %v1452
    %v2181 = vpack.c.b16 %v1461, %v1453
    %v2182 = vpack.c.b16 %v1462, %v1454
    %v2183 = vpack.c.b16 %v1463, %v1455
    %v2184 = vpack.c.b16 %v1464, %v1456
    %v2185 = vpack.c.b16 %v1473, %v1465
    %v2186 = vpack.c.b16 %v1474, %v1466
    %v2187 = vpack.c.b16 %v1475, %v1467
    %v2188 = vpack.c.b16 %v1476, %v1468
    %v2189 = vpack.c.b16 %v1477, %v1469
    %v2190 = vpack.c.b16 %v1478, %v1470
    %v2191 = vpack.c.b16 %v1479, %v1471
    %v2192 = vpack.c.b16 %v1480, %v1472
    %v2193 = vpack.c.b16 %v1489, %v1481
    %v2194 = vpack.c.b16 %v1490, %v1482
    %v2195 = vpack.c.b16 %v1491, %v1483
    %v2196 = vpack.c.b16 %v1492, %v1484
    %v2197 = vpack.c.b16 %v1493, %v1485
    %v2198 = vpack.c.b16 %v1494, %v1486
    %v2199 = vpack.c.b16 %v1495, %v1487
    %v2200 = vpack.c.b16 %v1496, %v1488
    %v2201 = vpack.c.b16 %v1505, %v1497
    %v2202 = vpack.c.b16 %v1506, %v1498
    %v2203 = vpack.c.b16 %v1507, %v1499
    %v2204 = vpack.c.b16 %v1508, %v1500
    %v2205 = vpack.c.b16 %v1509, %v1501
    %v2206 = vpack.c.b16 %v1510, %v1502
    %v2207 = vpack.c.b16 %v1511, %v1503
    %v2208 = vpack.c.b16 %v1512, %v1504
    %v2209 = vpack.c.b16 %v1521, %v1513
    %v2210 = vpack.c.b16 %v1522, %v1514
    %v2211 = vpack.c.b16 %v1523, %v1515
    %v2212 = vpack.c.b16 %v1524, %v1516
    %v2213 = vpack.c.b16 %v1525, %v1517
    %v2214 = vpack.c.b16 %v1526, %v1518
    %v2215 = vpack.c.b16 %v1527, %v1519
    %v2216 = vpack.c.b16 %v1528, %v1520
    %v2217 = vpack.c.b16 %v1537, %v1529
    %v2218 = vpack.c.b16 %v1538, %v1530
    %v2219 = vpack.c.b16 %v1539, %v1531
    %v2220 = vpack.c.b16 %v1540, %v1532
    %v2221 = vpack.c.b16 %v1541, %v1533
    %v2222 = vpack.c.b16 %v1542, %v1534
    %v2223 = vpack.c.b16 %v1543, %v1535
    %v2224 = vpack.c.b16 %v1544, %v1536
    %v2225 = vpack.c.b16 %v1553, %v1545
    %v2226 = vpack.c.b16 %v1554, %v1546
    %v2227 = vpack.c.b16 %v1555, %v1547
    %v2228 = vpack.c.b16 %v1556, %v1548
    %v2229 = vpack.c.b16 %v1557, %v1549
    %v2230 = vpack.c.b16 %v1558, %v1550
    %v2231 = vpack.c.b16 %v1559, %v1551
    %v2232 = vpack.c.b16 %v1560, %v1552
    %v2233 = vpack.c.b16 %v1569, %v1561
    %v2234 = vpack.c.b16 %v1570, %v1562
    %v2235 = vpack.c.b16 %v1571, %v1563
    %v2236 = vpack.c.b16 %v1572, %v1564
    %v2237 = vpack.c.b16 %v1573, %v1565
    %v2238 = vpack.c.b16 %v1574, %v1566
    %v2239 = vpack.c.b16 %v1575, %v1567
    %v2240 = vpack.c.b16 %v1576, %v1568
    %v2241 = vpack.c.b16 %v1585, %v1577
    %v2242 = vpack.c.b16 %v1586, %v1578
    %v2243 = vpack.c.b16 %v1587, %v1579
    %v2244 = vpack.c.b16 %v1588, %v1580
    %v2245 = vpack.c.b16 %v1589, %v1581
    %v2246 = vpack.c.b16 %v1590, %v1582
    %v2247 = vpack.c.b16 %v1591, %v1583
    %v2248 = vpack.c.b16 %v1592, %v1584
    %v2249 = vpack.c.b16 %v1601, %v1593
    %v2250 = vpack.c.b16 %v1602, %v1594
    %v2251 = vpack.c.b16 %v1603, %v1595
    %v2252 = vpack.c.b16 %v1604, %v1596
    %v2253 = vpack.c.b16 %v1605, %v1597
    %v2254 = vpack.c.b16 %v1606, %v1598
    %v2255 = vpack.c.b16 %v1607, %v1599
    %v2256 = vpack.c.b16 %v1608, %v1600
    %v2257 = vpack.c.b16 %v1617, %v1609
    %v2258 = vpack.c.b16 %v1618, %v1610
    %v2259 = vpack.c.b16 %v1619, %v1611
    %v2260 = vpack.c.b16 %v1620, %v1612
    %v2261 = vpack.c.b16 %v1621, %v1613
    %v2262 = vpack.c.b16 %v1622, %v1614
    %v2263 = vpack.c.b16 %v1623, %v1615
    %v2264 = vpack.c.b16 %v1624, %v1616
    %v2265 = vpack.c.b16 %v1633, %v1625
    %v2266 = vpack.c.b16 %v1634, %v1626
    %v2267 = vpack.c.b16 %v1635, %v1627
    %v2268 = vpack.c.b16 %v1636, %v1628
    %v2269 = vpack.c.b16 %v1637, %v1629
    %v2270 = vpack.c.b16 %v1638, %v1630
    %v2271 = vpack.c.b16 %v1639, %v1631
    %v2272 = vpack.c.b16 %v1640, %v1632
    %v2273 = vpack.c.b16 %v1649, %v1641
    %v2274 = vpack.c.b16 %v1650, %v1642
    %v2275 = vpack.c.b16 %v1651, %v1643
    %v2276 = vpack.c.b16 %v1652, %v1644
    %v2277 = vpack.c.b16 %v1653, %v1645
    %v2278 = vpack.c.b16 %v1654, %v1646
    %v2279 = vpack.c.b16 %v1655, %v1647
    %v2280 = vpack.c.b16 %v1656, %v1648
    %v2281 = vpack.c.b16 %v1665, %v1657
    %v2282 = vpack.c.b16 %v1666, %v1658
    %v2283 = vpack.c.b16 %v1667, %v1659
    %v2284 = vpack.c.b16 %v1668, %v1660
    %v2285 = vpack.c.b16 %v1669, %v1661
    %v2286 = vpack.c.b16 %v1670, %v1662
    %v2287 = vpack.c.b16 %v1671, %v1663
    %v2288 = vpack.c.b16 %v1672, %v1664
    %v2289 = vpack.c.b16 %v1681, %v1673
    %v2290 = vpack.c.b16 %v1682, %v1674
    %v2291 = vpack.c.b16 %v1683, %v1675
    %v2292 = vpack.c.b16 %v1684, %v1676
    %v2293 = vpack.c.b16 %v1685, %v1677
    %v2294 = vpack.c.b16 %v1686, %v1678
    %v2295 = vpack.c.b16 %v1687, %v1679
    %v2296 = vpack.c.b16 %v1688, %v1680
    %v2297 = vpack.c.b16 %v1697, %v1689
    %v2298 = vpack.c.b16 %v1698, %v1690
    %v2299 = vpack.c.b16 %v1699, %v1691
    %v2300 = vpack.c.b16 %v1700, %v1692
    %v2301 = vpack.c.b16 %v1701, %v1693
    %v2302 = vpack.c.b16 %v1702, %v1694
    %v2303 = vpack.c.b16 %v1703, %v1695
    %v2304 = vpack.c.b16 %v1704, %v1696
    %v2305 = vpack.c.b16 %v1713, %v1705
    %v2306 = vpack.c.b16 %v1714, %v1706
    %v2307 = vpack.c.b16 %v1715, %v1707
    %v2308 = vpack.c.b16 %v1716, %v1708
    %v2309 = vpack.c.b16 %v1717, %v1709
    %v2310 = vpack.c.b16 %v1718, %v1710
    %v2311 = vpack.c.b16 %v1719, %v1711
    %v2312 = vpack.c.b16 %v1720, %v1712
    %v2313 = vpack.c.b16 %v1729, %v1721
    %v2314 = vpack.c.b16 %v1730, %v1722
    %v2315 = vpack.c.b16 %v1731, %v1723
    %v2316 = vpack.c.b16 %v1732, %v1724
    %v2317 = vpack.c.b16 %v1733, %v1725
    %v2318 = vpack.c.b16 %v1734, %v1726
    %v2319 = vpack.c.b16 %v1735, %v1727
    %v2320 = vpack.c.b16 %v1736, %v1728
    %v2321 = vpack.c.b16 %v1745, %v1737
    %v2322 = vpack.c.b16 %v1746, %v1738
    %v2323 = vpack.c.b16 %v1747, %v1739
    %v2324 = vpack.c.b16 %v1748, %v1740
    %v2325 = vpack.c.b16 %v1749, %v1741
    %v2326 = vpack.c.b16 %v1750, %v1742
    %v2327 = vpack.c.b16 %v1751, %v1743
    %v2328 = vpack.c.b16 %v1752, %v1744
    %v2329 = vpack.c.b16 %v1761, %v1753
    %v2330 = vpack.c.b16 %v1762, %v1754
    %v2331 = vpack.c.b16 %v1763, %v1755
    %v2332 = vpack.c.b16 %v1764, %v1756
    %v2333 = vpack.c.b16 %v1765, %v1757
    %v2334 = vpack.c.b16 %v1766, %v1758
    %v2335 = vpack.c.b16 %v1767, %v1759
    %v2336 = vpack.c.b16 %v1768, %v1760
    %v2337 = vpack.c.b16 %v1777, %v1769
    %v2338 = vpack.c.b16 %v1778, %v1770
    %v2339 = vpack.c.b16 %v1779, %v1771
    %v2340 = vpack.c.b16 %v1780, %v1772
    %v2341 = vpack.c.b16 %v1781, %v1773
    %v2342 = vpack.c.b16 %v1782, %v1774
    %v2343 = vpack.c.b16 %v1783, %v1775
    %v2344 = vpack.c.b16 %v1784, %v1776
    %v2345 = vpack.c.b16 %v1793, %v1785
    %v2346 = vpack.c.b16 %v1794, %v1786
    %v2347 = vpack.c.b16 %v1795, %v1787
    %v2348 = vpack.c.b16 %v1796, %v1788
    %v2349 = vpack.c.b16 %v1797, %v1789
    %v2350 = vpack.c.b16 %v1798, %v1790
    %v2351 = vpack.c.b16 %v1799, %v1791
    %v2352 = vpack.c.b16 %v1800, %v1792
    %v2353 = vpack.c.b16 %v1809, %v1801
    %v2354 = vpack.c.b16 %v1810, %v1802
    %v2355 = vpack.c.b16 %v1811, %v1803
    %v2356 = vpack.c.b16 %v1812, %v1804
    %v2357 = vpack.c.b16 %v1813, %v1805
    %v2358 = vpack.c.b16 %v1814, %v1806
    %v2359 = vpack.c.b16 %v1815, %v1807
    %v2360 = vpack.c.b16 %v1816, %v1808
    %v2361 = vpack.c.b16 %v1825, %v1817
    %v2362 = vpack.c.b16 %v1826, %v1818
    %v2363 = vpack.c.b16 %v1827, %v1819
    %v2364 = vpack.c.b16 %v1828, %v1820
    %v2365 = vpack.c.b16 %v1829, %v1821
    %v2366 = vpack.c.b16 %v1830, %v1822
    %v2367 = vpack.c.b16 %v1831, %v1823
    %v2368 = vpack.c.b16 %v1832, %v1824
    %v2369 = vpack.c.b16 %v1841, %v1833
    %v2370 = vpack.c.b16 %v1842, %v1834
    %v2371 = vpack.c.b16 %v1843, %v1835
    %v2372 = vpack.c.b16 %v1844, %v1836
    %v2373 = vpack.c.b16 %v1845, %v1837
    %v2374 = vpack.c.b16 %v1846, %v1838
    %v2375 = vpack.c.b16 %v1847, %v1839
    %v2376 = vpack.c.b16 %v1848, %v1840
    %v2377 = vpack.c.b16 %v1857, %v1849
    %v2378 = vpack.c.b16 %v1858, %v1850
    %v2379 = vpack.c.b16 %v1859, %v1851
    %v2380 = vpack.c.b16 %v1860, %v1852
    %v2381 = vpack.c.b16 %v1861, %v1853
    %v2382 = vpack.c.b16 %v1862, %v1854
    %v2383 = vpack.c.b16 %v1863, %v1855
    %v2384 = vpack.c.b16 %v1864, %v1856
    %v2385 = vpack.c.b16 %v1873, %v1865
    %v2386 = vpack.c.b16 %v1874, %v1866
    %v2387 = vpack.c.b16 %v1875, %v1867
    %v2388 = vpack.c.b16 %v1876, %v1868
    %v2389 = vpack.c.b16 %v1877, %v1869
    %v2390 = vpack.c.b16 %v1878, %v1870
    %v2391 = vpack.c.b16 %v1879, %v1871
    %v2392 = vpack.c.b16 %v1880, %v1872
    %v2393 = vpack.c.b16 %v1889, %v1881
    %v2394 = vpack.c.b16 %v1890, %v1882
    %v2395 = vpack.c.b16 %v1891, %v1883
    %v2396 = vpack.c.b16 %v1892, %v1884
    %v2397 = vpack.c.b16 %v1893, %v1885
    %v2398 = vpack.c.b16 %v1894, %v1886
    %v2399 = vpack.c.b16 %v1895, %v1887
    %v2400 = vpack.c.b16 %v1896, %v1888
    %v2401 = vpack.c.b16 %v1905, %v1897
    %v2402 = vpack.c.b16 %v1906, %v1898
    %v2403 = vpack.c.b16 %v1907, %v1899
    %v2404 = vpack.c.b16 %v1908, %v1900
    %v2405 = vpack.c.b16 %v1909, %v1901
    %v2406 = vpack.c.b16 %v1910, %v1902
    %v2407 = vpack.c.b16 %v1911, %v1903
    %v2408 = vpack.c.b16 %v1912, %v1904
    %v2409 = vpack.c.b16 %v1921, %v1913
    %v2410 = vpack.c.b16 %v1922, %v1914
    %v2411 = vpack.c.b16 %v1923, %v1915
    %v2412 = vpack.c.b16 %v1924, %v1916
    %v2413 = vpack.c.b16 %v1925, %v1917
    %v2414 = vpack.c.b16 %v1926, %v1918
    %v2415 = vpack.c.b16 %v1927, %v1919
    %v2416 = vpack.c.b16 %v1928, %v1920
    %v2417 = vpack.c.b16 %v1937, %v1929
    %v2418 = vpack.c.b16 %v1938, %v1930
    %v2419 = vpack.c.b16 %v1939, %v1931
    %v2420 = vpack.c.b16 %v1940, %v1932
    %v2421 = vpack.c.b16 %v1941, %v1933
    %v2422 = vpack.c.b16 %v1942, %v1934
    %v2423 = vpack.c.b16 %v1943, %v1935
    %v2424 = vpack.c.b16 %v1944, %v1936
    %v2425 = vpack.c.b16 %v1953, %v1945
    %v2426 = vpack.c.b16 %v1954, %v1946
    %v2427 = vpack.c.b16 %v1955, %v1947
    %v2428 = vpack.c.b16 %v1956, %v1948
    %v2429 = vpack.c.b16 %v1957, %v1949
    %v2430 = vpack.c.b16 %v1958, %v1950
    %v2431 = vpack.c.b16 %v1959, %v1951
    %v2432 = vpack.c.b16 %v1960, %v1952
    %v2433 = vpack.c.b16 %v1969, %v1961
    %v2434 = vpack.c.b16 %v1970, %v1962
    %v2435 = vpack.c.b16 %v1971, %v1963
    %v2436 = vpack.c.b16 %v1972, %v1964
    %v2437 = vpack.c.b16 %v1973, %v1965
    %v2438 = vpack.c.b16 %v1974, %v1966
    %v2439 = vpack.c.b16 %v1975, %v1967
    %v2440 = vpack.c.b16 %v1976, %v1968
    %v2441 = vpack.c.b16 %v1985, %v1977
    %v2442 = vpack.c.b16 %v1986, %v1978
    %v2443 = vpack.c.b16 %v1987, %v1979
    %v2444 = vpack.c.b16 %v1988, %v1980
    %v2445 = vpack.c.b16 %v1989, %v1981
    %v2446 = vpack.c.b16 %v1990, %v1982
    %v2447 = vpack.c.b16 %v1991, %v1983
    %v2448 = vpack.c.b16 %v1992, %v1984
    %v2449 = vpack.c.b16 %v2001, %v1993
    %v2450 = vpack.c.b16 %v2002, %v1994
    %v2451 = vpack.c.b16 %v2003, %v1995
    %v2452 = vpack.c.b16 %v2004, %v1996
    %v2453 = vpack.c.b16 %v2005, %v1997
    %v2454 = vpack.c.b16 %v2006, %v1998
    %v2455 = vpack.c.b16 %v2007, %v1999
    %v2456 = vpack.c.b16 %v2008, %v2000
    %v2457 = vpack.c.b16 %v2017, %v2009
    %v2458 = vpack.c.b16 %v2018, %v2010
    %v2459 = vpack.c.b16 %v2019, %v2011
    %v2460 = vpack.c.b16 %v2020, %v2012
    %v2461 = vpack.c.b16 %v2021, %v2013
    %v2462 = vpack.c.b16 %v2022, %v2014
    %v2463 = vpack.c.b16 %v2023, %v2015
    %v2464 = vpack.c.b16 %v2024, %v2016
    %v2465 = vpack.c.b16 %v2033, %v2025
    %v2466 = vpack.c.b16 %v2034, %v2026
    %v2467 = vpack.c.b16 %v2035, %v2027
    %v2468 = vpack.c.b16 %v2036, %v2028
    %v2469 = vpack.c.b16 %v2037, %v2029
    %v2470 = vpack.c.b16 %v2038, %v2030
    %v2471 = vpack.c.b16 %v2039, %v2031
    %v2472 = vpack.c.b16 %v2040, %v2032
    %v2473 = vpack.c.b16 %v2049, %v2041
    %v2474 = vpack.c.b16 %v2050, %v2042
    %v2475 = vpack.c.b16 %v2051, %v2043
    %v2476 = vpack.c.b16 %v2052, %v2044
    %v2477 = vpack.c.b16 %v2053, %v2045
    %v2478 = vpack.c.b16 %v2054, %v2046
    %v2479 = vpack.c.b16 %v2055, %v2047
    %v2480 = vpack.c.b16 %v2056, %v2048
    %v2481 = vpack.c.b16 %v2065, %v2057
    %v2482 = vpack.c.b16 %v2066, %v2058
    %v2483 = vpack.c.b16 %v2067, %v2059
    %v2484 = vpack.c.b16 %v2068, %v2060
    %v2485 = vpack.c.b16 %v2069, %v2061
    %v2486 = vpack.c.b16 %v2070, %v2062
    %v2487 = vpack.c.b16 %v2071, %v2063
    %v2488 = vpack.c.b16 %v2072, %v2064
    %v2489 = vpack.c.b16 %v2081, %v2073
    %v2490 = vpack.c.b16 %v2082, %v2074
    %v2491 = vpack.c.b16 %v2083, %v2075
    %v2492 = vpack.c.b16 %v2084, %v2076
    %v2493 = vpack.c.b16 %v2085, %v2077
    %v2494 = vpack.c.b16 %v2086, %v2078
    %v2495 = vpack.c.b16 %v2087, %v2079
    %v2496 = vpack.c.b16 %v2088, %v2080
    %v2497 = vpack.c.b16 %v2097, %v2089
    %v2498 = vpack.c.b16 %v2098, %v2090
    %v2499 = vpack.c.b16 %v2099, %v2091
    %v2500 = vpack.c.b16 %v2100, %v2092
    %v2501 = vpack.c.b16 %v2101, %v2093
    %v2502 = vpack.c.b16 %v2102, %v2094
    %v2503 = vpack.c.b16 %v2103, %v2095
    %v2504 = vpack.c.b16 %v2104, %v2096
    %v2505 = vpack.c.b16 %v2113, %v2105
    %v2506 = vpack.c.b16 %v2114, %v2106
    %v2507 = vpack.c.b16 %v2115, %v2107
    %v2508 = vpack.c.b16 %v2116, %v2108
    %v2509 = vpack.c.b16 %v2117, %v2109
    %v2510 = vpack.c.b16 %v2118, %v2110
    %v2511 = vpack.c.b16 %v2119, %v2111
    %v2512 = vpack.c.b16 %v2120, %v2112
    %v2513 = vpack.c.b16 %v2129, %v2121
    %v2514 = vpack.c.b16 %v2130, %v2122
    %v2515 = vpack.c.b16 %v2131, %v2123
    %v2516 = vpack.c.b16 %v2132, %v2124
    %v2517 = vpack.c.b16 %v2133, %v2125
    %v2518 = vpack.c.b16 %v2134, %v2126
    %v2519 = vpack.c.b16 %v2135, %v2127
    %v2520 = vpack.c.b16 %v2136, %v2128
    %2905 = vmatprep.subr.bf16.mxu0 %v2138
    %2906 = vmatpush1.bf16.msra.mxu0 %v2137
    %2907 = vmatprep.subr.bf16.mxu0 %v2146
    %2908 = vmatpush1.bf16.msra.mxu0 %v2145
    %2909 = vmatprep.subr.bf16.mxu0 %v2154
    %2910 = vmatpush1.bf16.msra.mxu0 %v2153
    %2911 = vmatprep.subr.bf16.mxu0 %v2162
    %2912 = vmatpush1.bf16.msra.mxu0 %v2161
    %2913 = vmatprep.subr.bf16.mxu0 %v2170
    %2914 = vmatpush1.bf16.msra.mxu0 %v2169
    %2915 = vmatprep.subr.bf16.mxu0 %v2178
    %2916 = vmatpush1.bf16.msra.mxu0 %v2177
    %2917 = vmatprep.subr.bf16.mxu0 %v2186
    %2918 = vmatpush1.bf16.msra.mxu0 %v2185
    %2919 = vmatprep.subr.bf16.mxu0 %v2194
    %2920 = vmatpush1.bf16.msra.mxu0 %v2193
    %2921 = vmatprep.subr.bf16.mxu0 %v2202
    %2922 = vmatpush1.bf16.msra.mxu0 %v2201
    %2923 = vmatprep.subr.bf16.mxu0 %v2210
    %2924 = vmatpush1.bf16.msra.mxu0 %v2209
    %2925 = vmatprep.subr.bf16.mxu0 %v2218
    %2926 = vmatpush1.bf16.msra.mxu0 %v2217
    %2927 = vmatprep.subr.bf16.mxu0 %v2226
    %2928 = vmatpush1.bf16.msra.mxu0 %v2225
    %2929 = vmatprep.subr.bf16.mxu0 %v2234
    %2930 = vmatpush1.bf16.msra.mxu0 %v2233
    %2931 = vmatprep.subr.bf16.mxu0 %v2242
    %2932 = vmatpush1.bf16.msra.mxu0 %v2241
    %2933 = vmatprep.subr.bf16.mxu0 %v2250
    %2934 = vmatpush1.bf16.msra.mxu0 %v2249
    %2935 = vmatprep.subr.bf16.mxu0 %v2258
    %2936 = vmatpush1.bf16.msra.mxu0 %v2257
    %2937 = vmatprep.mubr.bf16.mxu0 %v200
    %2938 = vmatmul.mubr.bf16.gmra.mrb[0].mxu0 %v199
    %v2939 = vpop.f32.mrb[0].mxu0
    %v2940 = vadd.f32 0.0, %v2939
    %v2941 = vpop.f32.mrb[0].mxu0
    %v2942 = vadd.f32 0.0, %v2941
    %v2943 = vpop.f32.mrb[0].mxu0
    %v2944 = vpop.f32.mrb[0].mxu0
    %2945 = vdwg.mxu0
    %2946 = vmatprep.subr.bf16.mxu0 %v2266
    %2947 = vmatpush1.bf16.msra.mxu0 %v2265
    %2948 = vmatprep.subr.bf16.mxu0 %v2274
    %2949 = vmatpush1.bf16.msra.mxu0 %v2273
    %2950 = vmatprep.subr.bf16.mxu0 %v2282
    %2951 = vmatpush1.bf16.msra.mxu0 %v2281
    %2952 = vmatprep.subr.bf16.mxu0 %v2290
    %2953 = vmatpush1.bf16.msra.mxu0 %v2289
    %2954 = vmatprep.subr.bf16.mxu0 %v2298
    %2955 = vmatpush1.bf16.msra.mxu0 %v2297
    %2956 = vmatprep.subr.bf16.mxu0 %v2306
    %2957 = vmatpush1.bf16.msra.mxu0 %v2305
    %2958 = vmatprep.subr.bf16.mxu0 %v2314
    %2959 = vmatpush1.bf16.msra.mxu0 %v2313
    %2960 = vmatprep.subr.bf16.mxu0 %v2322
    %2961 = vmatpush1.bf16.msra.mxu0 %v2321
    %2962 = vmatprep.subr.bf16.mxu0 %v2330
    %2963 = vmatpush1.bf16.msra.mxu0 %v2329
    %2964 = vmatprep.subr.bf16.mxu0 %v2338
    %2965 = vmatpush1.bf16.msra.mxu0 %v2337
    %2966 = vmatprep.subr.bf16.mxu0 %v2346
    %2967 = vmatpush1.bf16.msra.mxu0 %v2345
    %2968 = vmatprep.subr.bf16.mxu0 %v2354
    %2969 = vmatpush1.bf16.msra.mxu0 %v2353
    %2970 = vmatprep.subr.bf16.mxu0 %v2362
    %2971 = vmatpush1.bf16.msra.mxu0 %v2361
    %2972 = vmatprep.subr.bf16.mxu0 %v2370
    %2973 = vmatpush1.bf16.msra.mxu0 %v2369
    %2974 = vmatprep.subr.bf16.mxu0 %v2378
    %2975 = vmatpush1.bf16.msra.mxu0 %v2377
    %2976 = vmatprep.subr.bf16.mxu0 %v2386
    %2977 = vmatpush1.bf16.msra.mxu0 %v2385
    %2978 = vmatprep.mubr.bf16.mxu0 %v202
    %2979 = vmatmul.mubr.bf16.gmra.mrb[0].mxu0 %v201
    %v2980 = vpop.f32.mrb[0].mxu0
    %v2981 = vadd.f32 %v2940, %v2980
    %v2982 = vpop.f32.mrb[0].mxu0
    %v2983 = vadd.f32 %v2942, %v2982
    %v2984 = vpop.f32.mrb[0].mxu0
    %v2985 = vpop.f32.mrb[0].mxu0
    %2986 = vdwg.mxu0
    %2987 = vmatprep.subr.bf16.mxu0 %v2394
    %2988 = vmatpush1.bf16.msra.mxu0 %v2393
    %2989 = vmatprep.subr.bf16.mxu0 %v2402
    %2990 = vmatpush1.bf16.msra.mxu0 %v2401
    %2991 = vmatprep.subr.bf16.mxu0 %v2410
    %2992 = vmatpush1.bf16.msra.mxu0 %v2409
    %2993 = vmatprep.subr.bf16.mxu0 %v2418
    %2994 = vmatpush1.bf16.msra.mxu0 %v2417
    %2995 = vmatprep.subr.bf16.mxu0 %v2426
    %2996 = vmatpush1.bf16.msra.mxu0 %v2425
    %2997 = vmatprep.subr.bf16.mxu0 %v2434
    %2998 = vmatpush1.bf16.msra.mxu0 %v2433
    %2999 = vmatprep.subr.bf16.mxu0 %v2442
    %3000 = vmatpush1.bf16.msra.mxu0 %v2441
    %3001 = vmatprep.subr.bf16.mxu0 %v2450
    %3002 = vmatpush1.bf16.msra.mxu0 %v2449
    %3003 = vmatprep.subr.bf16.mxu0 %v2458
    %3004 = vmatpush1.bf16.msra.mxu0 %v2457
    %3005 = vmatprep.subr.bf16.mxu0 %v2466
    %3006 = vmatpush1.bf16.msra.mxu0 %v2465
    %3007 = vmatprep.subr.bf16.mxu0 %v2474
    %3008 = vmatpush1.bf16.msra.mxu0 %v2473
    %3009 = vmatprep.subr.bf16.mxu0 %v2482
    %3010 = vmatpush1.bf16.msra.mxu0 %v2481
    %3011 = vmatprep.subr.bf16.mxu0 %v2490
    %3012 = vmatpush1.bf16.msra.mxu0 %v2489
    %3013 = vmatprep.subr.bf16.mxu0 %v2498
    %3014 = vmatpush1.bf16.msra.mxu0 %v2497
    %3015 = vmatprep.subr.bf16.mxu0 %v2506
    %3016 = vmatpush1.bf16.msra.mxu0 %v2505
    %3017 = vmatprep.subr.bf16.mxu0 %v2514
    %3018 = vmatpush1.bf16.msra.mxu0 %v2513
    %3019 = vmatprep.mubr.bf16.mxu0 %v204
    %3020 = vmatmul.mubr.bf16.gmra.mrb[0].mxu0 %v203
    %v3021 = vpop.f32.mrb[0].mxu0
    %v3022 = vadd.f32 %v2981, %v3021
    %v3023 = vpop.f32.mrb[0].mxu0
    %v3024 = vadd.f32 %v2983, %v3023
    %v3025 = vpop.f32.mrb[0].mxu0
    %v3026 = vpop.f32.mrb[0].mxu0
    %3027 = vdwg.mxu0
    %3028 = vmatprep.subr.bf16.mxu0 %v2140
    %3029 = vmatpush1.bf16.msra.mxu0 %v2139
    %3030 = vmatprep.subr.bf16.mxu0 %v2148
    %3031 = vmatpush1.bf16.msra.mxu0 %v2147
    %3032 = vmatprep.subr.bf16.mxu0 %v2156
    %3033 = vmatpush1.bf16.msra.mxu0 %v2155
    %3034 = vmatprep.subr.bf16.mxu0 %v2164
    %3035 = vmatpush1.bf16.msra.mxu0 %v2163
    %3036 = vmatprep.subr.bf16.mxu0 %v2172
    %3037 = vmatpush1.bf16.msra.mxu0 %v2171
    %3038 = vmatprep.subr.bf16.mxu0 %v2180
    %3039 = vmatpush1.bf16.msra.mxu0 %v2179
    %3040 = vmatprep.subr.bf16.mxu0 %v2188
    %3041 = vmatpush1.bf16.msra.mxu0 %v2187
    %3042 = vmatprep.subr.bf16.mxu0 %v2196
    %3043 = vmatpush1.bf16.msra.mxu0 %v2195
    %3044 = vmatprep.subr.bf16.mxu0 %v2204
    %3045 = vmatpush1.bf16.msra.mxu0 %v2203
    %3046 = vmatprep.subr.bf16.mxu0 %v2212
    %3047 = vmatpush1.bf16.msra.mxu0 %v2211
    %3048 = vmatprep.subr.bf16.mxu0 %v2220
    %3049 = vmatpush1.bf16.msra.mxu0 %v2219
    %3050 = vmatprep.subr.bf16.mxu0 %v2228
    %3051 = vmatpush1.bf16.msra.mxu0 %v2227
    %3052 = vmatprep.subr.bf16.mxu0 %v2236
    %3053 = vmatpush1.bf16.msra.mxu0 %v2235
    %3054 = vmatprep.subr.bf16.mxu0 %v2244
    %3055 = vmatpush1.bf16.msra.mxu0 %v2243
    %3056 = vmatprep.subr.bf16.mxu0 %v2252
    %3057 = vmatpush1.bf16.msra.mxu0 %v2251
    %3058 = vmatprep.subr.bf16.mxu0 %v2260
    %3059 = vmatpush1.bf16.msra.mxu0 %v2259
    %3060 = vmatprep.mubr.bf16.mxu0 %v200
    %3061 = vmatmul.mubr.bf16.gmra.mrb[0].mxu0 %v199
    %v3062 = vpop.f32.mrb[0].mxu0
    %v3063 = vadd.f32 0.0, %v3062
    %v3064 = vpop.f32.mrb[0].mxu0
    %v3065 = vadd.f32 0.0, %v3064
    %v3066 = vpop.f32.mrb[0].mxu0
    %v3067 = vpop.f32.mrb[0].mxu0
    %3068 = vdwg.mxu0
    %3069 = vmatprep.subr.bf16.mxu0 %v2268
    %3070 = vmatpush1.bf16.msra.mxu0 %v2267
    %3071 = vmatprep.subr.bf16.mxu0 %v2276
    %3072 = vmatpush1.bf16.msra.mxu0 %v2275
    %3073 = vmatprep.subr.bf16.mxu0 %v2284
    %3074 = vmatpush1.bf16.msra.mxu0 %v2283
    %3075 = vmatprep.subr.bf16.mxu0 %v2292
    %3076 = vmatpush1.bf16.msra.mxu0 %v2291
    %3077 = vmatprep.subr.bf16.mxu0 %v2300
    %3078 = vmatpush1.bf16.msra.mxu0 %v2299
    %3079 = vmatprep.subr.bf16.mxu0 %v2308
    %3080 = vmatpush1.bf16.msra.mxu0 %v2307
    %3081 = vmatprep.subr.bf16.mxu0 %v2316
    %3082 = vmatpush1.bf16.msra.mxu0 %v2315
    %3083 = vmatprep.subr.bf16.mxu0 %v2324
    %3084 = vmatpush1.bf16.msra.mxu0 %v2323
    %3085 = vmatprep.subr.bf16.mxu0 %v2332
    %3086 = vmatpush1.bf16.msra.mxu0 %v2331
    %3087 = vmatprep.subr.bf16.mxu0 %v2340
    %3088 = vmatpush1.bf16.msra.mxu0 %v2339
    %3089 = vmatprep.subr.bf16.mxu0 %v2348
    %3090 = vmatpush1.bf16.msra.mxu0 %v2347
    %3091 = vmatprep.subr.bf16.mxu0 %v2356
    %3092 = vmatpush1.bf16.msra.mxu0 %v2355
    %3093 = vmatprep.subr.bf16.mxu0 %v2364
    %3094 = vmatpush1.bf16.msra.mxu0 %v2363
    %3095 = vmatprep.subr.bf16.mxu0 %v2372
    %3096 = vmatpush1.bf16.msra.mxu0 %v2371
    %3097 = vmatprep.subr.bf16.mxu0 %v2380
    %3098 = vmatpush1.bf16.msra.mxu0 %v2379
    %3099 = vmatprep.subr.bf16.mxu0 %v2388
    %3100 = vmatpush1.bf16.msra.mxu0 %v2387
    %3101 = vmatprep.mubr.bf16.mxu0 %v202
    %3102 = vmatmul.mubr.bf16.gmra.mrb[0].mxu0 %v201
    %v3103 = vpop.f32.mrb[0].mxu0
    %v3104 = vadd.f32 %v3063, %v3103
    %v3105 = vpop.f32.mrb[0].mxu0
    %v3106 = vadd.f32 %v3065, %v3105
    %v3107 = vpop.f32.mrb[0].mxu0
    %v3108 = vpop.f32.mrb[0].mxu0
    %3109 = vdwg.mxu0
    %3110 = vmatprep.subr.bf16.mxu0 %v2396
    %3111 = vmatpush1.bf16.msra.mxu0 %v2395
    %3112 = vmatprep.subr.bf16.mxu0 %v2404
    %3113 = vmatpush1.bf16.msra.mxu0 %v2403
    %3114 = vmatprep.subr.bf16.mxu0 %v2412
    %3115 = vmatpush1.bf16.msra.mxu0 %v2411
    %3116 = vmatprep.subr.bf16.mxu0 %v2420
    %3117 = vmatpush1.bf16.msra.mxu0 %v2419
    %3118 = vmatprep.subr.bf16.mxu0 %v2428
    %3119 = vmatpush1.bf16.msra.mxu0 %v2427
    %3120 = vmatprep.subr.bf16.mxu0 %v2436
    %3121 = vmatpush1.bf16.msra.mxu0 %v2435
    %3122 = vmatprep.subr.bf16.mxu0 %v2444
    %3123 = vmatpush1.bf16.msra.mxu0 %v2443
    %3124 = vmatprep.subr.bf16.mxu0 %v2452
    %3125 = vmatpush1.bf16.msra.mxu0 %v2451
    %3126 = vmatprep.subr.bf16.mxu0 %v2460
    %3127 = vmatpush1.bf16.msra.mxu0 %v2459
    %3128 = vmatprep.subr.bf16.mxu0 %v2468
    %3129 = vmatpush1.bf16.msra.mxu0 %v2467
    %3130 = vmatprep.subr.bf16.mxu0 %v2476
    %3131 = vmatpush1.bf16.msra.mxu0 %v2475
    %3132 = vmatprep.subr.bf16.mxu0 %v2484
    %3133 = vmatpush1.bf16.msra.mxu0 %v2483
    %3134 = vmatprep.subr.bf16.mxu0 %v2492
    %3135 = vmatpush1.bf16.msra.mxu0 %v2491
    %3136 = vmatprep.subr.bf16.mxu0 %v2500
    %3137 = vmatpush1.bf16.msra.mxu0 %v2499
    %3138 = vmatprep.subr.bf16.mxu0 %v2508
    %3139 = vmatpush1.bf16.msra.mxu0 %v2507
    %3140 = vmatprep.subr.bf16.mxu0 %v2516
    %3141 = vmatpush1.bf16.msra.mxu0 %v2515
    %3142 = vmatprep.mubr.bf16.mxu0 %v204
    %3143 = vmatmul.mubr.bf16.gmra.mrb[0].mxu0 %v203
    %v3144 = vpop.f32.mrb[0].mxu0
    %v3145 = vadd.f32 %v3104, %v3144
    %v3146 = vpop.f32.mrb[0].mxu0
    %v3147 = vadd.f32 %v3106, %v3146
    %v3148 = vpop.f32.mrb[0].mxu0
    %v3149 = vpop.f32.mrb[0].mxu0
    %3150 = vdwg.mxu0
    %3151 = vmatprep.subr.bf16.mxu0 %v2142
    %3152 = vmatpush1.bf16.msra.mxu0 %v2141
    %3153 = vmatprep.subr.bf16.mxu0 %v2150
    %3154 = vmatpush1.bf16.msra.mxu0 %v2149
    %3155 = vmatprep.subr.bf16.mxu0 %v2158
    %3156 = vmatpush1.bf16.msra.mxu0 %v2157
    %3157 = vmatprep.subr.bf16.mxu0 %v2166
    %3158 = vmatpush1.bf16.msra.mxu0 %v2165
    %3159 = vmatprep.subr.bf16.mxu0 %v2174
    %3160 = vmatpush1.bf16.msra.mxu0 %v2173
    %3161 = vmatprep.subr.bf16.mxu0 %v2182
    %3162 = vmatpush1.bf16.msra.mxu0 %v2181
    %3163 = vmatprep.subr.bf16.mxu0 %v2190
    %3164 = vmatpush1.bf16.msra.mxu0 %v2189
    %3165 = vmatprep.subr.bf16.mxu0 %v2198
    %3166 = vmatpush1.bf16.msra.mxu0 %v2197
    %3167 = vmatprep.subr.bf16.mxu0 %v2206
    %3168 = vmatpush1.bf16.msra.mxu0 %v2205
    %3169 = vmatprep.subr.bf16.mxu0 %v2214
    %3170 = vmatpush1.bf16.msra.mxu0 %v2213
    %3171 = vmatprep.subr.bf16.mxu0 %v2222
    %3172 = vmatpush1.bf16.msra.mxu0 %v2221
    %3173 = vmatprep.subr.bf16.mxu0 %v2230
    %3174 = vmatpush1.bf16.msra.mxu0 %v2229
    %3175 = vmatprep.subr.bf16.mxu0 %v2238
    %3176 = vmatpush1.bf16.msra.mxu0 %v2237
    %3177 = vmatprep.subr.bf16.mxu0 %v2246
    %3178 = vmatpush1.bf16.msra.mxu0 %v2245
    %3179 = vmatprep.subr.bf16.mxu0 %v2254
    %3180 = vmatpush1.bf16.msra.mxu0 %v2253
    %3181 = vmatprep.subr.bf16.mxu0 %v2262
    %3182 = vmatpush1.bf16.msra.mxu0 %v2261
    %3183 = vmatprep.mubr.bf16.mxu0 %v200
    %3184 = vmatmul.mubr.bf16.gmra.mrb[0].mxu0 %v199
    %v3185 = vpop.f32.mrb[0].mxu0
    %v3186 = vadd.f32 0.0, %v3185
    %v3187 = vpop.f32.mrb[0].mxu0
    %v3188 = vadd.f32 0.0, %v3187
    %v3189 = vpop.f32.mrb[0].mxu0
    %v3190 = vpop.f32.mrb[0].mxu0
    %3191 = vdwg.mxu0
    %3192 = vmatprep.subr.bf16.mxu0 %v2270
    %3193 = vmatpush1.bf16.msra.mxu0 %v2269
    %3194 = vmatprep.subr.bf16.mxu0 %v2278
    %3195 = vmatpush1.bf16.msra.mxu0 %v2277
    %3196 = vmatprep.subr.bf16.mxu0 %v2286
    %3197 = vmatpush1.bf16.msra.mxu0 %v2285
    %3198 = vmatprep.subr.bf16.mxu0 %v2294
    %3199 = vmatpush1.bf16.msra.mxu0 %v2293
    %3200 = vmatprep.subr.bf16.mxu0 %v2302
    %3201 = vmatpush1.bf16.msra.mxu0 %v2301
    %3202 = vmatprep.subr.bf16.mxu0 %v2310
    %3203 = vmatpush1.bf16.msra.mxu0 %v2309
    %3204 = vmatprep.subr.bf16.mxu0 %v2318
    %3205 = vmatpush1.bf16.msra.mxu0 %v2317
    %3206 = vmatprep.subr.bf16.mxu0 %v2326
    %3207 = vmatpush1.bf16.msra.mxu0 %v2325
    %3208 = vmatprep.subr.bf16.mxu0 %v2334
    %3209 = vmatpush1.bf16.msra.mxu0 %v2333
    %3210 = vmatprep.subr.bf16.mxu0 %v2342
    %3211 = vmatpush1.bf16.msra.mxu0 %v2341
    %3212 = vmatprep.subr.bf16.mxu0 %v2350
    %3213 = vmatpush1.bf16.msra.mxu0 %v2349
    %3214 = vmatprep.subr.bf16.mxu0 %v2358
    %3215 = vmatpush1.bf16.msra.mxu0 %v2357
    %3216 = vmatprep.subr.bf16.mxu0 %v2366
    %3217 = vmatpush1.bf16.msra.mxu0 %v2365
    %3218 = vmatprep.subr.bf16.mxu0 %v2374
    %3219 = vmatpush1.bf16.msra.mxu0 %v2373
    %3220 = vmatprep.subr.bf16.mxu0 %v2382
    %3221 = vmatpush1.bf16.msra.mxu0 %v2381
    %3222 = vmatprep.subr.bf16.mxu0 %v2390
    %3223 = vmatpush1.bf16.msra.mxu0 %v2389
    %3224 = vmatprep.mubr.bf16.mxu0 %v202
    %3225 = vmatmul.mubr.bf16.gmra.mrb[0].mxu0 %v201
    %v3226 = vpop.f32.mrb[0].mxu0
    %v3227 = vadd.f32 %v3186, %v3226
    %v3228 = vpop.f32.mrb[0].mxu0
    %v3229 = vadd.f32 %v3188, %v3228
    %v3230 = vpop.f32.mrb[0].mxu0
    %v3231 = vpop.f32.mrb[0].mxu0
    %3232 = vdwg.mxu0
    %3233 = vmatprep.subr.bf16.mxu0 %v2398
    %3234 = vmatpush1.bf16.msra.mxu0 %v2397
    %3235 = vmatprep.subr.bf16.mxu0 %v2406
    %3236 = vmatpush1.bf16.msra.mxu0 %v2405
    %3237 = vmatprep.subr.bf16.mxu0 %v2414
    %3238 = vmatpush1.bf16.msra.mxu0 %v2413
    %3239 = vmatprep.subr.bf16.mxu0 %v2422
    %3240 = vmatpush1.bf16.msra.mxu0 %v2421
    %3241 = vmatprep.subr.bf16.mxu0 %v2430
    %3242 = vmatpush1.bf16.msra.mxu0 %v2429
    %3243 = vmatprep.subr.bf16.mxu0 %v2438
    %3244 = vmatpush1.bf16.msra.mxu0 %v2437
    %3245 = vmatprep.subr.bf16.mxu0 %v2446
    %3246 = vmatpush1.bf16.msra.mxu0 %v2445
    %3247 = vmatprep.subr.bf16.mxu0 %v2454
    %3248 = vmatpush1.bf16.msra.mxu0 %v2453
    %3249 = vmatprep.subr.bf16.mxu0 %v2462
    %3250 = vmatpush1.bf16.msra.mxu0 %v2461
    %3251 = vmatprep.subr.bf16.mxu0 %v2470
    %3252 = vmatpush1.bf16.msra.mxu0 %v2469
    %3253 = vmatprep.subr.bf16.mxu0 %v2478
    %3254 = vmatpush1.bf16.msra.mxu0 %v2477
    %3255 = vmatprep.subr.bf16.mxu0 %v2486
    %3256 = vmatpush1.bf16.msra.mxu0 %v2485
    %3257 = vmatprep.subr.bf16.mxu0 %v2494
    %3258 = vmatpush1.bf16.msra.mxu0 %v2493
    %3259 = vmatprep.subr.bf16.mxu0 %v2502
    %3260 = vmatpush1.bf16.msra.mxu0 %v2501
    %3261 = vmatprep.subr.bf16.mxu0 %v2510
    %3262 = vmatpush1.bf16.msra.mxu0 %v2509
    %3263 = vmatprep.subr.bf16.mxu0 %v2518
    %3264 = vmatpush1.bf16.msra.mxu0 %v2517
    %3265 = vmatprep.mubr.bf16.mxu0 %v204
    %3266 = vmatmul.mubr.bf16.gmra.mrb[0].mxu0 %v203
    %v3267 = vpop.f32.mrb[0].mxu0
    %v3268 = vadd.f32 %v3227, %v3267
    %v3269 = vpop.f32.mrb[0].mxu0
    %v3270 = vadd.f32 %v3229, %v3269
    %v3271 = vpop.f32.mrb[0].mxu0
    %v3272 = vpop.f32.mrb[0].mxu0
    %3273 = vdwg.mxu0
    %3274 = vmatprep.subr.bf16.mxu0 %v2144
    %3275 = vmatpush1.bf16.msra.mxu0 %v2143
    %3276 = vmatprep.subr.bf16.mxu0 %v2152
    %3277 = vmatpush1.bf16.msra.mxu0 %v2151
    %3278 = vmatprep.subr.bf16.mxu0 %v2160
    %3279 = vmatpush1.bf16.msra.mxu0 %v2159
    %3280 = vmatprep.subr.bf16.mxu0 %v2168
    %3281 = vmatpush1.bf16.msra.mxu0 %v2167
    %3282 = vmatprep.subr.bf16.mxu0 %v2176
    %3283 = vmatpush1.bf16.msra.mxu0 %v2175
    %3284 = vmatprep.subr.bf16.mxu0 %v2184
    %3285 = vmatpush1.bf16.msra.mxu0 %v2183
    %3286 = vmatprep.subr.bf16.mxu0 %v2192
    %3287 = vmatpush1.bf16.msra.mxu0 %v2191
    %3288 = vmatprep.subr.bf16.mxu0 %v2200
    %3289 = vmatpush1.bf16.msra.mxu0 %v2199
    %3290 = vmatprep.subr.bf16.mxu0 %v2208
    %3291 = vmatpush1.bf16.msra.mxu0 %v2207
    %3292 = vmatprep.subr.bf16.mxu0 %v2216
    %3293 = vmatpush1.bf16.msra.mxu0 %v2215
    %3294 = vmatprep.subr.bf16.mxu0 %v2224
    %3295 = vmatpush1.bf16.msra.mxu0 %v2223
    %3296 = vmatprep.subr.bf16.mxu0 %v2232
    %3297 = vmatpush1.bf16.msra.mxu0 %v2231
    %3298 = vmatprep.subr.bf16.mxu0 %v2240
    %3299 = vmatpush1.bf16.msra.mxu0 %v2239
    %3300 = vmatprep.subr.bf16.mxu0 %v2248
    %3301 = vmatpush1.bf16.msra.mxu0 %v2247
    %3302 = vmatprep.subr.bf16.mxu0 %v2256
    %3303 = vmatpush1.bf16.msra.mxu0 %v2255
    %3304 = vmatprep.subr.bf16.mxu0 %v2264
    %3305 = vmatpush1.bf16.msra.mxu0 %v2263
    %3306 = vmatprep.mubr.bf16.mxu0 %v200
    %3307 = vmatmul.mubr.bf16.gmra.mrb[0].mxu0 %v199
    %v3308 = vpop.f32.mrb[0].mxu0
    %v3309 = vadd.f32 0.0, %v3308
    %v3310 = vpop.f32.mrb[0].mxu0
    %v3311 = vadd.f32 0.0, %v3310
    %v3312 = vpop.f32.mrb[0].mxu0
    %v3313 = vpop.f32.mrb[0].mxu0
    %3314 = vdwg.mxu0
    %3315 = vmatprep.subr.bf16.mxu0 %v2272
    %3316 = vmatpush1.bf16.msra.mxu0 %v2271
    %3317 = vmatprep.subr.bf16.mxu0 %v2280
    %3318 = vmatpush1.bf16.msra.mxu0 %v2279
    %3319 = vmatprep.subr.bf16.mxu0 %v2288
    %3320 = vmatpush1.bf16.msra.mxu0 %v2287
    %3321 = vmatprep.subr.bf16.mxu0 %v2296
    %3322 = vmatpush1.bf16.msra.mxu0 %v2295
    %3323 = vmatprep.subr.bf16.mxu0 %v2304
    %3324 = vmatpush1.bf16.msra.mxu0 %v2303
    %3325 = vmatprep.subr.bf16.mxu0 %v2312
    %3326 = vmatpush1.bf16.msra.mxu0 %v2311
    %3327 = vmatprep.subr.bf16.mxu0 %v2320
    %3328 = vmatpush1.bf16.msra.mxu0 %v2319
    %3329 = vmatprep.subr.bf16.mxu0 %v2328
    %3330 = vmatpush1.bf16.msra.mxu0 %v2327
    %3331 = vmatprep.subr.bf16.mxu0 %v2336
    %3332 = vmatpush1.bf16.msra.mxu0 %v2335
    %3333 = vmatprep.subr.bf16.mxu0 %v2344
    %3334 = vmatpush1.bf16.msra.mxu0 %v2343
    %3335 = vmatprep.subr.bf16.mxu0 %v2352
    %3336 = vmatpush1.bf16.msra.mxu0 %v2351
    %3337 = vmatprep.subr.bf16.mxu0 %v2360
    %3338 = vmatpush1.bf16.msra.mxu0 %v2359
    %3339 = vmatprep.subr.bf16.mxu0 %v2368
    %3340 = vmatpush1.bf16.msra.mxu0 %v2367
    %3341 = vmatprep.subr.bf16.mxu0 %v2376
    %3342 = vmatpush1.bf16.msra.mxu0 %v2375
    %3343 = vmatprep.subr.bf16.mxu0 %v2384
    %3344 = vmatpush1.bf16.msra.mxu0 %v2383
    %3345 = vmatprep.subr.bf16.mxu0 %v2392
    %3346 = vmatpush1.bf16.msra.mxu0 %v2391
    %3347 = vmatprep.mubr.bf16.mxu0 %v202
    %3348 = vmatmul.mubr.bf16.gmra.mrb[0].mxu0 %v201
    %v3349 = vpop.f32.mrb[0].mxu0
    %v3350 = vadd.f32 %v3309, %v3349
    %v3351 = vpop.f32.mrb[0].mxu0
    %v3352 = vadd.f32 %v3311, %v3351
    %v3353 = vpop.f32.mrb[0].mxu0
    %v3354 = vpop.f32.mrb[0].mxu0
    %3355 = vdwg.mxu0
    %3356 = vmatprep.subr.bf16.mxu0 %v2400
    %3357 = vmatpush1.bf16.msra.mxu0 %v2399
    %3358 = vmatprep.subr.bf16.mxu0 %v2408
    %3359 = vmatpush1.bf16.msra.mxu0 %v2407
    %3360 = vmatprep.subr.bf16.mxu0 %v2416
    %3361 = vmatpush1.bf16.msra.mxu0 %v2415
    %3362 = vmatprep.subr.bf16.mxu0 %v2424
    %3363 = vmatpush1.bf16.msra.mxu0 %v2423
    %3364 = vmatprep.subr.bf16.mxu0 %v2432
    %3365 = vmatpush1.bf16.msra.mxu0 %v2431
    %3366 = vmatprep.subr.bf16.mxu0 %v2440
    %3367 = vmatpush1.bf16.msra.mxu0 %v2439
    %3368 = vmatprep.subr.bf16.mxu0 %v2448
    %3369 = vmatpush1.bf16.msra.mxu0 %v2447
    %3370 = vmatprep.subr.bf16.mxu0 %v2456
    %3371 = vmatpush1.bf16.msra.mxu0 %v2455
    %3372 = vmatprep.subr.bf16.mxu0 %v2464
    %3373 = vmatpush1.bf16.msra.mxu0 %v2463
    %3374 = vmatprep.subr.bf16.mxu0 %v2472
    %3375 = vmatpush1.bf16.msra.mxu0 %v2471
    %3376 = vmatprep.subr.bf16.mxu0 %v2480
    %3377 = vmatpush1.bf16.msra.mxu0 %v2479
    %3378 = vmatprep.subr.bf16.mxu0 %v2488
    %3379 = vmatpush1.bf16.msra.mxu0 %v2487
    %3380 = vmatprep.subr.bf16.mxu0 %v2496
    %3381 = vmatpush1.bf16.msra.mxu0 %v2495
    %3382 = vmatprep.subr.bf16.mxu0 %v2504
    %3383 = vmatpush1.bf16.msra.mxu0 %v2503
    %3384 = vmatprep.subr.bf16.mxu0 %v2512
    %3385 = vmatpush1.bf16.msra.mxu0 %v2511
    %3386 = vmatprep.subr.bf16.mxu0 %v2520
    %3387 = vmatpush1.bf16.msra.mxu0 %v2519
    %3388 = vmatprep.mubr.bf16.mxu0 %v204
    %3389 = vmatmul.mubr.bf16.gmra.mrb[0].mxu0 %v203
    %v3390 = vpop.f32.mrb[0].mxu0
    %v3391 = vadd.f32 %v3350, %v3390
    %v3392 = vpop.f32.mrb[0].mxu0
    %v3393 = vadd.f32 %v3352, %v3392
    %v3394 = vpop.f32.mrb[0].mxu0
    %v3395 = vpop.f32.mrb[0].mxu0
    %3396 = vdwg.mxu0
    %v3781 = vunpack.c.l.b16 %v217
    %v3782 = vunpack.c.h.b16 %v217
    %v3783 = vunpack.c.l.b16 %v218
    %v3784 = vunpack.c.h.b16 %v218
    %v3785 = vunpack.c.l.b16 %v219
    %v3786 = vunpack.c.h.b16 %v219
    %v3787 = vunpack.c.l.b16 %v220
    %v3788 = vunpack.c.h.b16 %v220
    %v3789 = vunpack.c.l.b16 %v221
    %v3790 = vunpack.c.h.b16 %v221
    %v3791 = vunpack.c.l.b16 %v222
    %v3792 = vunpack.c.h.b16 %v222
    %v3793 = vunpack.c.l.b16 %v223
    %v3794 = vunpack.c.h.b16 %v223
    %v3795 = vunpack.c.l.b16 %v224
    %v3796 = vunpack.c.h.b16 %v224
    %v3797 = vunpack.c.l.b16 %v225
    %v3798 = vunpack.c.h.b16 %v225
    %v3799 = vunpack.c.l.b16 %v226
    %v3800 = vunpack.c.h.b16 %v226
    %v3801 = vunpack.c.l.b16 %v227
    %v3802 = vunpack.c.h.b16 %v227
    %v3803 = vunpack.c.l.b16 %v228
    %v3804 = vunpack.c.h.b16 %v228
    %v3805 = vunpack.c.l.b16 %v229
    %v3806 = vunpack.c.h.b16 %v229
    %v3807 = vunpack.c.l.b16 %v230
    %v3808 = vunpack.c.h.b16 %v230
    %v3809 = vunpack.c.l.b16 %v231
    %v3810 = vunpack.c.h.b16 %v231
    %v3811 = vunpack.c.l.b16 %v232
    %v3812 = vunpack.c.h.b16 %v232
    %v3813 = vunpack.c.l.b16 %v233
    %v3814 = vunpack.c.h.b16 %v233
    %v3815 = vunpack.c.l.b16 %v234
    %v3816 = vunpack.c.h.b16 %v234
    %v3817 = vunpack.c.l.b16 %v235
    %v3818 = vunpack.c.h.b16 %v235
    %v3819 = vunpack.c.l.b16 %v236
    %v3820 = vunpack.c.h.b16 %v236
    %v3821 = vunpack.c.l.b16 %v237
    %v3822 = vunpack.c.h.b16 %v237
    %v3823 = vunpack.c.l.b16 %v238
    %v3824 = vunpack.c.h.b16 %v238
    %v3825 = vunpack.c.l.b16 %v239
    %v3826 = vunpack.c.h.b16 %v239
    %v3827 = vunpack.c.l.b16 %v240
    %v3828 = vunpack.c.h.b16 %v240
    %v3829 = vunpack.c.l.b16 %v241
    %v3830 = vunpack.c.h.b16 %v241
    %v3831 = vunpack.c.l.b16 %v242
    %v3832 = vunpack.c.h.b16 %v242
    %v3833 = vunpack.c.l.b16 %v243
    %v3834 = vunpack.c.h.b16 %v243
    %v3835 = vunpack.c.l.b16 %v244
    %v3836 = vunpack.c.h.b16 %v244
    %v3837 = vunpack.c.l.b16 %v245
    %v3838 = vunpack.c.h.b16 %v245
    %v3839 = vunpack.c.l.b16 %v246
    %v3840 = vunpack.c.h.b16 %v246
    %v3841 = vunpack.c.l.b16 %v247
    %v3842 = vunpack.c.h.b16 %v247
    %v3843 = vunpack.c.l.b16 %v248
    %v3844 = vunpack.c.h.b16 %v248
    %v3845 = vunpack.c.l.b16 %v249
    %v3846 = vunpack.c.h.b16 %v249
    %v3847 = vunpack.c.l.b16 %v250
    %v3848 = vunpack.c.h.b16 %v250
    %v3849 = vunpack.c.l.b16 %v251
    %v3850 = vunpack.c.h.b16 %v251
    %v3851 = vunpack.c.l.b16 %v252
    %v3852 = vunpack.c.h.b16 %v252
    %v3853 = vunpack.c.l.b16 %v253
    %v3854 = vunpack.c.h.b16 %v253
    %v3855 = vunpack.c.l.b16 %v254
    %v3856 = vunpack.c.h.b16 %v254
    %v3857 = vunpack.c.l.b16 %v255
    %v3858 = vunpack.c.h.b16 %v255
    %v3859 = vunpack.c.l.b16 %v256
    %v3860 = vunpack.c.h.b16 %v256
    %v3861 = vunpack.c.l.b16 %v257
    %v3862 = vunpack.c.h.b16 %v257
    %v3863 = vunpack.c.l.b16 %v258
    %v3864 = vunpack.c.h.b16 %v258
    %v3865 = vunpack.c.l.b16 %v259
    %v3866 = vunpack.c.h.b16 %v259
    %v3867 = vunpack.c.l.b16 %v260
    %v3868 = vunpack.c.h.b16 %v260
    %v3869 = vunpack.c.l.b16 %v261
    %v3870 = vunpack.c.h.b16 %v261
    %v3871 = vunpack.c.l.b16 %v262
    %v3872 = vunpack.c.h.b16 %v262
    %v3873 = vunpack.c.l.b16 %v263
    %v3874 = vunpack.c.h.b16 %v263
    %v3875 = vunpack.c.l.b16 %v264
    %v3876 = vunpack.c.h.b16 %v264
    %v3877 = vunpack.c.l.b16 %v265
    %v3878 = vunpack.c.h.b16 %v265
    %v3879 = vunpack.c.l.b16 %v266
    %v3880 = vunpack.c.h.b16 %v266
    %v3881 = vunpack.c.l.b16 %v267
    %v3882 = vunpack.c.h.b16 %v267
    %v3883 = vunpack.c.l.b16 %v268
    %v3884 = vunpack.c.h.b16 %v268
    %v3885 = vunpack.c.l.b16 %v269
    %v3886 = vunpack.c.h.b16 %v269
    %v3887 = vunpack.c.l.b16 %v270
    %v3888 = vunpack.c.h.b16 %v270
    %v3889 = vunpack.c.l.b16 %v271
    %v3890 = vunpack.c.h.b16 %v271
    %v3891 = vunpack.c.l.b16 %v272
    %v3892 = vunpack.c.h.b16 %v272
    %v3893 = vunpack.c.l.b16 %v273
    %v3894 = vunpack.c.h.b16 %v273
    %v3895 = vunpack.c.l.b16 %v274
    %v3896 = vunpack.c.h.b16 %v274
    %v3897 = vunpack.c.l.b16 %v275
    %v3898 = vunpack.c.h.b16 %v275
    %v3899 = vunpack.c.l.b16 %v276
    %v3900 = vunpack.c.h.b16 %v276
    %v3901 = vunpack.c.l.b16 %v277
    %v3902 = vunpack.c.h.b16 %v277
    %v3903 = vunpack.c.l.b16 %v278
    %v3904 = vunpack.c.h.b16 %v278
    %v3905 = vunpack.c.l.b16 %v279
    %v3906 = vunpack.c.h.b16 %v279
    %v3907 = vunpack.c.l.b16 %v280
    %v3908 = vunpack.c.h.b16 %v280
    %v3909 = vunpack.c.l.b16 %v281
    %v3910 = vunpack.c.h.b16 %v281
    %v3911 = vunpack.c.l.b16 %v282
    %v3912 = vunpack.c.h.b16 %v282
    %v3913 = vunpack.c.l.b16 %v283
    %v3914 = vunpack.c.h.b16 %v283
    %v3915 = vunpack.c.l.b16 %v284
    %v3916 = vunpack.c.h.b16 %v284
    %v3917 = vunpack.c.l.b16 %v285
    %v3918 = vunpack.c.h.b16 %v285
    %v3919 = vunpack.c.l.b16 %v286
    %v3920 = vunpack.c.h.b16 %v286
    %v3921 = vunpack.c.l.b16 %v287
    %v3922 = vunpack.c.h.b16 %v287
    %v3923 = vunpack.c.l.b16 %v288
    %v3924 = vunpack.c.h.b16 %v288
    %v3925 = vunpack.c.l.b16 %v289
    %v3926 = vunpack.c.h.b16 %v289
    %v3927 = vunpack.c.l.b16 %v290
    %v3928 = vunpack.c.h.b16 %v290
    %v3929 = vunpack.c.l.b16 %v291
    %v3930 = vunpack.c.h.b16 %v291
    %v3931 = vunpack.c.l.b16 %v292
    %v3932 = vunpack.c.h.b16 %v292
    %v3933 = vunpack.c.l.b16 %v293
    %v3934 = vunpack.c.h.b16 %v293
    %v3935 = vunpack.c.l.b16 %v294
    %v3936 = vunpack.c.h.b16 %v294
    %v3937 = vunpack.c.l.b16 %v295
    %v3938 = vunpack.c.h.b16 %v295
    %v3939 = vunpack.c.l.b16 %v296
    %v3940 = vunpack.c.h.b16 %v296
    %v3941 = vunpack.c.l.b16 %v297
    %v3942 = vunpack.c.h.b16 %v297
    %v3943 = vunpack.c.l.b16 %v298
    %v3944 = vunpack.c.h.b16 %v298
    %v3945 = vunpack.c.l.b16 %v299
    %v3946 = vunpack.c.h.b16 %v299
    %v3947 = vunpack.c.l.b16 %v300
    %v3948 = vunpack.c.h.b16 %v300
    %v3949 = vunpack.c.l.b16 %v301
    %v3950 = vunpack.c.h.b16 %v301
    %v3951 = vunpack.c.l.b16 %v302
    %v3952 = vunpack.c.h.b16 %v302
    %v3953 = vunpack.c.l.b16 %v303
    %v3954 = vunpack.c.h.b16 %v303
    %v3955 = vunpack.c.l.b16 %v304
    %v3956 = vunpack.c.h.b16 %v304
    %v3957 = vunpack.c.l.b16 %v305
    %v3958 = vunpack.c.h.b16 %v305
    %v3959 = vunpack.c.l.b16 %v306
    %v3960 = vunpack.c.h.b16 %v306
    %v3961 = vunpack.c.l.b16 %v307
    %v3962 = vunpack.c.h.b16 %v307
    %v3963 = vunpack.c.l.b16 %v308
    %v3964 = vunpack.c.h.b16 %v308
    %v3965 = vunpack.c.l.b16 %v309
    %v3966 = vunpack.c.h.b16 %v309
    %v3967 = vunpack.c.l.b16 %v310
    %v3968 = vunpack.c.h.b16 %v310
    %v3969 = vunpack.c.l.b16 %v311
    %v3970 = vunpack.c.h.b16 %v311
    %v3971 = vunpack.c.l.b16 %v312
    %v3972 = vunpack.c.h.b16 %v312
    %v3973 = vunpack.c.l.b16 %v313
    %v3974 = vunpack.c.h.b16 %v313
    %v3975 = vunpack.c.l.b16 %v314
    %v3976 = vunpack.c.h.b16 %v314
    %v3977 = vunpack.c.l.b16 %v315
    %v3978 = vunpack.c.h.b16 %v315
    %v3979 = vunpack.c.l.b16 %v316
    %v3980 = vunpack.c.h.b16 %v316
    %v3981 = vunpack.c.l.b16 %v317
    %v3982 = vunpack.c.h.b16 %v317
    %v3983 = vunpack.c.l.b16 %v318
    %v3984 = vunpack.c.h.b16 %v318
    %v3985 = vunpack.c.l.b16 %v319
    %v3986 = vunpack.c.h.b16 %v319
    %v3987 = vunpack.c.l.b16 %v320
    %v3988 = vunpack.c.h.b16 %v320
    %v3989 = vunpack.c.l.b16 %v321
    %v3990 = vunpack.c.h.b16 %v321
    %v3991 = vunpack.c.l.b16 %v322
    %v3992 = vunpack.c.h.b16 %v322
    %v3993 = vunpack.c.l.b16 %v323
    %v3994 = vunpack.c.h.b16 %v323
    %v3995 = vunpack.c.l.b16 %v324
    %v3996 = vunpack.c.h.b16 %v324
    %v3997 = vunpack.c.l.b16 %v325
    %v3998 = vunpack.c.h.b16 %v325
    %v3999 = vunpack.c.l.b16 %v326
    %v4000 = vunpack.c.h.b16 %v326
    %v4001 = vunpack.c.l.b16 %v327
    %v4002 = vunpack.c.h.b16 %v327
    %v4003 = vunpack.c.l.b16 %v328
    %v4004 = vunpack.c.h.b16 %v328
    %v4005 = vunpack.c.l.b16 %v329
    %v4006 = vunpack.c.h.b16 %v329
    %v4007 = vunpack.c.l.b16 %v330
    %v4008 = vunpack.c.h.b16 %v330
    %v4009 = vunpack.c.l.b16 %v331
    %v4010 = vunpack.c.h.b16 %v331
    %v4011 = vunpack.c.l.b16 %v332
    %v4012 = vunpack.c.h.b16 %v332
    %v4013 = vunpack.c.l.b16 %v333
    %v4014 = vunpack.c.h.b16 %v333
    %v4015 = vunpack.c.l.b16 %v334
    %v4016 = vunpack.c.h.b16 %v334
    %v4017 = vunpack.c.l.b16 %v335
    %v4018 = vunpack.c.h.b16 %v335
    %v4019 = vunpack.c.l.b16 %v336
    %v4020 = vunpack.c.h.b16 %v336
    %v4021 = vunpack.c.l.b16 %v337
    %v4022 = vunpack.c.h.b16 %v337
    %v4023 = vunpack.c.l.b16 %v338
    %v4024 = vunpack.c.h.b16 %v338
    %v4025 = vunpack.c.l.b16 %v339
    %v4026 = vunpack.c.h.b16 %v339
    %v4027 = vunpack.c.l.b16 %v340
    %v4028 = vunpack.c.h.b16 %v340
    %v4029 = vunpack.c.l.b16 %v341
    %v4030 = vunpack.c.h.b16 %v341
    %v4031 = vunpack.c.l.b16 %v342
    %v4032 = vunpack.c.h.b16 %v342
    %v4033 = vunpack.c.l.b16 %v343
    %v4034 = vunpack.c.h.b16 %v343
    %v4035 = vunpack.c.l.b16 %v344
    %v4036 = vunpack.c.h.b16 %v344
    %v4037 = vunpack.c.l.b16 %v345
    %v4038 = vunpack.c.h.b16 %v345
    %v4039 = vunpack.c.l.b16 %v346
    %v4040 = vunpack.c.h.b16 %v346
    %v4041 = vunpack.c.l.b16 %v347
    %v4042 = vunpack.c.h.b16 %v347
    %v4043 = vunpack.c.l.b16 %v348
    %v4044 = vunpack.c.h.b16 %v348
    %v4045 = vunpack.c.l.b16 %v349
    %v4046 = vunpack.c.h.b16 %v349
    %v4047 = vunpack.c.l.b16 %v350
    %v4048 = vunpack.c.h.b16 %v350
    %v4049 = vunpack.c.l.b16 %v351
    %v4050 = vunpack.c.h.b16 %v351
    %v4051 = vunpack.c.l.b16 %v352
    %v4052 = vunpack.c.h.b16 %v352
    %v4053 = vunpack.c.l.b16 %v353
    %v4054 = vunpack.c.h.b16 %v353
    %v4055 = vunpack.c.l.b16 %v354
    %v4056 = vunpack.c.h.b16 %v354
    %v4057 = vunpack.c.l.b16 %v355
    %v4058 = vunpack.c.h.b16 %v355
    %v4059 = vunpack.c.l.b16 %v356
    %v4060 = vunpack.c.h.b16 %v356
    %v4061 = vunpack.c.l.b16 %v357
    %v4062 = vunpack.c.h.b16 %v357
    %v4063 = vunpack.c.l.b16 %v358
    %v4064 = vunpack.c.h.b16 %v358
    %v4065 = vunpack.c.l.b16 %v359
    %v4066 = vunpack.c.h.b16 %v359
    %v4067 = vunpack.c.l.b16 %v360
    %v4068 = vunpack.c.h.b16 %v360
    %v4069 = vunpack.c.l.b16 %v361
    %v4070 = vunpack.c.h.b16 %v361
    %v4071 = vunpack.c.l.b16 %v362
    %v4072 = vunpack.c.h.b16 %v362
    %v4073 = vunpack.c.l.b16 %v363
    %v4074 = vunpack.c.h.b16 %v363
    %v4075 = vunpack.c.l.b16 %v364
    %v4076 = vunpack.c.h.b16 %v364
    %v4077 = vunpack.c.l.b16 %v365
    %v4078 = vunpack.c.h.b16 %v365
    %v4079 = vunpack.c.l.b16 %v366
    %v4080 = vunpack.c.h.b16 %v366
    %v4081 = vunpack.c.l.b16 %v367
    %v4082 = vunpack.c.h.b16 %v367
    %v4083 = vunpack.c.l.b16 %v368
    %v4084 = vunpack.c.h.b16 %v368
    %v4085 = vunpack.c.l.b16 %v369
    %v4086 = vunpack.c.h.b16 %v369
    %v4087 = vunpack.c.l.b16 %v370
    %v4088 = vunpack.c.h.b16 %v370
    %v4089 = vunpack.c.l.b16 %v371
    %v4090 = vunpack.c.h.b16 %v371
    %v4091 = vunpack.c.l.b16 %v372
    %v4092 = vunpack.c.h.b16 %v372
    %v4093 = vunpack.c.l.b16 %v373
    %v4094 = vunpack.c.h.b16 %v373
    %v4095 = vunpack.c.l.b16 %v374
    %v4096 = vunpack.c.h.b16 %v374
    %v4097 = vunpack.c.l.b16 %v375
    %v4098 = vunpack.c.h.b16 %v375
    %v4099 = vunpack.c.l.b16 %v376
    %v4100 = vunpack.c.h.b16 %v376
    %v4101 = vunpack.c.l.b16 %v377
    %v4102 = vunpack.c.h.b16 %v377
    %v4103 = vunpack.c.l.b16 %v378
    %v4104 = vunpack.c.h.b16 %v378
    %v4105 = vunpack.c.l.b16 %v379
    %v4106 = vunpack.c.h.b16 %v379
    %v4107 = vunpack.c.l.b16 %v380
    %v4108 = vunpack.c.h.b16 %v380
    %v4109 = vunpack.c.l.b16 %v381
    %v4110 = vunpack.c.h.b16 %v381
    %v4111 = vunpack.c.l.b16 %v382
    %v4112 = vunpack.c.h.b16 %v382
    %v4113 = vunpack.c.l.b16 %v383
    %v4114 = vunpack.c.h.b16 %v383
    %v4115 = vunpack.c.l.b16 %v384
    %v4116 = vunpack.c.h.b16 %v384
    %v4117 = vunpack.c.l.b16 %v385
    %v4118 = vunpack.c.h.b16 %v385
    %v4119 = vunpack.c.l.b16 %v386
    %v4120 = vunpack.c.h.b16 %v386
    %v4121 = vunpack.c.l.b16 %v387
    %v4122 = vunpack.c.h.b16 %v387
    %v4123 = vunpack.c.l.b16 %v388
    %v4124 = vunpack.c.h.b16 %v388
    %v4125 = vunpack.c.l.b16 %v389
    %v4126 = vunpack.c.h.b16 %v389
    %v4127 = vunpack.c.l.b16 %v390
    %v4128 = vunpack.c.h.b16 %v390
    %v4129 = vunpack.c.l.b16 %v391
    %v4130 = vunpack.c.h.b16 %v391
    %v4131 = vunpack.c.l.b16 %v392
    %v4132 = vunpack.c.h.b16 %v392
    %v4133 = vunpack.c.l.b16 %v393
    %v4134 = vunpack.c.h.b16 %v393
    %v4135 = vunpack.c.l.b16 %v394
    %v4136 = vunpack.c.h.b16 %v394
    %v4137 = vunpack.c.l.b16 %v395
    %v4138 = vunpack.c.h.b16 %v395
    %v4139 = vunpack.c.l.b16 %v396
    %v4140 = vunpack.c.h.b16 %v396
    %v4141 = vunpack.c.l.b16 %v397
    %v4142 = vunpack.c.h.b16 %v397
    %v4143 = vunpack.c.l.b16 %v398
    %v4144 = vunpack.c.h.b16 %v398
    %v4145 = vunpack.c.l.b16 %v399
    %v4146 = vunpack.c.h.b16 %v399
    %v4147 = vunpack.c.l.b16 %v400
    %v4148 = vunpack.c.h.b16 %v400
    %v4149 = vunpack.c.l.b16 %v401
    %v4150 = vunpack.c.h.b16 %v401
    %v4151 = vunpack.c.l.b16 %v402
    %v4152 = vunpack.c.h.b16 %v402
    %v4153 = vunpack.c.l.b16 %v403
    %v4154 = vunpack.c.h.b16 %v403
    %v4155 = vunpack.c.l.b16 %v404
    %v4156 = vunpack.c.h.b16 %v404
    %v4157 = vunpack.c.l.b16 %v405
    %v4158 = vunpack.c.h.b16 %v405
    %v4159 = vunpack.c.l.b16 %v406
    %v4160 = vunpack.c.h.b16 %v406
    %v4161 = vunpack.c.l.b16 %v407
    %v4162 = vunpack.c.h.b16 %v407
    %v4163 = vunpack.c.l.b16 %v408
    %v4164 = vunpack.c.h.b16 %v408
    %v4165 = vunpack.c.l.b16 %v409
    %v4166 = vunpack.c.h.b16 %v409
    %v4167 = vunpack.c.l.b16 %v410
    %v4168 = vunpack.c.h.b16 %v410
    %v4169 = vunpack.c.l.b16 %v411
    %v4170 = vunpack.c.h.b16 %v411
    %v4171 = vunpack.c.l.b16 %v412
    %v4172 = vunpack.c.h.b16 %v412
    %v4173 = vunpack.c.l.b16 %v413
    %v4174 = vunpack.c.h.b16 %v413
    %v4175 = vunpack.c.l.b16 %v414
    %v4176 = vunpack.c.h.b16 %v414
    %v4177 = vunpack.c.l.b16 %v415
    %v4178 = vunpack.c.h.b16 %v415
    %v4179 = vunpack.c.l.b16 %v416
    %v4180 = vunpack.c.h.b16 %v416
    %v4181 = vunpack.c.l.b16 %v417
    %v4182 = vunpack.c.h.b16 %v417
    %v4183 = vunpack.c.l.b16 %v418
    %v4184 = vunpack.c.h.b16 %v418
    %v4185 = vunpack.c.l.b16 %v419
    %v4186 = vunpack.c.h.b16 %v419
    %v4187 = vunpack.c.l.b16 %v420
    %v4188 = vunpack.c.h.b16 %v420
    %v4189 = vunpack.c.l.b16 %v421
    %v4190 = vunpack.c.h.b16 %v421
    %v4191 = vunpack.c.l.b16 %v422
    %v4192 = vunpack.c.h.b16 %v422
    %v4193 = vunpack.c.l.b16 %v423
    %v4194 = vunpack.c.h.b16 %v423
    %v4195 = vunpack.c.l.b16 %v424
    %v4196 = vunpack.c.h.b16 %v424
    %v4197 = vunpack.c.l.b16 %v425
    %v4198 = vunpack.c.h.b16 %v425
    %v4199 = vunpack.c.l.b16 %v426
    %v4200 = vunpack.c.h.b16 %v426
    %v4201 = vunpack.c.l.b16 %v427
    %v4202 = vunpack.c.h.b16 %v427
    %v4203 = vunpack.c.l.b16 %v428
    %v4204 = vunpack.c.h.b16 %v428
    %v4205 = vunpack.c.l.b16 %v429
    %v4206 = vunpack.c.h.b16 %v429
    %v4207 = vunpack.c.l.b16 %v430
    %v4208 = vunpack.c.h.b16 %v430
    %v4209 = vunpack.c.l.b16 %v431
    %v4210 = vunpack.c.h.b16 %v431
    %v4211 = vunpack.c.l.b16 %v432
    %v4212 = vunpack.c.h.b16 %v432
    %v4213 = vunpack.c.l.b16 %v433
    %v4214 = vunpack.c.h.b16 %v433
    %v4215 = vunpack.c.l.b16 %v434
    %v4216 = vunpack.c.h.b16 %v434
    %v4217 = vunpack.c.l.b16 %v435
    %v4218 = vunpack.c.h.b16 %v435
    %v4219 = vunpack.c.l.b16 %v436
    %v4220 = vunpack.c.h.b16 %v436
    %v4221 = vunpack.c.l.b16 %v437
    %v4222 = vunpack.c.h.b16 %v437
    %v4223 = vunpack.c.l.b16 %v438
    %v4224 = vunpack.c.h.b16 %v438
    %v4225 = vunpack.c.l.b16 %v439
    %v4226 = vunpack.c.h.b16 %v439
    %v4227 = vunpack.c.l.b16 %v440
    %v4228 = vunpack.c.h.b16 %v440
    %v4229 = vunpack.c.l.b16 %v441
    %v4230 = vunpack.c.h.b16 %v441
    %v4231 = vunpack.c.l.b16 %v442
    %v4232 = vunpack.c.h.b16 %v442
    %v4233 = vunpack.c.l.b16 %v443
    %v4234 = vunpack.c.h.b16 %v443
    %v4235 = vunpack.c.l.b16 %v444
    %v4236 = vunpack.c.h.b16 %v444
    %v4237 = vunpack.c.l.b16 %v445
    %v4238 = vunpack.c.h.b16 %v445
    %v4239 = vunpack.c.l.b16 %v446
    %v4240 = vunpack.c.h.b16 %v446
    %v4241 = vunpack.c.l.b16 %v447
    %v4242 = vunpack.c.h.b16 %v447
    %v4243 = vunpack.c.l.b16 %v448
    %v4244 = vunpack.c.h.b16 %v448
    %v4245 = vunpack.c.l.b16 %v449
    %v4246 = vunpack.c.h.b16 %v449
    %v4247 = vunpack.c.l.b16 %v450
    %v4248 = vunpack.c.h.b16 %v450
    %v4249 = vunpack.c.l.b16 %v451
    %v4250 = vunpack.c.h.b16 %v451
    %v4251 = vunpack.c.l.b16 %v452
    %v4252 = vunpack.c.h.b16 %v452
    %v4253 = vunpack.c.l.b16 %v453
    %v4254 = vunpack.c.h.b16 %v453
    %v4255 = vunpack.c.l.b16 %v454
    %v4256 = vunpack.c.h.b16 %v454
    %v4257 = vunpack.c.l.b16 %v455
    %v4258 = vunpack.c.h.b16 %v455
    %v4259 = vunpack.c.l.b16 %v456
    %v4260 = vunpack.c.h.b16 %v456
    %v4261 = vunpack.c.l.b16 %v457
    %v4262 = vunpack.c.h.b16 %v457
    %v4263 = vunpack.c.l.b16 %v458
    %v4264 = vunpack.c.h.b16 %v458
    %v4265 = vunpack.c.l.b16 %v459
    %v4266 = vunpack.c.h.b16 %v459
    %v4267 = vunpack.c.l.b16 %v460
    %v4268 = vunpack.c.h.b16 %v460
    %v4269 = vunpack.c.l.b16 %v461
    %v4270 = vunpack.c.h.b16 %v461
    %v4271 = vunpack.c.l.b16 %v462
    %v4272 = vunpack.c.h.b16 %v462
    %v4273 = vunpack.c.l.b16 %v463
    %v4274 = vunpack.c.h.b16 %v463
    %v4275 = vunpack.c.l.b16 %v464
    %v4276 = vunpack.c.h.b16 %v464
    %v4277 = vunpack.c.l.b16 %v465
    %v4278 = vunpack.c.h.b16 %v465
    %v4279 = vunpack.c.l.b16 %v466
    %v4280 = vunpack.c.h.b16 %v466
    %v4281 = vunpack.c.l.b16 %v467
    %v4282 = vunpack.c.h.b16 %v467
    %v4283 = vunpack.c.l.b16 %v468
    %v4284 = vunpack.c.h.b16 %v468
    %v4285 = vunpack.c.l.b16 %v469
    %v4286 = vunpack.c.h.b16 %v469
    %v4287 = vunpack.c.l.b16 %v470
    %v4288 = vunpack.c.h.b16 %v470
    %v4289 = vunpack.c.l.b16 %v471
    %v4290 = vunpack.c.h.b16 %v471
    %v4291 = vunpack.c.l.b16 %v472
    %v4292 = vunpack.c.h.b16 %v472
    %v4293 = vunpack.c.l.b16 %v473
    %v4294 = vunpack.c.h.b16 %v473
    %v4295 = vunpack.c.l.b16 %v474
    %v4296 = vunpack.c.h.b16 %v474
    %v4297 = vunpack.c.l.b16 %v475
    %v4298 = vunpack.c.h.b16 %v475
    %v4299 = vunpack.c.l.b16 %v476
    %v4300 = vunpack.c.h.b16 %v476
    %v4301 = vunpack.c.l.b16 %v477
    %v4302 = vunpack.c.h.b16 %v477
    %v4303 = vunpack.c.l.b16 %v478
    %v4304 = vunpack.c.h.b16 %v478
    %v4305 = vunpack.c.l.b16 %v479
    %v4306 = vunpack.c.h.b16 %v479
    %v4307 = vunpack.c.l.b16 %v480
    %v4308 = vunpack.c.h.b16 %v480
    %v4309 = vunpack.c.l.b16 %v481
    %v4310 = vunpack.c.h.b16 %v481
    %v4311 = vunpack.c.l.b16 %v482
    %v4312 = vunpack.c.h.b16 %v482
    %v4313 = vunpack.c.l.b16 %v483
    %v4314 = vunpack.c.h.b16 %v483
    %v4315 = vunpack.c.l.b16 %v484
    %v4316 = vunpack.c.h.b16 %v484
    %v4317 = vunpack.c.l.b16 %v485
    %v4318 = vunpack.c.h.b16 %v485
    %v4319 = vunpack.c.l.b16 %v486
    %v4320 = vunpack.c.h.b16 %v486
    %v4321 = vunpack.c.l.b16 %v487
    %v4322 = vunpack.c.h.b16 %v487
    %v4323 = vunpack.c.l.b16 %v488
    %v4324 = vunpack.c.h.b16 %v488
    %v4325 = vunpack.c.l.b16 %v489
    %v4326 = vunpack.c.h.b16 %v489
    %v4327 = vunpack.c.l.b16 %v490
    %v4328 = vunpack.c.h.b16 %v490
    %v4329 = vunpack.c.l.b16 %v491
    %v4330 = vunpack.c.h.b16 %v491
    %v4331 = vunpack.c.l.b16 %v492
    %v4332 = vunpack.c.h.b16 %v492
    %v4333 = vunpack.c.l.b16 %v493
    %v4334 = vunpack.c.h.b16 %v493
    %v4335 = vunpack.c.l.b16 %v494
    %v4336 = vunpack.c.h.b16 %v494
    %v4337 = vunpack.c.l.b16 %v495
    %v4338 = vunpack.c.h.b16 %v495
    %v4339 = vunpack.c.l.b16 %v496
    %v4340 = vunpack.c.h.b16 %v496
    %v4341 = vunpack.c.l.b16 %v497
    %v4342 = vunpack.c.h.b16 %v497
    %v4343 = vunpack.c.l.b16 %v498
    %v4344 = vunpack.c.h.b16 %v498
    %v4345 = vunpack.c.l.b16 %v499
    %v4346 = vunpack.c.h.b16 %v499
    %v4347 = vunpack.c.l.b16 %v500
    %v4348 = vunpack.c.h.b16 %v500
    %v4349 = vunpack.c.l.b16 %v501
    %v4350 = vunpack.c.h.b16 %v501
    %v4351 = vunpack.c.l.b16 %v502
    %v4352 = vunpack.c.h.b16 %v502
    %v4353 = vunpack.c.l.b16 %v503
    %v4354 = vunpack.c.h.b16 %v503
    %v4355 = vunpack.c.l.b16 %v504
    %v4356 = vunpack.c.h.b16 %v504
    %v4357 = vunpack.c.l.b16 %v505
    %v4358 = vunpack.c.h.b16 %v505
    %v4359 = vunpack.c.l.b16 %v506
    %v4360 = vunpack.c.h.b16 %v506
    %v4361 = vunpack.c.l.b16 %v507
    %v4362 = vunpack.c.h.b16 %v507
    %v4363 = vunpack.c.l.b16 %v508
    %v4364 = vunpack.c.h.b16 %v508
    %v4365 = vunpack.c.l.b16 %v509
    %v4366 = vunpack.c.h.b16 %v509
    %v4367 = vunpack.c.l.b16 %v510
    %v4368 = vunpack.c.h.b16 %v510
    %v4369 = vunpack.c.l.b16 %v511
    %v4370 = vunpack.c.h.b16 %v511
    %v4371 = vunpack.c.l.b16 %v512
    %v4372 = vunpack.c.h.b16 %v512
    %v4373 = vunpack.c.l.b16 %v513
    %v4374 = vunpack.c.h.b16 %v513
    %v4375 = vunpack.c.l.b16 %v514
    %v4376 = vunpack.c.h.b16 %v514
    %v4377 = vunpack.c.l.b16 %v515
    %v4378 = vunpack.c.h.b16 %v515
    %v4379 = vunpack.c.l.b16 %v516
    %v4380 = vunpack.c.h.b16 %v516
    %v4381 = vunpack.c.l.b16 %v517
    %v4382 = vunpack.c.h.b16 %v517
    %v4383 = vunpack.c.l.b16 %v518
    %v4384 = vunpack.c.h.b16 %v518
    %v4385 = vunpack.c.l.b16 %v519
    %v4386 = vunpack.c.h.b16 %v519
    %v4387 = vunpack.c.l.b16 %v520
    %v4388 = vunpack.c.h.b16 %v520
    %v4389 = vunpack.c.l.b16 %v521
    %v4390 = vunpack.c.h.b16 %v521
    %v4391 = vunpack.c.l.b16 %v522
    %v4392 = vunpack.c.h.b16 %v522
    %v4393 = vunpack.c.l.b16 %v523
    %v4394 = vunpack.c.h.b16 %v523
    %v4395 = vunpack.c.l.b16 %v524
    %v4396 = vunpack.c.h.b16 %v524
    %v4397 = vunpack.c.l.b16 %v525
    %v4398 = vunpack.c.h.b16 %v525
    %v4399 = vunpack.c.l.b16 %v526
    %v4400 = vunpack.c.h.b16 %v526
    %v4401 = vunpack.c.l.b16 %v527
    %v4402 = vunpack.c.h.b16 %v527
    %v4403 = vunpack.c.l.b16 %v528
    %v4404 = vunpack.c.h.b16 %v528
    %v4405 = vunpack.c.l.b16 %v529
    %v4406 = vunpack.c.h.b16 %v529
    %v4407 = vunpack.c.l.b16 %v530
    %v4408 = vunpack.c.h.b16 %v530
    %v4409 = vunpack.c.l.b16 %v531
    %v4410 = vunpack.c.h.b16 %v531
    %v4411 = vunpack.c.l.b16 %v532
    %v4412 = vunpack.c.h.b16 %v532
    %v4413 = vunpack.c.l.b16 %v533
    %v4414 = vunpack.c.h.b16 %v533
    %v4415 = vunpack.c.l.b16 %v534
    %v4416 = vunpack.c.h.b16 %v534
    %v4417 = vunpack.c.l.b16 %v535
    %v4418 = vunpack.c.h.b16 %v535
    %v4419 = vunpack.c.l.b16 %v536
    %v4420 = vunpack.c.h.b16 %v536
    %v4421 = vunpack.c.l.b16 %v537
    %v4422 = vunpack.c.h.b16 %v537
    %v4423 = vunpack.c.l.b16 %v538
    %v4424 = vunpack.c.h.b16 %v538
    %v4425 = vunpack.c.l.b16 %v539
    %v4426 = vunpack.c.h.b16 %v539
    %v4427 = vunpack.c.l.b16 %v540
    %v4428 = vunpack.c.h.b16 %v540
    %v4429 = vunpack.c.l.b16 %v541
    %v4430 = vunpack.c.h.b16 %v541
    %v4431 = vunpack.c.l.b16 %v542
    %v4432 = vunpack.c.h.b16 %v542
    %v4433 = vunpack.c.l.b16 %v543
    %v4434 = vunpack.c.h.b16 %v543
    %v4435 = vunpack.c.l.b16 %v544
    %v4436 = vunpack.c.h.b16 %v544
    %v4437 = vunpack.c.l.b16 %v545
    %v4438 = vunpack.c.h.b16 %v545
    %v4439 = vunpack.c.l.b16 %v546
    %v4440 = vunpack.c.h.b16 %v546
    %v4441 = vunpack.c.l.b16 %v547
    %v4442 = vunpack.c.h.b16 %v547
    %v4443 = vunpack.c.l.b16 %v548
    %v4444 = vunpack.c.h.b16 %v548
    %v4445 = vunpack.c.l.b16 %v549
    %v4446 = vunpack.c.h.b16 %v549
    %v4447 = vunpack.c.l.b16 %v550
    %v4448 = vunpack.c.h.b16 %v550
    %v4449 = vunpack.c.l.b16 %v551
    %v4450 = vunpack.c.h.b16 %v551
    %v4451 = vunpack.c.l.b16 %v552
    %v4452 = vunpack.c.h.b16 %v552
    %v4453 = vunpack.c.l.b16 %v553
    %v4454 = vunpack.c.h.b16 %v553
    %v4455 = vunpack.c.l.b16 %v554
    %v4456 = vunpack.c.h.b16 %v554
    %v4457 = vunpack.c.l.b16 %v555
    %v4458 = vunpack.c.h.b16 %v555
    %v4459 = vunpack.c.l.b16 %v556
    %v4460 = vunpack.c.h.b16 %v556
    %v4461 = vunpack.c.l.b16 %v557
    %v4462 = vunpack.c.h.b16 %v557
    %v4463 = vunpack.c.l.b16 %v558
    %v4464 = vunpack.c.h.b16 %v558
    %v4465 = vunpack.c.l.b16 %v559
    %v4466 = vunpack.c.h.b16 %v559
    %v4467 = vunpack.c.l.b16 %v560
    %v4468 = vunpack.c.h.b16 %v560
    %v4469 = vunpack.c.l.b16 %v561
    %v4470 = vunpack.c.h.b16 %v561
    %v4471 = vunpack.c.l.b16 %v562
    %v4472 = vunpack.c.h.b16 %v562
    %v4473 = vunpack.c.l.b16 %v563
    %v4474 = vunpack.c.h.b16 %v563
    %v4475 = vunpack.c.l.b16 %v564
    %v4476 = vunpack.c.h.b16 %v564
    %v4477 = vunpack.c.l.b16 %v565
    %v4478 = vunpack.c.h.b16 %v565
    %v4479 = vunpack.c.l.b16 %v566
    %v4480 = vunpack.c.h.b16 %v566
    %v4481 = vunpack.c.l.b16 %v567
    %v4482 = vunpack.c.h.b16 %v567
    %v4483 = vunpack.c.l.b16 %v568
    %v4484 = vunpack.c.h.b16 %v568
    %v4485 = vunpack.c.l.b16 %v569
    %v4486 = vunpack.c.h.b16 %v569
    %v4487 = vunpack.c.l.b16 %v570
    %v4488 = vunpack.c.h.b16 %v570
    %v4489 = vunpack.c.l.b16 %v571
    %v4490 = vunpack.c.h.b16 %v571
    %v4491 = vunpack.c.l.b16 %v572
    %v4492 = vunpack.c.h.b16 %v572
    %v4493 = vunpack.c.l.b16 %v573
    %v4494 = vunpack.c.h.b16 %v573
    %v4495 = vunpack.c.l.b16 %v574
    %v4496 = vunpack.c.h.b16 %v574
    %v4497 = vunpack.c.l.b16 %v575
    %v4498 = vunpack.c.h.b16 %v575
    %v4499 = vunpack.c.l.b16 %v576
    %v4500 = vunpack.c.h.b16 %v576
    %v4501 = vunpack.c.l.b16 %v577
    %v4502 = vunpack.c.h.b16 %v577
    %v4503 = vunpack.c.l.b16 %v578
    %v4504 = vunpack.c.h.b16 %v578
    %v4505 = vunpack.c.l.b16 %v579
    %v4506 = vunpack.c.h.b16 %v579
    %v4507 = vunpack.c.l.b16 %v580
    %v4508 = vunpack.c.h.b16 %v580
    %v4509 = vunpack.c.l.b16 %v581
    %v4510 = vunpack.c.h.b16 %v581
    %v4511 = vunpack.c.l.b16 %v582
    %v4512 = vunpack.c.h.b16 %v582
    %v4513 = vunpack.c.l.b16 %v583
    %v4514 = vunpack.c.h.b16 %v583
    %v4515 = vunpack.c.l.b16 %v584
    %v4516 = vunpack.c.h.b16 %v584
    %v4517 = vunpack.c.l.b16 %v585
    %v4518 = vunpack.c.h.b16 %v585
    %v4519 = vunpack.c.l.b16 %v586
    %v4520 = vunpack.c.h.b16 %v586
    %v4521 = vunpack.c.l.b16 %v587
    %v4522 = vunpack.c.h.b16 %v587
    %v4523 = vunpack.c.l.b16 %v588
    %v4524 = vunpack.c.h.b16 %v588
    %v4525 = vunpack.c.l.b16 %v589
    %v4526 = vunpack.c.h.b16 %v589
    %v4527 = vunpack.c.l.b16 %v590
    %v4528 = vunpack.c.h.b16 %v590
    %v4529 = vunpack.c.l.b16 %v591
    %v4530 = vunpack.c.h.b16 %v591
    %v4531 = vunpack.c.l.b16 %v592
    %v4532 = vunpack.c.h.b16 %v592
    %v4533 = vunpack.c.l.b16 %v593
    %v4534 = vunpack.c.h.b16 %v593
    %v4535 = vunpack.c.l.b16 %v594
    %v4536 = vunpack.c.h.b16 %v594
    %v4537 = vunpack.c.l.b16 %v595
    %v4538 = vunpack.c.h.b16 %v595
    %v4539 = vunpack.c.l.b16 %v596
    %v4540 = vunpack.c.h.b16 %v596
    %v4541 = vunpack.c.l.b16 %v597
    %v4542 = vunpack.c.h.b16 %v597
    %v4543 = vunpack.c.l.b16 %v598
    %v4544 = vunpack.c.h.b16 %v598
    %v4545 = vunpack.c.l.b16 %v599
    %v4546 = vunpack.c.h.b16 %v599
    %v4547 = vunpack.c.l.b16 %v600
    %v4548 = vunpack.c.h.b16 %v600
    %v4549 = vpack.c.b16 %v3789, %v3781
    %v4550 = vpack.c.b16 %v3790, %v3782
    %v4551 = vpack.c.b16 %v3791, %v3783
    %v4552 = vpack.c.b16 %v3792, %v3784
    %v4553 = vpack.c.b16 %v3793, %v3785
    %v4554 = vpack.c.b16 %v3794, %v3786
    %v4555 = vpack.c.b16 %v3795, %v3787
    %v4556 = vpack.c.b16 %v3796, %v3788
    %v4557 = vpack.c.b16 %v3805, %v3797
    %v4558 = vpack.c.b16 %v3806, %v3798
    %v4559 = vpack.c.b16 %v3807, %v3799
    %v4560 = vpack.c.b16 %v3808, %v3800
    %v4561 = vpack.c.b16 %v3809, %v3801
    %v4562 = vpack.c.b16 %v3810, %v3802
    %v4563 = vpack.c.b16 %v3811, %v3803
    %v4564 = vpack.c.b16 %v3812, %v3804
    %v4565 = vpack.c.b16 %v3821, %v3813
    %v4566 = vpack.c.b16 %v3822, %v3814
    %v4567 = vpack.c.b16 %v3823, %v3815
    %v4568 = vpack.c.b16 %v3824, %v3816
    %v4569 = vpack.c.b16 %v3825, %v3817
    %v4570 = vpack.c.b16 %v3826, %v3818
    %v4571 = vpack.c.b16 %v3827, %v3819
    %v4572 = vpack.c.b16 %v3828, %v3820
    %v4573 = vpack.c.b16 %v3837, %v3829
    %v4574 = vpack.c.b16 %v3838, %v3830
    %v4575 = vpack.c.b16 %v3839, %v3831
    %v4576 = vpack.c.b16 %v3840, %v3832
    %v4577 = vpack.c.b16 %v3841, %v3833
    %v4578 = vpack.c.b16 %v3842, %v3834
    %v4579 = vpack.c.b16 %v3843, %v3835
    %v4580 = vpack.c.b16 %v3844, %v3836
    %v4581 = vpack.c.b16 %v3853, %v3845
    %v4582 = vpack.c.b16 %v3854, %v3846
    %v4583 = vpack.c.b16 %v3855, %v3847
    %v4584 = vpack.c.b16 %v3856, %v3848
    %v4585 = vpack.c.b16 %v3857, %v3849
    %v4586 = vpack.c.b16 %v3858, %v3850
    %v4587 = vpack.c.b16 %v3859, %v3851
    %v4588 = vpack.c.b16 %v3860, %v3852
    %v4589 = vpack.c.b16 %v3869, %v3861
    %v4590 = vpack.c.b16 %v3870, %v3862
    %v4591 = vpack.c.b16 %v3871, %v3863
    %v4592 = vpack.c.b16 %v3872, %v3864
    %v4593 = vpack.c.b16 %v3873, %v3865
    %v4594 = vpack.c.b16 %v3874, %v3866
    %v4595 = vpack.c.b16 %v3875, %v3867
    %v4596 = vpack.c.b16 %v3876, %v3868
    %v4597 = vpack.c.b16 %v3885, %v3877
    %v4598 = vpack.c.b16 %v3886, %v3878
    %v4599 = vpack.c.b16 %v3887, %v3879
    %v4600 = vpack.c.b16 %v3888, %v3880
    %v4601 = vpack.c.b16 %v3889, %v3881
    %v4602 = vpack.c.b16 %v3890, %v3882
    %v4603 = vpack.c.b16 %v3891, %v3883
    %v4604 = vpack.c.b16 %v3892, %v3884
    %v4605 = vpack.c.b16 %v3901, %v3893
    %v4606 = vpack.c.b16 %v3902, %v3894
    %v4607 = vpack.c.b16 %v3903, %v3895
    %v4608 = vpack.c.b16 %v3904, %v3896
    %v4609 = vpack.c.b16 %v3905, %v3897
    %v4610 = vpack.c.b16 %v3906, %v3898
    %v4611 = vpack.c.b16 %v3907, %v3899
    %v4612 = vpack.c.b16 %v3908, %v3900
    %v4613 = vpack.c.b16 %v3917, %v3909
    %v4614 = vpack.c.b16 %v3918, %v3910
    %v4615 = vpack.c.b16 %v3919, %v3911
    %v4616 = vpack.c.b16 %v3920, %v3912
    %v4617 = vpack.c.b16 %v3921, %v3913
    %v4618 = vpack.c.b16 %v3922, %v3914
    %v4619 = vpack.c.b16 %v3923, %v3915
    %v4620 = vpack.c.b16 %v3924, %v3916
    %v4621 = vpack.c.b16 %v3933, %v3925
    %v4622 = vpack.c.b16 %v3934, %v3926
    %v4623 = vpack.c.b16 %v3935, %v3927
    %v4624 = vpack.c.b16 %v3936, %v3928
    %v4625 = vpack.c.b16 %v3937, %v3929
    %v4626 = vpack.c.b16 %v3938, %v3930
    %v4627 = vpack.c.b16 %v3939, %v3931
    %v4628 = vpack.c.b16 %v3940, %v3932
    %v4629 = vpack.c.b16 %v3949, %v3941
    %v4630 = vpack.c.b16 %v3950, %v3942
    %v4631 = vpack.c.b16 %v3951, %v3943
    %v4632 = vpack.c.b16 %v3952, %v3944
    %v4633 = vpack.c.b16 %v3953, %v3945
    %v4634 = vpack.c.b16 %v3954, %v3946
    %v4635 = vpack.c.b16 %v3955, %v3947
    %v4636 = vpack.c.b16 %v3956, %v3948
    %v4637 = vpack.c.b16 %v3965, %v3957
    %v4638 = vpack.c.b16 %v3966, %v3958
    %v4639 = vpack.c.b16 %v3967, %v3959
    %v4640 = vpack.c.b16 %v3968, %v3960
    %v4641 = vpack.c.b16 %v3969, %v3961
    %v4642 = vpack.c.b16 %v3970, %v3962
    %v4643 = vpack.c.b16 %v3971, %v3963
    %v4644 = vpack.c.b16 %v3972, %v3964
    %v4645 = vpack.c.b16 %v3981, %v3973
    %v4646 = vpack.c.b16 %v3982, %v3974
    %v4647 = vpack.c.b16 %v3983, %v3975
    %v4648 = vpack.c.b16 %v3984, %v3976
    %v4649 = vpack.c.b16 %v3985, %v3977
    %v4650 = vpack.c.b16 %v3986, %v3978
    %v4651 = vpack.c.b16 %v3987, %v3979
    %v4652 = vpack.c.b16 %v3988, %v3980
    %v4653 = vpack.c.b16 %v3997, %v3989
    %v4654 = vpack.c.b16 %v3998, %v3990
    %v4655 = vpack.c.b16 %v3999, %v3991
    %v4656 = vpack.c.b16 %v4000, %v3992
    %v4657 = vpack.c.b16 %v4001, %v3993
    %v4658 = vpack.c.b16 %v4002, %v3994
    %v4659 = vpack.c.b16 %v4003, %v3995
    %v4660 = vpack.c.b16 %v4004, %v3996
    %v4661 = vpack.c.b16 %v4013, %v4005
    %v4662 = vpack.c.b16 %v4014, %v4006
    %v4663 = vpack.c.b16 %v4015, %v4007
    %v4664 = vpack.c.b16 %v4016, %v4008
    %v4665 = vpack.c.b16 %v4017, %v4009
    %v4666 = vpack.c.b16 %v4018, %v4010
    %v4667 = vpack.c.b16 %v4019, %v4011
    %v4668 = vpack.c.b16 %v4020, %v4012
    %v4669 = vpack.c.b16 %v4029, %v4021
    %v4670 = vpack.c.b16 %v4030, %v4022
    %v4671 = vpack.c.b16 %v4031, %v4023
    %v4672 = vpack.c.b16 %v4032, %v4024
    %v4673 = vpack.c.b16 %v4033, %v4025
    %v4674 = vpack.c.b16 %v4034, %v4026
    %v4675 = vpack.c.b16 %v4035, %v4027
    %v4676 = vpack.c.b16 %v4036, %v4028
    %v4677 = vpack.c.b16 %v4045, %v4037
    %v4678 = vpack.c.b16 %v4046, %v4038
    %v4679 = vpack.c.b16 %v4047, %v4039
    %v4680 = vpack.c.b16 %v4048, %v4040
    %v4681 = vpack.c.b16 %v4049, %v4041
    %v4682 = vpack.c.b16 %v4050, %v4042
    %v4683 = vpack.c.b16 %v4051, %v4043
    %v4684 = vpack.c.b16 %v4052, %v4044
    %v4685 = vpack.c.b16 %v4061, %v4053
    %v4686 = vpack.c.b16 %v4062, %v4054
    %v4687 = vpack.c.b16 %v4063, %v4055
    %v4688 = vpack.c.b16 %v4064, %v4056
    %v4689 = vpack.c.b16 %v4065, %v4057
    %v4690 = vpack.c.b16 %v4066, %v4058
    %v4691 = vpack.c.b16 %v4067, %v4059
    %v4692 = vpack.c.b16 %v4068, %v4060
    %v4693 = vpack.c.b16 %v4077, %v4069
    %v4694 = vpack.c.b16 %v4078, %v4070
    %v4695 = vpack.c.b16 %v4079, %v4071
    %v4696 = vpack.c.b16 %v4080, %v4072
    %v4697 = vpack.c.b16 %v4081, %v4073
    %v4698 = vpack.c.b16 %v4082, %v4074
    %v4699 = vpack.c.b16 %v4083, %v4075
    %v4700 = vpack.c.b16 %v4084, %v4076
    %v4701 = vpack.c.b16 %v4093, %v4085
    %v4702 = vpack.c.b16 %v4094, %v4086
    %v4703 = vpack.c.b16 %v4095, %v4087
    %v4704 = vpack.c.b16 %v4096, %v4088
    %v4705 = vpack.c.b16 %v4097, %v4089
    %v4706 = vpack.c.b16 %v4098, %v4090
    %v4707 = vpack.c.b16 %v4099, %v4091
    %v4708 = vpack.c.b16 %v4100, %v4092
    %v4709 = vpack.c.b16 %v4109, %v4101
    %v4710 = vpack.c.b16 %v4110, %v4102
    %v4711 = vpack.c.b16 %v4111, %v4103
    %v4712 = vpack.c.b16 %v4112, %v4104
    %v4713 = vpack.c.b16 %v4113, %v4105
    %v4714 = vpack.c.b16 %v4114, %v4106
    %v4715 = vpack.c.b16 %v4115, %v4107
    %v4716 = vpack.c.b16 %v4116, %v4108
    %v4717 = vpack.c.b16 %v4125, %v4117
    %v4718 = vpack.c.b16 %v4126, %v4118
    %v4719 = vpack.c.b16 %v4127, %v4119
    %v4720 = vpack.c.b16 %v4128, %v4120
    %v4721 = vpack.c.b16 %v4129, %v4121
    %v4722 = vpack.c.b16 %v4130, %v4122
    %v4723 = vpack.c.b16 %v4131, %v4123
    %v4724 = vpack.c.b16 %v4132, %v4124
    %v4725 = vpack.c.b16 %v4141, %v4133
    %v4726 = vpack.c.b16 %v4142, %v4134
    %v4727 = vpack.c.b16 %v4143, %v4135
    %v4728 = vpack.c.b16 %v4144, %v4136
    %v4729 = vpack.c.b16 %v4145, %v4137
    %v4730 = vpack.c.b16 %v4146, %v4138
    %v4731 = vpack.c.b16 %v4147, %v4139
    %v4732 = vpack.c.b16 %v4148, %v4140
    %v4733 = vpack.c.b16 %v4157, %v4149
    %v4734 = vpack.c.b16 %v4158, %v4150
    %v4735 = vpack.c.b16 %v4159, %v4151
    %v4736 = vpack.c.b16 %v4160, %v4152
    %v4737 = vpack.c.b16 %v4161, %v4153
    %v4738 = vpack.c.b16 %v4162, %v4154
    %v4739 = vpack.c.b16 %v4163, %v4155
    %v4740 = vpack.c.b16 %v4164, %v4156
    %v4741 = vpack.c.b16 %v4173, %v4165
    %v4742 = vpack.c.b16 %v4174, %v4166
    %v4743 = vpack.c.b16 %v4175, %v4167
    %v4744 = vpack.c.b16 %v4176, %v4168
    %v4745 = vpack.c.b16 %v4177, %v4169
    %v4746 = vpack.c.b16 %v4178, %v4170
    %v4747 = vpack.c.b16 %v4179, %v4171
    %v4748 = vpack.c.b16 %v4180, %v4172
    %v4749 = vpack.c.b16 %v4189, %v4181
    %v4750 = vpack.c.b16 %v4190, %v4182
    %v4751 = vpack.c.b16 %v4191, %v4183
    %v4752 = vpack.c.b16 %v4192, %v4184
    %v4753 = vpack.c.b16 %v4193, %v4185
    %v4754 = vpack.c.b16 %v4194, %v4186
    %v4755 = vpack.c.b16 %v4195, %v4187
    %v4756 = vpack.c.b16 %v4196, %v4188
    %v4757 = vpack.c.b16 %v4205, %v4197
    %v4758 = vpack.c.b16 %v4206, %v4198
    %v4759 = vpack.c.b16 %v4207, %v4199
    %v4760 = vpack.c.b16 %v4208, %v4200
    %v4761 = vpack.c.b16 %v4209, %v4201
    %v4762 = vpack.c.b16 %v4210, %v4202
    %v4763 = vpack.c.b16 %v4211, %v4203
    %v4764 = vpack.c.b16 %v4212, %v4204
    %v4765 = vpack.c.b16 %v4221, %v4213
    %v4766 = vpack.c.b16 %v4222, %v4214
    %v4767 = vpack.c.b16 %v4223, %v4215
    %v4768 = vpack.c.b16 %v4224, %v4216
    %v4769 = vpack.c.b16 %v4225, %v4217
    %v4770 = vpack.c.b16 %v4226, %v4218
    %v4771 = vpack.c.b16 %v4227, %v4219
    %v4772 = vpack.c.b16 %v4228, %v4220
    %v4773 = vpack.c.b16 %v4237, %v4229
    %v4774 = vpack.c.b16 %v4238, %v4230
    %v4775 = vpack.c.b16 %v4239, %v4231
    %v4776 = vpack.c.b16 %v4240, %v4232
    %v4777 = vpack.c.b16 %v4241, %v4233
    %v4778 = vpack.c.b16 %v4242, %v4234
    %v4779 = vpack.c.b16 %v4243, %v4235
    %v4780 = vpack.c.b16 %v4244, %v4236
    %v4781 = vpack.c.b16 %v4253, %v4245
    %v4782 = vpack.c.b16 %v4254, %v4246
    %v4783 = vpack.c.b16 %v4255, %v4247
    %v4784 = vpack.c.b16 %v4256, %v4248
    %v4785 = vpack.c.b16 %v4257, %v4249
    %v4786 = vpack.c.b16 %v4258, %v4250
    %v4787 = vpack.c.b16 %v4259, %v4251
    %v4788 = vpack.c.b16 %v4260, %v4252
    %v4789 = vpack.c.b16 %v4269, %v4261
    %v4790 = vpack.c.b16 %v4270, %v4262
    %v4791 = vpack.c.b16 %v4271, %v4263
    %v4792 = vpack.c.b16 %v4272, %v4264
    %v4793 = vpack.c.b16 %v4273, %v4265
    %v4794 = vpack.c.b16 %v4274, %v4266
    %v4795 = vpack.c.b16 %v4275, %v4267
    %v4796 = vpack.c.b16 %v4276, %v4268
    %v4797 = vpack.c.b16 %v4285, %v4277
    %v4798 = vpack.c.b16 %v4286, %v4278
    %v4799 = vpack.c.b16 %v4287, %v4279
    %v4800 = vpack.c.b16 %v4288, %v4280
    %v4801 = vpack.c.b16 %v4289, %v4281
    %v4802 = vpack.c.b16 %v4290, %v4282
    %v4803 = vpack.c.b16 %v4291, %v4283
    %v4804 = vpack.c.b16 %v4292, %v4284
    %v4805 = vpack.c.b16 %v4301, %v4293
    %v4806 = vpack.c.b16 %v4302, %v4294
    %v4807 = vpack.c.b16 %v4303, %v4295
    %v4808 = vpack.c.b16 %v4304, %v4296
    %v4809 = vpack.c.b16 %v4305, %v4297
    %v4810 = vpack.c.b16 %v4306, %v4298
    %v4811 = vpack.c.b16 %v4307, %v4299
    %v4812 = vpack.c.b16 %v4308, %v4300
    %v4813 = vpack.c.b16 %v4317, %v4309
    %v4814 = vpack.c.b16 %v4318, %v4310
    %v4815 = vpack.c.b16 %v4319, %v4311
    %v4816 = vpack.c.b16 %v4320, %v4312
    %v4817 = vpack.c.b16 %v4321, %v4313
    %v4818 = vpack.c.b16 %v4322, %v4314
    %v4819 = vpack.c.b16 %v4323, %v4315
    %v4820 = vpack.c.b16 %v4324, %v4316
    %v4821 = vpack.c.b16 %v4333, %v4325
    %v4822 = vpack.c.b16 %v4334, %v4326
    %v4823 = vpack.c.b16 %v4335, %v4327
    %v4824 = vpack.c.b16 %v4336, %v4328
    %v4825 = vpack.c.b16 %v4337, %v4329
    %v4826 = vpack.c.b16 %v4338, %v4330
    %v4827 = vpack.c.b16 %v4339, %v4331
    %v4828 = vpack.c.b16 %v4340, %v4332
    %v4829 = vpack.c.b16 %v4349, %v4341
    %v4830 = vpack.c.b16 %v4350, %v4342
    %v4831 = vpack.c.b16 %v4351, %v4343
    %v4832 = vpack.c.b16 %v4352, %v4344
    %v4833 = vpack.c.b16 %v4353, %v4345
    %v4834 = vpack.c.b16 %v4354, %v4346
    %v4835 = vpack.c.b16 %v4355, %v4347
    %v4836 = vpack.c.b16 %v4356, %v4348
    %v4837 = vpack.c.b16 %v4365, %v4357
    %v4838 = vpack.c.b16 %v4366, %v4358
    %v4839 = vpack.c.b16 %v4367, %v4359
    %v4840 = vpack.c.b16 %v4368, %v4360
    %v4841 = vpack.c.b16 %v4369, %v4361
    %v4842 = vpack.c.b16 %v4370, %v4362
    %v4843 = vpack.c.b16 %v4371, %v4363
    %v4844 = vpack.c.b16 %v4372, %v4364
    %v4845 = vpack.c.b16 %v4381, %v4373
    %v4846 = vpack.c.b16 %v4382, %v4374
    %v4847 = vpack.c.b16 %v4383, %v4375
    %v4848 = vpack.c.b16 %v4384, %v4376
    %v4849 = vpack.c.b16 %v4385, %v4377
    %v4850 = vpack.c.b16 %v4386, %v4378
    %v4851 = vpack.c.b16 %v4387, %v4379
    %v4852 = vpack.c.b16 %v4388, %v4380
    %v4853 = vpack.c.b16 %v4397, %v4389
    %v4854 = vpack.c.b16 %v4398, %v4390
    %v4855 = vpack.c.b16 %v4399, %v4391
    %v4856 = vpack.c.b16 %v4400, %v4392
    %v4857 = vpack.c.b16 %v4401, %v4393
    %v4858 = vpack.c.b16 %v4402, %v4394
    %v4859 = vpack.c.b16 %v4403, %v4395
    %v4860 = vpack.c.b16 %v4404, %v4396
    %v4861 = vpack.c.b16 %v4413, %v4405
    %v4862 = vpack.c.b16 %v4414, %v4406
    %v4863 = vpack.c.b16 %v4415, %v4407
    %v4864 = vpack.c.b16 %v4416, %v4408
    %v4865 = vpack.c.b16 %v4417, %v4409
    %v4866 = vpack.c.b16 %v4418, %v4410
    %v4867 = vpack.c.b16 %v4419, %v4411
    %v4868 = vpack.c.b16 %v4420, %v4412
    %v4869 = vpack.c.b16 %v4429, %v4421
    %v4870 = vpack.c.b16 %v4430, %v4422
    %v4871 = vpack.c.b16 %v4431, %v4423
    %v4872 = vpack.c.b16 %v4432, %v4424
    %v4873 = vpack.c.b16 %v4433, %v4425
    %v4874 = vpack.c.b16 %v4434, %v4426
    %v4875 = vpack.c.b16 %v4435, %v4427
    %v4876 = vpack.c.b16 %v4436, %v4428
    %v4877 = vpack.c.b16 %v4445, %v4437
    %v4878 = vpack.c.b16 %v4446, %v4438
    %v4879 = vpack.c.b16 %v4447, %v4439
    %v4880 = vpack.c.b16 %v4448, %v4440
    %v4881 = vpack.c.b16 %v4449, %v4441
    %v4882 = vpack.c.b16 %v4450, %v4442
    %v4883 = vpack.c.b16 %v4451, %v4443
    %v4884 = vpack.c.b16 %v4452, %v4444
    %v4885 = vpack.c.b16 %v4461, %v4453
    %v4886 = vpack.c.b16 %v4462, %v4454
    %v4887 = vpack.c.b16 %v4463, %v4455
    %v4888 = vpack.c.b16 %v4464, %v4456
    %v4889 = vpack.c.b16 %v4465, %v4457
    %v4890 = vpack.c.b16 %v4466, %v4458
    %v4891 = vpack.c.b16 %v4467, %v4459
    %v4892 = vpack.c.b16 %v4468, %v4460
    %v4893 = vpack.c.b16 %v4477, %v4469
    %v4894 = vpack.c.b16 %v4478, %v4470
    %v4895 = vpack.c.b16 %v4479, %v4471
    %v4896 = vpack.c.b16 %v4480, %v4472
    %v4897 = vpack.c.b16 %v4481, %v4473
    %v4898 = vpack.c.b16 %v4482, %v4474
    %v4899 = vpack.c.b16 %v4483, %v4475
    %v4900 = vpack.c.b16 %v4484, %v4476
    %v4901 = vpack.c.b16 %v4493, %v4485
    %v4902 = vpack.c.b16 %v4494, %v4486
    %v4903 = vpack.c.b16 %v4495, %v4487
    %v4904 = vpack.c.b16 %v4496, %v4488
    %v4905 = vpack.c.b16 %v4497, %v4489
    %v4906 = vpack.c.b16 %v4498, %v4490
    %v4907 = vpack.c.b16 %v4499, %v4491
    %v4908 = vpack.c.b16 %v4500, %v4492
    %v4909 = vpack.c.b16 %v4509, %v4501
    %v4910 = vpack.c.b16 %v4510, %v4502
    %v4911 = vpack.c.b16 %v4511, %v4503
    %v4912 = vpack.c.b16 %v4512, %v4504
    %v4913 = vpack.c.b16 %v4513, %v4505
    %v4914 = vpack.c.b16 %v4514, %v4506
    %v4915 = vpack.c.b16 %v4515, %v4507
    %v4916 = vpack.c.b16 %v4516, %v4508
    %v4917 = vpack.c.b16 %v4525, %v4517
    %v4918 = vpack.c.b16 %v4526, %v4518
    %v4919 = vpack.c.b16 %v4527, %v4519
    %v4920 = vpack.c.b16 %v4528, %v4520
    %v4921 = vpack.c.b16 %v4529, %v4521
    %v4922 = vpack.c.b16 %v4530, %v4522
    %v4923 = vpack.c.b16 %v4531, %v4523
    %v4924 = vpack.c.b16 %v4532, %v4524
    %v4925 = vpack.c.b16 %v4541, %v4533
    %v4926 = vpack.c.b16 %v4542, %v4534
    %v4927 = vpack.c.b16 %v4543, %v4535
    %v4928 = vpack.c.b16 %v4544, %v4536
    %v4929 = vpack.c.b16 %v4545, %v4537
    %v4930 = vpack.c.b16 %v4546, %v4538
    %v4931 = vpack.c.b16 %v4547, %v4539
    %v4932 = vpack.c.b16 %v4548, %v4540
    %5317 = vmatprep.subr.bf16.mxu0 %v4550
    %5318 = vmatpush1.bf16.msra.mxu0 %v4549
    %5319 = vmatprep.subr.bf16.mxu0 %v4558
    %5320 = vmatpush1.bf16.msra.mxu0 %v4557
    %5321 = vmatprep.subr.bf16.mxu0 %v4566
    %5322 = vmatpush1.bf16.msra.mxu0 %v4565
    %5323 = vmatprep.subr.bf16.mxu0 %v4574
    %5324 = vmatpush1.bf16.msra.mxu0 %v4573
    %5325 = vmatprep.subr.bf16.mxu0 %v4582
    %5326 = vmatpush1.bf16.msra.mxu0 %v4581
    %5327 = vmatprep.subr.bf16.mxu0 %v4590
    %5328 = vmatpush1.bf16.msra.mxu0 %v4589
    %5329 = vmatprep.subr.bf16.mxu0 %v4598
    %5330 = vmatpush1.bf16.msra.mxu0 %v4597
    %5331 = vmatprep.subr.bf16.mxu0 %v4606
    %5332 = vmatpush1.bf16.msra.mxu0 %v4605
    %5333 = vmatprep.subr.bf16.mxu0 %v4614
    %5334 = vmatpush1.bf16.msra.mxu0 %v4613
    %5335 = vmatprep.subr.bf16.mxu0 %v4622
    %5336 = vmatpush1.bf16.msra.mxu0 %v4621
    %5337 = vmatprep.subr.bf16.mxu0 %v4630
    %5338 = vmatpush1.bf16.msra.mxu0 %v4629
    %5339 = vmatprep.subr.bf16.mxu0 %v4638
    %5340 = vmatpush1.bf16.msra.mxu0 %v4637
    %5341 = vmatprep.subr.bf16.mxu0 %v4646
    %5342 = vmatpush1.bf16.msra.mxu0 %v4645
    %5343 = vmatprep.subr.bf16.mxu0 %v4654
    %5344 = vmatpush1.bf16.msra.mxu0 %v4653
    %5345 = vmatprep.subr.bf16.mxu0 %v4662
    %5346 = vmatpush1.bf16.msra.mxu0 %v4661
    %5347 = vmatprep.subr.bf16.mxu0 %v4670
    %5348 = vmatpush1.bf16.msra.mxu0 %v4669
    %5349 = vmatprep.mubr.bf16.mxu0 %v188
    %5350 = vmatmul.mubr.bf16.gmra.mrb[0].mxu0 %v187
    %v5351 = vpop.f32.mrb[0].mxu0
    %v5352 = vadd.f32 %v3022, %v5351
    %v5353 = vpop.f32.mrb[0].mxu0
    %v5354 = vadd.f32 %v3024, %v5353
    %v5355 = vpop.f32.mrb[0].mxu0
    %v5356 = vpop.f32.mrb[0].mxu0
    %5357 = vdwg.mxu0
    %5358 = vmatprep.subr.bf16.mxu0 %v4678
    %5359 = vmatpush1.bf16.msra.mxu0 %v4677
    %5360 = vmatprep.subr.bf16.mxu0 %v4686
    %5361 = vmatpush1.bf16.msra.mxu0 %v4685
    %5362 = vmatprep.subr.bf16.mxu0 %v4694
    %5363 = vmatpush1.bf16.msra.mxu0 %v4693
    %5364 = vmatprep.subr.bf16.mxu0 %v4702
    %5365 = vmatpush1.bf16.msra.mxu0 %v4701
    %5366 = vmatprep.subr.bf16.mxu0 %v4710
    %5367 = vmatpush1.bf16.msra.mxu0 %v4709
    %5368 = vmatprep.subr.bf16.mxu0 %v4718
    %5369 = vmatpush1.bf16.msra.mxu0 %v4717
    %5370 = vmatprep.subr.bf16.mxu0 %v4726
    %5371 = vmatpush1.bf16.msra.mxu0 %v4725
    %5372 = vmatprep.subr.bf16.mxu0 %v4734
    %5373 = vmatpush1.bf16.msra.mxu0 %v4733
    %5374 = vmatprep.subr.bf16.mxu0 %v4742
    %5375 = vmatpush1.bf16.msra.mxu0 %v4741
    %5376 = vmatprep.subr.bf16.mxu0 %v4750
    %5377 = vmatpush1.bf16.msra.mxu0 %v4749
    %5378 = vmatprep.subr.bf16.mxu0 %v4758
    %5379 = vmatpush1.bf16.msra.mxu0 %v4757
    %5380 = vmatprep.subr.bf16.mxu0 %v4766
    %5381 = vmatpush1.bf16.msra.mxu0 %v4765
    %5382 = vmatprep.subr.bf16.mxu0 %v4774
    %5383 = vmatpush1.bf16.msra.mxu0 %v4773
    %5384 = vmatprep.subr.bf16.mxu0 %v4782
    %5385 = vmatpush1.bf16.msra.mxu0 %v4781
    %5386 = vmatprep.subr.bf16.mxu0 %v4790
    %5387 = vmatpush1.bf16.msra.mxu0 %v4789
    %5388 = vmatprep.subr.bf16.mxu0 %v4798
    %5389 = vmatpush1.bf16.msra.mxu0 %v4797
    %5390 = vmatprep.mubr.bf16.mxu0 %v190
    %5391 = vmatmul.mubr.bf16.gmra.mrb[0].mxu0 %v189
    %v5392 = vpop.f32.mrb[0].mxu0
    %v5393 = vadd.f32 %v5352, %v5392
    %v5394 = vpop.f32.mrb[0].mxu0
    %v5395 = vadd.f32 %v5354, %v5394
    %v5396 = vpop.f32.mrb[0].mxu0
    %v5397 = vpop.f32.mrb[0].mxu0
    %5398 = vdwg.mxu0
    %5399 = vmatprep.subr.bf16.mxu0 %v4806
    %5400 = vmatpush1.bf16.msra.mxu0 %v4805
    %5401 = vmatprep.subr.bf16.mxu0 %v4814
    %5402 = vmatpush1.bf16.msra.mxu0 %v4813
    %5403 = vmatprep.subr.bf16.mxu0 %v4822
    %5404 = vmatpush1.bf16.msra.mxu0 %v4821
    %5405 = vmatprep.subr.bf16.mxu0 %v4830
    %5406 = vmatpush1.bf16.msra.mxu0 %v4829
    %5407 = vmatprep.subr.bf16.mxu0 %v4838
    %5408 = vmatpush1.bf16.msra.mxu0 %v4837
    %5409 = vmatprep.subr.bf16.mxu0 %v4846
    %5410 = vmatpush1.bf16.msra.mxu0 %v4845
    %5411 = vmatprep.subr.bf16.mxu0 %v4854
    %5412 = vmatpush1.bf16.msra.mxu0 %v4853
    %5413 = vmatprep.subr.bf16.mxu0 %v4862
    %5414 = vmatpush1.bf16.msra.mxu0 %v4861
    %5415 = vmatprep.subr.bf16.mxu0 %v4870
    %5416 = vmatpush1.bf16.msra.mxu0 %v4869
    %5417 = vmatprep.subr.bf16.mxu0 %v4878
    %5418 = vmatpush1.bf16.msra.mxu0 %v4877
    %5419 = vmatprep.subr.bf16.mxu0 %v4886
    %5420 = vmatpush1.bf16.msra.mxu0 %v4885
    %5421 = vmatprep.subr.bf16.mxu0 %v4894
    %5422 = vmatpush1.bf16.msra.mxu0 %v4893
    %5423 = vmatprep.subr.bf16.mxu0 %v4902
    %5424 = vmatpush1.bf16.msra.mxu0 %v4901
    %5425 = vmatprep.subr.bf16.mxu0 %v4910
    %5426 = vmatpush1.bf16.msra.mxu0 %v4909
    %5427 = vmatprep.subr.bf16.mxu0 %v4918
    %5428 = vmatpush1.bf16.msra.mxu0 %v4917
    %5429 = vmatprep.subr.bf16.mxu0 %v4926
    %5430 = vmatpush1.bf16.msra.mxu0 %v4925
    %5431 = vmatprep.mubr.bf16.mxu0 %v192
    %5432 = vmatmul.mubr.bf16.gmra.mrb[0].mxu0 %v191
    %v5433 = vpop.f32.mrb[0].mxu0
    %v5434 = vadd.f32 %v5393, %v5433
    %v5435 = vpop.f32.mrb[0].mxu0
    %v5436 = vadd.f32 %v5395, %v5435
    %v5437 = vpop.f32.mrb[0].mxu0
    %v5438 = vpop.f32.mrb[0].mxu0
    %5439 = vdwg.mxu0
    %5440 = vmatprep.subr.bf16.mxu0 %v4552
    %5441 = vmatpush1.bf16.msra.mxu0 %v4551
    %5442 = vmatprep.subr.bf16.mxu0 %v4560
    %5443 = vmatpush1.bf16.msra.mxu0 %v4559
    %5444 = vmatprep.subr.bf16.mxu0 %v4568
    %5445 = vmatpush1.bf16.msra.mxu0 %v4567
    %5446 = vmatprep.subr.bf16.mxu0 %v4576
    %5447 = vmatpush1.bf16.msra.mxu0 %v4575
    %5448 = vmatprep.subr.bf16.mxu0 %v4584
    %5449 = vmatpush1.bf16.msra.mxu0 %v4583
    %5450 = vmatprep.subr.bf16.mxu0 %v4592
    %5451 = vmatpush1.bf16.msra.mxu0 %v4591
    %5452 = vmatprep.subr.bf16.mxu0 %v4600
    %5453 = vmatpush1.bf16.msra.mxu0 %v4599
    %5454 = vmatprep.subr.bf16.mxu0 %v4608
    %5455 = vmatpush1.bf16.msra.mxu0 %v4607
    %5456 = vmatprep.subr.bf16.mxu0 %v4616
    %5457 = vmatpush1.bf16.msra.mxu0 %v4615
    %5458 = vmatprep.subr.bf16.mxu0 %v4624
    %5459 = vmatpush1.bf16.msra.mxu0 %v4623
    %5460 = vmatprep.subr.bf16.mxu0 %v4632
    %5461 = vmatpush1.bf16.msra.mxu0 %v4631
    %5462 = vmatprep.subr.bf16.mxu0 %v4640
    %5463 = vmatpush1.bf16.msra.mxu0 %v4639
    %5464 = vmatprep.subr.bf16.mxu0 %v4648
    %5465 = vmatpush1.bf16.msra.mxu0 %v4647
    %5466 = vmatprep.subr.bf16.mxu0 %v4656
    %5467 = vmatpush1.bf16.msra.mxu0 %v4655
    %5468 = vmatprep.subr.bf16.mxu0 %v4664
    %5469 = vmatpush1.bf16.msra.mxu0 %v4663
    %5470 = vmatprep.subr.bf16.mxu0 %v4672
    %5471 = vmatpush1.bf16.msra.mxu0 %v4671
    %5472 = vmatprep.mubr.bf16.mxu0 %v188
    %5473 = vmatmul.mubr.bf16.gmra.mrb[0].mxu0 %v187
    %v5474 = vpop.f32.mrb[0].mxu0
    %v5475 = vadd.f32 %v3145, %v5474
    %v5476 = vpop.f32.mrb[0].mxu0
    %v5477 = vadd.f32 %v3147, %v5476
    %v5478 = vpop.f32.mrb[0].mxu0
    %v5479 = vpop.f32.mrb[0].mxu0
    %5480 = vdwg.mxu0
    %5481 = vmatprep.subr.bf16.mxu0 %v4680
    %5482 = vmatpush1.bf16.msra.mxu0 %v4679
    %5483 = vmatprep.subr.bf16.mxu0 %v4688
    %5484 = vmatpush1.bf16.msra.mxu0 %v4687
    %5485 = vmatprep.subr.bf16.mxu0 %v4696
    %5486 = vmatpush1.bf16.msra.mxu0 %v4695
    %5487 = vmatprep.subr.bf16.mxu0 %v4704
    %5488 = vmatpush1.bf16.msra.mxu0 %v4703
    %5489 = vmatprep.subr.bf16.mxu0 %v4712
    %5490 = vmatpush1.bf16.msra.mxu0 %v4711
    %5491 = vmatprep.subr.bf16.mxu0 %v4720
    %5492 = vmatpush1.bf16.msra.mxu0 %v4719
    %5493 = vmatprep.subr.bf16.mxu0 %v4728
    %5494 = vmatpush1.bf16.msra.mxu0 %v4727
    %5495 = vmatprep.subr.bf16.mxu0 %v4736
    %5496 = vmatpush1.bf16.msra.mxu0 %v4735
    %5497 = vmatprep.subr.bf16.mxu0 %v4744
    %5498 = vmatpush1.bf16.msra.mxu0 %v4743
    %5499 = vmatprep.subr.bf16.mxu0 %v4752
    %5500 = vmatpush1.bf16.msra.mxu0 %v4751
    %5501 = vmatprep.subr.bf16.mxu0 %v4760
    %5502 = vmatpush1.bf16.msra.mxu0 %v4759
    %5503 = vmatprep.subr.bf16.mxu0 %v4768
    %5504 = vmatpush1.bf16.msra.mxu0 %v4767
    %5505 = vmatprep.subr.bf16.mxu0 %v4776
    %5506 = vmatpush1.bf16.msra.mxu0 %v4775
    %5507 = vmatprep.subr.bf16.mxu0 %v4784
    %5508 = vmatpush1.bf16.msra.mxu0 %v4783
    %5509 = vmatprep.subr.bf16.mxu0 %v4792
    %5510 = vmatpush1.bf16.msra.mxu0 %v4791
    %5511 = vmatprep.subr.bf16.mxu0 %v4800
    %5512 = vmatpush1.bf16.msra.mxu0 %v4799
    %5513 = vmatprep.mubr.bf16.mxu0 %v190
    %5514 = vmatmul.mubr.bf16.gmra.mrb[0].mxu0 %v189
    %v5515 = vpop.f32.mrb[0].mxu0
    %v5516 = vadd.f32 %v5475, %v5515
    %v5517 = vpop.f32.mrb[0].mxu0
    %v5518 = vadd.f32 %v5477, %v5517
    %v5519 = vpop.f32.mrb[0].mxu0
    %v5520 = vpop.f32.mrb[0].mxu0
    %5521 = vdwg.mxu0
    %5522 = vmatprep.subr.bf16.mxu0 %v4808
    %5523 = vmatpush1.bf16.msra.mxu0 %v4807
    %5524 = vmatprep.subr.bf16.mxu0 %v4816
    %5525 = vmatpush1.bf16.msra.mxu0 %v4815
    %5526 = vmatprep.subr.bf16.mxu0 %v4824
    %5527 = vmatpush1.bf16.msra.mxu0 %v4823
    %5528 = vmatprep.subr.bf16.mxu0 %v4832
    %5529 = vmatpush1.bf16.msra.mxu0 %v4831
    %5530 = vmatprep.subr.bf16.mxu0 %v4840
    %5531 = vmatpush1.bf16.msra.mxu0 %v4839
    %5532 = vmatprep.subr.bf16.mxu0 %v4848
    %5533 = vmatpush1.bf16.msra.mxu0 %v4847
    %5534 = vmatprep.subr.bf16.mxu0 %v4856
    %5535 = vmatpush1.bf16.msra.mxu0 %v4855
    %5536 = vmatprep.subr.bf16.mxu0 %v4864
    %5537 = vmatpush1.bf16.msra.mxu0 %v4863
    %5538 = vmatprep.subr.bf16.mxu0 %v4872
    %5539 = vmatpush1.bf16.msra.mxu0 %v4871
    %5540 = vmatprep.subr.bf16.mxu0 %v4880
    %5541 = vmatpush1.bf16.msra.mxu0 %v4879
    %5542 = vmatprep.subr.bf16.mxu0 %v4888
    %5543 = vmatpush1.bf16.msra.mxu0 %v4887
    %5544 = vmatprep.subr.bf16.mxu0 %v4896
    %5545 = vmatpush1.bf16.msra.mxu0 %v4895
    %5546 = vmatprep.subr.bf16.mxu0 %v4904
    %5547 = vmatpush1.bf16.msra.mxu0 %v4903
    %5548 = vmatprep.subr.bf16.mxu0 %v4912
    %5549 = vmatpush1.bf16.msra.mxu0 %v4911
    %5550 = vmatprep.subr.bf16.mxu0 %v4920
    %5551 = vmatpush1.bf16.msra.mxu0 %v4919
    %5552 = vmatprep.subr.bf16.mxu0 %v4928
    %5553 = vmatpush1.bf16.msra.mxu0 %v4927
    %5554 = vmatprep.mubr.bf16.mxu0 %v192
    %5555 = vmatmul.mubr.bf16.gmra.mrb[0].mxu0 %v191
    %v5556 = vpop.f32.mrb[0].mxu0
    %v5557 = vadd.f32 %v5516, %v5556
    %v5558 = vpop.f32.mrb[0].mxu0
    %v5559 = vadd.f32 %v5518, %v5558
    %v5560 = vpop.f32.mrb[0].mxu0
    %v5561 = vpop.f32.mrb[0].mxu0
    %5562 = vdwg.mxu0
    %5563 = vmatprep.subr.bf16.mxu0 %v4554
    %5564 = vmatpush1.bf16.msra.mxu0 %v4553
    %5565 = vmatprep.subr.bf16.mxu0 %v4562
    %5566 = vmatpush1.bf16.msra.mxu0 %v4561
    %5567 = vmatprep.subr.bf16.mxu0 %v4570
    %5568 = vmatpush1.bf16.msra.mxu0 %v4569
    %5569 = vmatprep.subr.bf16.mxu0 %v4578
    %5570 = vmatpush1.bf16.msra.mxu0 %v4577
    %5571 = vmatprep.subr.bf16.mxu0 %v4586
    %5572 = vmatpush1.bf16.msra.mxu0 %v4585
    %5573 = vmatprep.subr.bf16.mxu0 %v4594
    %5574 = vmatpush1.bf16.msra.mxu0 %v4593
    %5575 = vmatprep.subr.bf16.mxu0 %v4602
    %5576 = vmatpush1.bf16.msra.mxu0 %v4601
    %5577 = vmatprep.subr.bf16.mxu0 %v4610
    %5578 = vmatpush1.bf16.msra.mxu0 %v4609
    %5579 = vmatprep.subr.bf16.mxu0 %v4618
    %5580 = vmatpush1.bf16.msra.mxu0 %v4617
    %5581 = vmatprep.subr.bf16.mxu0 %v4626
    %5582 = vmatpush1.bf16.msra.mxu0 %v4625
    %5583 = vmatprep.subr.bf16.mxu0 %v4634
    %5584 = vmatpush1.bf16.msra.mxu0 %v4633
    %5585 = vmatprep.subr.bf16.mxu0 %v4642
    %5586 = vmatpush1.bf16.msra.mxu0 %v4641
    %5587 = vmatprep.subr.bf16.mxu0 %v4650
    %5588 = vmatpush1.bf16.msra.mxu0 %v4649
    %5589 = vmatprep.subr.bf16.mxu0 %v4658
    %5590 = vmatpush1.bf16.msra.mxu0 %v4657
    %5591 = vmatprep.subr.bf16.mxu0 %v4666
    %5592 = vmatpush1.bf16.msra.mxu0 %v4665
    %5593 = vmatprep.subr.bf16.mxu0 %v4674
    %5594 = vmatpush1.bf16.msra.mxu0 %v4673
    %5595 = vmatprep.mubr.bf16.mxu0 %v188
    %5596 = vmatmul.mubr.bf16.gmra.mrb[0].mxu0 %v187
    %v5597 = vpop.f32.mrb[0].mxu0
    %v5598 = vadd.f32 %v3268, %v5597
    %v5599 = vpop.f32.mrb[0].mxu0
    %v5600 = vadd.f32 %v3270, %v5599
    %v5601 = vpop.f32.mrb[0].mxu0
    %v5602 = vpop.f32.mrb[0].mxu0
    %5603 = vdwg.mxu0
    %5604 = vmatprep.subr.bf16.mxu0 %v4682
    %5605 = vmatpush1.bf16.msra.mxu0 %v4681
    %5606 = vmatprep.subr.bf16.mxu0 %v4690
    %5607 = vmatpush1.bf16.msra.mxu0 %v4689
    %5608 = vmatprep.subr.bf16.mxu0 %v4698
    %5609 = vmatpush1.bf16.msra.mxu0 %v4697
    %5610 = vmatprep.subr.bf16.mxu0 %v4706
    %5611 = vmatpush1.bf16.msra.mxu0 %v4705
    %5612 = vmatprep.subr.bf16.mxu0 %v4714
    %5613 = vmatpush1.bf16.msra.mxu0 %v4713
    %5614 = vmatprep.subr.bf16.mxu0 %v4722
    %5615 = vmatpush1.bf16.msra.mxu0 %v4721
    %5616 = vmatprep.subr.bf16.mxu0 %v4730
    %5617 = vmatpush1.bf16.msra.mxu0 %v4729
    %5618 = vmatprep.subr.bf16.mxu0 %v4738
    %5619 = vmatpush1.bf16.msra.mxu0 %v4737
    %5620 = vmatprep.subr.bf16.mxu0 %v4746
    %5621 = vmatpush1.bf16.msra.mxu0 %v4745
    %5622 = vmatprep.subr.bf16.mxu0 %v4754
    %5623 = vmatpush1.bf16.msra.mxu0 %v4753
    %5624 = vmatprep.subr.bf16.mxu0 %v4762
    %5625 = vmatpush1.bf16.msra.mxu0 %v4761
    %5626 = vmatprep.subr.bf16.mxu0 %v4770
    %5627 = vmatpush1.bf16.msra.mxu0 %v4769
    %5628 = vmatprep.subr.bf16.mxu0 %v4778
    %5629 = vmatpush1.bf16.msra.mxu0 %v4777
    %5630 = vmatprep.subr.bf16.mxu0 %v4786
    %5631 = vmatpush1.bf16.msra.mxu0 %v4785
    %5632 = vmatprep.subr.bf16.mxu0 %v4794
    %5633 = vmatpush1.bf16.msra.mxu0 %v4793
    %5634 = vmatprep.subr.bf16.mxu0 %v4802
    %5635 = vmatpush1.bf16.msra.mxu0 %v4801
    %5636 = vmatprep.mubr.bf16.mxu0 %v190
    %5637 = vmatmul.mubr.bf16.gmra.mrb[0].mxu0 %v189
    %v5638 = vpop.f32.mrb[0].mxu0
    %v5639 = vadd.f32 %v5598, %v5638
    %v5640 = vpop.f32.mrb[0].mxu0
    %v5641 = vadd.f32 %v5600, %v5640
    %v5642 = vpop.f32.mrb[0].mxu0
    %v5643 = vpop.f32.mrb[0].mxu0
    %5644 = vdwg.mxu0
    %5645 = vmatprep.subr.bf16.mxu0 %v4810
    %5646 = vmatpush1.bf16.msra.mxu0 %v4809
    %5647 = vmatprep.subr.bf16.mxu0 %v4818
    %5648 = vmatpush1.bf16.msra.mxu0 %v4817
    %5649 = vmatprep.subr.bf16.mxu0 %v4826
    %5650 = vmatpush1.bf16.msra.mxu0 %v4825
    %5651 = vmatprep.subr.bf16.mxu0 %v4834
    %5652 = vmatpush1.bf16.msra.mxu0 %v4833
    %5653 = vmatprep.subr.bf16.mxu0 %v4842
    %5654 = vmatpush1.bf16.msra.mxu0 %v4841
    %5655 = vmatprep.subr.bf16.mxu0 %v4850
    %5656 = vmatpush1.bf16.msra.mxu0 %v4849
    %5657 = vmatprep.subr.bf16.mxu0 %v4858
    %5658 = vmatpush1.bf16.msra.mxu0 %v4857
    %5659 = vmatprep.subr.bf16.mxu0 %v4866
    %5660 = vmatpush1.bf16.msra.mxu0 %v4865
    %5661 = vmatprep.subr.bf16.mxu0 %v4874
    %5662 = vmatpush1.bf16.msra.mxu0 %v4873
    %5663 = vmatprep.subr.bf16.mxu0 %v4882
    %5664 = vmatpush1.bf16.msra.mxu0 %v4881
    %5665 = vmatprep.subr.bf16.mxu0 %v4890
    %5666 = vmatpush1.bf16.msra.mxu0 %v4889
    %5667 = vmatprep.subr.bf16.mxu0 %v4898
    %5668 = vmatpush1.bf16.msra.mxu0 %v4897
    %5669 = vmatprep.subr.bf16.mxu0 %v4906
    %5670 = vmatpush1.bf16.msra.mxu0 %v4905
    %5671 = vmatprep.subr.bf16.mxu0 %v4914
    %5672 = vmatpush1.bf16.msra.mxu0 %v4913
    %5673 = vmatprep.subr.bf16.mxu0 %v4922
    %5674 = vmatpush1.bf16.msra.mxu0 %v4921
    %5675 = vmatprep.subr.bf16.mxu0 %v4930
    %5676 = vmatpush1.bf16.msra.mxu0 %v4929
    %5677 = vmatprep.mubr.bf16.mxu0 %v192
    %5678 = vmatmul.mubr.bf16.gmra.mrb[0].mxu0 %v191
    %v5679 = vpop.f32.mrb[0].mxu0
    %v5680 = vadd.f32 %v5639, %v5679
    %v5681 = vpop.f32.mrb[0].mxu0
    %v5682 = vadd.f32 %v5641, %v5681
    %v5683 = vpop.f32.mrb[0].mxu0
    %v5684 = vpop.f32.mrb[0].mxu0
    %5685 = vdwg.mxu0
    %5686 = vmatprep.subr.bf16.mxu0 %v4556
    %5687 = vmatpush1.bf16.msra.mxu0 %v4555
    %5688 = vmatprep.subr.bf16.mxu0 %v4564
    %5689 = vmatpush1.bf16.msra.mxu0 %v4563
    %5690 = vmatprep.subr.bf16.mxu0 %v4572
    %5691 = vmatpush1.bf16.msra.mxu0 %v4571
    %5692 = vmatprep.subr.bf16.mxu0 %v4580
    %5693 = vmatpush1.bf16.msra.mxu0 %v4579
    %5694 = vmatprep.subr.bf16.mxu0 %v4588
    %5695 = vmatpush1.bf16.msra.mxu0 %v4587
    %5696 = vmatprep.subr.bf16.mxu0 %v4596
    %5697 = vmatpush1.bf16.msra.mxu0 %v4595
    %5698 = vmatprep.subr.bf16.mxu0 %v4604
    %5699 = vmatpush1.bf16.msra.mxu0 %v4603
    %5700 = vmatprep.subr.bf16.mxu0 %v4612
    %5701 = vmatpush1.bf16.msra.mxu0 %v4611
    %5702 = vmatprep.subr.bf16.mxu0 %v4620
    %5703 = vmatpush1.bf16.msra.mxu0 %v4619
    %5704 = vmatprep.subr.bf16.mxu0 %v4628
    %5705 = vmatpush1.bf16.msra.mxu0 %v4627
    %5706 = vmatprep.subr.bf16.mxu0 %v4636
    %5707 = vmatpush1.bf16.msra.mxu0 %v4635
    %5708 = vmatprep.subr.bf16.mxu0 %v4644
    %5709 = vmatpush1.bf16.msra.mxu0 %v4643
    %5710 = vmatprep.subr.bf16.mxu0 %v4652
    %5711 = vmatpush1.bf16.msra.mxu0 %v4651
    %5712 = vmatprep.subr.bf16.mxu0 %v4660
    %5713 = vmatpush1.bf16.msra.mxu0 %v4659
    %5714 = vmatprep.subr.bf16.mxu0 %v4668
    %5715 = vmatpush1.bf16.msra.mxu0 %v4667
    %5716 = vmatprep.subr.bf16.mxu0 %v4676
    %5717 = vmatpush1.bf16.msra.mxu0 %v4675
    %5718 = vmatprep.mubr.bf16.mxu0 %v188
    %5719 = vmatmul.mubr.bf16.gmra.mrb[0].mxu0 %v187
    %v5720 = vpop.f32.mrb[0].mxu0
    %v5721 = vadd.f32 %v3391, %v5720
    %v5722 = vpop.f32.mrb[0].mxu0
    %v5723 = vadd.f32 %v3393, %v5722
    %v5724 = vpop.f32.mrb[0].mxu0
    %v5725 = vpop.f32.mrb[0].mxu0
    %5726 = vdwg.mxu0
    %5727 = vmatprep.subr.bf16.mxu0 %v4684
    %5728 = vmatpush1.bf16.msra.mxu0 %v4683
    %5729 = vmatprep.subr.bf16.mxu0 %v4692
    %5730 = vmatpush1.bf16.msra.mxu0 %v4691
    %5731 = vmatprep.subr.bf16.mxu0 %v4700
    %5732 = vmatpush1.bf16.msra.mxu0 %v4699
    %5733 = vmatprep.subr.bf16.mxu0 %v4708
    %5734 = vmatpush1.bf16.msra.mxu0 %v4707
    %5735 = vmatprep.subr.bf16.mxu0 %v4716
    %5736 = vmatpush1.bf16.msra.mxu0 %v4715
    %5737 = vmatprep.subr.bf16.mxu0 %v4724
    %5738 = vmatpush1.bf16.msra.mxu0 %v4723
    %5739 = vmatprep.subr.bf16.mxu0 %v4732
    %5740 = vmatpush1.bf16.msra.mxu0 %v4731
    %5741 = vmatprep.subr.bf16.mxu0 %v4740
    %5742 = vmatpush1.bf16.msra.mxu0 %v4739
    %5743 = vmatprep.subr.bf16.mxu0 %v4748
    %5744 = vmatpush1.bf16.msra.mxu0 %v4747
    %5745 = vmatprep.subr.bf16.mxu0 %v4756
    %5746 = vmatpush1.bf16.msra.mxu0 %v4755
    %5747 = vmatprep.subr.bf16.mxu0 %v4764
    %5748 = vmatpush1.bf16.msra.mxu0 %v4763
    %5749 = vmatprep.subr.bf16.mxu0 %v4772
    %5750 = vmatpush1.bf16.msra.mxu0 %v4771
    %5751 = vmatprep.subr.bf16.mxu0 %v4780
    %5752 = vmatpush1.bf16.msra.mxu0 %v4779
    %5753 = vmatprep.subr.bf16.mxu0 %v4788
    %5754 = vmatpush1.bf16.msra.mxu0 %v4787
    %5755 = vmatprep.subr.bf16.mxu0 %v4796
    %5756 = vmatpush1.bf16.msra.mxu0 %v4795
    %5757 = vmatprep.subr.bf16.mxu0 %v4804
    %5758 = vmatpush1.bf16.msra.mxu0 %v4803
    %5759 = vmatprep.mubr.bf16.mxu0 %v190
    %5760 = vmatmul.mubr.bf16.gmra.mrb[0].mxu0 %v189
    %v5761 = vpop.f32.mrb[0].mxu0
    %v5762 = vadd.f32 %v5721, %v5761
    %v5763 = vpop.f32.mrb[0].mxu0
    %v5764 = vadd.f32 %v5723, %v5763
    %v5765 = vpop.f32.mrb[0].mxu0
    %v5766 = vpop.f32.mrb[0].mxu0
    %5767 = vdwg.mxu0
    %5768 = vmatprep.subr.bf16.mxu0 %v4812
    %5769 = vmatpush1.bf16.msra.mxu0 %v4811
    %5770 = vmatprep.subr.bf16.mxu0 %v4820
    %5771 = vmatpush1.bf16.msra.mxu0 %v4819
    %5772 = vmatprep.subr.bf16.mxu0 %v4828
    %5773 = vmatpush1.bf16.msra.mxu0 %v4827
    %5774 = vmatprep.subr.bf16.mxu0 %v4836
    %5775 = vmatpush1.bf16.msra.mxu0 %v4835
    %5776 = vmatprep.subr.bf16.mxu0 %v4844
    %5777 = vmatpush1.bf16.msra.mxu0 %v4843
    %5778 = vmatprep.subr.bf16.mxu0 %v4852
    %5779 = vmatpush1.bf16.msra.mxu0 %v4851
    %5780 = vmatprep.subr.bf16.mxu0 %v4860
    %5781 = vmatpush1.bf16.msra.mxu0 %v4859
    %5782 = vmatprep.subr.bf16.mxu0 %v4868
    %5783 = vmatpush1.bf16.msra.mxu0 %v4867
    %5784 = vmatprep.subr.bf16.mxu0 %v4876
    %5785 = vmatpush1.bf16.msra.mxu0 %v4875
    %5786 = vmatprep.subr.bf16.mxu0 %v4884
    %5787 = vmatpush1.bf16.msra.mxu0 %v4883
    %5788 = vmatprep.subr.bf16.mxu0 %v4892
    %5789 = vmatpush1.bf16.msra.mxu0 %v4891
    %5790 = vmatprep.subr.bf16.mxu0 %v4900
    %5791 = vmatpush1.bf16.msra.mxu0 %v4899
    %5792 = vmatprep.subr.bf16.mxu0 %v4908
    %5793 = vmatpush1.bf16.msra.mxu0 %v4907
    %5794 = vmatprep.subr.bf16.mxu0 %v4916
    %5795 = vmatpush1.bf16.msra.mxu0 %v4915
    %5796 = vmatprep.subr.bf16.mxu0 %v4924
    %5797 = vmatpush1.bf16.msra.mxu0 %v4923
    %5798 = vmatprep.subr.bf16.mxu0 %v4932
    %5799 = vmatpush1.bf16.msra.mxu0 %v4931
    %5800 = vmatprep.mubr.bf16.mxu0 %v192
    %5801 = vmatmul.mubr.bf16.gmra.mrb[0].mxu0 %v191
    %v5802 = vpop.f32.mrb[0].mxu0
    %v5803 = vadd.f32 %v5762, %v5802
    %v5804 = vpop.f32.mrb[0].mxu0
    %v5805 = vadd.f32 %v5764, %v5804
    %v5806 = vpop.f32.mrb[0].mxu0
    %v5807 = vpop.f32.mrb[0].mxu0
    %5808 = vdwg.mxu0
    %v5809 = vld [vmem:[#allocation11] sm:$0xff]
    %v5810 = vld [vmem:[#allocation11 + $0x8] sm:$0xff]
    %v5811 = vld [vmem:[#allocation11 + $0x10] sm:$0xff]
    %v5812 = vld [vmem:[#allocation11 + $0x18] sm:$0xff]
    %v5813 = vld [vmem:[#allocation11 + $0x20] sm:$0xff]
    %v5814 = vld [vmem:[#allocation11 + $0x28] sm:$0xff]
    %v5815 = vld [vmem:[#allocation11 + $0x30] sm:$0xff]
    %v5816 = vld [vmem:[#allocation11 + $0x38] sm:$0xff]
    %v5817 = vld [vmem:[#allocation11 + $0x40] sm:$0xff]
    %v5818 = vld [vmem:[#allocation11 + $0x48] sm:$0xff]
    %v5819 = vld [vmem:[#allocation11 + $0x50] sm:$0xff]
    %v5820 = vld [vmem:[#allocation11 + $0x58] sm:$0xff]
    %v5821 = vld [vmem:[#allocation11 + $0x60] sm:$0xff]
    %v5822 = vld [vmem:[#allocation11 + $0x68] sm:$0xff]
    %v5823 = vld [vmem:[#allocation11 + $0x70] sm:$0xff]
    %v5824 = vld [vmem:[#allocation11 + $0x78] sm:$0xff]
    %v5825 = vld [vmem:[#allocation11 + $0x80] sm:$0xff]
    %v5826 = vld [vmem:[#allocation11 + $0x88] sm:$0xff]
    %v5827 = vld [vmem:[#allocation11 + $0x90] sm:$0xff]
    %v5828 = vld [vmem:[#allocation11 + $0x98] sm:$0xff]
    %v5829 = vld [vmem:[#allocation11 + $0xa0] sm:$0xff]
    %v5830 = vld [vmem:[#allocation11 + $0xa8] sm:$0xff]
    %v5831 = vld [vmem:[#allocation11 + $0xb0] sm:$0xff]
    %v5832 = vld [vmem:[#allocation11 + $0xb8] sm:$0xff]
    %v5833 = vld [vmem:[#allocation11 + $0xc0] sm:$0xff]
    %v5834 = vld [vmem:[#allocation11 + $0xc8] sm:$0xff]
    %v5835 = vld [vmem:[#allocation11 + $0xd0] sm:$0xff]
    %v5836 = vld [vmem:[#allocation11 + $0xd8] sm:$0xff]
    %v5837 = vld [vmem:[#allocation11 + $0xe0] sm:$0xff]
    %v5838 = vld [vmem:[#allocation11 + $0xe8] sm:$0xff]
    %v5839 = vld [vmem:[#allocation11 + $0xf0] sm:$0xff]
    %v5840 = vld [vmem:[#allocation11 + $0xf8] sm:$0xff]
    %v5841 = vld [vmem:[#allocation11 + $0x100] sm:$0xff]
    %v5842 = vld [vmem:[#allocation11 + $0x108] sm:$0xff]
    %v5843 = vld [vmem:[#allocation11 + $0x110] sm:$0xff]
    %v5844 = vld [vmem:[#allocation11 + $0x118] sm:$0xff]
    %v5845 = vld [vmem:[#allocation11 + $0x120] sm:$0xff]
    %v5846 = vld [vmem:[#allocation11 + $0x128] sm:$0xff]
    %v5847 = vld [vmem:[#allocation11 + $0x130] sm:$0xff]
    %v5848 = vld [vmem:[#allocation11 + $0x138] sm:$0xff]
    %v5849 = vld [vmem:[#allocation11 + $0x140] sm:$0xff]
    %v5850 = vld [vmem:[#allocation11 + $0x148] sm:$0xff]
    %v5851 = vld [vmem:[#allocation11 + $0x150] sm:$0xff]
    %v5852 = vld [vmem:[#allocation11 + $0x158] sm:$0xff]
    %v5853 = vld [vmem:[#allocation11 + $0x160] sm:$0xff]
    %v5854 = vld [vmem:[#allocation11 + $0x168] sm:$0xff]
    %v5855 = vld [vmem:[#allocation11 + $0x170] sm:$0xff]
    %v5856 = vld [vmem:[#allocation11 + $0x178] sm:$0xff]
    %v5857 = vld [vmem:[#allocation11 + $0x180] sm:$0xff]
    %v5858 = vld [vmem:[#allocation11 + $0x188] sm:$0xff]
    %v5859 = vld [vmem:[#allocation11 + $0x190] sm:$0xff]
    %v5860 = vld [vmem:[#allocation11 + $0x198] sm:$0xff]
    %v5861 = vld [vmem:[#allocation11 + $0x1a0] sm:$0xff]
    %v5862 = vld [vmem:[#allocation11 + $0x1a8] sm:$0xff]
    %v5863 = vld [vmem:[#allocation11 + $0x1b0] sm:$0xff]
    %v5864 = vld [vmem:[#allocation11 + $0x1b8] sm:$0xff]
    %v5865 = vld [vmem:[#allocation11 + $0x1c0] sm:$0xff]
    %v5866 = vld [vmem:[#allocation11 + $0x1c8] sm:$0xff]
    %v5867 = vld [vmem:[#allocation11 + $0x1d0] sm:$0xff]
    %v5868 = vld [vmem:[#allocation11 + $0x1d8] sm:$0xff]
    %v5869 = vld [vmem:[#allocation11 + $0x1e0] sm:$0xff]
    %v5870 = vld [vmem:[#allocation11 + $0x1e8] sm:$0xff]
    %v5871 = vld [vmem:[#allocation11 + $0x1f0] sm:$0xff]
    %v5872 = vld [vmem:[#allocation11 + $0x1f8] sm:$0xff]
    %v5873 = vld [vmem:[#allocation11 + $0x200] sm:$0xff]
    %v5874 = vld [vmem:[#allocation11 + $0x208] sm:$0xff]
    %v5875 = vld [vmem:[#allocation11 + $0x210] sm:$0xff]
    %v5876 = vld [vmem:[#allocation11 + $0x218] sm:$0xff]
    %v5877 = vld [vmem:[#allocation11 + $0x220] sm:$0xff]
    %v5878 = vld [vmem:[#allocation11 + $0x228] sm:$0xff]
    %v5879 = vld [vmem:[#allocation11 + $0x230] sm:$0xff]
    %v5880 = vld [vmem:[#allocation11 + $0x238] sm:$0xff]
    %v5881 = vld [vmem:[#allocation11 + $0x240] sm:$0xff]
    %v5882 = vld [vmem:[#allocation11 + $0x248] sm:$0xff]
    %v5883 = vld [vmem:[#allocation11 + $0x250] sm:$0xff]
    %v5884 = vld [vmem:[#allocation11 + $0x258] sm:$0xff]
    %v5885 = vld [vmem:[#allocation11 + $0x260] sm:$0xff]
    %v5886 = vld [vmem:[#allocation11 + $0x268] sm:$0xff]
    %v5887 = vld [vmem:[#allocation11 + $0x270] sm:$0xff]
    %v5888 = vld [vmem:[#allocation11 + $0x278] sm:$0xff]
    %v5889 = vld [vmem:[#allocation11 + $0x280] sm:$0xff]
    %v5890 = vld [vmem:[#allocation11 + $0x288] sm:$0xff]
    %v5891 = vld [vmem:[#allocation11 + $0x290] sm:$0xff]
    %v5892 = vld [vmem:[#allocation11 + $0x298] sm:$0xff]
    %v5893 = vld [vmem:[#allocation11 + $0x2a0] sm:$0xff]
    %v5894 = vld [vmem:[#allocation11 + $0x2a8] sm:$0xff]
    %v5895 = vld [vmem:[#allocation11 + $0x2b0] sm:$0xff]
    %v5896 = vld [vmem:[#allocation11 + $0x2b8] sm:$0xff]
    %v5897 = vld [vmem:[#allocation11 + $0x2c0] sm:$0xff]
    %v5898 = vld [vmem:[#allocation11 + $0x2c8] sm:$0xff]
    %v5899 = vld [vmem:[#allocation11 + $0x2d0] sm:$0xff]
    %v5900 = vld [vmem:[#allocation11 + $0x2d8] sm:$0xff]
    %v5901 = vld [vmem:[#allocation11 + $0x2e0] sm:$0xff]
    %v5902 = vld [vmem:[#allocation11 + $0x2e8] sm:$0xff]
    %v5903 = vld [vmem:[#allocation11 + $0x2f0] sm:$0xff]
    %v5904 = vld [vmem:[#allocation11 + $0x2f8] sm:$0xff]
    %v5905 = vld [vmem:[#allocation11 + $0x300] sm:$0xff]
    %v5906 = vld [vmem:[#allocation11 + $0x308] sm:$0xff]
    %v5907 = vld [vmem:[#allocation11 + $0x310] sm:$0xff]
    %v5908 = vld [vmem:[#allocation11 + $0x318] sm:$0xff]
    %v5909 = vld [vmem:[#allocation11 + $0x320] sm:$0xff]
    %v5910 = vld [vmem:[#allocation11 + $0x328] sm:$0xff]
    %v5911 = vld [vmem:[#allocation11 + $0x330] sm:$0xff]
    %v5912 = vld [vmem:[#allocation11 + $0x338] sm:$0xff]
    %v5913 = vld [vmem:[#allocation11 + $0x340] sm:$0xff]
    %v5914 = vld [vmem:[#allocation11 + $0x348] sm:$0xff]
    %v5915 = vld [vmem:[#allocation11 + $0x350] sm:$0xff]
    %v5916 = vld [vmem:[#allocation11 + $0x358] sm:$0xff]
    %v5917 = vld [vmem:[#allocation11 + $0x360] sm:$0xff]
    %v5918 = vld [vmem:[#allocation11 + $0x368] sm:$0xff]
    %v5919 = vld [vmem:[#allocation11 + $0x370] sm:$0xff]
    %v5920 = vld [vmem:[#allocation11 + $0x378] sm:$0xff]
    %v5921 = vld [vmem:[#allocation11 + $0x380] sm:$0xff]
    %v5922 = vld [vmem:[#allocation11 + $0x388] sm:$0xff]
    %v5923 = vld [vmem:[#allocation11 + $0x390] sm:$0xff]
    %v5924 = vld [vmem:[#allocation11 + $0x398] sm:$0xff]
    %v5925 = vld [vmem:[#allocation11 + $0x3a0] sm:$0xff]
    %v5926 = vld [vmem:[#allocation11 + $0x3a8] sm:$0xff]
    %v5927 = vld [vmem:[#allocation11 + $0x3b0] sm:$0xff]
    %v5928 = vld [vmem:[#allocation11 + $0x3b8] sm:$0xff]
    %v5929 = vld [vmem:[#allocation11 + $0x3c0] sm:$0xff]
    %v5930 = vld [vmem:[#allocation11 + $0x3c8] sm:$0xff]
    %v5931 = vld [vmem:[#allocation11 + $0x3d0] sm:$0xff]
    %v5932 = vld [vmem:[#allocation11 + $0x3d8] sm:$0xff]
    %v5933 = vld [vmem:[#allocation11 + $0x3e0] sm:$0xff]
    %v5934 = vld [vmem:[#allocation11 + $0x3e8] sm:$0xff]
    %v5935 = vld [vmem:[#allocation11 + $0x3f0] sm:$0xff]
    %v5936 = vld [vmem:[#allocation11 + $0x3f8] sm:$0xff]
    %v5937 = vld [vmem:[#allocation11 + $0x400] sm:$0xff]
    %v5938 = vld [vmem:[#allocation11 + $0x408] sm:$0xff]
    %v5939 = vld [vmem:[#allocation11 + $0x410] sm:$0xff]
    %v5940 = vld [vmem:[#allocation11 + $0x418] sm:$0xff]
    %v5941 = vld [vmem:[#allocation11 + $0x420] sm:$0xff]
    %v5942 = vld [vmem:[#allocation11 + $0x428] sm:$0xff]
    %v5943 = vld [vmem:[#allocation11 + $0x430] sm:$0xff]
    %v5944 = vld [vmem:[#allocation11 + $0x438] sm:$0xff]
    %v5945 = vld [vmem:[#allocation11 + $0x440] sm:$0xff]
    %v5946 = vld [vmem:[#allocation11 + $0x448] sm:$0xff]
    %v5947 = vld [vmem:[#allocation11 + $0x450] sm:$0xff]
    %v5948 = vld [vmem:[#allocation11 + $0x458] sm:$0xff]
    %v5949 = vld [vmem:[#allocation11 + $0x460] sm:$0xff]
    %v5950 = vld [vmem:[#allocation11 + $0x468] sm:$0xff]
    %v5951 = vld [vmem:[#allocation11 + $0x470] sm:$0xff]
    %v5952 = vld [vmem:[#allocation11 + $0x478] sm:$0xff]
    %v5953 = vld [vmem:[#allocation11 + $0x480] sm:$0xff]
    %v5954 = vld [vmem:[#allocation11 + $0x488] sm:$0xff]
    %v5955 = vld [vmem:[#allocation11 + $0x490] sm:$0xff]
    %v5956 = vld [vmem:[#allocation11 + $0x498] sm:$0xff]
    %v5957 = vld [vmem:[#allocation11 + $0x4a0] sm:$0xff]
    %v5958 = vld [vmem:[#allocation11 + $0x4a8] sm:$0xff]
    %v5959 = vld [vmem:[#allocation11 + $0x4b0] sm:$0xff]
    %v5960 = vld [vmem:[#allocation11 + $0x4b8] sm:$0xff]
    %v5961 = vld [vmem:[#allocation11 + $0x4c0] sm:$0xff]
    %v5962 = vld [vmem:[#allocation11 + $0x4c8] sm:$0xff]
    %v5963 = vld [vmem:[#allocation11 + $0x4d0] sm:$0xff]
    %v5964 = vld [vmem:[#allocation11 + $0x4d8] sm:$0xff]
    %v5965 = vld [vmem:[#allocation11 + $0x4e0] sm:$0xff]
    %v5966 = vld [vmem:[#allocation11 + $0x4e8] sm:$0xff]
    %v5967 = vld [vmem:[#allocation11 + $0x4f0] sm:$0xff]
    %v5968 = vld [vmem:[#allocation11 + $0x4f8] sm:$0xff]
    %v5969 = vld [vmem:[#allocation11 + $0x500] sm:$0xff]
    %v5970 = vld [vmem:[#allocation11 + $0x508] sm:$0xff]
    %v5971 = vld [vmem:[#allocation11 + $0x510] sm:$0xff]
    %v5972 = vld [vmem:[#allocation11 + $0x518] sm:$0xff]
    %v5973 = vld [vmem:[#allocation11 + $0x520] sm:$0xff]
    %v5974 = vld [vmem:[#allocation11 + $0x528] sm:$0xff]
    %v5975 = vld [vmem:[#allocation11 + $0x530] sm:$0xff]
    %v5976 = vld [vmem:[#allocation11 + $0x538] sm:$0xff]
    %v5977 = vld [vmem:[#allocation11 + $0x540] sm:$0xff]
    %v5978 = vld [vmem:[#allocation11 + $0x548] sm:$0xff]
    %v5979 = vld [vmem:[#allocation11 + $0x550] sm:$0xff]
    %v5980 = vld [vmem:[#allocation11 + $0x558] sm:$0xff]
    %v5981 = vld [vmem:[#allocation11 + $0x560] sm:$0xff]
    %v5982 = vld [vmem:[#allocation11 + $0x568] sm:$0xff]
    %v5983 = vld [vmem:[#allocation11 + $0x570] sm:$0xff]
    %v5984 = vld [vmem:[#allocation11 + $0x578] sm:$0xff]
    %v5985 = vld [vmem:[#allocation11 + $0x580] sm:$0xff]
    %v5986 = vld [vmem:[#allocation11 + $0x588] sm:$0xff]
    %v5987 = vld [vmem:[#allocation11 + $0x590] sm:$0xff]
    %v5988 = vld [vmem:[#allocation11 + $0x598] sm:$0xff]
    %v5989 = vld [vmem:[#allocation11 + $0x5a0] sm:$0xff]
    %v5990 = vld [vmem:[#allocation11 + $0x5a8] sm:$0xff]
    %v5991 = vld [vmem:[#allocation11 + $0x5b0] sm:$0xff]
    %v5992 = vld [vmem:[#allocation11 + $0x5b8] sm:$0xff]
    %v5993 = vld [vmem:[#allocation11 + $0x5c0] sm:$0xff]
    %v5994 = vld [vmem:[#allocation11 + $0x5c8] sm:$0xff]
    %v5995 = vld [vmem:[#allocation11 + $0x5d0] sm:$0xff]
    %v5996 = vld [vmem:[#allocation11 + $0x5d8] sm:$0xff]
    %v5997 = vld [vmem:[#allocation11 + $0x5e0] sm:$0xff]
    %v5998 = vld [vmem:[#allocation11 + $0x5e8] sm:$0xff]
    %v5999 = vld [vmem:[#allocation11 + $0x5f0] sm:$0xff]
    %v6000 = vld [vmem:[#allocation11 + $0x5f8] sm:$0xff]
    %v6001 = vld [vmem:[#allocation11 + $0x600] sm:$0xff]
    %v6002 = vld [vmem:[#allocation11 + $0x608] sm:$0xff]
    %v6003 = vld [vmem:[#allocation11 + $0x610] sm:$0xff]
    %v6004 = vld [vmem:[#allocation11 + $0x618] sm:$0xff]
    %v6005 = vld [vmem:[#allocation11 + $0x620] sm:$0xff]
    %v6006 = vld [vmem:[#allocation11 + $0x628] sm:$0xff]
    %v6007 = vld [vmem:[#allocation11 + $0x630] sm:$0xff]
    %v6008 = vld [vmem:[#allocation11 + $0x638] sm:$0xff]
    %v6009 = vld [vmem:[#allocation11 + $0x640] sm:$0xff]
    %v6010 = vld [vmem:[#allocation11 + $0x648] sm:$0xff]
    %v6011 = vld [vmem:[#allocation11 + $0x650] sm:$0xff]
    %v6012 = vld [vmem:[#allocation11 + $0x658] sm:$0xff]
    %v6013 = vld [vmem:[#allocation11 + $0x660] sm:$0xff]
    %v6014 = vld [vmem:[#allocation11 + $0x668] sm:$0xff]
    %v6015 = vld [vmem:[#allocation11 + $0x670] sm:$0xff]
    %v6016 = vld [vmem:[#allocation11 + $0x678] sm:$0xff]
    %v6017 = vld [vmem:[#allocation11 + $0x680] sm:$0xff]
    %v6018 = vld [vmem:[#allocation11 + $0x688] sm:$0xff]
    %v6019 = vld [vmem:[#allocation11 + $0x690] sm:$0xff]
    %v6020 = vld [vmem:[#allocation11 + $0x698] sm:$0xff]
    %v6021 = vld [vmem:[#allocation11 + $0x6a0] sm:$0xff]
    %v6022 = vld [vmem:[#allocation11 + $0x6a8] sm:$0xff]
    %v6023 = vld [vmem:[#allocation11 + $0x6b0] sm:$0xff]
    %v6024 = vld [vmem:[#allocation11 + $0x6b8] sm:$0xff]
    %v6025 = vld [vmem:[#allocation11 + $0x6c0] sm:$0xff]
    %v6026 = vld [vmem:[#allocation11 + $0x6c8] sm:$0xff]
    %v6027 = vld [vmem:[#allocation11 + $0x6d0] sm:$0xff]
    %v6028 = vld [vmem:[#allocation11 + $0x6d8] sm:$0xff]
    %v6029 = vld [vmem:[#allocation11 + $0x6e0] sm:$0xff]
    %v6030 = vld [vmem:[#allocation11 + $0x6e8] sm:$0xff]
    %v6031 = vld [vmem:[#allocation11 + $0x6f0] sm:$0xff]
    %v6032 = vld [vmem:[#allocation11 + $0x6f8] sm:$0xff]
    %v6033 = vld [vmem:[#allocation11 + $0x700] sm:$0xff]
    %v6034 = vld [vmem:[#allocation11 + $0x708] sm:$0xff]
    %v6035 = vld [vmem:[#allocation11 + $0x710] sm:$0xff]
    %v6036 = vld [vmem:[#allocation11 + $0x718] sm:$0xff]
    %v6037 = vld [vmem:[#allocation11 + $0x720] sm:$0xff]
    %v6038 = vld [vmem:[#allocation11 + $0x728] sm:$0xff]
    %v6039 = vld [vmem:[#allocation11 + $0x730] sm:$0xff]
    %v6040 = vld [vmem:[#allocation11 + $0x738] sm:$0xff]
    %v6041 = vld [vmem:[#allocation11 + $0x740] sm:$0xff]
    %v6042 = vld [vmem:[#allocation11 + $0x748] sm:$0xff]
    %v6043 = vld [vmem:[#allocation11 + $0x750] sm:$0xff]
    %v6044 = vld [vmem:[#allocation11 + $0x758] sm:$0xff]
    %v6045 = vld [vmem:[#allocation11 + $0x760] sm:$0xff]
    %v6046 = vld [vmem:[#allocation11 + $0x768] sm:$0xff]
    %v6047 = vld [vmem:[#allocation11 + $0x770] sm:$0xff]
    %v6048 = vld [vmem:[#allocation11 + $0x778] sm:$0xff]
    %v6049 = vld [vmem:[#allocation11 + $0x780] sm:$0xff]
    %v6050 = vld [vmem:[#allocation11 + $0x788] sm:$0xff]
    %v6051 = vld [vmem:[#allocation11 + $0x790] sm:$0xff]
    %v6052 = vld [vmem:[#allocation11 + $0x798] sm:$0xff]
    %v6053 = vld [vmem:[#allocation11 + $0x7a0] sm:$0xff]
    %v6054 = vld [vmem:[#allocation11 + $0x7a8] sm:$0xff]
    %v6055 = vld [vmem:[#allocation11 + $0x7b0] sm:$0xff]
    %v6056 = vld [vmem:[#allocation11 + $0x7b8] sm:$0xff]
    %v6057 = vld [vmem:[#allocation11 + $0x7c0] sm:$0xff]
    %v6058 = vld [vmem:[#allocation11 + $0x7c8] sm:$0xff]
    %v6059 = vld [vmem:[#allocation11 + $0x7d0] sm:$0xff]
    %v6060 = vld [vmem:[#allocation11 + $0x7d8] sm:$0xff]
    %v6061 = vld [vmem:[#allocation11 + $0x7e0] sm:$0xff]
    %v6062 = vld [vmem:[#allocation11 + $0x7e8] sm:$0xff]
    %v6063 = vld [vmem:[#allocation11 + $0x7f0] sm:$0xff]
    %v6064 = vld [vmem:[#allocation11 + $0x7f8] sm:$0xff]
    %v6065 = vld [vmem:[#allocation11 + $0x800] sm:$0xff]
    %v6066 = vld [vmem:[#allocation11 + $0x808] sm:$0xff]
    %v6067 = vld [vmem:[#allocation11 + $0x810] sm:$0xff]
    %v6068 = vld [vmem:[#allocation11 + $0x818] sm:$0xff]
    %v6069 = vld [vmem:[#allocation11 + $0x820] sm:$0xff]
    %v6070 = vld [vmem:[#allocation11 + $0x828] sm:$0xff]
    %v6071 = vld [vmem:[#allocation11 + $0x830] sm:$0xff]
    %v6072 = vld [vmem:[#allocation11 + $0x838] sm:$0xff]
    %v6073 = vld [vmem:[#allocation11 + $0x840] sm:$0xff]
    %v6074 = vld [vmem:[#allocation11 + $0x848] sm:$0xff]
    %v6075 = vld [vmem:[#allocation11 + $0x850] sm:$0xff]
    %v6076 = vld [vmem:[#allocation11 + $0x858] sm:$0xff]
    %v6077 = vld [vmem:[#allocation11 + $0x860] sm:$0xff]
    %v6078 = vld [vmem:[#allocation11 + $0x868] sm:$0xff]
    %v6079 = vld [vmem:[#allocation11 + $0x870] sm:$0xff]
    %v6080 = vld [vmem:[#allocation11 + $0x878] sm:$0xff]
    %v6081 = vld [vmem:[#allocation11 + $0x880] sm:$0xff]
    %v6082 = vld [vmem:[#allocation11 + $0x888] sm:$0xff]
    %v6083 = vld [vmem:[#allocation11 + $0x890] sm:$0xff]
    %v6084 = vld [vmem:[#allocation11 + $0x898] sm:$0xff]
    %v6085 = vld [vmem:[#allocation11 + $0x8a0] sm:$0xff]
    %v6086 = vld [vmem:[#allocation11 + $0x8a8] sm:$0xff]
    %v6087 = vld [vmem:[#allocation11 + $0x8b0] sm:$0xff]
    %v6088 = vld [vmem:[#allocation11 + $0x8b8] sm:$0xff]
    %v6089 = vld [vmem:[#allocation11 + $0x8c0] sm:$0xff]
    %v6090 = vld [vmem:[#allocation11 + $0x8c8] sm:$0xff]
    %v6091 = vld [vmem:[#allocation11 + $0x8d0] sm:$0xff]
    %v6092 = vld [vmem:[#allocation11 + $0x8d8] sm:$0xff]
    %v6093 = vld [vmem:[#allocation11 + $0x8e0] sm:$0xff]
    %v6094 = vld [vmem:[#allocation11 + $0x8e8] sm:$0xff]
    %v6095 = vld [vmem:[#allocation11 + $0x8f0] sm:$0xff]
    %v6096 = vld [vmem:[#allocation11 + $0x8f8] sm:$0xff]
    %v6097 = vld [vmem:[#allocation11 + $0x900] sm:$0xff]
    %v6098 = vld [vmem:[#allocation11 + $0x908] sm:$0xff]
    %v6099 = vld [vmem:[#allocation11 + $0x910] sm:$0xff]
    %v6100 = vld [vmem:[#allocation11 + $0x918] sm:$0xff]
    %v6101 = vld [vmem:[#allocation11 + $0x920] sm:$0xff]
    %v6102 = vld [vmem:[#allocation11 + $0x928] sm:$0xff]
    %v6103 = vld [vmem:[#allocation11 + $0x930] sm:$0xff]
    %v6104 = vld [vmem:[#allocation11 + $0x938] sm:$0xff]
    %v6105 = vld [vmem:[#allocation11 + $0x940] sm:$0xff]
    %v6106 = vld [vmem:[#allocation11 + $0x948] sm:$0xff]
    %v6107 = vld [vmem:[#allocation11 + $0x950] sm:$0xff]
    %v6108 = vld [vmem:[#allocation11 + $0x958] sm:$0xff]
    %v6109 = vld [vmem:[#allocation11 + $0x960] sm:$0xff]
    %v6110 = vld [vmem:[#allocation11 + $0x968] sm:$0xff]
    %v6111 = vld [vmem:[#allocation11 + $0x970] sm:$0xff]
    %v6112 = vld [vmem:[#allocation11 + $0x978] sm:$0xff]
    %v6113 = vld [vmem:[#allocation11 + $0x980] sm:$0xff]
    %v6114 = vld [vmem:[#allocation11 + $0x988] sm:$0xff]
    %v6115 = vld [vmem:[#allocation11 + $0x990] sm:$0xff]
    %v6116 = vld [vmem:[#allocation11 + $0x998] sm:$0xff]
    %v6117 = vld [vmem:[#allocation11 + $0x9a0] sm:$0xff]
    %v6118 = vld [vmem:[#allocation11 + $0x9a8] sm:$0xff]
    %v6119 = vld [vmem:[#allocation11 + $0x9b0] sm:$0xff]
    %v6120 = vld [vmem:[#allocation11 + $0x9b8] sm:$0xff]
    %v6121 = vld [vmem:[#allocation11 + $0x9c0] sm:$0xff]
    %v6122 = vld [vmem:[#allocation11 + $0x9c8] sm:$0xff]
    %v6123 = vld [vmem:[#allocation11 + $0x9d0] sm:$0xff]
    %v6124 = vld [vmem:[#allocation11 + $0x9d8] sm:$0xff]
    %v6125 = vld [vmem:[#allocation11 + $0x9e0] sm:$0xff]
    %v6126 = vld [vmem:[#allocation11 + $0x9e8] sm:$0xff]
    %v6127 = vld [vmem:[#allocation11 + $0x9f0] sm:$0xff]
    %v6128 = vld [vmem:[#allocation11 + $0x9f8] sm:$0xff]
    %v6129 = vld [vmem:[#allocation11 + $0xa00] sm:$0xff]
    %v6130 = vld [vmem:[#allocation11 + $0xa08] sm:$0xff]
    %v6131 = vld [vmem:[#allocation11 + $0xa10] sm:$0xff]
    %v6132 = vld [vmem:[#allocation11 + $0xa18] sm:$0xff]
    %v6133 = vld [vmem:[#allocation11 + $0xa20] sm:$0xff]
    %v6134 = vld [vmem:[#allocation11 + $0xa28] sm:$0xff]
    %v6135 = vld [vmem:[#allocation11 + $0xa30] sm:$0xff]
    %v6136 = vld [vmem:[#allocation11 + $0xa38] sm:$0xff]
    %v6137 = vld [vmem:[#allocation11 + $0xa40] sm:$0xff]
    %v6138 = vld [vmem:[#allocation11 + $0xa48] sm:$0xff]
    %v6139 = vld [vmem:[#allocation11 + $0xa50] sm:$0xff]
    %v6140 = vld [vmem:[#allocation11 + $0xa58] sm:$0xff]
    %v6141 = vld [vmem:[#allocation11 + $0xa60] sm:$0xff]
    %v6142 = vld [vmem:[#allocation11 + $0xa68] sm:$0xff]
    %v6143 = vld [vmem:[#allocation11 + $0xa70] sm:$0xff]
    %v6144 = vld [vmem:[#allocation11 + $0xa78] sm:$0xff]
    %v6145 = vld [vmem:[#allocation11 + $0xa80] sm:$0xff]
    %v6146 = vld [vmem:[#allocation11 + $0xa88] sm:$0xff]
    %v6147 = vld [vmem:[#allocation11 + $0xa90] sm:$0xff]
    %v6148 = vld [vmem:[#allocation11 + $0xa98] sm:$0xff]
    %v6149 = vld [vmem:[#allocation11 + $0xaa0] sm:$0xff]
    %v6150 = vld [vmem:[#allocation11 + $0xaa8] sm:$0xff]
    %v6151 = vld [vmem:[#allocation11 + $0xab0] sm:$0xff]
    %v6152 = vld [vmem:[#allocation11 + $0xab8] sm:$0xff]
    %v6153 = vld [vmem:[#allocation11 + $0xac0] sm:$0xff]
    %v6154 = vld [vmem:[#allocation11 + $0xac8] sm:$0xff]
    %v6155 = vld [vmem:[#allocation11 + $0xad0] sm:$0xff]
    %v6156 = vld [vmem:[#allocation11 + $0xad8] sm:$0xff]
    %v6157 = vld [vmem:[#allocation11 + $0xae0] sm:$0xff]
    %v6158 = vld [vmem:[#allocation11 + $0xae8] sm:$0xff]
    %v6159 = vld [vmem:[#allocation11 + $0xaf0] sm:$0xff]
    %v6160 = vld [vmem:[#allocation11 + $0xaf8] sm:$0xff]
    %v6161 = vld [vmem:[#allocation11 + $0xb00] sm:$0xff]
    %v6162 = vld [vmem:[#allocation11 + $0xb08] sm:$0xff]
    %v6163 = vld [vmem:[#allocation11 + $0xb10] sm:$0xff]
    %v6164 = vld [vmem:[#allocation11 + $0xb18] sm:$0xff]
    %v6165 = vld [vmem:[#allocation11 + $0xb20] sm:$0xff]
    %v6166 = vld [vmem:[#allocation11 + $0xb28] sm:$0xff]
    %v6167 = vld [vmem:[#allocation11 + $0xb30] sm:$0xff]
    %v6168 = vld [vmem:[#allocation11 + $0xb38] sm:$0xff]
    %v6169 = vld [vmem:[#allocation11 + $0xb40] sm:$0xff]
    %v6170 = vld [vmem:[#allocation11 + $0xb48] sm:$0xff]
    %v6171 = vld [vmem:[#allocation11 + $0xb50] sm:$0xff]
    %v6172 = vld [vmem:[#allocation11 + $0xb58] sm:$0xff]
    %v6173 = vld [vmem:[#allocation11 + $0xb60] sm:$0xff]
    %v6174 = vld [vmem:[#allocation11 + $0xb68] sm:$0xff]
    %v6175 = vld [vmem:[#allocation11 + $0xb70] sm:$0xff]
    %v6176 = vld [vmem:[#allocation11 + $0xb78] sm:$0xff]
    %v6177 = vld [vmem:[#allocation11 + $0xb80] sm:$0xff]
    %v6178 = vld [vmem:[#allocation11 + $0xb88] sm:$0xff]
    %v6179 = vld [vmem:[#allocation11 + $0xb90] sm:$0xff]
    %v6180 = vld [vmem:[#allocation11 + $0xb98] sm:$0xff]
    %v6181 = vld [vmem:[#allocation11 + $0xba0] sm:$0xff]
    %v6182 = vld [vmem:[#allocation11 + $0xba8] sm:$0xff]
    %v6183 = vld [vmem:[#allocation11 + $0xbb0] sm:$0xff]
    %v6184 = vld [vmem:[#allocation11 + $0xbb8] sm:$0xff]
    %v6185 = vld [vmem:[#allocation11 + $0xbc0] sm:$0xff]
    %v6186 = vld [vmem:[#allocation11 + $0xbc8] sm:$0xff]
    %v6187 = vld [vmem:[#allocation11 + $0xbd0] sm:$0xff]
    %v6188 = vld [vmem:[#allocation11 + $0xbd8] sm:$0xff]
    %v6189 = vld [vmem:[#allocation11 + $0xbe0] sm:$0xff]
    %v6190 = vld [vmem:[#allocation11 + $0xbe8] sm:$0xff]
    %v6191 = vld [vmem:[#allocation11 + $0xbf0] sm:$0xff]
    %v6192 = vld [vmem:[#allocation11 + $0xbf8] sm:$0xff]
    %v6577 = vunpack.c.l.b16 %v5809
    %v6578 = vunpack.c.h.b16 %v5809
    %v6579 = vunpack.c.l.b16 %v5810
    %v6580 = vunpack.c.h.b16 %v5810
    %v6581 = vunpack.c.l.b16 %v5811
    %v6582 = vunpack.c.h.b16 %v5811
    %v6583 = vunpack.c.l.b16 %v5812
    %v6584 = vunpack.c.h.b16 %v5812
    %v6585 = vunpack.c.l.b16 %v5813
    %v6586 = vunpack.c.h.b16 %v5813
    %v6587 = vunpack.c.l.b16 %v5814
    %v6588 = vunpack.c.h.b16 %v5814
    %v6589 = vunpack.c.l.b16 %v5815
    %v6590 = vunpack.c.h.b16 %v5815
    %v6591 = vunpack.c.l.b16 %v5816
    %v6592 = vunpack.c.h.b16 %v5816
    %v6593 = vunpack.c.l.b16 %v5817
    %v6594 = vunpack.c.h.b16 %v5817
    %v6595 = vunpack.c.l.b16 %v5818
    %v6596 = vunpack.c.h.b16 %v5818
    %v6597 = vunpack.c.l.b16 %v5819
    %v6598 = vunpack.c.h.b16 %v5819
    %v6599 = vunpack.c.l.b16 %v5820
    %v6600 = vunpack.c.h.b16 %v5820
    %v6601 = vunpack.c.l.b16 %v5821
    %v6602 = vunpack.c.h.b16 %v5821
    %v6603 = vunpack.c.l.b16 %v5822
    %v6604 = vunpack.c.h.b16 %v5822
    %v6605 = vunpack.c.l.b16 %v5823
    %v6606 = vunpack.c.h.b16 %v5823
    %v6607 = vunpack.c.l.b16 %v5824
    %v6608 = vunpack.c.h.b16 %v5824
    %v6609 = vunpack.c.l.b16 %v5825
    %v6610 = vunpack.c.h.b16 %v5825
    %v6611 = vunpack.c.l.b16 %v5826
    %v6612 = vunpack.c.h.b16 %v5826
    %v6613 = vunpack.c.l.b16 %v5827
    %v6614 = vunpack.c.h.b16 %v5827
    %v6615 = vunpack.c.l.b16 %v5828
    %v6616 = vunpack.c.h.b16 %v5828
    %v6617 = vunpack.c.l.b16 %v5829
    %v6618 = vunpack.c.h.b16 %v5829
    %v6619 = vunpack.c.l.b16 %v5830
    %v6620 = vunpack.c.h.b16 %v5830
    %v6621 = vunpack.c.l.b16 %v5831
    %v6622 = vunpack.c.h.b16 %v5831
    %v6623 = vunpack.c.l.b16 %v5832
    %v6624 = vunpack.c.h.b16 %v5832
    %v6625 = vunpack.c.l.b16 %v5833
    %v6626 = vunpack.c.h.b16 %v5833
    %v6627 = vunpack.c.l.b16 %v5834
    %v6628 = vunpack.c.h.b16 %v5834
    %v6629 = vunpack.c.l.b16 %v5835
    %v6630 = vunpack.c.h.b16 %v5835
    %v6631 = vunpack.c.l.b16 %v5836
    %v6632 = vunpack.c.h.b16 %v5836
    %v6633 = vunpack.c.l.b16 %v5837
    %v6634 = vunpack.c.h.b16 %v5837
    %v6635 = vunpack.c.l.b16 %v5838
    %v6636 = vunpack.c.h.b16 %v5838
    %v6637 = vunpack.c.l.b16 %v5839
    %v6638 = vunpack.c.h.b16 %v5839
    %v6639 = vunpack.c.l.b16 %v5840
    %v6640 = vunpack.c.h.b16 %v5840
    %v6641 = vunpack.c.l.b16 %v5841
    %v6642 = vunpack.c.h.b16 %v5841
    %v6643 = vunpack.c.l.b16 %v5842
    %v6644 = vunpack.c.h.b16 %v5842
    %v6645 = vunpack.c.l.b16 %v5843
    %v6646 = vunpack.c.h.b16 %v5843
    %v6647 = vunpack.c.l.b16 %v5844
    %v6648 = vunpack.c.h.b16 %v5844
    %v6649 = vunpack.c.l.b16 %v5845
    %v6650 = vunpack.c.h.b16 %v5845
    %v6651 = vunpack.c.l.b16 %v5846
    %v6652 = vunpack.c.h.b16 %v5846
    %v6653 = vunpack.c.l.b16 %v5847
    %v6654 = vunpack.c.h.b16 %v5847
    %v6655 = vunpack.c.l.b16 %v5848
    %v6656 = vunpack.c.h.b16 %v5848
    %v6657 = vunpack.c.l.b16 %v5849
    %v6658 = vunpack.c.h.b16 %v5849
    %v6659 = vunpack.c.l.b16 %v5850
    %v6660 = vunpack.c.h.b16 %v5850
    %v6661 = vunpack.c.l.b16 %v5851
    %v6662 = vunpack.c.h.b16 %v5851
    %v6663 = vunpack.c.l.b16 %v5852
    %v6664 = vunpack.c.h.b16 %v5852
    %v6665 = vunpack.c.l.b16 %v5853
    %v6666 = vunpack.c.h.b16 %v5853
    %v6667 = vunpack.c.l.b16 %v5854
    %v6668 = vunpack.c.h.b16 %v5854
    %v6669 = vunpack.c.l.b16 %v5855
    %v6670 = vunpack.c.h.b16 %v5855
    %v6671 = vunpack.c.l.b16 %v5856
    %v6672 = vunpack.c.h.b16 %v5856
    %v6673 = vunpack.c.l.b16 %v5857
    %v6674 = vunpack.c.h.b16 %v5857
    %v6675 = vunpack.c.l.b16 %v5858
    %v6676 = vunpack.c.h.b16 %v5858
    %v6677 = vunpack.c.l.b16 %v5859
    %v6678 = vunpack.c.h.b16 %v5859
    %v6679 = vunpack.c.l.b16 %v5860
    %v6680 = vunpack.c.h.b16 %v5860
    %v6681 = vunpack.c.l.b16 %v5861
    %v6682 = vunpack.c.h.b16 %v5861
    %v6683 = vunpack.c.l.b16 %v5862
    %v6684 = vunpack.c.h.b16 %v5862
    %v6685 = vunpack.c.l.b16 %v5863
    %v6686 = vunpack.c.h.b16 %v5863
    %v6687 = vunpack.c.l.b16 %v5864
    %v6688 = vunpack.c.h.b16 %v5864
    %v6689 = vunpack.c.l.b16 %v5865
    %v6690 = vunpack.c.h.b16 %v5865
    %v6691 = vunpack.c.l.b16 %v5866
    %v6692 = vunpack.c.h.b16 %v5866
    %v6693 = vunpack.c.l.b16 %v5867
    %v6694 = vunpack.c.h.b16 %v5867
    %v6695 = vunpack.c.l.b16 %v5868
    %v6696 = vunpack.c.h.b16 %v5868
    %v6697 = vunpack.c.l.b16 %v5869
    %v6698 = vunpack.c.h.b16 %v5869
    %v6699 = vunpack.c.l.b16 %v5870
    %v6700 = vunpack.c.h.b16 %v5870
    %v6701 = vunpack.c.l.b16 %v5871
    %v6702 = vunpack.c.h.b16 %v5871
    %v6703 = vunpack.c.l.b16 %v5872
    %v6704 = vunpack.c.h.b16 %v5872
    %v6705 = vunpack.c.l.b16 %v5873
    %v6706 = vunpack.c.h.b16 %v5873
    %v6707 = vunpack.c.l.b16 %v5874
    %v6708 = vunpack.c.h.b16 %v5874
    %v6709 = vunpack.c.l.b16 %v5875
    %v6710 = vunpack.c.h.b16 %v5875
    %v6711 = vunpack.c.l.b16 %v5876
    %v6712 = vunpack.c.h.b16 %v5876
    %v6713 = vunpack.c.l.b16 %v5877
    %v6714 = vunpack.c.h.b16 %v5877
    %v6715 = vunpack.c.l.b16 %v5878
    %v6716 = vunpack.c.h.b16 %v5878
    %v6717 = vunpack.c.l.b16 %v5879
    %v6718 = vunpack.c.h.b16 %v5879
    %v6719 = vunpack.c.l.b16 %v5880
    %v6720 = vunpack.c.h.b16 %v5880
    %v6721 = vunpack.c.l.b16 %v5881
    %v6722 = vunpack.c.h.b16 %v5881
    %v6723 = vunpack.c.l.b16 %v5882
    %v6724 = vunpack.c.h.b16 %v5882
    %v6725 = vunpack.c.l.b16 %v5883
    %v6726 = vunpack.c.h.b16 %v5883
    %v6727 = vunpack.c.l.b16 %v5884
    %v6728 = vunpack.c.h.b16 %v5884
    %v6729 = vunpack.c.l.b16 %v5885
    %v6730 = vunpack.c.h.b16 %v5885
    %v6731 = vunpack.c.l.b16 %v5886
    %v6732 = vunpack.c.h.b16 %v5886
    %v6733 = vunpack.c.l.b16 %v5887
    %v6734 = vunpack.c.h.b16 %v5887
    %v6735 = vunpack.c.l.b16 %v5888
    %v6736 = vunpack.c.h.b16 %v5888
    %v6737 = vunpack.c.l.b16 %v5889
    %v6738 = vunpack.c.h.b16 %v5889
    %v6739 = vunpack.c.l.b16 %v5890
    %v6740 = vunpack.c.h.b16 %v5890
    %v6741 = vunpack.c.l.b16 %v5891
    %v6742 = vunpack.c.h.b16 %v5891
    %v6743 = vunpack.c.l.b16 %v5892
    %v6744 = vunpack.c.h.b16 %v5892
    %v6745 = vunpack.c.l.b16 %v5893
    %v6746 = vunpack.c.h.b16 %v5893
    %v6747 = vunpack.c.l.b16 %v5894
    %v6748 = vunpack.c.h.b16 %v5894
    %v6749 = vunpack.c.l.b16 %v5895
    %v6750 = vunpack.c.h.b16 %v5895
    %v6751 = vunpack.c.l.b16 %v5896
    %v6752 = vunpack.c.h.b16 %v5896
    %v6753 = vunpack.c.l.b16 %v5897
    %v6754 = vunpack.c.h.b16 %v5897
    %v6755 = vunpack.c.l.b16 %v5898
    %v6756 = vunpack.c.h.b16 %v5898
    %v6757 = vunpack.c.l.b16 %v5899
    %v6758 = vunpack.c.h.b16 %v5899
    %v6759 = vunpack.c.l.b16 %v5900
    %v6760 = vunpack.c.h.b16 %v5900
    %v6761 = vunpack.c.l.b16 %v5901
    %v6762 = vunpack.c.h.b16 %v5901
    %v6763 = vunpack.c.l.b16 %v5902
    %v6764 = vunpack.c.h.b16 %v5902
    %v6765 = vunpack.c.l.b16 %v5903
    %v6766 = vunpack.c.h.b16 %v5903
    %v6767 = vunpack.c.l.b16 %v5904
    %v6768 = vunpack.c.h.b16 %v5904
    %v6769 = vunpack.c.l.b16 %v5905
    %v6770 = vunpack.c.h.b16 %v5905
    %v6771 = vunpack.c.l.b16 %v5906
    %v6772 = vunpack.c.h.b16 %v5906
    %v6773 = vunpack.c.l.b16 %v5907
    %v6774 = vunpack.c.h.b16 %v5907
    %v6775 = vunpack.c.l.b16 %v5908
    %v6776 = vunpack.c.h.b16 %v5908
    %v6777 = vunpack.c.l.b16 %v5909
    %v6778 = vunpack.c.h.b16 %v5909
    %v6779 = vunpack.c.l.b16 %v5910
    %v6780 = vunpack.c.h.b16 %v5910
    %v6781 = vunpack.c.l.b16 %v5911
    %v6782 = vunpack.c.h.b16 %v5911
    %v6783 = vunpack.c.l.b16 %v5912
    %v6784 = vunpack.c.h.b16 %v5912
    %v6785 = vunpack.c.l.b16 %v5913
    %v6786 = vunpack.c.h.b16 %v5913
    %v6787 = vunpack.c.l.b16 %v5914
    %v6788 = vunpack.c.h.b16 %v5914
    %v6789 = vunpack.c.l.b16 %v5915
    %v6790 = vunpack.c.h.b16 %v5915
    %v6791 = vunpack.c.l.b16 %v5916
    %v6792 = vunpack.c.h.b16 %v5916
    %v6793 = vunpack.c.l.b16 %v5917
    %v6794 = vunpack.c.h.b16 %v5917
    %v6795 = vunpack.c.l.b16 %v5918
    %v6796 = vunpack.c.h.b16 %v5918
    %v6797 = vunpack.c.l.b16 %v5919
    %v6798 = vunpack.c.h.b16 %v5919
    %v6799 = vunpack.c.l.b16 %v5920
    %v6800 = vunpack.c.h.b16 %v5920
    %v6801 = vunpack.c.l.b16 %v5921
    %v6802 = vunpack.c.h.b16 %v5921
    %v6803 = vunpack.c.l.b16 %v5922
    %v6804 = vunpack.c.h.b16 %v5922
    %v6805 = vunpack.c.l.b16 %v5923
    %v6806 = vunpack.c.h.b16 %v5923
    %v6807 = vunpack.c.l.b16 %v5924
    %v6808 = vunpack.c.h.b16 %v5924
    %v6809 = vunpack.c.l.b16 %v5925
    %v6810 = vunpack.c.h.b16 %v5925
    %v6811 = vunpack.c.l.b16 %v5926
    %v6812 = vunpack.c.h.b16 %v5926
    %v6813 = vunpack.c.l.b16 %v5927
    %v6814 = vunpack.c.h.b16 %v5927
    %v6815 = vunpack.c.l.b16 %v5928
    %v6816 = vunpack.c.h.b16 %v5928
    %v6817 = vunpack.c.l.b16 %v5929
    %v6818 = vunpack.c.h.b16 %v5929
    %v6819 = vunpack.c.l.b16 %v5930
    %v6820 = vunpack.c.h.b16 %v5930
    %v6821 = vunpack.c.l.b16 %v5931
    %v6822 = vunpack.c.h.b16 %v5931
    %v6823 = vunpack.c.l.b16 %v5932
    %v6824 = vunpack.c.h.b16 %v5932
    %v6825 = vunpack.c.l.b16 %v5933
    %v6826 = vunpack.c.h.b16 %v5933
    %v6827 = vunpack.c.l.b16 %v5934
    %v6828 = vunpack.c.h.b16 %v5934
    %v6829 = vunpack.c.l.b16 %v5935
    %v6830 = vunpack.c.h.b16 %v5935
    %v6831 = vunpack.c.l.b16 %v5936
    %v6832 = vunpack.c.h.b16 %v5936
    %v6833 = vunpack.c.l.b16 %v5937
    %v6834 = vunpack.c.h.b16 %v5937
    %v6835 = vunpack.c.l.b16 %v5938
    %v6836 = vunpack.c.h.b16 %v5938
    %v6837 = vunpack.c.l.b16 %v5939
    %v6838 = vunpack.c.h.b16 %v5939
    %v6839 = vunpack.c.l.b16 %v5940
    %v6840 = vunpack.c.h.b16 %v5940
    %v6841 = vunpack.c.l.b16 %v5941
    %v6842 = vunpack.c.h.b16 %v5941
    %v6843 = vunpack.c.l.b16 %v5942
    %v6844 = vunpack.c.h.b16 %v5942
    %v6845 = vunpack.c.l.b16 %v5943
    %v6846 = vunpack.c.h.b16 %v5943
    %v6847 = vunpack.c.l.b16 %v5944
    %v6848 = vunpack.c.h.b16 %v5944
    %v6849 = vunpack.c.l.b16 %v5945
    %v6850 = vunpack.c.h.b16 %v5945
    %v6851 = vunpack.c.l.b16 %v5946
    %v6852 = vunpack.c.h.b16 %v5946
    %v6853 = vunpack.c.l.b16 %v5947
    %v6854 = vunpack.c.h.b16 %v5947
    %v6855 = vunpack.c.l.b16 %v5948
    %v6856 = vunpack.c.h.b16 %v5948
    %v6857 = vunpack.c.l.b16 %v5949
    %v6858 = vunpack.c.h.b16 %v5949
    %v6859 = vunpack.c.l.b16 %v5950
    %v6860 = vunpack.c.h.b16 %v5950
    %v6861 = vunpack.c.l.b16 %v5951
    %v6862 = vunpack.c.h.b16 %v5951
    %v6863 = vunpack.c.l.b16 %v5952
    %v6864 = vunpack.c.h.b16 %v5952
    %v6865 = vunpack.c.l.b16 %v5953
    %v6866 = vunpack.c.h.b16 %v5953
    %v6867 = vunpack.c.l.b16 %v5954
    %v6868 = vunpack.c.h.b16 %v5954
    %v6869 = vunpack.c.l.b16 %v5955
    %v6870 = vunpack.c.h.b16 %v5955
    %v6871 = vunpack.c.l.b16 %v5956
    %v6872 = vunpack.c.h.b16 %v5956
    %v6873 = vunpack.c.l.b16 %v5957
    %v6874 = vunpack.c.h.b16 %v5957
    %v6875 = vunpack.c.l.b16 %v5958
    %v6876 = vunpack.c.h.b16 %v5958
    %v6877 = vunpack.c.l.b16 %v5959
    %v6878 = vunpack.c.h.b16 %v5959
    %v6879 = vunpack.c.l.b16 %v5960
    %v6880 = vunpack.c.h.b16 %v5960
    %v6881 = vunpack.c.l.b16 %v5961
    %v6882 = vunpack.c.h.b16 %v5961
    %v6883 = vunpack.c.l.b16 %v5962
    %v6884 = vunpack.c.h.b16 %v5962
    %v6885 = vunpack.c.l.b16 %v5963
    %v6886 = vunpack.c.h.b16 %v5963
    %v6887 = vunpack.c.l.b16 %v5964
    %v6888 = vunpack.c.h.b16 %v5964
    %v6889 = vunpack.c.l.b16 %v5965
    %v6890 = vunpack.c.h.b16 %v5965
    %v6891 = vunpack.c.l.b16 %v5966
    %v6892 = vunpack.c.h.b16 %v5966
    %v6893 = vunpack.c.l.b16 %v5967
    %v6894 = vunpack.c.h.b16 %v5967
    %v6895 = vunpack.c.l.b16 %v5968
    %v6896 = vunpack.c.h.b16 %v5968
    %v6897 = vunpack.c.l.b16 %v5969
    %v6898 = vunpack.c.h.b16 %v5969
    %v6899 = vunpack.c.l.b16 %v5970
    %v6900 = vunpack.c.h.b16 %v5970
    %v6901 = vunpack.c.l.b16 %v5971
    %v6902 = vunpack.c.h.b16 %v5971
    %v6903 = vunpack.c.l.b16 %v5972
    %v6904 = vunpack.c.h.b16 %v5972
    %v6905 = vunpack.c.l.b16 %v5973
    %v6906 = vunpack.c.h.b16 %v5973
    %v6907 = vunpack.c.l.b16 %v5974
    %v6908 = vunpack.c.h.b16 %v5974
    %v6909 = vunpack.c.l.b16 %v5975
    %v6910 = vunpack.c.h.b16 %v5975
    %v6911 = vunpack.c.l.b16 %v5976
    %v6912 = vunpack.c.h.b16 %v5976
    %v6913 = vunpack.c.l.b16 %v5977
    %v6914 = vunpack.c.h.b16 %v5977
    %v6915 = vunpack.c.l.b16 %v5978
    %v6916 = vunpack.c.h.b16 %v5978
    %v6917 = vunpack.c.l.b16 %v5979
    %v6918 = vunpack.c.h.b16 %v5979
    %v6919 = vunpack.c.l.b16 %v5980
    %v6920 = vunpack.c.h.b16 %v5980
    %v6921 = vunpack.c.l.b16 %v5981
    %v6922 = vunpack.c.h.b16 %v5981
    %v6923 = vunpack.c.l.b16 %v5982
    %v6924 = vunpack.c.h.b16 %v5982
    %v6925 = vunpack.c.l.b16 %v5983
    %v6926 = vunpack.c.h.b16 %v5983
    %v6927 = vunpack.c.l.b16 %v5984
    %v6928 = vunpack.c.h.b16 %v5984
    %v6929 = vunpack.c.l.b16 %v5985
    %v6930 = vunpack.c.h.b16 %v5985
    %v6931 = vunpack.c.l.b16 %v5986
    %v6932 = vunpack.c.h.b16 %v5986
    %v6933 = vunpack.c.l.b16 %v5987
    %v6934 = vunpack.c.h.b16 %v5987
    %v6935 = vunpack.c.l.b16 %v5988
    %v6936 = vunpack.c.h.b16 %v5988
    %v6937 = vunpack.c.l.b16 %v5989
    %v6938 = vunpack.c.h.b16 %v5989
    %v6939 = vunpack.c.l.b16 %v5990
    %v6940 = vunpack.c.h.b16 %v5990
    %v6941 = vunpack.c.l.b16 %v5991
    %v6942 = vunpack.c.h.b16 %v5991
    %v6943 = vunpack.c.l.b16 %v5992
    %v6944 = vunpack.c.h.b16 %v5992
    %v6945 = vunpack.c.l.b16 %v5993
    %v6946 = vunpack.c.h.b16 %v5993
    %v6947 = vunpack.c.l.b16 %v5994
    %v6948 = vunpack.c.h.b16 %v5994
    %v6949 = vunpack.c.l.b16 %v5995
    %v6950 = vunpack.c.h.b16 %v5995
    %v6951 = vunpack.c.l.b16 %v5996
    %v6952 = vunpack.c.h.b16 %v5996
    %v6953 = vunpack.c.l.b16 %v5997
    %v6954 = vunpack.c.h.b16 %v5997
    %v6955 = vunpack.c.l.b16 %v5998
    %v6956 = vunpack.c.h.b16 %v5998
    %v6957 = vunpack.c.l.b16 %v5999
    %v6958 = vunpack.c.h.b16 %v5999
    %v6959 = vunpack.c.l.b16 %v6000
    %v6960 = vunpack.c.h.b16 %v6000
    %v6961 = vunpack.c.l.b16 %v6001
    %v6962 = vunpack.c.h.b16 %v6001
    %v6963 = vunpack.c.l.b16 %v6002
    %v6964 = vunpack.c.h.b16 %v6002
    %v6965 = vunpack.c.l.b16 %v6003
    %v6966 = vunpack.c.h.b16 %v6003
    %v6967 = vunpack.c.l.b16 %v6004
    %v6968 = vunpack.c.h.b16 %v6004
    %v6969 = vunpack.c.l.b16 %v6005
    %v6970 = vunpack.c.h.b16 %v6005
    %v6971 = vunpack.c.l.b16 %v6006
    %v6972 = vunpack.c.h.b16 %v6006
    %v6973 = vunpack.c.l.b16 %v6007
    %v6974 = vunpack.c.h.b16 %v6007
    %v6975 = vunpack.c.l.b16 %v6008
    %v6976 = vunpack.c.h.b16 %v6008
    %v6977 = vunpack.c.l.b16 %v6009
    %v6978 = vunpack.c.h.b16 %v6009
    %v6979 = vunpack.c.l.b16 %v6010
    %v6980 = vunpack.c.h.b16 %v6010
    %v6981 = vunpack.c.l.b16 %v6011
    %v6982 = vunpack.c.h.b16 %v6011
    %v6983 = vunpack.c.l.b16 %v6012
    %v6984 = vunpack.c.h.b16 %v6012
    %v6985 = vunpack.c.l.b16 %v6013
    %v6986 = vunpack.c.h.b16 %v6013
    %v6987 = vunpack.c.l.b16 %v6014
    %v6988 = vunpack.c.h.b16 %v6014
    %v6989 = vunpack.c.l.b16 %v6015
    %v6990 = vunpack.c.h.b16 %v6015
    %v6991 = vunpack.c.l.b16 %v6016
    %v6992 = vunpack.c.h.b16 %v6016
    %v6993 = vunpack.c.l.b16 %v6017
    %v6994 = vunpack.c.h.b16 %v6017
    %v6995 = vunpack.c.l.b16 %v6018
    %v6996 = vunpack.c.h.b16 %v6018
    %v6997 = vunpack.c.l.b16 %v6019
    %v6998 = vunpack.c.h.b16 %v6019
    %v6999 = vunpack.c.l.b16 %v6020
    %v7000 = vunpack.c.h.b16 %v6020
    %v7001 = vunpack.c.l.b16 %v6021
    %v7002 = vunpack.c.h.b16 %v6021
    %v7003 = vunpack.c.l.b16 %v6022
    %v7004 = vunpack.c.h.b16 %v6022
    %v7005 = vunpack.c.l.b16 %v6023
    %v7006 = vunpack.c.h.b16 %v6023
    %v7007 = vunpack.c.l.b16 %v6024
    %v7008 = vunpack.c.h.b16 %v6024
    %v7009 = vunpack.c.l.b16 %v6025
    %v7010 = vunpack.c.h.b16 %v6025
    %v7011 = vunpack.c.l.b16 %v6026
    %v7012 = vunpack.c.h.b16 %v6026
    %v7013 = vunpack.c.l.b16 %v6027
    %v7014 = vunpack.c.h.b16 %v6027
    %v7015 = vunpack.c.l.b16 %v6028
    %v7016 = vunpack.c.h.b16 %v6028
    %v7017 = vunpack.c.l.b16 %v6029
    %v7018 = vunpack.c.h.b16 %v6029
    %v7019 = vunpack.c.l.b16 %v6030
    %v7020 = vunpack.c.h.b16 %v6030
    %v7021 = vunpack.c.l.b16 %v6031
    %v7022 = vunpack.c.h.b16 %v6031
    %v7023 = vunpack.c.l.b16 %v6032
    %v7024 = vunpack.c.h.b16 %v6032
    %v7025 = vunpack.c.l.b16 %v6033
    %v7026 = vunpack.c.h.b16 %v6033
    %v7027 = vunpack.c.l.b16 %v6034
    %v7028 = vunpack.c.h.b16 %v6034
    %v7029 = vunpack.c.l.b16 %v6035
    %v7030 = vunpack.c.h.b16 %v6035
    %v7031 = vunpack.c.l.b16 %v6036
    %v7032 = vunpack.c.h.b16 %v6036
    %v7033 = vunpack.c.l.b16 %v6037
    %v7034 = vunpack.c.h.b16 %v6037
    %v7035 = vunpack.c.l.b16 %v6038
    %v7036 = vunpack.c.h.b16 %v6038
    %v7037 = vunpack.c.l.b16 %v6039
    %v7038 = vunpack.c.h.b16 %v6039
    %v7039 = vunpack.c.l.b16 %v6040
    %v7040 = vunpack.c.h.b16 %v6040
    %v7041 = vunpack.c.l.b16 %v6041
    %v7042 = vunpack.c.h.b16 %v6041
    %v7043 = vunpack.c.l.b16 %v6042
    %v7044 = vunpack.c.h.b16 %v6042
    %v7045 = vunpack.c.l.b16 %v6043
    %v7046 = vunpack.c.h.b16 %v6043
    %v7047 = vunpack.c.l.b16 %v6044
    %v7048 = vunpack.c.h.b16 %v6044
    %v7049 = vunpack.c.l.b16 %v6045
    %v7050 = vunpack.c.h.b16 %v6045
    %v7051 = vunpack.c.l.b16 %v6046
    %v7052 = vunpack.c.h.b16 %v6046
    %v7053 = vunpack.c.l.b16 %v6047
    %v7054 = vunpack.c.h.b16 %v6047
    %v7055 = vunpack.c.l.b16 %v6048
    %v7056 = vunpack.c.h.b16 %v6048
    %v7057 = vunpack.c.l.b16 %v6049
    %v7058 = vunpack.c.h.b16 %v6049
    %v7059 = vunpack.c.l.b16 %v6050
    %v7060 = vunpack.c.h.b16 %v6050
    %v7061 = vunpack.c.l.b16 %v6051
    %v7062 = vunpack.c.h.b16 %v6051
    %v7063 = vunpack.c.l.b16 %v6052
    %v7064 = vunpack.c.h.b16 %v6052
    %v7065 = vunpack.c.l.b16 %v6053
    %v7066 = vunpack.c.h.b16 %v6053
    %v7067 = vunpack.c.l.b16 %v6054
    %v7068 = vunpack.c.h.b16 %v6054
    %v7069 = vunpack.c.l.b16 %v6055
    %v7070 = vunpack.c.h.b16 %v6055
    %v7071 = vunpack.c.l.b16 %v6056
    %v7072 = vunpack.c.h.b16 %v6056
    %v7073 = vunpack.c.l.b16 %v6057
    %v7074 = vunpack.c.h.b16 %v6057
    %v7075 = vunpack.c.l.b16 %v6058
    %v7076 = vunpack.c.h.b16 %v6058
    %v7077 = vunpack.c.l.b16 %v6059
    %v7078 = vunpack.c.h.b16 %v6059
    %v7079 = vunpack.c.l.b16 %v6060
    %v7080 = vunpack.c.h.b16 %v6060
    %v7081 = vunpack.c.l.b16 %v6061
    %v7082 = vunpack.c.h.b16 %v6061
    %v7083 = vunpack.c.l.b16 %v6062
    %v7084 = vunpack.c.h.b16 %v6062
    %v7085 = vunpack.c.l.b16 %v6063
    %v7086 = vunpack.c.h.b16 %v6063
    %v7087 = vunpack.c.l.b16 %v6064
    %v7088 = vunpack.c.h.b16 %v6064
    %v7089 = vunpack.c.l.b16 %v6065
    %v7090 = vunpack.c.h.b16 %v6065
    %v7091 = vunpack.c.l.b16 %v6066
    %v7092 = vunpack.c.h.b16 %v6066
    %v7093 = vunpack.c.l.b16 %v6067
    %v7094 = vunpack.c.h.b16 %v6067
    %v7095 = vunpack.c.l.b16 %v6068
    %v7096 = vunpack.c.h.b16 %v6068
    %v7097 = vunpack.c.l.b16 %v6069
    %v7098 = vunpack.c.h.b16 %v6069
    %v7099 = vunpack.c.l.b16 %v6070
    %v7100 = vunpack.c.h.b16 %v6070
    %v7101 = vunpack.c.l.b16 %v6071
    %v7102 = vunpack.c.h.b16 %v6071
    %v7103 = vunpack.c.l.b16 %v6072
    %v7104 = vunpack.c.h.b16 %v6072
    %v7105 = vunpack.c.l.b16 %v6073
    %v7106 = vunpack.c.h.b16 %v6073
    %v7107 = vunpack.c.l.b16 %v6074
    %v7108 = vunpack.c.h.b16 %v6074
    %v7109 = vunpack.c.l.b16 %v6075
    %v7110 = vunpack.c.h.b16 %v6075
    %v7111 = vunpack.c.l.b16 %v6076
    %v7112 = vunpack.c.h.b16 %v6076
    %v7113 = vunpack.c.l.b16 %v6077
    %v7114 = vunpack.c.h.b16 %v6077
    %v7115 = vunpack.c.l.b16 %v6078
    %v7116 = vunpack.c.h.b16 %v6078
    %v7117 = vunpack.c.l.b16 %v6079
    %v7118 = vunpack.c.h.b16 %v6079
    %v7119 = vunpack.c.l.b16 %v6080
    %v7120 = vunpack.c.h.b16 %v6080
    %v7121 = vunpack.c.l.b16 %v6081
    %v7122 = vunpack.c.h.b16 %v6081
    %v7123 = vunpack.c.l.b16 %v6082
    %v7124 = vunpack.c.h.b16 %v6082
    %v7125 = vunpack.c.l.b16 %v6083
    %v7126 = vunpack.c.h.b16 %v6083
    %v7127 = vunpack.c.l.b16 %v6084
    %v7128 = vunpack.c.h.b16 %v6084
    %v7129 = vunpack.c.l.b16 %v6085
    %v7130 = vunpack.c.h.b16 %v6085
    %v7131 = vunpack.c.l.b16 %v6086
    %v7132 = vunpack.c.h.b16 %v6086
    %v7133 = vunpack.c.l.b16 %v6087
    %v7134 = vunpack.c.h.b16 %v6087
    %v7135 = vunpack.c.l.b16 %v6088
    %v7136 = vunpack.c.h.b16 %v6088
    %v7137 = vunpack.c.l.b16 %v6089
    %v7138 = vunpack.c.h.b16 %v6089
    %v7139 = vunpack.c.l.b16 %v6090
    %v7140 = vunpack.c.h.b16 %v6090
    %v7141 = vunpack.c.l.b16 %v6091
    %v7142 = vunpack.c.h.b16 %v6091
    %v7143 = vunpack.c.l.b16 %v6092
    %v7144 = vunpack.c.h.b16 %v6092
    %v7145 = vunpack.c.l.b16 %v6093
    %v7146 = vunpack.c.h.b16 %v6093
    %v7147 = vunpack.c.l.b16 %v6094
    %v7148 = vunpack.c.h.b16 %v6094
    %v7149 = vunpack.c.l.b16 %v6095
    %v7150 = vunpack.c.h.b16 %v6095
    %v7151 = vunpack.c.l.b16 %v6096
    %v7152 = vunpack.c.h.b16 %v6096
    %v7153 = vunpack.c.l.b16 %v6097
    %v7154 = vunpack.c.h.b16 %v6097
    %v7155 = vunpack.c.l.b16 %v6098
    %v7156 = vunpack.c.h.b16 %v6098
    %v7157 = vunpack.c.l.b16 %v6099
    %v7158 = vunpack.c.h.b16 %v6099
    %v7159 = vunpack.c.l.b16 %v6100
    %v7160 = vunpack.c.h.b16 %v6100
    %v7161 = vunpack.c.l.b16 %v6101
    %v7162 = vunpack.c.h.b16 %v6101
    %v7163 = vunpack.c.l.b16 %v6102
    %v7164 = vunpack.c.h.b16 %v6102
    %v7165 = vunpack.c.l.b16 %v6103
    %v7166 = vunpack.c.h.b16 %v6103
    %v7167 = vunpack.c.l.b16 %v6104
    %v7168 = vunpack.c.h.b16 %v6104
    %v7169 = vunpack.c.l.b16 %v6105
    %v7170 = vunpack.c.h.b16 %v6105
    %v7171 = vunpack.c.l.b16 %v6106
    %v7172 = vunpack.c.h.b16 %v6106
    %v7173 = vunpack.c.l.b16 %v6107
    %v7174 = vunpack.c.h.b16 %v6107
    %v7175 = vunpack.c.l.b16 %v6108
    %v7176 = vunpack.c.h.b16 %v6108
    %v7177 = vunpack.c.l.b16 %v6109
    %v7178 = vunpack.c.h.b16 %v6109
    %v7179 = vunpack.c.l.b16 %v6110
    %v7180 = vunpack.c.h.b16 %v6110
    %v7181 = vunpack.c.l.b16 %v6111
    %v7182 = vunpack.c.h.b16 %v6111
    %v7183 = vunpack.c.l.b16 %v6112
    %v7184 = vunpack.c.h.b16 %v6112
    %v7185 = vunpack.c.l.b16 %v6113
    %v7186 = vunpack.c.h.b16 %v6113
    %v7187 = vunpack.c.l.b16 %v6114
    %v7188 = vunpack.c.h.b16 %v6114
    %v7189 = vunpack.c.l.b16 %v6115
    %v7190 = vunpack.c.h.b16 %v6115
    %v7191 = vunpack.c.l.b16 %v6116
    %v7192 = vunpack.c.h.b16 %v6116
    %v7193 = vunpack.c.l.b16 %v6117
    %v7194 = vunpack.c.h.b16 %v6117
    %v7195 = vunpack.c.l.b16 %v6118
    %v7196 = vunpack.c.h.b16 %v6118
    %v7197 = vunpack.c.l.b16 %v6119
    %v7198 = vunpack.c.h.b16 %v6119
    %v7199 = vunpack.c.l.b16 %v6120
    %v7200 = vunpack.c.h.b16 %v6120
    %v7201 = vunpack.c.l.b16 %v6121
    %v7202 = vunpack.c.h.b16 %v6121
    %v7203 = vunpack.c.l.b16 %v6122
    %v7204 = vunpack.c.h.b16 %v6122
    %v7205 = vunpack.c.l.b16 %v6123
    %v7206 = vunpack.c.h.b16 %v6123
    %v7207 = vunpack.c.l.b16 %v6124
    %v7208 = vunpack.c.h.b16 %v6124
    %v7209 = vunpack.c.l.b16 %v6125
    %v7210 = vunpack.c.h.b16 %v6125
    %v7211 = vunpack.c.l.b16 %v6126
    %v7212 = vunpack.c.h.b16 %v6126
    %v7213 = vunpack.c.l.b16 %v6127
    %v7214 = vunpack.c.h.b16 %v6127
    %v7215 = vunpack.c.l.b16 %v6128
    %v7216 = vunpack.c.h.b16 %v6128
    %v7217 = vunpack.c.l.b16 %v6129
    %v7218 = vunpack.c.h.b16 %v6129
    %v7219 = vunpack.c.l.b16 %v6130
    %v7220 = vunpack.c.h.b16 %v6130
    %v7221 = vunpack.c.l.b16 %v6131
    %v7222 = vunpack.c.h.b16 %v6131
    %v7223 = vunpack.c.l.b16 %v6132
    %v7224 = vunpack.c.h.b16 %v6132
    %v7225 = vunpack.c.l.b16 %v6133
    %v7226 = vunpack.c.h.b16 %v6133
    %v7227 = vunpack.c.l.b16 %v6134
    %v7228 = vunpack.c.h.b16 %v6134
    %v7229 = vunpack.c.l.b16 %v6135
    %v7230 = vunpack.c.h.b16 %v6135
    %v7231 = vunpack.c.l.b16 %v6136
    %v7232 = vunpack.c.h.b16 %v6136
    %v7233 = vunpack.c.l.b16 %v6137
    %v7234 = vunpack.c.h.b16 %v6137
    %v7235 = vunpack.c.l.b16 %v6138
    %v7236 = vunpack.c.h.b16 %v6138
    %v7237 = vunpack.c.l.b16 %v6139
    %v7238 = vunpack.c.h.b16 %v6139
    %v7239 = vunpack.c.l.b16 %v6140
    %v7240 = vunpack.c.h.b16 %v6140
    %v7241 = vunpack.c.l.b16 %v6141
    %v7242 = vunpack.c.h.b16 %v6141
    %v7243 = vunpack.c.l.b16 %v6142
    %v7244 = vunpack.c.h.b16 %v6142
    %v7245 = vunpack.c.l.b16 %v6143
    %v7246 = vunpack.c.h.b16 %v6143
    %v7247 = vunpack.c.l.b16 %v6144
    %v7248 = vunpack.c.h.b16 %v6144
    %v7249 = vunpack.c.l.b16 %v6145
    %v7250 = vunpack.c.h.b16 %v6145
    %v7251 = vunpack.c.l.b16 %v6146
    %v7252 = vunpack.c.h.b16 %v6146
    %v7253 = vunpack.c.l.b16 %v6147
    %v7254 = vunpack.c.h.b16 %v6147
    %v7255 = vunpack.c.l.b16 %v6148
    %v7256 = vunpack.c.h.b16 %v6148
    %v7257 = vunpack.c.l.b16 %v6149
    %v7258 = vunpack.c.h.b16 %v6149
    %v7259 = vunpack.c.l.b16 %v6150
    %v7260 = vunpack.c.h.b16 %v6150
    %v7261 = vunpack.c.l.b16 %v6151
    %v7262 = vunpack.c.h.b16 %v6151
    %v7263 = vunpack.c.l.b16 %v6152
    %v7264 = vunpack.c.h.b16 %v6152
    %v7265 = vunpack.c.l.b16 %v6153
    %v7266 = vunpack.c.h.b16 %v6153
    %v7267 = vunpack.c.l.b16 %v6154
    %v7268 = vunpack.c.h.b16 %v6154
    %v7269 = vunpack.c.l.b16 %v6155
    %v7270 = vunpack.c.h.b16 %v6155
    %v7271 = vunpack.c.l.b16 %v6156
    %v7272 = vunpack.c.h.b16 %v6156
    %v7273 = vunpack.c.l.b16 %v6157
    %v7274 = vunpack.c.h.b16 %v6157
    %v7275 = vunpack.c.l.b16 %v6158
    %v7276 = vunpack.c.h.b16 %v6158
    %v7277 = vunpack.c.l.b16 %v6159
    %v7278 = vunpack.c.h.b16 %v6159
    %v7279 = vunpack.c.l.b16 %v6160
    %v7280 = vunpack.c.h.b16 %v6160
    %v7281 = vunpack.c.l.b16 %v6161
    %v7282 = vunpack.c.h.b16 %v6161
    %v7283 = vunpack.c.l.b16 %v6162
    %v7284 = vunpack.c.h.b16 %v6162
    %v7285 = vunpack.c.l.b16 %v6163
    %v7286 = vunpack.c.h.b16 %v6163
    %v7287 = vunpack.c.l.b16 %v6164
    %v7288 = vunpack.c.h.b16 %v6164
    %v7289 = vunpack.c.l.b16 %v6165
    %v7290 = vunpack.c.h.b16 %v6165
    %v7291 = vunpack.c.l.b16 %v6166
    %v7292 = vunpack.c.h.b16 %v6166
    %v7293 = vunpack.c.l.b16 %v6167
    %v7294 = vunpack.c.h.b16 %v6167
    %v7295 = vunpack.c.l.b16 %v6168
    %v7296 = vunpack.c.h.b16 %v6168
    %v7297 = vunpack.c.l.b16 %v6169
    %v7298 = vunpack.c.h.b16 %v6169
    %v7299 = vunpack.c.l.b16 %v6170
    %v7300 = vunpack.c.h.b16 %v6170
    %v7301 = vunpack.c.l.b16 %v6171
    %v7302 = vunpack.c.h.b16 %v6171
    %v7303 = vunpack.c.l.b16 %v6172
    %v7304 = vunpack.c.h.b16 %v6172
    %v7305 = vunpack.c.l.b16 %v6173
    %v7306 = vunpack.c.h.b16 %v6173
    %v7307 = vunpack.c.l.b16 %v6174
    %v7308 = vunpack.c.h.b16 %v6174
    %v7309 = vunpack.c.l.b16 %v6175
    %v7310 = vunpack.c.h.b16 %v6175
    %v7311 = vunpack.c.l.b16 %v6176
    %v7312 = vunpack.c.h.b16 %v6176
    %v7313 = vunpack.c.l.b16 %v6177
    %v7314 = vunpack.c.h.b16 %v6177
    %v7315 = vunpack.c.l.b16 %v6178
    %v7316 = vunpack.c.h.b16 %v6178
    %v7317 = vunpack.c.l.b16 %v6179
    %v7318 = vunpack.c.h.b16 %v6179
    %v7319 = vunpack.c.l.b16 %v6180
    %v7320 = vunpack.c.h.b16 %v6180
    %v7321 = vunpack.c.l.b16 %v6181
    %v7322 = vunpack.c.h.b16 %v6181
    %v7323 = vunpack.c.l.b16 %v6182
    %v7324 = vunpack.c.h.b16 %v6182
    %v7325 = vunpack.c.l.b16 %v6183
    %v7326 = vunpack.c.h.b16 %v6183
    %v7327 = vunpack.c.l.b16 %v6184
    %v7328 = vunpack.c.h.b16 %v6184
    %v7329 = vunpack.c.l.b16 %v6185
    %v7330 = vunpack.c.h.b16 %v6185
    %v7331 = vunpack.c.l.b16 %v6186
    %v7332 = vunpack.c.h.b16 %v6186
    %v7333 = vunpack.c.l.b16 %v6187
    %v7334 = vunpack.c.h.b16 %v6187
    %v7335 = vunpack.c.l.b16 %v6188
    %v7336 = vunpack.c.h.b16 %v6188
    %v7337 = vunpack.c.l.b16 %v6189
    %v7338 = vunpack.c.h.b16 %v6189
    %v7339 = vunpack.c.l.b16 %v6190
    %v7340 = vunpack.c.h.b16 %v6190
    %v7341 = vunpack.c.l.b16 %v6191
    %v7342 = vunpack.c.h.b16 %v6191
    %v7343 = vunpack.c.l.b16 %v6192
    %v7344 = vunpack.c.h.b16 %v6192
    %v7345 = vpack.c.b16 %v6585, %v6577
    %v7346 = vpack.c.b16 %v6586, %v6578
    %v7347 = vpack.c.b16 %v6587, %v6579
    %v7348 = vpack.c.b16 %v6588, %v6580
    %v7349 = vpack.c.b16 %v6589, %v6581
    %v7350 = vpack.c.b16 %v6590, %v6582
    %v7351 = vpack.c.b16 %v6591, %v6583
    %v7352 = vpack.c.b16 %v6592, %v6584
    %v7353 = vpack.c.b16 %v6601, %v6593
    %v7354 = vpack.c.b16 %v6602, %v6594
    %v7355 = vpack.c.b16 %v6603, %v6595
    %v7356 = vpack.c.b16 %v6604, %v6596
    %v7357 = vpack.c.b16 %v6605, %v6597
    %v7358 = vpack.c.b16 %v6606, %v6598
    %v7359 = vpack.c.b16 %v6607, %v6599
    %v7360 = vpack.c.b16 %v6608, %v6600
    %v7361 = vpack.c.b16 %v6617, %v6609
    %v7362 = vpack.c.b16 %v6618, %v6610
    %v7363 = vpack.c.b16 %v6619, %v6611
    %v7364 = vpack.c.b16 %v6620, %v6612
    %v7365 = vpack.c.b16 %v6621, %v6613
    %v7366 = vpack.c.b16 %v6622, %v6614
    %v7367 = vpack.c.b16 %v6623, %v6615
    %v7368 = vpack.c.b16 %v6624, %v6616
    %v7369 = vpack.c.b16 %v6633, %v6625
    %v7370 = vpack.c.b16 %v6634, %v6626
    %v7371 = vpack.c.b16 %v6635, %v6627
    %v7372 = vpack.c.b16 %v6636, %v6628
    %v7373 = vpack.c.b16 %v6637, %v6629
    %v7374 = vpack.c.b16 %v6638, %v6630
    %v7375 = vpack.c.b16 %v6639, %v6631
    %v7376 = vpack.c.b16 %v6640, %v6632
    %v7377 = vpack.c.b16 %v6649, %v6641
    %v7378 = vpack.c.b16 %v6650, %v6642
    %v7379 = vpack.c.b16 %v6651, %v6643
    %v7380 = vpack.c.b16 %v6652, %v6644
    %v7381 = vpack.c.b16 %v6653, %v6645
    %v7382 = vpack.c.b16 %v6654, %v6646
    %v7383 = vpack.c.b16 %v6655, %v6647
    %v7384 = vpack.c.b16 %v6656, %v6648
    %v7385 = vpack.c.b16 %v6665, %v6657
    %v7386 = vpack.c.b16 %v6666, %v6658
    %v7387 = vpack.c.b16 %v6667, %v6659
    %v7388 = vpack.c.b16 %v6668, %v6660
    %v7389 = vpack.c.b16 %v6669, %v6661
    %v7390 = vpack.c.b16 %v6670, %v6662
    %v7391 = vpack.c.b16 %v6671, %v6663
    %v7392 = vpack.c.b16 %v6672, %v6664
    %v7393 = vpack.c.b16 %v6681, %v6673
    %v7394 = vpack.c.b16 %v6682, %v6674
    %v7395 = vpack.c.b16 %v6683, %v6675
    %v7396 = vpack.c.b16 %v6684, %v6676
    %v7397 = vpack.c.b16 %v6685, %v6677
    %v7398 = vpack.c.b16 %v6686, %v6678
    %v7399 = vpack.c.b16 %v6687, %v6679
    %v7400 = vpack.c.b16 %v6688, %v6680
    %v7401 = vpack.c.b16 %v6697, %v6689
    %v7402 = vpack.c.b16 %v6698, %v6690
    %v7403 = vpack.c.b16 %v6699, %v6691
    %v7404 = vpack.c.b16 %v6700, %v6692
    %v7405 = vpack.c.b16 %v6701, %v6693
    %v7406 = vpack.c.b16 %v6702, %v6694
    %v7407 = vpack.c.b16 %v6703, %v6695
    %v7408 = vpack.c.b16 %v6704, %v6696
    %v7409 = vpack.c.b16 %v6713, %v6705
    %v7410 = vpack.c.b16 %v6714, %v6706
    %v7411 = vpack.c.b16 %v6715, %v6707
    %v7412 = vpack.c.b16 %v6716, %v6708
    %v7413 = vpack.c.b16 %v6717, %v6709
    %v7414 = vpack.c.b16 %v6718, %v6710
    %v7415 = vpack.c.b16 %v6719, %v6711
    %v7416 = vpack.c.b16 %v6720, %v6712
    %v7417 = vpack.c.b16 %v6729, %v6721
    %v7418 = vpack.c.b16 %v6730, %v6722
    %v7419 = vpack.c.b16 %v6731, %v6723
    %v7420 = vpack.c.b16 %v6732, %v6724
    %v7421 = vpack.c.b16 %v6733, %v6725
    %v7422 = vpack.c.b16 %v6734, %v6726
    %v7423 = vpack.c.b16 %v6735, %v6727
    %v7424 = vpack.c.b16 %v6736, %v6728
    %v7425 = vpack.c.b16 %v6745, %v6737
    %v7426 = vpack.c.b16 %v6746, %v6738
    %v7427 = vpack.c.b16 %v6747, %v6739
    %v7428 = vpack.c.b16 %v6748, %v6740
    %v7429 = vpack.c.b16 %v6749, %v6741
    %v7430 = vpack.c.b16 %v6750, %v6742
    %v7431 = vpack.c.b16 %v6751, %v6743
    %v7432 = vpack.c.b16 %v6752, %v6744
    %v7433 = vpack.c.b16 %v6761, %v6753
    %v7434 = vpack.c.b16 %v6762, %v6754
    %v7435 = vpack.c.b16 %v6763, %v6755
    %v7436 = vpack.c.b16 %v6764, %v6756
    %v7437 = vpack.c.b16 %v6765, %v6757
    %v7438 = vpack.c.b16 %v6766, %v6758
    %v7439 = vpack.c.b16 %v6767, %v6759
    %v7440 = vpack.c.b16 %v6768, %v6760
    %v7441 = vpack.c.b16 %v6777, %v6769
    %v7442 = vpack.c.b16 %v6778, %v6770
    %v7443 = vpack.c.b16 %v6779, %v6771
    %v7444 = vpack.c.b16 %v6780, %v6772
    %v7445 = vpack.c.b16 %v6781, %v6773
    %v7446 = vpack.c.b16 %v6782, %v6774
    %v7447 = vpack.c.b16 %v6783, %v6775
    %v7448 = vpack.c.b16 %v6784, %v6776
    %v7449 = vpack.c.b16 %v6793, %v6785
    %v7450 = vpack.c.b16 %v6794, %v6786
    %v7451 = vpack.c.b16 %v6795, %v6787
    %v7452 = vpack.c.b16 %v6796, %v6788
    %v7453 = vpack.c.b16 %v6797, %v6789
    %v7454 = vpack.c.b16 %v6798, %v6790
    %v7455 = vpack.c.b16 %v6799, %v6791
    %v7456 = vpack.c.b16 %v6800, %v6792
    %v7457 = vpack.c.b16 %v6809, %v6801
    %v7458 = vpack.c.b16 %v6810, %v6802
    %v7459 = vpack.c.b16 %v6811, %v6803
    %v7460 = vpack.c.b16 %v6812, %v6804
    %v7461 = vpack.c.b16 %v6813, %v6805
    %v7462 = vpack.c.b16 %v6814, %v6806
    %v7463 = vpack.c.b16 %v6815, %v6807
    %v7464 = vpack.c.b16 %v6816, %v6808
    %v7465 = vpack.c.b16 %v6825, %v6817
    %v7466 = vpack.c.b16 %v6826, %v6818
    %v7467 = vpack.c.b16 %v6827, %v6819
    %v7468 = vpack.c.b16 %v6828, %v6820
    %v7469 = vpack.c.b16 %v6829, %v6821
    %v7470 = vpack.c.b16 %v6830, %v6822
    %v7471 = vpack.c.b16 %v6831, %v6823
    %v7472 = vpack.c.b16 %v6832, %v6824
    %v7473 = vpack.c.b16 %v6841, %v6833
    %v7474 = vpack.c.b16 %v6842, %v6834
    %v7475 = vpack.c.b16 %v6843, %v6835
    %v7476 = vpack.c.b16 %v6844, %v6836
    %v7477 = vpack.c.b16 %v6845, %v6837
    %v7478 = vpack.c.b16 %v6846, %v6838
    %v7479 = vpack.c.b16 %v6847, %v6839
    %v7480 = vpack.c.b16 %v6848, %v6840
    %v7481 = vpack.c.b16 %v6857, %v6849
    %v7482 = vpack.c.b16 %v6858, %v6850
    %v7483 = vpack.c.b16 %v6859, %v6851
    %v7484 = vpack.c.b16 %v6860, %v6852
    %v7485 = vpack.c.b16 %v6861, %v6853
    %v7486 = vpack.c.b16 %v6862, %v6854
    %v7487 = vpack.c.b16 %v6863, %v6855
    %v7488 = vpack.c.b16 %v6864, %v6856
    %v7489 = vpack.c.b16 %v6873, %v6865
    %v7490 = vpack.c.b16 %v6874, %v6866
    %v7491 = vpack.c.b16 %v6875, %v6867
    %v7492 = vpack.c.b16 %v6876, %v6868
    %v7493 = vpack.c.b16 %v6877, %v6869
    %v7494 = vpack.c.b16 %v6878, %v6870
    %v7495 = vpack.c.b16 %v6879, %v6871
    %v7496 = vpack.c.b16 %v6880, %v6872
    %v7497 = vpack.c.b16 %v6889, %v6881
    %v7498 = vpack.c.b16 %v6890, %v6882
    %v7499 = vpack.c.b16 %v6891, %v6883
    %v7500 = vpack.c.b16 %v6892, %v6884
    %v7501 = vpack.c.b16 %v6893, %v6885
    %v7502 = vpack.c.b16 %v6894, %v6886
    %v7503 = vpack.c.b16 %v6895, %v6887
    %v7504 = vpack.c.b16 %v6896, %v6888
    %v7505 = vpack.c.b16 %v6905, %v6897
    %v7506 = vpack.c.b16 %v6906, %v6898
    %v7507 = vpack.c.b16 %v6907, %v6899
    %v7508 = vpack.c.b16 %v6908, %v6900
    %v7509 = vpack.c.b16 %v6909, %v6901
    %v7510 = vpack.c.b16 %v6910, %v6902
    %v7511 = vpack.c.b16 %v6911, %v6903
    %v7512 = vpack.c.b16 %v6912, %v6904
    %v7513 = vpack.c.b16 %v6921, %v6913
    %v7514 = vpack.c.b16 %v6922, %v6914
    %v7515 = vpack.c.b16 %v6923, %v6915
    %v7516 = vpack.c.b16 %v6924, %v6916
    %v7517 = vpack.c.b16 %v6925, %v6917
    %v7518 = vpack.c.b16 %v6926, %v6918
    %v7519 = vpack.c.b16 %v6927, %v6919
    %v7520 = vpack.c.b16 %v6928, %v6920
    %v7521 = vpack.c.b16 %v6937, %v6929
    %v7522 = vpack.c.b16 %v6938, %v6930
    %v7523 = vpack.c.b16 %v6939, %v6931
    %v7524 = vpack.c.b16 %v6940, %v6932
    %v7525 = vpack.c.b16 %v6941, %v6933
    %v7526 = vpack.c.b16 %v6942, %v6934
    %v7527 = vpack.c.b16 %v6943, %v6935
    %v7528 = vpack.c.b16 %v6944, %v6936
    %v7529 = vpack.c.b16 %v6953, %v6945
    %v7530 = vpack.c.b16 %v6954, %v6946
    %v7531 = vpack.c.b16 %v6955, %v6947
    %v7532 = vpack.c.b16 %v6956, %v6948
    %v7533 = vpack.c.b16 %v6957, %v6949
    %v7534 = vpack.c.b16 %v6958, %v6950
    %v7535 = vpack.c.b16 %v6959, %v6951
    %v7536 = vpack.c.b16 %v6960, %v6952
    %v7537 = vpack.c.b16 %v6969, %v6961
    %v7538 = vpack.c.b16 %v6970, %v6962
    %v7539 = vpack.c.b16 %v6971, %v6963
    %v7540 = vpack.c.b16 %v6972, %v6964
    %v7541 = vpack.c.b16 %v6973, %v6965
    %v7542 = vpack.c.b16 %v6974, %v6966
    %v7543 = vpack.c.b16 %v6975, %v6967
    %v7544 = vpack.c.b16 %v6976, %v6968
    %v7545 = vpack.c.b16 %v6985, %v6977
    %v7546 = vpack.c.b16 %v6986, %v6978
    %v7547 = vpack.c.b16 %v6987, %v6979
    %v7548 = vpack.c.b16 %v6988, %v6980
    %v7549 = vpack.c.b16 %v6989, %v6981
    %v7550 = vpack.c.b16 %v6990, %v6982
    %v7551 = vpack.c.b16 %v6991, %v6983
    %v7552 = vpack.c.b16 %v6992, %v6984
    %v7553 = vpack.c.b16 %v7001, %v6993
    %v7554 = vpack.c.b16 %v7002, %v6994
    %v7555 = vpack.c.b16 %v7003, %v6995
    %v7556 = vpack.c.b16 %v7004, %v6996
    %v7557 = vpack.c.b16 %v7005, %v6997
    %v7558 = vpack.c.b16 %v7006, %v6998
    %v7559 = vpack.c.b16 %v7007, %v6999
    %v7560 = vpack.c.b16 %v7008, %v7000
    %v7561 = vpack.c.b16 %v7017, %v7009
    %v7562 = vpack.c.b16 %v7018, %v7010
    %v7563 = vpack.c.b16 %v7019, %v7011
    %v7564 = vpack.c.b16 %v7020, %v7012
    %v7565 = vpack.c.b16 %v7021, %v7013
    %v7566 = vpack.c.b16 %v7022, %v7014
    %v7567 = vpack.c.b16 %v7023, %v7015
    %v7568 = vpack.c.b16 %v7024, %v7016
    %v7569 = vpack.c.b16 %v7033, %v7025
    %v7570 = vpack.c.b16 %v7034, %v7026
    %v7571 = vpack.c.b16 %v7035, %v7027
    %v7572 = vpack.c.b16 %v7036, %v7028
    %v7573 = vpack.c.b16 %v7037, %v7029
    %v7574 = vpack.c.b16 %v7038, %v7030
    %v7575 = vpack.c.b16 %v7039, %v7031
    %v7576 = vpack.c.b16 %v7040, %v7032
    %v7577 = vpack.c.b16 %v7049, %v7041
    %v7578 = vpack.c.b16 %v7050, %v7042
    %v7579 = vpack.c.b16 %v7051, %v7043
    %v7580 = vpack.c.b16 %v7052, %v7044
    %v7581 = vpack.c.b16 %v7053, %v7045
    %v7582 = vpack.c.b16 %v7054, %v7046
    %v7583 = vpack.c.b16 %v7055, %v7047
    %v7584 = vpack.c.b16 %v7056, %v7048
    %v7585 = vpack.c.b16 %v7065, %v7057
    %v7586 = vpack.c.b16 %v7066, %v7058
    %v7587 = vpack.c.b16 %v7067, %v7059
    %v7588 = vpack.c.b16 %v7068, %v7060
    %v7589 = vpack.c.b16 %v7069, %v7061
    %v7590 = vpack.c.b16 %v7070, %v7062
    %v7591 = vpack.c.b16 %v7071, %v7063
    %v7592 = vpack.c.b16 %v7072, %v7064
    %v7593 = vpack.c.b16 %v7081, %v7073
    %v7594 = vpack.c.b16 %v7082, %v7074
    %v7595 = vpack.c.b16 %v7083, %v7075
    %v7596 = vpack.c.b16 %v7084, %v7076
    %v7597 = vpack.c.b16 %v7085, %v7077
    %v7598 = vpack.c.b16 %v7086, %v7078
    %v7599 = vpack.c.b16 %v7087, %v7079
    %v7600 = vpack.c.b16 %v7088, %v7080
    %v7601 = vpack.c.b16 %v7097, %v7089
    %v7602 = vpack.c.b16 %v7098, %v7090
    %v7603 = vpack.c.b16 %v7099, %v7091
    %v7604 = vpack.c.b16 %v7100, %v7092
    %v7605 = vpack.c.b16 %v7101, %v7093
    %v7606 = vpack.c.b16 %v7102, %v7094
    %v7607 = vpack.c.b16 %v7103, %v7095
    %v7608 = vpack.c.b16 %v7104, %v7096
    %v7609 = vpack.c.b16 %v7113, %v7105
    %v7610 = vpack.c.b16 %v7114, %v7106
    %v7611 = vpack.c.b16 %v7115, %v7107
    %v7612 = vpack.c.b16 %v7116, %v7108
    %v7613 = vpack.c.b16 %v7117, %v7109
    %v7614 = vpack.c.b16 %v7118, %v7110
    %v7615 = vpack.c.b16 %v7119, %v7111
    %v7616 = vpack.c.b16 %v7120, %v7112
    %v7617 = vpack.c.b16 %v7129, %v7121
    %v7618 = vpack.c.b16 %v7130, %v7122
    %v7619 = vpack.c.b16 %v7131, %v7123
    %v7620 = vpack.c.b16 %v7132, %v7124
    %v7621 = vpack.c.b16 %v7133, %v7125
    %v7622 = vpack.c.b16 %v7134, %v7126
    %v7623 = vpack.c.b16 %v7135, %v7127
    %v7624 = vpack.c.b16 %v7136, %v7128
    %v7625 = vpack.c.b16 %v7145, %v7137
    %v7626 = vpack.c.b16 %v7146, %v7138
    %v7627 = vpack.c.b16 %v7147, %v7139
    %v7628 = vpack.c.b16 %v7148, %v7140
    %v7629 = vpack.c.b16 %v7149, %v7141
    %v7630 = vpack.c.b16 %v7150, %v7142
    %v7631 = vpack.c.b16 %v7151, %v7143
    %v7632 = vpack.c.b16 %v7152, %v7144
    %v7633 = vpack.c.b16 %v7161, %v7153
    %v7634 = vpack.c.b16 %v7162, %v7154
    %v7635 = vpack.c.b16 %v7163, %v7155
    %v7636 = vpack.c.b16 %v7164, %v7156
    %v7637 = vpack.c.b16 %v7165, %v7157
    %v7638 = vpack.c.b16 %v7166, %v7158
    %v7639 = vpack.c.b16 %v7167, %v7159
    %v7640 = vpack.c.b16 %v7168, %v7160
    %v7641 = vpack.c.b16 %v7177, %v7169
    %v7642 = vpack.c.b16 %v7178, %v7170
    %v7643 = vpack.c.b16 %v7179, %v7171
    %v7644 = vpack.c.b16 %v7180, %v7172
    %v7645 = vpack.c.b16 %v7181, %v7173
    %v7646 = vpack.c.b16 %v7182, %v7174
    %v7647 = vpack.c.b16 %v7183, %v7175
    %v7648 = vpack.c.b16 %v7184, %v7176
    %v7649 = vpack.c.b16 %v7193, %v7185
    %v7650 = vpack.c.b16 %v7194, %v7186
    %v7651 = vpack.c.b16 %v7195, %v7187
    %v7652 = vpack.c.b16 %v7196, %v7188
    %v7653 = vpack.c.b16 %v7197, %v7189
    %v7654 = vpack.c.b16 %v7198, %v7190
    %v7655 = vpack.c.b16 %v7199, %v7191
    %v7656 = vpack.c.b16 %v7200, %v7192
    %v7657 = vpack.c.b16 %v7209, %v7201
    %v7658 = vpack.c.b16 %v7210, %v7202
    %v7659 = vpack.c.b16 %v7211, %v7203
    %v7660 = vpack.c.b16 %v7212, %v7204
    %v7661 = vpack.c.b16 %v7213, %v7205
    %v7662 = vpack.c.b16 %v7214, %v7206
    %v7663 = vpack.c.b16 %v7215, %v7207
    %v7664 = vpack.c.b16 %v7216, %v7208
    %v7665 = vpack.c.b16 %v7225, %v7217
    %v7666 = vpack.c.b16 %v7226, %v7218
    %v7667 = vpack.c.b16 %v7227, %v7219
    %v7668 = vpack.c.b16 %v7228, %v7220
    %v7669 = vpack.c.b16 %v7229, %v7221
    %v7670 = vpack.c.b16 %v7230, %v7222
    %v7671 = vpack.c.b16 %v7231, %v7223
    %v7672 = vpack.c.b16 %v7232, %v7224
    %v7673 = vpack.c.b16 %v7241, %v7233
    %v7674 = vpack.c.b16 %v7242, %v7234
    %v7675 = vpack.c.b16 %v7243, %v7235
    %v7676 = vpack.c.b16 %v7244, %v7236
    %v7677 = vpack.c.b16 %v7245, %v7237
    %v7678 = vpack.c.b16 %v7246, %v7238
    %v7679 = vpack.c.b16 %v7247, %v7239
    %v7680 = vpack.c.b16 %v7248, %v7240
    %v7681 = vpack.c.b16 %v7257, %v7249
    %v7682 = vpack.c.b16 %v7258, %v7250
    %v7683 = vpack.c.b16 %v7259, %v7251
    %v7684 = vpack.c.b16 %v7260, %v7252
    %v7685 = vpack.c.b16 %v7261, %v7253
    %v7686 = vpack.c.b16 %v7262, %v7254
    %v7687 = vpack.c.b16 %v7263, %v7255
    %v7688 = vpack.c.b16 %v7264, %v7256
    %v7689 = vpack.c.b16 %v7273, %v7265
    %v7690 = vpack.c.b16 %v7274, %v7266
    %v7691 = vpack.c.b16 %v7275, %v7267
    %v7692 = vpack.c.b16 %v7276, %v7268
    %v7693 = vpack.c.b16 %v7277, %v7269
    %v7694 = vpack.c.b16 %v7278, %v7270
    %v7695 = vpack.c.b16 %v7279, %v7271
    %v7696 = vpack.c.b16 %v7280, %v7272
    %v7697 = vpack.c.b16 %v7289, %v7281
    %v7698 = vpack.c.b16 %v7290, %v7282
    %v7699 = vpack.c.b16 %v7291, %v7283
    %v7700 = vpack.c.b16 %v7292, %v7284
    %v7701 = vpack.c.b16 %v7293, %v7285
    %v7702 = vpack.c.b16 %v7294, %v7286
    %v7703 = vpack.c.b16 %v7295, %v7287
    %v7704 = vpack.c.b16 %v7296, %v7288
    %v7705 = vpack.c.b16 %v7305, %v7297
    %v7706 = vpack.c.b16 %v7306, %v7298
    %v7707 = vpack.c.b16 %v7307, %v7299
    %v7708 = vpack.c.b16 %v7308, %v7300
    %v7709 = vpack.c.b16 %v7309, %v7301
    %v7710 = vpack.c.b16 %v7310, %v7302
    %v7711 = vpack.c.b16 %v7311, %v7303
    %v7712 = vpack.c.b16 %v7312, %v7304
    %v7713 = vpack.c.b16 %v7321, %v7313
    %v7714 = vpack.c.b16 %v7322, %v7314
    %v7715 = vpack.c.b16 %v7323, %v7315
    %v7716 = vpack.c.b16 %v7324, %v7316
    %v7717 = vpack.c.b16 %v7325, %v7317
    %v7718 = vpack.c.b16 %v7326, %v7318
    %v7719 = vpack.c.b16 %v7327, %v7319
    %v7720 = vpack.c.b16 %v7328, %v7320
    %v7721 = vpack.c.b16 %v7337, %v7329
    %v7722 = vpack.c.b16 %v7338, %v7330
    %v7723 = vpack.c.b16 %v7339, %v7331
    %v7724 = vpack.c.b16 %v7340, %v7332
    %v7725 = vpack.c.b16 %v7341, %v7333
    %v7726 = vpack.c.b16 %v7342, %v7334
    %v7727 = vpack.c.b16 %v7343, %v7335
    %v7728 = vpack.c.b16 %v7344, %v7336
    %8113 = vmatprep.subr.bf16.mxu0 %v7346
    %8114 = vmatpush1.bf16.msra.mxu0 %v7345
    %8115 = vmatprep.subr.bf16.mxu0 %v7354
    %8116 = vmatpush1.bf16.msra.mxu0 %v7353
    %8117 = vmatprep.subr.bf16.mxu0 %v7362
    %8118 = vmatpush1.bf16.msra.mxu0 %v7361
    %8119 = vmatprep.subr.bf16.mxu0 %v7370
    %8120 = vmatpush1.bf16.msra.mxu0 %v7369
    %8121 = vmatprep.subr.bf16.mxu0 %v7378
    %8122 = vmatpush1.bf16.msra.mxu0 %v7377
    %8123 = vmatprep.subr.bf16.mxu0 %v7386
    %8124 = vmatpush1.bf16.msra.mxu0 %v7385
    %8125 = vmatprep.subr.bf16.mxu0 %v7394
    %8126 = vmatpush1.bf16.msra.mxu0 %v7393
    %8127 = vmatprep.subr.bf16.mxu0 %v7402
    %8128 = vmatpush1.bf16.msra.mxu0 %v7401
    %8129 = vmatprep.subr.bf16.mxu0 %v7410
    %8130 = vmatpush1.bf16.msra.mxu0 %v7409
    %8131 = vmatprep.subr.bf16.mxu0 %v7418
    %8132 = vmatpush1.bf16.msra.mxu0 %v7417
    %8133 = vmatprep.subr.bf16.mxu0 %v7426
    %8134 = vmatpush1.bf16.msra.mxu0 %v7425
    %8135 = vmatprep.subr.bf16.mxu0 %v7434
    %8136 = vmatpush1.bf16.msra.mxu0 %v7433
    %8137 = vmatprep.subr.bf16.mxu0 %v7442
    %8138 = vmatpush1.bf16.msra.mxu0 %v7441
    %8139 = vmatprep.subr.bf16.mxu0 %v7450
    %8140 = vmatpush1.bf16.msra.mxu0 %v7449
    %8141 = vmatprep.subr.bf16.mxu0 %v7458
    %8142 = vmatpush1.bf16.msra.mxu0 %v7457
    %8143 = vmatprep.subr.bf16.mxu0 %v7466
    %8144 = vmatpush1.bf16.msra.mxu0 %v7465
    %8145 = vmatprep.mubr.bf16.mxu0 %v212
    %8146 = vmatmul.mubr.bf16.gmra.mrb[0].mxu0 %v211
    %v8147 = vpop.f32.mrb[0].mxu0
    %v8148 = vadd.f32 0.0, %v8147
    %v8149 = vpop.f32.mrb[0].mxu0
    %v8150 = vadd.f32 0.0, %v8149
    %v8151 = vpop.f32.mrb[0].mxu0
    %v8152 = vpop.f32.mrb[0].mxu0
    %8153 = vdwg.mxu0
    %8154 = vmatprep.subr.bf16.mxu0 %v7474
    %8155 = vmatpush1.bf16.msra.mxu0 %v7473
    %8156 = vmatprep.subr.bf16.mxu0 %v7482
    %8157 = vmatpush1.bf16.msra.mxu0 %v7481
    %8158 = vmatprep.subr.bf16.mxu0 %v7490
    %8159 = vmatpush1.bf16.msra.mxu0 %v7489
    %8160 = vmatprep.subr.bf16.mxu0 %v7498
    %8161 = vmatpush1.bf16.msra.mxu0 %v7497
    %8162 = vmatprep.subr.bf16.mxu0 %v7506
    %8163 = vmatpush1.bf16.msra.mxu0 %v7505
    %8164 = vmatprep.subr.bf16.mxu0 %v7514
    %8165 = vmatpush1.bf16.msra.mxu0 %v7513
    %8166 = vmatprep.subr.bf16.mxu0 %v7522
    %8167 = vmatpush1.bf16.msra.mxu0 %v7521
    %8168 = vmatprep.subr.bf16.mxu0 %v7530
    %8169 = vmatpush1.bf16.msra.mxu0 %v7529
    %8170 = vmatprep.subr.bf16.mxu0 %v7538
    %8171 = vmatpush1.bf16.msra.mxu0 %v7537
    %8172 = vmatprep.subr.bf16.mxu0 %v7546
    %8173 = vmatpush1.bf16.msra.mxu0 %v7545
    %8174 = vmatprep.subr.bf16.mxu0 %v7554
    %8175 = vmatpush1.bf16.msra.mxu0 %v7553
    %8176 = vmatprep.subr.bf16.mxu0 %v7562
    %8177 = vmatpush1.bf16.msra.mxu0 %v7561
    %8178 = vmatprep.subr.bf16.mxu0 %v7570
    %8179 = vmatpush1.bf16.msra.mxu0 %v7569
    %8180 = vmatprep.subr.bf16.mxu0 %v7578
    %8181 = vmatpush1.bf16.msra.mxu0 %v7577
    %8182 = vmatprep.subr.bf16.mxu0 %v7586
    %8183 = vmatpush1.bf16.msra.mxu0 %v7585
    %8184 = vmatprep.subr.bf16.mxu0 %v7594
    %8185 = vmatpush1.bf16.msra.mxu0 %v7593
    %8186 = vmatprep.mubr.bf16.mxu0 %v214
    %8187 = vmatmul.mubr.bf16.gmra.mrb[0].mxu0 %v213
    %v8188 = vpop.f32.mrb[0].mxu0
    %v8189 = vadd.f32 %v8148, %v8188
    %v8190 = vpop.f32.mrb[0].mxu0
    %v8191 = vadd.f32 %v8150, %v8190
    %v8192 = vpop.f32.mrb[0].mxu0
    %v8193 = vpop.f32.mrb[0].mxu0
    %8194 = vdwg.mxu0
    %8195 = vmatprep.subr.bf16.mxu0 %v7602
    %8196 = vmatpush1.bf16.msra.mxu0 %v7601
    %8197 = vmatprep.subr.bf16.mxu0 %v7610
    %8198 = vmatpush1.bf16.msra.mxu0 %v7609
    %8199 = vmatprep.subr.bf16.mxu0 %v7618
    %8200 = vmatpush1.bf16.msra.mxu0 %v7617
    %8201 = vmatprep.subr.bf16.mxu0 %v7626
    %8202 = vmatpush1.bf16.msra.mxu0 %v7625
    %8203 = vmatprep.subr.bf16.mxu0 %v7634
    %8204 = vmatpush1.bf16.msra.mxu0 %v7633
    %8205 = vmatprep.subr.bf16.mxu0 %v7642
    %8206 = vmatpush1.bf16.msra.mxu0 %v7641
    %8207 = vmatprep.subr.bf16.mxu0 %v7650
    %8208 = vmatpush1.bf16.msra.mxu0 %v7649
    %8209 = vmatprep.subr.bf16.mxu0 %v7658
    %8210 = vmatpush1.bf16.msra.mxu0 %v7657
    %8211 = vmatprep.subr.bf16.mxu0 %v7666
    %8212 = vmatpush1.bf16.msra.mxu0 %v7665
    %8213 = vmatprep.subr.bf16.mxu0 %v7674
    %8214 = vmatpush1.bf16.msra.mxu0 %v7673
    %8215 = vmatprep.subr.bf16.mxu0 %v7682
    %8216 = vmatpush1.bf16.msra.mxu0 %v7681
    %8217 = vmatprep.subr.bf16.mxu0 %v7690
    %8218 = vmatpush1.bf16.msra.mxu0 %v7689
    %8219 = vmatprep.subr.bf16.mxu0 %v7698
    %8220 = vmatpush1.bf16.msra.mxu0 %v7697
    %8221 = vmatprep.subr.bf16.mxu0 %v7706
    %8222 = vmatpush1.bf16.msra.mxu0 %v7705
    %8223 = vmatprep.subr.bf16.mxu0 %v7714
    %8224 = vmatpush1.bf16.msra.mxu0 %v7713
    %8225 = vmatprep.subr.bf16.mxu0 %v7722
    %8226 = vmatpush1.bf16.msra.mxu0 %v7721
    %8227 = vmatprep.mubr.bf16.mxu0 %v216
    %8228 = vmatmul.mubr.bf16.gmra.mrb[0].mxu0 %v215
    %v8229 = vpop.f32.mrb[0].mxu0
    %v8230 = vadd.f32 %v8189, %v8229
    %v8231 = vpop.f32.mrb[0].mxu0
    %v8232 = vadd.f32 %v8191, %v8231
    %v8233 = vpop.f32.mrb[0].mxu0
    %v8234 = vpop.f32.mrb[0].mxu0
    %8235 = vdwg.mxu0
    %8236 = vmatprep.subr.bf16.mxu0 %v7348
    %8237 = vmatpush1.bf16.msra.mxu0 %v7347
    %8238 = vmatprep.subr.bf16.mxu0 %v7356
    %8239 = vmatpush1.bf16.msra.mxu0 %v7355
    %8240 = vmatprep.subr.bf16.mxu0 %v7364
    %8241 = vmatpush1.bf16.msra.mxu0 %v7363
    %8242 = vmatprep.subr.bf16.mxu0 %v7372
    %8243 = vmatpush1.bf16.msra.mxu0 %v7371
    %8244 = vmatprep.subr.bf16.mxu0 %v7380
    %8245 = vmatpush1.bf16.msra.mxu0 %v7379
    %8246 = vmatprep.subr.bf16.mxu0 %v7388
    %8247 = vmatpush1.bf16.msra.mxu0 %v7387
    %8248 = vmatprep.subr.bf16.mxu0 %v7396
    %8249 = vmatpush1.bf16.msra.mxu0 %v7395
    %8250 = vmatprep.subr.bf16.mxu0 %v7404
    %8251 = vmatpush1.bf16.msra.mxu0 %v7403
    %8252 = vmatprep.subr.bf16.mxu0 %v7412
    %8253 = vmatpush1.bf16.msra.mxu0 %v7411
    %8254 = vmatprep.subr.bf16.mxu0 %v7420
    %8255 = vmatpush1.bf16.msra.mxu0 %v7419
    %8256 = vmatprep.subr.bf16.mxu0 %v7428
    %8257 = vmatpush1.bf16.msra.mxu0 %v7427
    %8258 = vmatprep.subr.bf16.mxu0 %v7436
    %8259 = vmatpush1.bf16.msra.mxu0 %v7435
    %8260 = vmatprep.subr.bf16.mxu0 %v7444
    %8261 = vmatpush1.bf16.msra.mxu0 %v7443
    %8262 = vmatprep.subr.bf16.mxu0 %v7452
    %8263 = vmatpush1.bf16.msra.mxu0 %v7451
    %8264 = vmatprep.subr.bf16.mxu0 %v7460
    %8265 = vmatpush1.bf16.msra.mxu0 %v7459
    %8266 = vmatprep.subr.bf16.mxu0 %v7468
    %8267 = vmatpush1.bf16.msra.mxu0 %v7467
    %8268 = vmatprep.mubr.bf16.mxu0 %v212
    %8269 = vmatmul.mubr.bf16.gmra.mrb[0].mxu0 %v211
    %v8270 = vpop.f32.mrb[0].mxu0
    %v8271 = vadd.f32 0.0, %v8270
    %v8272 = vpop.f32.mrb[0].mxu0
    %v8273 = vadd.f32 0.0, %v8272
    %v8274 = vpop.f32.mrb[0].mxu0
    %v8275 = vpop.f32.mrb[0].mxu0
    %8276 = vdwg.mxu0
    %8277 = vmatprep.subr.bf16.mxu0 %v7476
    %8278 = vmatpush1.bf16.msra.mxu0 %v7475
    %8279 = vmatprep.subr.bf16.mxu0 %v7484
    %8280 = vmatpush1.bf16.msra.mxu0 %v7483
    %8281 = vmatprep.subr.bf16.mxu0 %v7492
    %8282 = vmatpush1.bf16.msra.mxu0 %v7491
    %8283 = vmatprep.subr.bf16.mxu0 %v7500
    %8284 = vmatpush1.bf16.msra.mxu0 %v7499
    %8285 = vmatprep.subr.bf16.mxu0 %v7508
    %8286 = vmatpush1.bf16.msra.mxu0 %v7507
    %8287 = vmatprep.subr.bf16.mxu0 %v7516
    %8288 = vmatpush1.bf16.msra.mxu0 %v7515
    %8289 = vmatprep.subr.bf16.mxu0 %v7524
    %8290 = vmatpush1.bf16.msra.mxu0 %v7523
    %8291 = vmatprep.subr.bf16.mxu0 %v7532
    %8292 = vmatpush1.bf16.msra.mxu0 %v7531
    %8293 = vmatprep.subr.bf16.mxu0 %v7540
    %8294 = vmatpush1.bf16.msra.mxu0 %v7539
    %8295 = vmatprep.subr.bf16.mxu0 %v7548
    %8296 = vmatpush1.bf16.msra.mxu0 %v7547
    %8297 = vmatprep.subr.bf16.mxu0 %v7556
    %8298 = vmatpush1.bf16.msra.mxu0 %v7555
    %8299 = vmatprep.subr.bf16.mxu0 %v7564
    %8300 = vmatpush1.bf16.msra.mxu0 %v7563
    %8301 = vmatprep.subr.bf16.mxu0 %v7572
    %8302 = vmatpush1.bf16.msra.mxu0 %v7571
    %8303 = vmatprep.subr.bf16.mxu0 %v7580
    %8304 = vmatpush1.bf16.msra.mxu0 %v7579
    %8305 = vmatprep.subr.bf16.mxu0 %v7588
    %8306 = vmatpush1.bf16.msra.mxu0 %v7587
    %8307 = vmatprep.subr.bf16.mxu0 %v7596
    %8308 = vmatpush1.bf16.msra.mxu0 %v7595
    %8309 = vmatprep.mubr.bf16.mxu0 %v214
    %8310 = vmatmul.mubr.bf16.gmra.mrb[0].mxu0 %v213
    %v8311 = vpop.f32.mrb[0].mxu0
    %v8312 = vadd.f32 %v8271, %v8311
    %v8313 = vpop.f32.mrb[0].mxu0
    %v8314 = vadd.f32 %v8273, %v8313
    %v8315 = vpop.f32.mrb[0].mxu0
    %v8316 = vpop.f32.mrb[0].mxu0
    %8317 = vdwg.mxu0
    %8318 = vmatprep.subr.bf16.mxu0 %v7604
    %8319 = vmatpush1.bf16.msra.mxu0 %v7603
    %8320 = vmatprep.subr.bf16.mxu0 %v7612
    %8321 = vmatpush1.bf16.msra.mxu0 %v7611
    %8322 = vmatprep.subr.bf16.mxu0 %v7620
    %8323 = vmatpush1.bf16.msra.mxu0 %v7619
    %8324 = vmatprep.subr.bf16.mxu0 %v7628
    %8325 = vmatpush1.bf16.msra.mxu0 %v7627
    %8326 = vmatprep.subr.bf16.mxu0 %v7636
    %8327 = vmatpush1.bf16.msra.mxu0 %v7635
    %8328 = vmatprep.subr.bf16.mxu0 %v7644
    %8329 = vmatpush1.bf16.msra.mxu0 %v7643
    %8330 = vmatprep.subr.bf16.mxu0 %v7652
    %8331 = vmatpush1.bf16.msra.mxu0 %v7651
    %8332 = vmatprep.subr.bf16.mxu0 %v7660
    %8333 = vmatpush1.bf16.msra.mxu0 %v7659
    %8334 = vmatprep.subr.bf16.mxu0 %v7668
    %8335 = vmatpush1.bf16.msra.mxu0 %v7667
    %8336 = vmatprep.subr.bf16.mxu0 %v7676
    %8337 = vmatpush1.bf16.msra.mxu0 %v7675
    %8338 = vmatprep.subr.bf16.mxu0 %v7684
    %8339 = vmatpush1.bf16.msra.mxu0 %v7683
    %8340 = vmatprep.subr.bf16.mxu0 %v7692
    %8341 = vmatpush1.bf16.msra.mxu0 %v7691
    %8342 = vmatprep.subr.bf16.mxu0 %v7700
    %8343 = vmatpush1.bf16.msra.mxu0 %v7699
    %8344 = vmatprep.subr.bf16.mxu0 %v7708
    %8345 = vmatpush1.bf16.msra.mxu0 %v7707
    %8346 = vmatprep.subr.bf16.mxu0 %v7716
    %8347 = vmatpush1.bf16.msra.mxu0 %v7715
    %8348 = vmatprep.subr.bf16.mxu0 %v7724
    %8349 = vmatpush1.bf16.msra.mxu0 %v7723
    %8350 = vmatprep.mubr.bf16.mxu0 %v216
    %8351 = vmatmul.mubr.bf16.gmra.mrb[0].mxu0 %v215
    %v8352 = vpop.f32.mrb[0].mxu0
    %v8353 = vadd.f32 %v8312, %v8352
    %v8354 = vpop.f32.mrb[0].mxu0
    %v8355 = vadd.f32 %v8314, %v8354
    %v8356 = vpop.f32.mrb[0].mxu0
    %v8357 = vpop.f32.mrb[0].mxu0
    %8358 = vdwg.mxu0
    %8359 = vmatprep.subr.bf16.mxu0 %v7350
    %8360 = vmatpush1.bf16.msra.mxu0 %v7349
    %8361 = vmatprep.subr.bf16.mxu0 %v7358
    %8362 = vmatpush1.bf16.msra.mxu0 %v7357
    %8363 = vmatprep.subr.bf16.mxu0 %v7366
    %8364 = vmatpush1.bf16.msra.mxu0 %v7365
    %8365 = vmatprep.subr.bf16.mxu0 %v7374
    %8366 = vmatpush1.bf16.msra.mxu0 %v7373
    %8367 = vmatprep.subr.bf16.mxu0 %v7382
    %8368 = vmatpush1.bf16.msra.mxu0 %v7381
    %8369 = vmatprep.subr.bf16.mxu0 %v7390
    %8370 = vmatpush1.bf16.msra.mxu0 %v7389
    %8371 = vmatprep.subr.bf16.mxu0 %v7398
    %8372 = vmatpush1.bf16.msra.mxu0 %v7397
    %8373 = vmatprep.subr.bf16.mxu0 %v7406
    %8374 = vmatpush1.bf16.msra.mxu0 %v7405
    %8375 = vmatprep.subr.bf16.mxu0 %v7414
    %8376 = vmatpush1.bf16.msra.mxu0 %v7413
    %8377 = vmatprep.subr.bf16.mxu0 %v7422
    %8378 = vmatpush1.bf16.msra.mxu0 %v7421
    %8379 = vmatprep.subr.bf16.mxu0 %v7430
    %8380 = vmatpush1.bf16.msra.mxu0 %v7429
    %8381 = vmatprep.subr.bf16.mxu0 %v7438
    %8382 = vmatpush1.bf16.msra.mxu0 %v7437
    %8383 = vmatprep.subr.bf16.mxu0 %v7446
    %8384 = vmatpush1.bf16.msra.mxu0 %v7445
    %8385 = vmatprep.subr.bf16.mxu0 %v7454
    %8386 = vmatpush1.bf16.msra.mxu0 %v7453
    %8387 = vmatprep.subr.bf16.mxu0 %v7462
    %8388 = vmatpush1.bf16.msra.mxu0 %v7461
    %8389 = vmatprep.subr.bf16.mxu0 %v7470
    %8390 = vmatpush1.bf16.msra.mxu0 %v7469
    %8391 = vmatprep.mubr.bf16.mxu0 %v212
    %8392 = vmatmul.mubr.bf16.gmra.mrb[0].mxu0 %v211
    %v8393 = vpop.f32.mrb[0].mxu0
    %v8394 = vadd.f32 0.0, %v8393
    %v8395 = vpop.f32.mrb[0].mxu0
    %v8396 = vadd.f32 0.0, %v8395
    %v8397 = vpop.f32.mrb[0].mxu0
    %v8398 = vpop.f32.mrb[0].mxu0
    %8399 = vdwg.mxu0
    %8400 = vmatprep.subr.bf16.mxu0 %v7478
    %8401 = vmatpush1.bf16.msra.mxu0 %v7477
    %8402 = vmatprep.subr.bf16.mxu0 %v7486
    %8403 = vmatpush1.bf16.msra.mxu0 %v7485
    %8404 = vmatprep.subr.bf16.mxu0 %v7494
    %8405 = vmatpush1.bf16.msra.mxu0 %v7493
    %8406 = vmatprep.subr.bf16.mxu0 %v7502
    %8407 = vmatpush1.bf16.msra.mxu0 %v7501
    %8408 = vmatprep.subr.bf16.mxu0 %v7510
    %8409 = vmatpush1.bf16.msra.mxu0 %v7509
    %8410 = vmatprep.subr.bf16.mxu0 %v7518
    %8411 = vmatpush1.bf16.msra.mxu0 %v7517
    %8412 = vmatprep.subr.bf16.mxu0 %v7526
    %8413 = vmatpush1.bf16.msra.mxu0 %v7525
    %8414 = vmatprep.subr.bf16.mxu0 %v7534
    %8415 = vmatpush1.bf16.msra.mxu0 %v7533
    %8416 = vmatprep.subr.bf16.mxu0 %v7542
    %8417 = vmatpush1.bf16.msra.mxu0 %v7541
    %8418 = vmatprep.subr.bf16.mxu0 %v7550
    %8419 = vmatpush1.bf16.msra.mxu0 %v7549
    %8420 = vmatprep.subr.bf16.mxu0 %v7558
    %8421 = vmatpush1.bf16.msra.mxu0 %v7557
    %8422 = vmatprep.subr.bf16.mxu0 %v7566
    %8423 = vmatpush1.bf16.msra.mxu0 %v7565
    %8424 = vmatprep.subr.bf16.mxu0 %v7574
    %8425 = vmatpush1.bf16.msra.mxu0 %v7573
    %8426 = vmatprep.subr.bf16.mxu0 %v7582
    %8427 = vmatpush1.bf16.msra.mxu0 %v7581
    %8428 = vmatprep.subr.bf16.mxu0 %v7590
    %8429 = vmatpush1.bf16.msra.mxu0 %v7589
    %8430 = vmatprep.subr.bf16.mxu0 %v7598
    %8431 = vmatpush1.bf16.msra.mxu0 %v7597
    %8432 = vmatprep.mubr.bf16.mxu0 %v214
    %8433 = vmatmul.mubr.bf16.gmra.mrb[0].mxu0 %v213
    %v8434 = vpop.f32.mrb[0].mxu0
    %v8435 = vadd.f32 %v8394, %v8434
    %v8436 = vpop.f32.mrb[0].mxu0
    %v8437 = vadd.f32 %v8396, %v8436
    %v8438 = vpop.f32.mrb[0].mxu0
    %v8439 = vpop.f32.mrb[0].mxu0
    %8440 = vdwg.mxu0
    %8441 = vmatprep.subr.bf16.mxu0 %v7606
    %8442 = vmatpush1.bf16.msra.mxu0 %v7605
    %8443 = vmatprep.subr.bf16.mxu0 %v7614
    %8444 = vmatpush1.bf16.msra.mxu0 %v7613
    %8445 = vmatprep.subr.bf16.mxu0 %v7622
    %8446 = vmatpush1.bf16.msra.mxu0 %v7621
    %8447 = vmatprep.subr.bf16.mxu0 %v7630
    %8448 = vmatpush1.bf16.msra.mxu0 %v7629
    %8449 = vmatprep.subr.bf16.mxu0 %v7638
    %8450 = vmatpush1.bf16.msra.mxu0 %v7637
    %8451 = vmatprep.subr.bf16.mxu0 %v7646
    %8452 = vmatpush1.bf16.msra.mxu0 %v7645
    %8453 = vmatprep.subr.bf16.mxu0 %v7654
    %8454 = vmatpush1.bf16.msra.mxu0 %v7653
    %8455 = vmatprep.subr.bf16.mxu0 %v7662
    %8456 = vmatpush1.bf16.msra.mxu0 %v7661
    %8457 = vmatprep.subr.bf16.mxu0 %v7670
    %8458 = vmatpush1.bf16.msra.mxu0 %v7669
    %8459 = vmatprep.subr.bf16.mxu0 %v7678
    %8460 = vmatpush1.bf16.msra.mxu0 %v7677
    %8461 = vmatprep.subr.bf16.mxu0 %v7686
    %8462 = vmatpush1.bf16.msra.mxu0 %v7685
    %8463 = vmatprep.subr.bf16.mxu0 %v7694
    %8464 = vmatpush1.bf16.msra.mxu0 %v7693
    %8465 = vmatprep.subr.bf16.mxu0 %v7702
    %8466 = vmatpush1.bf16.msra.mxu0 %v7701
    %8467 = vmatprep.subr.bf16.mxu0 %v7710
    %8468 = vmatpush1.bf16.msra.mxu0 %v7709
    %8469 = vmatprep.subr.bf16.mxu0 %v7718
    %8470 = vmatpush1.bf16.msra.mxu0 %v7717
    %8471 = vmatprep.subr.bf16.mxu0 %v7726
    %8472 = vmatpush1.bf16.msra.mxu0 %v7725
    %8473 = vmatprep.mubr.bf16.mxu0 %v216
    %8474 = vmatmul.mubr.bf16.gmra.mrb[0].mxu0 %v215
    %v8475 = vpop.f32.mrb[0].mxu0
    %v8476 = vadd.f32 %v8435, %v8475
    %v8477 = vpop.f32.mrb[0].mxu0
    %v8478 = vadd.f32 %v8437, %v8477
    %v8479 = vpop.f32.mrb[0].mxu0
    %v8480 = vpop.f32.mrb[0].mxu0
    %8481 = vdwg.mxu0
    %8482 = vmatprep.subr.bf16.mxu0 %v7352
    %8483 = vmatpush1.bf16.msra.mxu0 %v7351
    %8484 = vmatprep.subr.bf16.mxu0 %v7360
    %8485 = vmatpush1.bf16.msra.mxu0 %v7359
    %8486 = vmatprep.subr.bf16.mxu0 %v7368
    %8487 = vmatpush1.bf16.msra.mxu0 %v7367
    %8488 = vmatprep.subr.bf16.mxu0 %v7376
    %8489 = vmatpush1.bf16.msra.mxu0 %v7375
    %8490 = vmatprep.subr.bf16.mxu0 %v7384
    %8491 = vmatpush1.bf16.msra.mxu0 %v7383
    %8492 = vmatprep.subr.bf16.mxu0 %v7392
    %8493 = vmatpush1.bf16.msra.mxu0 %v7391
    %8494 = vmatprep.subr.bf16.mxu0 %v7400
    %8495 = vmatpush1.bf16.msra.mxu0 %v7399
    %8496 = vmatprep.subr.bf16.mxu0 %v7408
    %8497 = vmatpush1.bf16.msra.mxu0 %v7407
    %8498 = vmatprep.subr.bf16.mxu0 %v7416
    %8499 = vmatpush1.bf16.msra.mxu0 %v7415
    %8500 = vmatprep.subr.bf16.mxu0 %v7424
    %8501 = vmatpush1.bf16.msra.mxu0 %v7423
    %8502 = vmatprep.subr.bf16.mxu0 %v7432
    %8503 = vmatpush1.bf16.msra.mxu0 %v7431
    %8504 = vmatprep.subr.bf16.mxu0 %v7440
    %8505 = vmatpush1.bf16.msra.mxu0 %v7439
    %8506 = vmatprep.subr.bf16.mxu0 %v7448
    %8507 = vmatpush1.bf16.msra.mxu0 %v7447
    %8508 = vmatprep.subr.bf16.mxu0 %v7456
    %8509 = vmatpush1.bf16.msra.mxu0 %v7455
    %8510 = vmatprep.subr.bf16.mxu0 %v7464
    %8511 = vmatpush1.bf16.msra.mxu0 %v7463
    %8512 = vmatprep.subr.bf16.mxu0 %v7472
    %8513 = vmatpush1.bf16.msra.mxu0 %v7471
    %8514 = vmatprep.mubr.bf16.mxu0 %v212
    %8515 = vmatmul.mubr.bf16.gmra.mrb[0].mxu0 %v211
    %v8516 = vpop.f32.mrb[0].mxu0
    %v8517 = vadd.f32 0.0, %v8516
    %v8518 = vpop.f32.mrb[0].mxu0
    %v8519 = vadd.f32 0.0, %v8518
    %v8520 = vpop.f32.mrb[0].mxu0
    %v8521 = vpop.f32.mrb[0].mxu0
    %8522 = vdwg.mxu0
    %8523 = vmatprep.subr.bf16.mxu0 %v7480
    %8524 = vmatpush1.bf16.msra.mxu0 %v7479
    %8525 = vmatprep.subr.bf16.mxu0 %v7488
    %8526 = vmatpush1.bf16.msra.mxu0 %v7487
    %8527 = vmatprep.subr.bf16.mxu0 %v7496
    %8528 = vmatpush1.bf16.msra.mxu0 %v7495
    %8529 = vmatprep.subr.bf16.mxu0 %v7504
    %8530 = vmatpush1.bf16.msra.mxu0 %v7503
    %8531 = vmatprep.subr.bf16.mxu0 %v7512
    %8532 = vmatpush1.bf16.msra.mxu0 %v7511
    %8533 = vmatprep.subr.bf16.mxu0 %v7520
    %8534 = vmatpush1.bf16.msra.mxu0 %v7519
    %8535 = vmatprep.subr.bf16.mxu0 %v7528
    %8536 = vmatpush1.bf16.msra.mxu0 %v7527
    %8537 = vmatprep.subr.bf16.mxu0 %v7536
    %8538 = vmatpush1.bf16.msra.mxu0 %v7535
    %8539 = vmatprep.subr.bf16.mxu0 %v7544
    %8540 = vmatpush1.bf16.msra.mxu0 %v7543
    %8541 = vmatprep.subr.bf16.mxu0 %v7552
    %8542 = vmatpush1.bf16.msra.mxu0 %v7551
    %8543 = vmatprep.subr.bf16.mxu0 %v7560
    %8544 = vmatpush1.bf16.msra.mxu0 %v7559
    %8545 = vmatprep.subr.bf16.mxu0 %v7568
    %8546 = vmatpush1.bf16.msra.mxu0 %v7567
    %8547 = vmatprep.subr.bf16.mxu0 %v7576
    %8548 = vmatpush1.bf16.msra.mxu0 %v7575
    %8549 = vmatprep.subr.bf16.mxu0 %v7584
    %8550 = vmatpush1.bf16.msra.mxu0 %v7583
    %8551 = vmatprep.subr.bf16.mxu0 %v7592
    %8552 = vmatpush1.bf16.msra.mxu0 %v7591
    %8553 = vmatprep.subr.bf16.mxu0 %v7600
    %8554 = vmatpush1.bf16.msra.mxu0 %v7599
    %8555 = vmatprep.mubr.bf16.mxu0 %v214
    %8556 = vmatmul.mubr.bf16.gmra.mrb[0].mxu0 %v213
    %v8557 = vpop.f32.mrb[0].mxu0
    %v8558 = vadd.f32 %v8517, %v8557
    %v8559 = vpop.f32.mrb[0].mxu0
    %v8560 = vadd.f32 %v8519, %v8559
    %v8561 = vpop.f32.mrb[0].mxu0
    %v8562 = vpop.f32.mrb[0].mxu0
    %8563 = vdwg.mxu0
    %8564 = vmatprep.subr.bf16.mxu0 %v7608
    %8565 = vmatpush1.bf16.msra.mxu0 %v7607
    %8566 = vmatprep.subr.bf16.mxu0 %v7616
    %8567 = vmatpush1.bf16.msra.mxu0 %v7615
    %8568 = vmatprep.subr.bf16.mxu0 %v7624
    %8569 = vmatpush1.bf16.msra.mxu0 %v7623
    %8570 = vmatprep.subr.bf16.mxu0 %v7632
    %8571 = vmatpush1.bf16.msra.mxu0 %v7631
    %8572 = vmatprep.subr.bf16.mxu0 %v7640
    %8573 = vmatpush1.bf16.msra.mxu0 %v7639
    %8574 = vmatprep.subr.bf16.mxu0 %v7648
    %8575 = vmatpush1.bf16.msra.mxu0 %v7647
    %8576 = vmatprep.subr.bf16.mxu0 %v7656
    %8577 = vmatpush1.bf16.msra.mxu0 %v7655
    %8578 = vmatprep.subr.bf16.mxu0 %v7664
    %8579 = vmatpush1.bf16.msra.mxu0 %v7663
    %8580 = vmatprep.subr.bf16.mxu0 %v7672
    %8581 = vmatpush1.bf16.msra.mxu0 %v7671
    %8582 = vmatprep.subr.bf16.mxu0 %v7680
    %8583 = vmatpush1.bf16.msra.mxu0 %v7679
    %8584 = vmatprep.subr.bf16.mxu0 %v7688
    %8585 = vmatpush1.bf16.msra.mxu0 %v7687
    %8586 = vmatprep.subr.bf16.mxu0 %v7696
    %8587 = vmatpush1.bf16.msra.mxu0 %v7695
    %8588 = vmatprep.subr.bf16.mxu0 %v7704
    %8589 = vmatpush1.bf16.msra.mxu0 %v7703
    %8590 = vmatprep.subr.bf16.mxu0 %v7712
    %8591 = vmatpush1.bf16.msra.mxu0 %v7711
    %8592 = vmatprep.subr.bf16.mxu0 %v7720
    %8593 = vmatpush1.bf16.msra.mxu0 %v7719
    %8594 = vmatprep.subr.bf16.mxu0 %v7728
    %8595 = vmatpush1.bf16.msra.mxu0 %v7727
    %8596 = vmatprep.mubr.bf16.mxu0 %v216
    %8597 = vmatmul.mubr.bf16.gmra.mrb[0].mxu0 %v215
    %v8598 = vpop.f32.mrb[0].mxu0
    %v8599 = vadd.f32 %v8558, %v8598
    %v8600 = vpop.f32.mrb[0].mxu0
    %v8601 = vadd.f32 %v8560, %v8600
    %v8602 = vpop.f32.mrb[0].mxu0
    %v8603 = vpop.f32.mrb[0].mxu0
    %8604 = vdwg.mxu0
    %v8605 = vadd.f32 %v5434, %v8230
    %v8606 = vadd.f32 %v5436, %v8232
    %v8607 = vadd.f32 %v5557, %v8353
    %v8608 = vadd.f32 %v5559, %v8355
    %v8609 = vadd.f32 %v5680, %v8476
    %v8610 = vadd.f32 %v5682, %v8478
    %v8611 = vadd.f32 %v5803, %v8599
    %v8612 = vadd.f32 %v5805, %v8601
    %v8613 = vld [vmem:[#allocation19] ss:$8 sm:$0xf]
    %v8614 = vld [vmem:[#allocation19] ss:$8 sm:$0xf0]
    %v8615 = vor.u32 %v8613, %v8614
    %v8617 = vlaneseq
    %v8618 = vshrl.u32 %v8617, 7
    %v8619 = vsub.s32 0, %v8618
    %v8620 = vrot.slane %v8615, %v8619
    %v8621 = vlaneseq
    %v8622 = vshrl.u32 %v8621, 7
    %v8623 = vsub.s32 1, %v8622
    %v8624 = vrot.slane %v8615, %v8623
    %v8625 = vlaneseq
    %v8626 = vshrl.u32 %v8625, 7
    %v8627 = vsub.s32 2, %v8626
    %v8628 = vrot.slane %v8615, %v8627
    %v8629 = vlaneseq
    %v8630 = vshrl.u32 %v8629, 7
    %v8631 = vsub.s32 3, %v8630
    %v8632 = vrot.slane %v8615, %v8631
    %v8633 = vlaneseq
    %v8634 = vshrl.u32 %v8633, 7
    %v8635 = vsub.s32 4, %v8634
    %v8636 = vrot.slane %v8615, %v8635
    %v8637 = vlaneseq
    %v8638 = vshrl.u32 %v8637, 7
    %v8639 = vsub.s32 5, %v8638
    %v8640 = vrot.slane %v8615, %v8639
    %v8641 = vlaneseq
    %v8642 = vshrl.u32 %v8641, 7
    %v8643 = vsub.s32 6, %v8642
    %v8644 = vrot.slane %v8615, %v8643
    %v8645 = vlaneseq
    %v8646 = vshrl.u32 %v8645, 7
    %v8647 = vsub.s32 7, %v8646
    %v8648 = vrot.slane %v8615, %v8647
    %v8657 = vadd.f32 %v8605, %v8620
    %v8658 = vadd.f32 %v8606, %v8624
    %v8659 = vadd.f32 %v8607, %v8628
    %v8660 = vadd.f32 %v8608, %v8632
    %v8661 = vadd.f32 %v8609, %v8636
    %v8662 = vadd.f32 %v8610, %v8640
    %v8663 = vadd.f32 %v8611, %v8644
    %v8664 = vadd.f32 %v8612, %v8648
    %v8665 = vmax.f32 %v8657, 0.0
    %v8666 = vmax.f32 %v8658, 0.0
    %v8667 = vmax.f32 %v8659, 0.0
    %v8668 = vmax.f32 %v8660, 0.0
    %v8669 = vmax.f32 %v8661, 0.0
    %v8670 = vmax.f32 %v8662, 0.0
    %v8671 = vmax.f32 %v8663, 0.0
    %v8672 = vmax.f32 %v8664, 0.0
    %v8673 = vpack.c.bf16 %v8665, %v8665
    %v8674 = vpack.c.bf16 %v8666, %v8666
    %v8675 = vpack.c.bf16 %v8667, %v8667
    %v8676 = vpack.c.bf16 %v8668, %v8668
    %v8677 = vpack.c.bf16 %v8669, %v8669
    %v8678 = vpack.c.bf16 %v8670, %v8670
    %v8679 = vpack.c.bf16 %v8671, %v8671
    %v8680 = vpack.c.bf16 %v8672, %v8672
    %v8681 = vld [vmem:[#allocation13] sm:$0xff]
    %v8682 = vld [vmem:[#allocation13 + $0x8] sm:$0xff]
    %v8683 = vld [vmem:[#allocation13 + $0x10] sm:$0xff]
    %v8684 = vld [vmem:[#allocation13 + $0x18] sm:$0xff]
    %v8685 = vld [vmem:[#allocation13 + $0x20] sm:$0xff]
    %v8686 = vld [vmem:[#allocation13 + $0x28] sm:$0xff]
    %v8687 = vld [vmem:[#allocation13 + $0x30] sm:$0xff]
    %v8688 = vld [vmem:[#allocation13 + $0x38] sm:$0xff]
    %v8689 = vld [vmem:[#allocation13 + $0x40] sm:$0xff]
    %v8690 = vld [vmem:[#allocation13 + $0x48] sm:$0xff]
    %v8691 = vld [vmem:[#allocation13 + $0x50] sm:$0xff]
    %v8692 = vld [vmem:[#allocation13 + $0x58] sm:$0xff]
    %v8693 = vld [vmem:[#allocation13 + $0x60] sm:$0xff]
    %v8694 = vld [vmem:[#allocation13 + $0x68] sm:$0xff]
    %v8695 = vld [vmem:[#allocation13 + $0x70] sm:$0xff]
    %v8696 = vld [vmem:[#allocation13 + $0x78] sm:$0xff]
    %v8697 = vld [vmem:[#allocation13 + $0x80] sm:$0xff]
    %v8698 = vld [vmem:[#allocation13 + $0x88] sm:$0xff]
    %v8699 = vld [vmem:[#allocation13 + $0x90] sm:$0xff]
    %v8700 = vld [vmem:[#allocation13 + $0x98] sm:$0xff]
    %v8701 = vld [vmem:[#allocation13 + $0xa0] sm:$0xff]
    %v8702 = vld [vmem:[#allocation13 + $0xa8] sm:$0xff]
    %v8703 = vld [vmem:[#allocation13 + $0xb0] sm:$0xff]
    %v8704 = vld [vmem:[#allocation13 + $0xb8] sm:$0xff]
    %v8705 = vld [vmem:[#allocation13 + $0xc0] sm:$0xff]
    %v8706 = vld [vmem:[#allocation13 + $0xc8] sm:$0xff]
    %v8707 = vld [vmem:[#allocation13 + $0xd0] sm:$0xff]
    %v8708 = vld [vmem:[#allocation13 + $0xd8] sm:$0xff]
    %v8709 = vld [vmem:[#allocation13 + $0xe0] sm:$0xff]
    %v8710 = vld [vmem:[#allocation13 + $0xe8] sm:$0xff]
    %v8711 = vld [vmem:[#allocation13 + $0xf0] sm:$0xff]
    %v8712 = vld [vmem:[#allocation13 + $0xf8] sm:$0xff]
    %v8713 = vld [vmem:[#allocation13 + $0x100] sm:$0xff]
    %v8714 = vld [vmem:[#allocation13 + $0x108] sm:$0xff]
    %v8715 = vld [vmem:[#allocation13 + $0x110] sm:$0xff]
    %v8716 = vld [vmem:[#allocation13 + $0x118] sm:$0xff]
    %v8717 = vld [vmem:[#allocation13 + $0x120] sm:$0xff]
    %v8718 = vld [vmem:[#allocation13 + $0x128] sm:$0xff]
    %v8719 = vld [vmem:[#allocation13 + $0x130] sm:$0xff]
    %v8720 = vld [vmem:[#allocation13 + $0x138] sm:$0xff]
    %v8721 = vld [vmem:[#allocation13 + $0x140] sm:$0xff]
    %v8722 = vld [vmem:[#allocation13 + $0x148] sm:$0xff]
    %v8723 = vld [vmem:[#allocation13 + $0x150] sm:$0xff]
    %v8724 = vld [vmem:[#allocation13 + $0x158] sm:$0xff]
    %v8725 = vld [vmem:[#allocation13 + $0x160] sm:$0xff]
    %v8726 = vld [vmem:[#allocation13 + $0x168] sm:$0xff]
    %v8727 = vld [vmem:[#allocation13 + $0x170] sm:$0xff]
    %v8728 = vld [vmem:[#allocation13 + $0x178] sm:$0xff]
    %v8729 = vld [vmem:[#allocation13 + $0x180] sm:$0xff]
    %v8730 = vld [vmem:[#allocation13 + $0x188] sm:$0xff]
    %v8731 = vld [vmem:[#allocation13 + $0x190] sm:$0xff]
    %v8732 = vld [vmem:[#allocation13 + $0x198] sm:$0xff]
    %v8733 = vld [vmem:[#allocation13 + $0x1a0] sm:$0xff]
    %v8734 = vld [vmem:[#allocation13 + $0x1a8] sm:$0xff]
    %v8735 = vld [vmem:[#allocation13 + $0x1b0] sm:$0xff]
    %v8736 = vld [vmem:[#allocation13 + $0x1b8] sm:$0xff]
    %v8737 = vld [vmem:[#allocation13 + $0x1c0] sm:$0xff]
    %v8738 = vld [vmem:[#allocation13 + $0x1c8] sm:$0xff]
    %v8739 = vld [vmem:[#allocation13 + $0x1d0] sm:$0xff]
    %v8740 = vld [vmem:[#allocation13 + $0x1d8] sm:$0xff]
    %v8741 = vld [vmem:[#allocation13 + $0x1e0] sm:$0xff]
    %v8742 = vld [vmem:[#allocation13 + $0x1e8] sm:$0xff]
    %v8743 = vld [vmem:[#allocation13 + $0x1f0] sm:$0xff]
    %v8744 = vld [vmem:[#allocation13 + $0x1f8] sm:$0xff]
    %v8745 = vld [vmem:[#allocation13 + $0x200] sm:$0xff]
    %v8746 = vld [vmem:[#allocation13 + $0x208] sm:$0xff]
    %v8747 = vld [vmem:[#allocation13 + $0x210] sm:$0xff]
    %v8748 = vld [vmem:[#allocation13 + $0x218] sm:$0xff]
    %v8749 = vld [vmem:[#allocation13 + $0x220] sm:$0xff]
    %v8750 = vld [vmem:[#allocation13 + $0x228] sm:$0xff]
    %v8751 = vld [vmem:[#allocation13 + $0x230] sm:$0xff]
    %v8752 = vld [vmem:[#allocation13 + $0x238] sm:$0xff]
    %v8753 = vld [vmem:[#allocation13 + $0x240] sm:$0xff]
    %v8754 = vld [vmem:[#allocation13 + $0x248] sm:$0xff]
    %v8755 = vld [vmem:[#allocation13 + $0x250] sm:$0xff]
    %v8756 = vld [vmem:[#allocation13 + $0x258] sm:$0xff]
    %v8757 = vld [vmem:[#allocation13 + $0x260] sm:$0xff]
    %v8758 = vld [vmem:[#allocation13 + $0x268] sm:$0xff]
    %v8759 = vld [vmem:[#allocation13 + $0x270] sm:$0xff]
    %v8760 = vld [vmem:[#allocation13 + $0x278] sm:$0xff]
    %v8761 = vld [vmem:[#allocation13 + $0x280] sm:$0xff]
    %v8762 = vld [vmem:[#allocation13 + $0x288] sm:$0xff]
    %v8763 = vld [vmem:[#allocation13 + $0x290] sm:$0xff]
    %v8764 = vld [vmem:[#allocation13 + $0x298] sm:$0xff]
    %v8765 = vld [vmem:[#allocation13 + $0x2a0] sm:$0xff]
    %v8766 = vld [vmem:[#allocation13 + $0x2a8] sm:$0xff]
    %v8767 = vld [vmem:[#allocation13 + $0x2b0] sm:$0xff]
    %v8768 = vld [vmem:[#allocation13 + $0x2b8] sm:$0xff]
    %v8769 = vld [vmem:[#allocation13 + $0x2c0] sm:$0xff]
    %v8770 = vld [vmem:[#allocation13 + $0x2c8] sm:$0xff]
    %v8771 = vld [vmem:[#allocation13 + $0x2d0] sm:$0xff]
    %v8772 = vld [vmem:[#allocation13 + $0x2d8] sm:$0xff]
    %v8773 = vld [vmem:[#allocation13 + $0x2e0] sm:$0xff]
    %v8774 = vld [vmem:[#allocation13 + $0x2e8] sm:$0xff]
    %v8775 = vld [vmem:[#allocation13 + $0x2f0] sm:$0xff]
    %v8776 = vld [vmem:[#allocation13 + $0x2f8] sm:$0xff]
    %v8777 = vld [vmem:[#allocation13 + $0x300] sm:$0xff]
    %v8778 = vld [vmem:[#allocation13 + $0x308] sm:$0xff]
    %v8779 = vld [vmem:[#allocation13 + $0x310] sm:$0xff]
    %v8780 = vld [vmem:[#allocation13 + $0x318] sm:$0xff]
    %v8781 = vld [vmem:[#allocation13 + $0x320] sm:$0xff]
    %v8782 = vld [vmem:[#allocation13 + $0x328] sm:$0xff]
    %v8783 = vld [vmem:[#allocation13 + $0x330] sm:$0xff]
    %v8784 = vld [vmem:[#allocation13 + $0x338] sm:$0xff]
    %v8785 = vld [vmem:[#allocation13 + $0x340] sm:$0xff]
    %v8786 = vld [vmem:[#allocation13 + $0x348] sm:$0xff]
    %v8787 = vld [vmem:[#allocation13 + $0x350] sm:$0xff]
    %v8788 = vld [vmem:[#allocation13 + $0x358] sm:$0xff]
    %v8789 = vld [vmem:[#allocation13 + $0x360] sm:$0xff]
    %v8790 = vld [vmem:[#allocation13 + $0x368] sm:$0xff]
    %v8791 = vld [vmem:[#allocation13 + $0x370] sm:$0xff]
    %v8792 = vld [vmem:[#allocation13 + $0x378] sm:$0xff]
    %v8793 = vld [vmem:[#allocation13 + $0x380] sm:$0xff]
    %v8794 = vld [vmem:[#allocation13 + $0x388] sm:$0xff]
    %v8795 = vld [vmem:[#allocation13 + $0x390] sm:$0xff]
    %v8796 = vld [vmem:[#allocation13 + $0x398] sm:$0xff]
    %v8797 = vld [vmem:[#allocation13 + $0x3a0] sm:$0xff]
    %v8798 = vld [vmem:[#allocation13 + $0x3a8] sm:$0xff]
    %v8799 = vld [vmem:[#allocation13 + $0x3b0] sm:$0xff]
    %v8800 = vld [vmem:[#allocation13 + $0x3b8] sm:$0xff]
    %v8801 = vld [vmem:[#allocation13 + $0x3c0] sm:$0xff]
    %v8802 = vld [vmem:[#allocation13 + $0x3c8] sm:$0xff]
    %v8803 = vld [vmem:[#allocation13 + $0x3d0] sm:$0xff]
    %v8804 = vld [vmem:[#allocation13 + $0x3d8] sm:$0xff]
    %v8805 = vld [vmem:[#allocation13 + $0x3e0] sm:$0xff]
    %v8806 = vld [vmem:[#allocation13 + $0x3e8] sm:$0xff]
    %v8807 = vld [vmem:[#allocation13 + $0x3f0] sm:$0xff]
    %v8808 = vld [vmem:[#allocation13 + $0x3f8] sm:$0xff]
    %s8809 = scalar_lea.vmem [#allocation19], 1
    %v8810 = vld [vmem:[%s8809] ss:$8 sm:$0x3]
    %v8812 = vlaneseq
    %v8813 = vshrl.u32 %v8812, 7
    %v8814 = vsub.s32 0, %v8813
    %v8815 = vrot.slane %v8810, %v8814
    %v8816 = vlaneseq
    %v8817 = vshrl.u32 %v8816, 7
    %v8818 = vsub.s32 1, %v8817
    %v8819 = vrot.slane %v8810, %v8818
    %v8950 = vunpack.c.l.b16 %v8681
    %v8951 = vunpack.c.h.b16 %v8681
    %v8952 = vunpack.c.l.b16 %v8682
    %v8953 = vunpack.c.h.b16 %v8682
    %v8954 = vunpack.c.l.b16 %v8683
    %v8955 = vunpack.c.h.b16 %v8683
    %v8956 = vunpack.c.l.b16 %v8684
    %v8957 = vunpack.c.h.b16 %v8684
    %v8958 = vunpack.c.l.b16 %v8685
    %v8959 = vunpack.c.h.b16 %v8685
    %v8960 = vunpack.c.l.b16 %v8686
    %v8961 = vunpack.c.h.b16 %v8686
    %v8962 = vunpack.c.l.b16 %v8687
    %v8963 = vunpack.c.h.b16 %v8687
    %v8964 = vunpack.c.l.b16 %v8688
    %v8965 = vunpack.c.h.b16 %v8688
    %v8966 = vunpack.c.l.b16 %v8689
    %v8967 = vunpack.c.h.b16 %v8689
    %v8968 = vunpack.c.l.b16 %v8690
    %v8969 = vunpack.c.h.b16 %v8690
    %v8970 = vunpack.c.l.b16 %v8691
    %v8971 = vunpack.c.h.b16 %v8691
    %v8972 = vunpack.c.l.b16 %v8692
    %v8973 = vunpack.c.h.b16 %v8692
    %v8974 = vunpack.c.l.b16 %v8693
    %v8975 = vunpack.c.h.b16 %v8693
    %v8976 = vunpack.c.l.b16 %v8694
    %v8977 = vunpack.c.h.b16 %v8694
    %v8978 = vunpack.c.l.b16 %v8695
    %v8979 = vunpack.c.h.b16 %v8695
    %v8980 = vunpack.c.l.b16 %v8696
    %v8981 = vunpack.c.h.b16 %v8696
    %v8982 = vunpack.c.l.b16 %v8697
    %v8983 = vunpack.c.h.b16 %v8697
    %v8984 = vunpack.c.l.b16 %v8698
    %v8985 = vunpack.c.h.b16 %v8698
    %v8986 = vunpack.c.l.b16 %v8699
    %v8987 = vunpack.c.h.b16 %v8699
    %v8988 = vunpack.c.l.b16 %v8700
    %v8989 = vunpack.c.h.b16 %v8700
    %v8990 = vunpack.c.l.b16 %v8701
    %v8991 = vunpack.c.h.b16 %v8701
    %v8992 = vunpack.c.l.b16 %v8702
    %v8993 = vunpack.c.h.b16 %v8702
    %v8994 = vunpack.c.l.b16 %v8703
    %v8995 = vunpack.c.h.b16 %v8703
    %v8996 = vunpack.c.l.b16 %v8704
    %v8997 = vunpack.c.h.b16 %v8704
    %v8998 = vunpack.c.l.b16 %v8705
    %v8999 = vunpack.c.h.b16 %v8705
    %v9000 = vunpack.c.l.b16 %v8706
    %v9001 = vunpack.c.h.b16 %v8706
    %v9002 = vunpack.c.l.b16 %v8707
    %v9003 = vunpack.c.h.b16 %v8707
    %v9004 = vunpack.c.l.b16 %v8708
    %v9005 = vunpack.c.h.b16 %v8708
    %v9006 = vunpack.c.l.b16 %v8709
    %v9007 = vunpack.c.h.b16 %v8709
    %v9008 = vunpack.c.l.b16 %v8710
    %v9009 = vunpack.c.h.b16 %v8710
    %v9010 = vunpack.c.l.b16 %v8711
    %v9011 = vunpack.c.h.b16 %v8711
    %v9012 = vunpack.c.l.b16 %v8712
    %v9013 = vunpack.c.h.b16 %v8712
    %v9014 = vunpack.c.l.b16 %v8713
    %v9015 = vunpack.c.h.b16 %v8713
    %v9016 = vunpack.c.l.b16 %v8714
    %v9017 = vunpack.c.h.b16 %v8714
    %v9018 = vunpack.c.l.b16 %v8715
    %v9019 = vunpack.c.h.b16 %v8715
    %v9020 = vunpack.c.l.b16 %v8716
    %v9021 = vunpack.c.h.b16 %v8716
    %v9022 = vunpack.c.l.b16 %v8717
    %v9023 = vunpack.c.h.b16 %v8717
    %v9024 = vunpack.c.l.b16 %v8718
    %v9025 = vunpack.c.h.b16 %v8718
    %v9026 = vunpack.c.l.b16 %v8719
    %v9027 = vunpack.c.h.b16 %v8719
    %v9028 = vunpack.c.l.b16 %v8720
    %v9029 = vunpack.c.h.b16 %v8720
    %v9030 = vunpack.c.l.b16 %v8721
    %v9031 = vunpack.c.h.b16 %v8721
    %v9032 = vunpack.c.l.b16 %v8722
    %v9033 = vunpack.c.h.b16 %v8722
    %v9034 = vunpack.c.l.b16 %v8723
    %v9035 = vunpack.c.h.b16 %v8723
    %v9036 = vunpack.c.l.b16 %v8724
    %v9037 = vunpack.c.h.b16 %v8724
    %v9038 = vunpack.c.l.b16 %v8725
    %v9039 = vunpack.c.h.b16 %v8725
    %v9040 = vunpack.c.l.b16 %v8726
    %v9041 = vunpack.c.h.b16 %v8726
    %v9042 = vunpack.c.l.b16 %v8727
    %v9043 = vunpack.c.h.b16 %v8727
    %v9044 = vunpack.c.l.b16 %v8728
    %v9045 = vunpack.c.h.b16 %v8728
    %v9046 = vunpack.c.l.b16 %v8729
    %v9047 = vunpack.c.h.b16 %v8729
    %v9048 = vunpack.c.l.b16 %v8730
    %v9049 = vunpack.c.h.b16 %v8730
    %v9050 = vunpack.c.l.b16 %v8731
    %v9051 = vunpack.c.h.b16 %v8731
    %v9052 = vunpack.c.l.b16 %v8732
    %v9053 = vunpack.c.h.b16 %v8732
    %v9054 = vunpack.c.l.b16 %v8733
    %v9055 = vunpack.c.h.b16 %v8733
    %v9056 = vunpack.c.l.b16 %v8734
    %v9057 = vunpack.c.h.b16 %v8734
    %v9058 = vunpack.c.l.b16 %v8735
    %v9059 = vunpack.c.h.b16 %v8735
    %v9060 = vunpack.c.l.b16 %v8736
    %v9061 = vunpack.c.h.b16 %v8736
    %v9062 = vunpack.c.l.b16 %v8737
    %v9063 = vunpack.c.h.b16 %v8737
    %v9064 = vunpack.c.l.b16 %v8738
    %v9065 = vunpack.c.h.b16 %v8738
    %v9066 = vunpack.c.l.b16 %v8739
    %v9067 = vunpack.c.h.b16 %v8739
    %v9068 = vunpack.c.l.b16 %v8740
    %v9069 = vunpack.c.h.b16 %v8740
    %v9070 = vunpack.c.l.b16 %v8741
    %v9071 = vunpack.c.h.b16 %v8741
    %v9072 = vunpack.c.l.b16 %v8742
    %v9073 = vunpack.c.h.b16 %v8742
    %v9074 = vunpack.c.l.b16 %v8743
    %v9075 = vunpack.c.h.b16 %v8743
    %v9076 = vunpack.c.l.b16 %v8744
    %v9077 = vunpack.c.h.b16 %v8744
    %v9078 = vunpack.c.l.b16 %v8745
    %v9079 = vunpack.c.h.b16 %v8745
    %v9080 = vunpack.c.l.b16 %v8746
    %v9081 = vunpack.c.h.b16 %v8746
    %v9082 = vunpack.c.l.b16 %v8747
    %v9083 = vunpack.c.h.b16 %v8747
    %v9084 = vunpack.c.l.b16 %v8748
    %v9085 = vunpack.c.h.b16 %v8748
    %v9086 = vunpack.c.l.b16 %v8749
    %v9087 = vunpack.c.h.b16 %v8749
    %v9088 = vunpack.c.l.b16 %v8750
    %v9089 = vunpack.c.h.b16 %v8750
    %v9090 = vunpack.c.l.b16 %v8751
    %v9091 = vunpack.c.h.b16 %v8751
    %v9092 = vunpack.c.l.b16 %v8752
    %v9093 = vunpack.c.h.b16 %v8752
    %v9094 = vunpack.c.l.b16 %v8753
    %v9095 = vunpack.c.h.b16 %v8753
    %v9096 = vunpack.c.l.b16 %v8754
    %v9097 = vunpack.c.h.b16 %v8754
    %v9098 = vunpack.c.l.b16 %v8755
    %v9099 = vunpack.c.h.b16 %v8755
    %v9100 = vunpack.c.l.b16 %v8756
    %v9101 = vunpack.c.h.b16 %v8756
    %v9102 = vunpack.c.l.b16 %v8757
    %v9103 = vunpack.c.h.b16 %v8757
    %v9104 = vunpack.c.l.b16 %v8758
    %v9105 = vunpack.c.h.b16 %v8758
    %v9106 = vunpack.c.l.b16 %v8759
    %v9107 = vunpack.c.h.b16 %v8759
    %v9108 = vunpack.c.l.b16 %v8760
    %v9109 = vunpack.c.h.b16 %v8760
    %v9110 = vunpack.c.l.b16 %v8761
    %v9111 = vunpack.c.h.b16 %v8761
    %v9112 = vunpack.c.l.b16 %v8762
    %v9113 = vunpack.c.h.b16 %v8762
    %v9114 = vunpack.c.l.b16 %v8763
    %v9115 = vunpack.c.h.b16 %v8763
    %v9116 = vunpack.c.l.b16 %v8764
    %v9117 = vunpack.c.h.b16 %v8764
    %v9118 = vunpack.c.l.b16 %v8765
    %v9119 = vunpack.c.h.b16 %v8765
    %v9120 = vunpack.c.l.b16 %v8766
    %v9121 = vunpack.c.h.b16 %v8766
    %v9122 = vunpack.c.l.b16 %v8767
    %v9123 = vunpack.c.h.b16 %v8767
    %v9124 = vunpack.c.l.b16 %v8768
    %v9125 = vunpack.c.h.b16 %v8768
    %v9126 = vunpack.c.l.b16 %v8769
    %v9127 = vunpack.c.h.b16 %v8769
    %v9128 = vunpack.c.l.b16 %v8770
    %v9129 = vunpack.c.h.b16 %v8770
    %v9130 = vunpack.c.l.b16 %v8771
    %v9131 = vunpack.c.h.b16 %v8771
    %v9132 = vunpack.c.l.b16 %v8772
    %v9133 = vunpack.c.h.b16 %v8772
    %v9134 = vunpack.c.l.b16 %v8773
    %v9135 = vunpack.c.h.b16 %v8773
    %v9136 = vunpack.c.l.b16 %v8774
    %v9137 = vunpack.c.h.b16 %v8774
    %v9138 = vunpack.c.l.b16 %v8775
    %v9139 = vunpack.c.h.b16 %v8775
    %v9140 = vunpack.c.l.b16 %v8776
    %v9141 = vunpack.c.h.b16 %v8776
    %v9142 = vunpack.c.l.b16 %v8777
    %v9143 = vunpack.c.h.b16 %v8777
    %v9144 = vunpack.c.l.b16 %v8778
    %v9145 = vunpack.c.h.b16 %v8778
    %v9146 = vunpack.c.l.b16 %v8779
    %v9147 = vunpack.c.h.b16 %v8779
    %v9148 = vunpack.c.l.b16 %v8780
    %v9149 = vunpack.c.h.b16 %v8780
    %v9150 = vunpack.c.l.b16 %v8781
    %v9151 = vunpack.c.h.b16 %v8781
    %v9152 = vunpack.c.l.b16 %v8782
    %v9153 = vunpack.c.h.b16 %v8782
    %v9154 = vunpack.c.l.b16 %v8783
    %v9155 = vunpack.c.h.b16 %v8783
    %v9156 = vunpack.c.l.b16 %v8784
    %v9157 = vunpack.c.h.b16 %v8784
    %v9158 = vunpack.c.l.b16 %v8785
    %v9159 = vunpack.c.h.b16 %v8785
    %v9160 = vunpack.c.l.b16 %v8786
    %v9161 = vunpack.c.h.b16 %v8786
    %v9162 = vunpack.c.l.b16 %v8787
    %v9163 = vunpack.c.h.b16 %v8787
    %v9164 = vunpack.c.l.b16 %v8788
    %v9165 = vunpack.c.h.b16 %v8788
    %v9166 = vunpack.c.l.b16 %v8789
    %v9167 = vunpack.c.h.b16 %v8789
    %v9168 = vunpack.c.l.b16 %v8790
    %v9169 = vunpack.c.h.b16 %v8790
    %v9170 = vunpack.c.l.b16 %v8791
    %v9171 = vunpack.c.h.b16 %v8791
    %v9172 = vunpack.c.l.b16 %v8792
    %v9173 = vunpack.c.h.b16 %v8792
    %v9174 = vunpack.c.l.b16 %v8793
    %v9175 = vunpack.c.h.b16 %v8793
    %v9176 = vunpack.c.l.b16 %v8794
    %v9177 = vunpack.c.h.b16 %v8794
    %v9178 = vunpack.c.l.b16 %v8795
    %v9179 = vunpack.c.h.b16 %v8795
    %v9180 = vunpack.c.l.b16 %v8796
    %v9181 = vunpack.c.h.b16 %v8796
    %v9182 = vunpack.c.l.b16 %v8797
    %v9183 = vunpack.c.h.b16 %v8797
    %v9184 = vunpack.c.l.b16 %v8798
    %v9185 = vunpack.c.h.b16 %v8798
    %v9186 = vunpack.c.l.b16 %v8799
    %v9187 = vunpack.c.h.b16 %v8799
    %v9188 = vunpack.c.l.b16 %v8800
    %v9189 = vunpack.c.h.b16 %v8800
    %v9190 = vunpack.c.l.b16 %v8801
    %v9191 = vunpack.c.h.b16 %v8801
    %v9192 = vunpack.c.l.b16 %v8802
    %v9193 = vunpack.c.h.b16 %v8802
    %v9194 = vunpack.c.l.b16 %v8803
    %v9195 = vunpack.c.h.b16 %v8803
    %v9196 = vunpack.c.l.b16 %v8804
    %v9197 = vunpack.c.h.b16 %v8804
    %v9198 = vunpack.c.l.b16 %v8805
    %v9199 = vunpack.c.h.b16 %v8805
    %v9200 = vunpack.c.l.b16 %v8806
    %v9201 = vunpack.c.h.b16 %v8806
    %v9202 = vunpack.c.l.b16 %v8807
    %v9203 = vunpack.c.h.b16 %v8807
    %v9204 = vunpack.c.l.b16 %v8808
    %v9205 = vunpack.c.h.b16 %v8808
    %v9206 = vpack.c.b16 %v8952, %v8950
    %v9207 = vpack.c.b16 %v8953, %v8951
    %v9208 = vpack.c.b16 %v8956, %v8954
    %v9209 = vpack.c.b16 %v8957, %v8955
    %v9210 = vpack.c.b16 %v8960, %v8958
    %v9211 = vpack.c.b16 %v8961, %v8959
    %v9212 = vpack.c.b16 %v8964, %v8962
    %v9213 = vpack.c.b16 %v8965, %v8963
    %v9214 = vpack.c.b16 %v8968, %v8966
    %v9215 = vpack.c.b16 %v8969, %v8967
    %v9216 = vpack.c.b16 %v8972, %v8970
    %v9217 = vpack.c.b16 %v8973, %v8971
    %v9218 = vpack.c.b16 %v8976, %v8974
    %v9219 = vpack.c.b16 %v8977, %v8975
    %v9220 = vpack.c.b16 %v8980, %v8978
    %v9221 = vpack.c.b16 %v8981, %v8979
    %v9222 = vpack.c.b16 %v8984, %v8982
    %v9223 = vpack.c.b16 %v8985, %v8983
    %v9224 = vpack.c.b16 %v8988, %v8986
    %v9225 = vpack.c.b16 %v8989, %v8987
    %v9226 = vpack.c.b16 %v8992, %v8990
    %v9227 = vpack.c.b16 %v8993, %v8991
    %v9228 = vpack.c.b16 %v8996, %v8994
    %v9229 = vpack.c.b16 %v8997, %v8995
    %v9230 = vpack.c.b16 %v9000, %v8998
    %v9231 = vpack.c.b16 %v9001, %v8999
    %v9232 = vpack.c.b16 %v9004, %v9002
    %v9233 = vpack.c.b16 %v9005, %v9003
    %v9234 = vpack.c.b16 %v9008, %v9006
    %v9235 = vpack.c.b16 %v9009, %v9007
    %v9236 = vpack.c.b16 %v9012, %v9010
    %v9237 = vpack.c.b16 %v9013, %v9011
    %v9238 = vpack.c.b16 %v9016, %v9014
    %v9239 = vpack.c.b16 %v9017, %v9015
    %v9240 = vpack.c.b16 %v9020, %v9018
    %v9241 = vpack.c.b16 %v9021, %v9019
    %v9242 = vpack.c.b16 %v9024, %v9022
    %v9243 = vpack.c.b16 %v9025, %v9023
    %v9244 = vpack.c.b16 %v9028, %v9026
    %v9245 = vpack.c.b16 %v9029, %v9027
    %v9246 = vpack.c.b16 %v9032, %v9030
    %v9247 = vpack.c.b16 %v9033, %v9031
    %v9248 = vpack.c.b16 %v9036, %v9034
    %v9249 = vpack.c.b16 %v9037, %v9035
    %v9250 = vpack.c.b16 %v9040, %v9038
    %v9251 = vpack.c.b16 %v9041, %v9039
    %v9252 = vpack.c.b16 %v9044, %v9042
    %v9253 = vpack.c.b16 %v9045, %v9043
    %v9254 = vpack.c.b16 %v9048, %v9046
    %v9255 = vpack.c.b16 %v9049, %v9047
    %v9256 = vpack.c.b16 %v9052, %v9050
    %v9257 = vpack.c.b16 %v9053, %v9051
    %v9258 = vpack.c.b16 %v9056, %v9054
    %v9259 = vpack.c.b16 %v9057, %v9055
    %v9260 = vpack.c.b16 %v9060, %v9058
    %v9261 = vpack.c.b16 %v9061, %v9059
    %v9262 = vpack.c.b16 %v9064, %v9062
    %v9263 = vpack.c.b16 %v9065, %v9063
    %v9264 = vpack.c.b16 %v9068, %v9066
    %v9265 = vpack.c.b16 %v9069, %v9067
    %v9266 = vpack.c.b16 %v9072, %v9070
    %v9267 = vpack.c.b16 %v9073, %v9071
    %v9268 = vpack.c.b16 %v9076, %v9074
    %v9269 = vpack.c.b16 %v9077, %v9075
    %v9270 = vpack.c.b16 %v9080, %v9078
    %v9271 = vpack.c.b16 %v9081, %v9079
    %v9272 = vpack.c.b16 %v9084, %v9082
    %v9273 = vpack.c.b16 %v9085, %v9083
    %v9274 = vpack.c.b16 %v9088, %v9086
    %v9275 = vpack.c.b16 %v9089, %v9087
    %v9276 = vpack.c.b16 %v9092, %v9090
    %v9277 = vpack.c.b16 %v9093, %v9091
    %v9278 = vpack.c.b16 %v9096, %v9094
    %v9279 = vpack.c.b16 %v9097, %v9095
    %v9280 = vpack.c.b16 %v9100, %v9098
    %v9281 = vpack.c.b16 %v9101, %v9099
    %v9282 = vpack.c.b16 %v9104, %v9102
    %v9283 = vpack.c.b16 %v9105, %v9103
    %v9284 = vpack.c.b16 %v9108, %v9106
    %v9285 = vpack.c.b16 %v9109, %v9107
    %v9286 = vpack.c.b16 %v9112, %v9110
    %v9287 = vpack.c.b16 %v9113, %v9111
    %v9288 = vpack.c.b16 %v9116, %v9114
    %v9289 = vpack.c.b16 %v9117, %v9115
    %v9290 = vpack.c.b16 %v9120, %v9118
    %v9291 = vpack.c.b16 %v9121, %v9119
    %v9292 = vpack.c.b16 %v9124, %v9122
    %v9293 = vpack.c.b16 %v9125, %v9123
    %v9294 = vpack.c.b16 %v9128, %v9126
    %v9295 = vpack.c.b16 %v9129, %v9127
    %v9296 = vpack.c.b16 %v9132, %v9130
    %v9297 = vpack.c.b16 %v9133, %v9131
    %v9298 = vpack.c.b16 %v9136, %v9134
    %v9299 = vpack.c.b16 %v9137, %v9135
    %v9300 = vpack.c.b16 %v9140, %v9138
    %v9301 = vpack.c.b16 %v9141, %v9139
    %v9302 = vpack.c.b16 %v9144, %v9142
    %v9303 = vpack.c.b16 %v9145, %v9143
    %v9304 = vpack.c.b16 %v9148, %v9146
    %v9305 = vpack.c.b16 %v9149, %v9147
    %v9306 = vpack.c.b16 %v9152, %v9150
    %v9307 = vpack.c.b16 %v9153, %v9151
    %v9308 = vpack.c.b16 %v9156, %v9154
    %v9309 = vpack.c.b16 %v9157, %v9155
    %v9310 = vpack.c.b16 %v9160, %v9158
    %v9311 = vpack.c.b16 %v9161, %v9159
    %v9312 = vpack.c.b16 %v9164, %v9162
    %v9313 = vpack.c.b16 %v9165, %v9163
    %v9314 = vpack.c.b16 %v9168, %v9166
    %v9315 = vpack.c.b16 %v9169, %v9167
    %v9316 = vpack.c.b16 %v9172, %v9170
    %v9317 = vpack.c.b16 %v9173, %v9171
    %v9318 = vpack.c.b16 %v9176, %v9174
    %v9319 = vpack.c.b16 %v9177, %v9175
    %v9320 = vpack.c.b16 %v9180, %v9178
    %v9321 = vpack.c.b16 %v9181, %v9179
    %v9322 = vpack.c.b16 %v9184, %v9182
    %v9323 = vpack.c.b16 %v9185, %v9183
    %v9324 = vpack.c.b16 %v9188, %v9186
    %v9325 = vpack.c.b16 %v9189, %v9187
    %v9326 = vpack.c.b16 %v9192, %v9190
    %v9327 = vpack.c.b16 %v9193, %v9191
    %v9328 = vpack.c.b16 %v9196, %v9194
    %v9329 = vpack.c.b16 %v9197, %v9195
    %v9330 = vpack.c.b16 %v9200, %v9198
    %v9331 = vpack.c.b16 %v9201, %v9199
    %v9332 = vpack.c.b16 %v9204, %v9202
    %v9333 = vpack.c.b16 %v9205, %v9203
    %9462 = vmatprep.subr.bf16.mxu0 %v9207
    %9463 = vmatpush1.bf16.msra.mxu0 %v9206
    %9464 = vmatprep.subr.bf16.mxu0 %v9209
    %9465 = vmatpush1.bf16.msra.mxu0 %v9208
    %9466 = vmatprep.subr.bf16.mxu0 %v9211
    %9467 = vmatpush1.bf16.msra.mxu0 %v9210
    %9468 = vmatprep.subr.bf16.mxu0 %v9213
    %9469 = vmatpush1.bf16.msra.mxu0 %v9212
    %9470 = vmatprep.subr.bf16.mxu0 %v9215
    %9471 = vmatpush1.bf16.msra.mxu0 %v9214
    %9472 = vmatprep.subr.bf16.mxu0 %v9217
    %9473 = vmatpush1.bf16.msra.mxu0 %v9216
    %9474 = vmatprep.subr.bf16.mxu0 %v9219
    %9475 = vmatpush1.bf16.msra.mxu0 %v9218
    %9476 = vmatprep.subr.bf16.mxu0 %v9221
    %9477 = vmatpush1.bf16.msra.mxu0 %v9220
    %9478 = vmatprep.subr.bf16.mxu0 %v9223
    %9479 = vmatpush1.bf16.msra.mxu0 %v9222
    %9480 = vmatprep.subr.bf16.mxu0 %v9225
    %9481 = vmatpush1.bf16.msra.mxu0 %v9224
    %9482 = vmatprep.subr.bf16.mxu0 %v9227
    %9483 = vmatpush1.bf16.msra.mxu0 %v9226
    %9484 = vmatprep.subr.bf16.mxu0 %v9229
    %9485 = vmatpush1.bf16.msra.mxu0 %v9228
    %9486 = vmatprep.subr.bf16.mxu0 %v9231
    %9487 = vmatpush1.bf16.msra.mxu0 %v9230
    %9488 = vmatprep.subr.bf16.mxu0 %v9233
    %9489 = vmatpush1.bf16.msra.mxu0 %v9232
    %9490 = vmatprep.subr.bf16.mxu0 %v9235
    %9491 = vmatpush1.bf16.msra.mxu0 %v9234
    %9492 = vmatprep.subr.bf16.mxu0 %v9237
    %9493 = vmatpush1.bf16.msra.mxu0 %v9236
    %9494 = vmatprep.mubr.bf16.mxu0 %v8674
    %9495 = vmatmul.mubr.bf16.gmra.mrb[0].mxu0 %v8673
    %v9496 = vpop.f32.mrb[0].mxu0
    %v9497 = vadd.f32 %v8815, %v9496
    %v9498 = vpop.f32.mrb[0].mxu0
    %v9499 = vadd.f32 %v8819, %v9498
    %v9500 = vpop.f32.mrb[0].mxu0
    %v9501 = vpop.f32.mrb[0].mxu0
    %9502 = vdwg.mxu0
    %9503 = vmatprep.subr.bf16.mxu0 %v9239
    %9504 = vmatpush1.bf16.msra.mxu0 %v9238
    %9505 = vmatprep.subr.bf16.mxu0 %v9241
    %9506 = vmatpush1.bf16.msra.mxu0 %v9240
    %9507 = vmatprep.subr.bf16.mxu0 %v9243
    %9508 = vmatpush1.bf16.msra.mxu0 %v9242
    %9509 = vmatprep.subr.bf16.mxu0 %v9245
    %9510 = vmatpush1.bf16.msra.mxu0 %v9244
    %9511 = vmatprep.subr.bf16.mxu0 %v9247
    %9512 = vmatpush1.bf16.msra.mxu0 %v9246
    %9513 = vmatprep.subr.bf16.mxu0 %v9249
    %9514 = vmatpush1.bf16.msra.mxu0 %v9248
    %9515 = vmatprep.subr.bf16.mxu0 %v9251
    %9516 = vmatpush1.bf16.msra.mxu0 %v9250
    %9517 = vmatprep.subr.bf16.mxu0 %v9253
    %9518 = vmatpush1.bf16.msra.mxu0 %v9252
    %9519 = vmatprep.subr.bf16.mxu0 %v9255
    %9520 = vmatpush1.bf16.msra.mxu0 %v9254
    %9521 = vmatprep.subr.bf16.mxu0 %v9257
    %9522 = vmatpush1.bf16.msra.mxu0 %v9256
    %9523 = vmatprep.subr.bf16.mxu0 %v9259
    %9524 = vmatpush1.bf16.msra.mxu0 %v9258
    %9525 = vmatprep.subr.bf16.mxu0 %v9261
    %9526 = vmatpush1.bf16.msra.mxu0 %v9260
    %9527 = vmatprep.subr.bf16.mxu0 %v9263
    %9528 = vmatpush1.bf16.msra.mxu0 %v9262
    %9529 = vmatprep.subr.bf16.mxu0 %v9265
    %9530 = vmatpush1.bf16.msra.mxu0 %v9264
    %9531 = vmatprep.subr.bf16.mxu0 %v9267
    %9532 = vmatpush1.bf16.msra.mxu0 %v9266
    %9533 = vmatprep.subr.bf16.mxu0 %v9269
    %9534 = vmatpush1.bf16.msra.mxu0 %v9268
    %9535 = vmatprep.mubr.bf16.mxu0 %v8676
    %9536 = vmatmul.mubr.bf16.gmra.mrb[0].mxu0 %v8675
    %v9537 = vpop.f32.mrb[0].mxu0
    %v9538 = vadd.f32 %v9497, %v9537
    %v9539 = vpop.f32.mrb[0].mxu0
    %v9540 = vadd.f32 %v9499, %v9539
    %v9541 = vpop.f32.mrb[0].mxu0
    %v9542 = vpop.f32.mrb[0].mxu0
    %9543 = vdwg.mxu0
    %9544 = vmatprep.subr.bf16.mxu0 %v9271
    %9545 = vmatpush1.bf16.msra.mxu0 %v9270
    %9546 = vmatprep.subr.bf16.mxu0 %v9273
    %9547 = vmatpush1.bf16.msra.mxu0 %v9272
    %9548 = vmatprep.subr.bf16.mxu0 %v9275
    %9549 = vmatpush1.bf16.msra.mxu0 %v9274
    %9550 = vmatprep.subr.bf16.mxu0 %v9277
    %9551 = vmatpush1.bf16.msra.mxu0 %v9276
    %9552 = vmatprep.subr.bf16.mxu0 %v9279
    %9553 = vmatpush1.bf16.msra.mxu0 %v9278
    %9554 = vmatprep.subr.bf16.mxu0 %v9281
    %9555 = vmatpush1.bf16.msra.mxu0 %v9280
    %9556 = vmatprep.subr.bf16.mxu0 %v9283
    %9557 = vmatpush1.bf16.msra.mxu0 %v9282
    %9558 = vmatprep.subr.bf16.mxu0 %v9285
    %9559 = vmatpush1.bf16.msra.mxu0 %v9284
    %9560 = vmatprep.subr.bf16.mxu0 %v9287
    %9561 = vmatpush1.bf16.msra.mxu0 %v9286
    %9562 = vmatprep.subr.bf16.mxu0 %v9289
    %9563 = vmatpush1.bf16.msra.mxu0 %v9288
    %9564 = vmatprep.subr.bf16.mxu0 %v9291
    %9565 = vmatpush1.bf16.msra.mxu0 %v9290
    %9566 = vmatprep.subr.bf16.mxu0 %v9293
    %9567 = vmatpush1.bf16.msra.mxu0 %v9292
    %9568 = vmatprep.subr.bf16.mxu0 %v9295
    %9569 = vmatpush1.bf16.msra.mxu0 %v9294
    %9570 = vmatprep.subr.bf16.mxu0 %v9297
    %9571 = vmatpush1.bf16.msra.mxu0 %v9296
    %9572 = vmatprep.subr.bf16.mxu0 %v9299
    %9573 = vmatpush1.bf16.msra.mxu0 %v9298
    %9574 = vmatprep.subr.bf16.mxu0 %v9301
    %9575 = vmatpush1.bf16.msra.mxu0 %v9300
    %9576 = vmatprep.mubr.bf16.mxu0 %v8678
    %9577 = vmatmul.mubr.bf16.gmra.mrb[0].mxu0 %v8677
    %v9578 = vpop.f32.mrb[0].mxu0
    %v9579 = vadd.f32 %v9538, %v9578
    %v9580 = vpop.f32.mrb[0].mxu0
    %v9581 = vadd.f32 %v9540, %v9580
    %v9582 = vpop.f32.mrb[0].mxu0
    %v9583 = vpop.f32.mrb[0].mxu0
    %9584 = vdwg.mxu0
    %9585 = vmatprep.subr.bf16.mxu0 %v9303
    %9586 = vmatpush1.bf16.msra.mxu0 %v9302
    %9587 = vmatprep.subr.bf16.mxu0 %v9305
    %9588 = vmatpush1.bf16.msra.mxu0 %v9304
    %9589 = vmatprep.subr.bf16.mxu0 %v9307
    %9590 = vmatpush1.bf16.msra.mxu0 %v9306
    %9591 = vmatprep.subr.bf16.mxu0 %v9309
    %9592 = vmatpush1.bf16.msra.mxu0 %v9308
    %9593 = vmatprep.subr.bf16.mxu0 %v9311
    %9594 = vmatpush1.bf16.msra.mxu0 %v9310
    %9595 = vmatprep.subr.bf16.mxu0 %v9313
    %9596 = vmatpush1.bf16.msra.mxu0 %v9312
    %9597 = vmatprep.subr.bf16.mxu0 %v9315
    %9598 = vmatpush1.bf16.msra.mxu0 %v9314
    %9599 = vmatprep.subr.bf16.mxu0 %v9317
    %9600 = vmatpush1.bf16.msra.mxu0 %v9316
    %9601 = vmatprep.subr.bf16.mxu0 %v9319
    %9602 = vmatpush1.bf16.msra.mxu0 %v9318
    %9603 = vmatprep.subr.bf16.mxu0 %v9321
    %9604 = vmatpush1.bf16.msra.mxu0 %v9320
    %9605 = vmatprep.subr.bf16.mxu0 %v9323
    %9606 = vmatpush1.bf16.msra.mxu0 %v9322
    %9607 = vmatprep.subr.bf16.mxu0 %v9325
    %9608 = vmatpush1.bf16.msra.mxu0 %v9324
    %9609 = vmatprep.subr.bf16.mxu0 %v9327
    %9610 = vmatpush1.bf16.msra.mxu0 %v9326
    %9611 = vmatprep.subr.bf16.mxu0 %v9329
    %9612 = vmatpush1.bf16.msra.mxu0 %v9328
    %9613 = vmatprep.subr.bf16.mxu0 %v9331
    %9614 = vmatpush1.bf16.msra.mxu0 %v9330
    %9615 = vmatprep.subr.bf16.mxu0 %v9333
    %9616 = vmatpush1.bf16.msra.mxu0 %v9332
    %9617 = vmatprep.mubr.bf16.mxu0 %v8680
    %9618 = vmatmul.mubr.bf16.gmra.mrb[0].mxu0 %v8679
    %v9619 = vpop.f32.mrb[0].mxu0
    %v9620 = vadd.f32 %v9579, %v9619
    %v9621 = vpop.f32.mrb[0].mxu0
    %v9622 = vadd.f32 %v9581, %v9621
    %v9623 = vpop.f32.mrb[0].mxu0
    %v9624 = vpop.f32.mrb[0].mxu0
    %9625 = vdwg.mxu0
    %v9626 = vmax.f32 %v9620, 0.0
    %v9627 = vmax.f32 %v9622, 0.0
    %v9628 = vpack.c.bf16 %v9626, %v9626
    %v9629 = vpack.c.bf16 %v9627, %v9627
    %v9630 = vld [vmem:[#allocation14] sm:$0xf]
    %v9631 = vld [vmem:[#allocation14 + $0x4] sm:$0xf]
    %v9632 = vld [vmem:[#allocation14 + $0x8] sm:$0xf]
    %v9633 = vld [vmem:[#allocation14 + $0xc] sm:$0xf]
    %v9634 = vld [vmem:[#allocation14 + $0x10] sm:$0xf]
    %v9635 = vld [vmem:[#allocation14 + $0x14] sm:$0xf]
    %v9636 = vld [vmem:[#allocation14 + $0x18] sm:$0xf]
    %v9637 = vld [vmem:[#allocation14 + $0x1c] sm:$0xf]
    %v9638 = vld [vmem:[#allocation14 + $0x20] sm:$0xf]
    %v9639 = vld [vmem:[#allocation14 + $0x24] sm:$0xf]
    %v9640 = vld [vmem:[#allocation14 + $0x28] sm:$0xf]
    %v9641 = vld [vmem:[#allocation14 + $0x2c] sm:$0xf]
    %v9642 = vld [vmem:[#allocation14 + $0x30] sm:$0xf]
    %v9643 = vld [vmem:[#allocation14 + $0x34] sm:$0xf]
    %v9644 = vld [vmem:[#allocation14 + $0x38] sm:$0xf]
    %v9645 = vld [vmem:[#allocation14 + $0x3c] sm:$0xf]
    %v9646 = vld [vmem:[#allocation14 + $0x40] sm:$0xf]
    %v9647 = vld [vmem:[#allocation14 + $0x44] sm:$0xf]
    %v9648 = vld [vmem:[#allocation14 + $0x48] sm:$0xf]
    %v9649 = vld [vmem:[#allocation14 + $0x4c] sm:$0xf]
    %v9650 = vld [vmem:[#allocation14 + $0x50] sm:$0xf]
    %v9651 = vld [vmem:[#allocation14 + $0x54] sm:$0xf]
    %v9652 = vld [vmem:[#allocation14 + $0x58] sm:$0xf]
    %v9653 = vld [vmem:[#allocation14 + $0x5c] sm:$0xf]
    %v9654 = vld [vmem:[#allocation14 + $0x60] sm:$0xf]
    %v9655 = vld [vmem:[#allocation14 + $0x64] sm:$0xf]
    %v9656 = vld [vmem:[#allocation14 + $0x68] sm:$0xf]
    %v9657 = vld [vmem:[#allocation14 + $0x6c] sm:$0xf]
    %v9658 = vld [vmem:[#allocation14 + $0x70] sm:$0xf]
    %v9659 = vld [vmem:[#allocation14 + $0x74] sm:$0xf]
    %v9660 = vld [vmem:[#allocation14 + $0x78] sm:$0xf]
    %v9661 = vld [vmem:[#allocation14 + $0x7c] sm:$0xf]
    %v9662 = vld [vmem:[#allocation19 + $0x2] ss:$0 sm:$0xff]
    %v9695 = vunpack.c.l.b16 %v9630
    %v9696 = vunpack.c.l.b16 %v9631
    %v9697 = vunpack.c.l.b16 %v9632
    %v9698 = vunpack.c.l.b16 %v9633
    %v9699 = vunpack.c.l.b16 %v9634
    %v9700 = vunpack.c.l.b16 %v9635
    %v9701 = vunpack.c.l.b16 %v9636
    %v9702 = vunpack.c.l.b16 %v9637
    %v9703 = vunpack.c.l.b16 %v9638
    %v9704 = vunpack.c.l.b16 %v9639
    %v9705 = vunpack.c.l.b16 %v9640
    %v9706 = vunpack.c.l.b16 %v9641
    %v9707 = vunpack.c.l.b16 %v9642
    %v9708 = vunpack.c.l.b16 %v9643
    %v9709 = vunpack.c.l.b16 %v9644
    %v9710 = vunpack.c.l.b16 %v9645
    %v9711 = vunpack.c.l.b16 %v9646
    %v9712 = vunpack.c.l.b16 %v9647
    %v9713 = vunpack.c.l.b16 %v9648
    %v9714 = vunpack.c.l.b16 %v9649
    %v9715 = vunpack.c.l.b16 %v9650
    %v9716 = vunpack.c.l.b16 %v9651
    %v9717 = vunpack.c.l.b16 %v9652
    %v9718 = vunpack.c.l.b16 %v9653
    %v9719 = vunpack.c.l.b16 %v9654
    %v9720 = vunpack.c.l.b16 %v9655
    %v9721 = vunpack.c.l.b16 %v9656
    %v9722 = vunpack.c.l.b16 %v9657
    %v9723 = vunpack.c.l.b16 %v9658
    %v9724 = vunpack.c.l.b16 %v9659
    %v9725 = vunpack.c.l.b16 %v9660
    %v9726 = vunpack.c.l.b16 %v9661
    %v9727 = vpack.c.b16 %v9696, %v9695
    %v9728 = vpack.c.b16 %v9698, %v9697
    %v9729 = vpack.c.b16 %v9700, %v9699
    %v9730 = vpack.c.b16 %v9702, %v9701
    %v9731 = vpack.c.b16 %v9704, %v9703
    %v9732 = vpack.c.b16 %v9706, %v9705
    %v9733 = vpack.c.b16 %v9708, %v9707
    %v9734 = vpack.c.b16 %v9710, %v9709
    %v9735 = vpack.c.b16 %v9712, %v9711
    %v9736 = vpack.c.b16 %v9714, %v9713
    %v9737 = vpack.c.b16 %v9716, %v9715
    %v9738 = vpack.c.b16 %v9718, %v9717
    %v9739 = vpack.c.b16 %v9720, %v9719
    %v9740 = vpack.c.b16 %v9722, %v9721
    %v9741 = vpack.c.b16 %v9724, %v9723
    %v9742 = vpack.c.b16 %v9726, %v9725
    %9759 = vmatprep.subr.bf16.mxu0 0
    %9760 = vmatpush1.bf16.msra.mxu0 %v9727
    %9761 = vmatprep.subr.bf16.mxu0 0
    %9762 = vmatpush1.bf16.msra.mxu0 %v9728
    %9763 = vmatprep.subr.bf16.mxu0 0
    %9764 = vmatpush1.bf16.msra.mxu0 %v9729
    %9765 = vmatprep.subr.bf16.mxu0 0
    %9766 = vmatpush1.bf16.msra.mxu0 %v9730
    %9767 = vmatprep.subr.bf16.mxu0 0
    %9768 = vmatpush1.bf16.msra.mxu0 %v9731
    %9769 = vmatprep.subr.bf16.mxu0 0
    %9770 = vmatpush1.bf16.msra.mxu0 %v9732
    %9771 = vmatprep.subr.bf16.mxu0 0
    %9772 = vmatpush1.bf16.msra.mxu0 %v9733
    %9773 = vmatprep.subr.bf16.mxu0 0
    %9774 = vmatpush1.bf16.msra.mxu0 %v9734
    %9775 = vmatprep.subr.bf16.mxu0 0
    %9776 = vmatpush1.bf16.msra.mxu0 %v9735
    %9777 = vmatprep.subr.bf16.mxu0 0
    %9778 = vmatpush1.bf16.msra.mxu0 %v9736
    %9779 = vmatprep.subr.bf16.mxu0 0
    %9780 = vmatpush1.bf16.msra.mxu0 %v9737
    %9781 = vmatprep.subr.bf16.mxu0 0
    %9782 = vmatpush1.bf16.msra.mxu0 %v9738
    %9783 = vmatprep.subr.bf16.mxu0 0
    %9784 = vmatpush1.bf16.msra.mxu0 %v9739
    %9785 = vmatprep.subr.bf16.mxu0 0
    %9786 = vmatpush1.bf16.msra.mxu0 %v9740
    %9787 = vmatprep.subr.bf16.mxu0 0
    %9788 = vmatpush1.bf16.msra.mxu0 %v9741
    %9789 = vmatprep.subr.bf16.mxu0 0
    %9790 = vmatpush1.bf16.msra.mxu0 %v9742
    %9791 = vmatprep.mubr.bf16.mxu0 %v9629
    %9792 = vmatmul.mubr.bf16.gmra.mrb[0].mxu0 %v9628
    %v9793 = vpop.f32.mrb[0].mxu0
    %v9794 = vadd.f32 %v9662, %v9793
    %v9795 = vpop.f32.mrb[0].mxu0
    %v9796 = vpop.f32.mrb[0].mxu0
    %v9797 = vpop.f32.mrb[0].mxu0
    %9798 = vdwg.mxu0
    %v9799 = vmax.f32 %v9794, 0.0
    %v9800 = vpack.c.bf16 %v9799, %v9799
    %v9801 = vld [vmem:[#allocation16] sm:$0xf]
    %v9802 = vld [vmem:[#allocation16 + $0x4] sm:$0xf]
    %v9803 = vld [vmem:[#allocation16 + $0x8] sm:$0xf]
    %v9804 = vld [vmem:[#allocation16 + $0xc] sm:$0xf]
    %v9805 = vld [vmem:[#allocation16 + $0x10] sm:$0xf]
    %v9806 = vld [vmem:[#allocation16 + $0x14] sm:$0xf]
    %v9807 = vld [vmem:[#allocation16 + $0x18] sm:$0xf]
    %v9808 = vld [vmem:[#allocation16 + $0x1c] sm:$0xf]
    %v9809 = vld [vmem:[#allocation16 + $0x20] sm:$0xf]
    %v9810 = vld [vmem:[#allocation16 + $0x24] sm:$0xf]
    %v9811 = vld [vmem:[#allocation16 + $0x28] sm:$0xf]
    %v9812 = vld [vmem:[#allocation16 + $0x2c] sm:$0xf]
    %v9813 = vld [vmem:[#allocation16 + $0x30] sm:$0xf]
    %v9814 = vld [vmem:[#allocation16 + $0x34] sm:$0xf]
    %v9815 = vld [vmem:[#allocation16 + $0x38] sm:$0xf]
    %v9816 = vld [vmem:[#allocation16 + $0x3c] sm:$0xf]
    %v9817 = vld [vmem:[#allocation19 + $0x3] ss:$0 sm:$0xff]
    %v9834 = vunpack.c.l.b16 %v9801
    %v9835 = vunpack.c.l.b16 %v9802
    %v9836 = vunpack.c.l.b16 %v9803
    %v9837 = vunpack.c.l.b16 %v9804
    %v9838 = vunpack.c.l.b16 %v9805
    %v9839 = vunpack.c.l.b16 %v9806
    %v9840 = vunpack.c.l.b16 %v9807
    %v9841 = vunpack.c.l.b16 %v9808
    %v9842 = vunpack.c.l.b16 %v9809
    %v9843 = vunpack.c.l.b16 %v9810
    %v9844 = vunpack.c.l.b16 %v9811
    %v9845 = vunpack.c.l.b16 %v9812
    %v9846 = vunpack.c.l.b16 %v9813
    %v9847 = vunpack.c.l.b16 %v9814
    %v9848 = vunpack.c.l.b16 %v9815
    %v9849 = vunpack.c.l.b16 %v9816
    %v9850 = vpack.c.b16 %v9835, %v9834
    %v9851 = vpack.c.b16 %v9837, %v9836
    %v9852 = vpack.c.b16 %v9839, %v9838
    %v9853 = vpack.c.b16 %v9841, %v9840
    %v9854 = vpack.c.b16 %v9843, %v9842
    %v9855 = vpack.c.b16 %v9845, %v9844
    %v9856 = vpack.c.b16 %v9847, %v9846
    %v9857 = vpack.c.b16 %v9849, %v9848
    %9866 = vmatprep.subr.bf16.mxu0 0
    %9867 = vmatpush1.bf16.msra.mxu0 %v9850
    %9868 = vmatprep.subr.bf16.mxu0 0
    %9869 = vmatpush1.bf16.msra.mxu0 %v9851
    %9870 = vmatprep.subr.bf16.mxu0 0
    %9871 = vmatpush1.bf16.msra.mxu0 %v9852
    %9872 = vmatprep.subr.bf16.mxu0 0
    %9873 = vmatpush1.bf16.msra.mxu0 %v9853
    %9874 = vmatprep.subr.bf16.mxu0 0
    %9875 = vmatpush1.bf16.msra.mxu0 %v9854
    %9876 = vmatprep.subr.bf16.mxu0 0
    %9877 = vmatpush1.bf16.msra.mxu0 %v9855
    %9878 = vmatprep.subr.bf16.mxu0 0
    %9879 = vmatpush1.bf16.msra.mxu0 %v9856
    %9880 = vmatprep.subr.bf16.mxu0 0
    %9881 = vmatpush1.bf16.msra.mxu0 %v9857
    %9882 = vmatprep.subr.bf16.mxu0 0
    %9883 = vmatpush1.bf16.msra.mxu0 0
    %9884 = vmatprep.subr.bf16.mxu0 0
    %9885 = vmatpush1.bf16.msra.mxu0 0
    %9886 = vmatprep.subr.bf16.mxu0 0
    %9887 = vmatpush1.bf16.msra.mxu0 0
    %9888 = vmatprep.subr.bf16.mxu0 0
    %9889 = vmatpush1.bf16.msra.mxu0 0
    %9890 = vmatprep.subr.bf16.mxu0 0
    %9891 = vmatpush1.bf16.msra.mxu0 0
    %9892 = vmatprep.subr.bf16.mxu0 0
    %9893 = vmatpush1.bf16.msra.mxu0 0
    %9894 = vmatprep.subr.bf16.mxu0 0
    %9895 = vmatpush1.bf16.msra.mxu0 0
    %9896 = vmatprep.subr.bf16.mxu0 0
    %9897 = vmatpush1.bf16.msra.mxu0 0
    %9898 = vmatprep.mubr.bf16.mxu0 0
    %9899 = vmatmul.mubr.bf16.gmra.mrb[0].mxu0 %v9800
    %v9900 = vpop.f32.mrb[0].mxu0
    %v9901 = vadd.f32 %v9817, %v9900
    %v9902 = vpop.f32.mrb[0].mxu0
    %v9903 = vpop.f32.mrb[0].mxu0
    %v9904 = vpop.f32.mrb[0].mxu0
    %9905 = vdwg.mxu0
    %v9906 = vmax.f32 %v9901, 0.0
    %v9907 = vpack.c.bf16 %v9906, %v9906
    %v9908 = vld [vmem:[#allocation17] sm:$0xf]
    %v9909 = vld [vmem:[#allocation17 + $0x4] sm:$0xf]
    %v9910 = vld [vmem:[#allocation17 + $0x8] sm:$0xf]
    %v9911 = vld [vmem:[#allocation17 + $0xc] sm:$0xf]
    %v9912 = vld [vmem:[#allocation17 + $0x10] sm:$0xf]
    %v9913 = vld [vmem:[#allocation17 + $0x14] sm:$0xf]
    %v9914 = vld [vmem:[#allocation17 + $0x18] sm:$0xf]
    %v9915 = vld [vmem:[#allocation17 + $0x1c] sm:$0xf]
    %v9916 = vld [vmem:[#allocation17 + $0x20] sm:$0xf]
    %v9917 = vld [vmem:[#allocation17 + $0x24] sm:$0xf]
    %v9918 = vld [vmem:[#allocation17 + $0x28] sm:$0xf]
    %v9919 = vld [vmem:[#allocation17 + $0x2c] sm:$0xf]
    %v9920 = vld [vmem:[#allocation17 + $0x30] sm:$0xf]
    %v9921 = vld [vmem:[#allocation17 + $0x34] sm:$0xf]
    %v9922 = vld [vmem:[#allocation17 + $0x38] sm:$0xf]
    %v9923 = vld [vmem:[#allocation17 + $0x3c] sm:$0xf]
    %v9924 = vld [vmem:[#allocation19 + $0x4] ss:$0 sm:$0xff]
    %v9941 = vunpack.c.l.b16 %v9908
    %v9942 = vunpack.c.l.b16 %v9909
    %v9943 = vunpack.c.l.b16 %v9910
    %v9944 = vunpack.c.l.b16 %v9911
    %v9945 = vunpack.c.l.b16 %v9912
    %v9946 = vunpack.c.l.b16 %v9913
    %v9947 = vunpack.c.l.b16 %v9914
    %v9948 = vunpack.c.l.b16 %v9915
    %v9949 = vunpack.c.l.b16 %v9916
    %v9950 = vunpack.c.l.b16 %v9917
    %v9951 = vunpack.c.l.b16 %v9918
    %v9952 = vunpack.c.l.b16 %v9919
    %v9953 = vunpack.c.l.b16 %v9920
    %v9954 = vunpack.c.l.b16 %v9921
    %v9955 = vunpack.c.l.b16 %v9922
    %v9956 = vunpack.c.l.b16 %v9923
    %v9957 = vpack.c.b16 %v9942, %v9941
    %v9958 = vpack.c.b16 %v9944, %v9943
    %v9959 = vpack.c.b16 %v9946, %v9945
    %v9960 = vpack.c.b16 %v9948, %v9947
    %v9961 = vpack.c.b16 %v9950, %v9949
    %v9962 = vpack.c.b16 %v9952, %v9951
    %v9963 = vpack.c.b16 %v9954, %v9953
    %v9964 = vpack.c.b16 %v9956, %v9955
    %9973 = vmatprep.subr.bf16.mxu0 0
    %9974 = vmatpush1.bf16.msra.mxu0 %v9957
    %9975 = vmatprep.subr.bf16.mxu0 0
    %9976 = vmatpush1.bf16.msra.mxu0 %v9958
    %9977 = vmatprep.subr.bf16.mxu0 0
    %9978 = vmatpush1.bf16.msra.mxu0 %v9959
    %9979 = vmatprep.subr.bf16.mxu0 0
    %9980 = vmatpush1.bf16.msra.mxu0 %v9960
    %9981 = vmatprep.subr.bf16.mxu0 0
    %9982 = vmatpush1.bf16.msra.mxu0 %v9961
    %9983 = vmatprep.subr.bf16.mxu0 0
    %9984 = vmatpush1.bf16.msra.mxu0 %v9962
    %9985 = vmatprep.subr.bf16.mxu0 0
    %9986 = vmatpush1.bf16.msra.mxu0 %v9963
    %9987 = vmatprep.subr.bf16.mxu0 0
    %9988 = vmatpush1.bf16.msra.mxu0 %v9964
    %9989 = vmatprep.subr.bf16.mxu0 0
    %9990 = vmatpush1.bf16.msra.mxu0 0
    %9991 = vmatprep.subr.bf16.mxu0 0
    %9992 = vmatpush1.bf16.msra.mxu0 0
    %9993 = vmatprep.subr.bf16.mxu0 0
    %9994 = vmatpush1.bf16.msra.mxu0 0
    %9995 = vmatprep.subr.bf16.mxu0 0
    %9996 = vmatpush1.bf16.msra.mxu0 0
    %9997 = vmatprep.subr.bf16.mxu0 0
    %9998 = vmatpush1.bf16.msra.mxu0 0
    %9999 = vmatprep.subr.bf16.mxu0 0
    %10000 = vmatpush1.bf16.msra.mxu0 0
    %10001 = vmatprep.subr.bf16.mxu0 0
    %10002 = vmatpush1.bf16.msra.mxu0 0
    %10003 = vmatprep.subr.bf16.mxu0 0
    %10004 = vmatpush1.bf16.msra.mxu0 0
    %10005 = vmatprep.mubr.bf16.mxu0 0
    %10006 = vmatmul.mubr.bf16.gmra.mrb[0].mxu0 %v9907
    %v10007 = vpop.f32.mrb[0].mxu0
    %v10008 = vadd.f32 %v9924, %v10007
    %v10009 = vpop.f32.mrb[0].mxu0
    %v10010 = vpop.f32.mrb[0].mxu0
    %v10011 = vpop.f32.mrb[0].mxu0
    %10012 = vdwg.mxu0
    %v10013 = vmax.f32 %v10008, 0.0
    %v10014 = vpack.c.bf16 %v10013, %v10013
    %10015 = vst [vmem:[#allocation20] sm:$0xf] %v10014
    // Predicated region
    $region90: #{tpu_custom_call.1} parent=1 // pred_check
      _
    $region91: #{tpu_custom_call.1} parent=1 // pred_check_branch
      %10017 = sbr.rel (0) target = $region93
    $region92: #{tpu_custom_call.1} parent=1 // pred_region
      %s10019 = ssub.s32 64, 64
      %10020 = vsyncadd [#allocation4], %s10019
      %s10022 = sshll.u32 [#allocation20], 4
      %s10023 = int_to_ptr.vmem [resolvable:$true] %s10022
      %10025 = dma.vmem_to_hbm [thread:$0]  %s10023, 64, %s11, [#allocation4]
    $region93: #{tpu_custom_call.1} parent=1 // pred_fallthru
      _
    // Predicated region
    $region94: #{tpu_custom_call.1} parent=1 // pred_check
      _
    $region95: #{tpu_custom_call.1} parent=1 // pred_check_branch
      %10027 = sbr.rel (0) target = $region97
    $region96: #{tpu_custom_call.1} parent=1 // pred_region
      %10028 = dma.done [#allocation4], 64
    $region97: #{tpu_custom_call.1} parent=1 // pred_fallthru
      _
    %10029 = vsyncpa [#allocation3], 1
    %10030 = vsyncpa [#allocation6], 1
    %10031 = vsyncpa [#allocation9], 1
    %10032 = vsyncpa [#allocation12], 1
    %10033 = vsyncpa [#allocation15], 1
    %10034 = vsyncpa [#allocation18], 1
    %10035 = vsyncpa [#allocation4], 1

</llo_original>
